<compile_context>
chip_gen: v7x
topology: tpu7x:2x2x1
jax: 0.10.0
libtpu: 0.0.40
codegen_flags: <defaults>
</compile_context>

<pallas_src>
import functools

import numpy as np
import jax
import jax.numpy as jnp
from jax import lax
from jax.experimental import pallas as pl
from jax.experimental.pallas import tpu as pltpu

BIG_NODE = 1e10   # (mask - 1) * 1e10   additive masks for nodes / roots / rules
BIG_RULE = 1e15   # (mask - 1) * 1e15   additive mask for pos-unary rules


def _crfcfg_kernel(L, N,
                   seqlen_ref,                       # SMEM (B,) int32 (scalar prefetch)
                   seq_h_ref, phrase_ref,            # (1,L,H), (1,L*L,H)
                   wp_ref, bp_ref,                   # (H,N), (1,N)  bias has posmask+mu folded
                   wns_ref, bns_ref,                 # (H,N+1), (1,N+1) fused [node|span] head
                   eu_ref,                           # (N,N)   exp(pos_unary - mu), [a, p]
                   exprule_ref,                      # (N,N,N) exp(rule - mr), [bl, br, a]
                   rootmask_ref,                     # (1,N)   additive root mask
                   logits_ref,                       # out (1,1,N)
                   chart_ref, node_ref, span_ref,    # scratch (L*L,N), (L*L,N), (L*L,1)
                   estack_ref):                      # scratch (L*N, N) per-diagonal E stack
    f32 = jnp.float32
    b = pl.program_id(0)

    # ---------- fused node|span head: one MXU pass over the phrase block ----------
    ph = phrase_ref[0]                                                      # (L*L, H)
    ns = jnp.dot(ph, wns_ref[...], preferred_element_type=f32) + bns_ref[...]
    node_ref[...] = ns[:, 0:N]                                              # (L*L, N)
    span_ref[...] = ns[:, N:N + 1]                                          # (L*L, 1)  (incl. +mr)

    # ---------- posnode head (bias already includes posnode mask + mu) ----------
    seq_h = seq_h_ref[0]                                                    # (L, H)
    posnode = jnp.dot(seq_h, wp_ref[...], preferred_element_type=f32) + bp_ref[...]

    # ---------- width-1 spans: per-row shifted logsumexp over POS symbols ----------
    mp = jnp.max(posnode, axis=1, keepdims=True)                            # (L, 1)
    ep = jnp.exp(posnode - mp)                                              # (L, N_p)
    epu = lax.dot_general(ep, eu_ref[...], (((1,), (1,)), ((), ())),
                          preferred_element_type=f32)                       # (L, N_a)
    prenode = node_ref[pl.ds(0, L, stride=L + 1), :]                        # diag rows -> (L, N)
    first_inner = prenode + mp + jnp.log(epu)                               # (L, N)
    for j in range(L):
        r = j * (L + 1)
        chart_ref[r:r + 1, :] = first_inner[j:j + 1, :]

    # ---------- CKY inside recursion, batched per diagonal ----------
    # TODO(synk): for masked grammars with fully-excluded cells the exp-shift gives
    # log(0) = -inf here where the reference yields a finite ~-1e10 score.
    for i in range(1, L):                    # span width = i + 1 words
        nspans = L - i
        ms_rows = []
        # TODO(synk): convert this inner j loop to lax.fori_loop with dynamic
        # pl.ds starts for production-size L to bound code size / vreg ranges.
        for j in range(nspans):
            e = j + i
            ls = j * (L + 1)                 # left children (j, j+k): contiguous rows
            left = chart_ref[ls:ls + i, :] + node_ref[ls:ls + i, :]          # (i, N) [k, bl]
            rs = (j + 1) * L + e             # right children (j+k+1, e): stride-L rows
            right = (chart_ref[pl.ds(rs, i, stride=L), :]
                     + node_ref[pl.ds(rs, i, stride=L), :])                  # (i, N) [k, br]
            ml = jnp.max(jnp.max(left, axis=1, keepdims=True), axis=0, keepdims=True)
            mg = jnp.max(jnp.max(right, axis=1, keepdims=True), axis=0, keepdims=True)
            el = jnp.exp(left - ml)
            er = jnp.exp(right - mg)
            # E[bl, br] = sum_k exp(left)[k, bl] * exp(right)[k, br]
            emat = lax.dot_general(el, er, (((0,), (0,)), ((), ())),
                                   preferred_element_type=f32)               # (N, N)
            estack_ref[j * N:(j + 1) * N, :] = emat
            ms_rows.append(ml + mg)                                          # (1, 1)
        ms = jnp.concatenate(ms_rows, axis=0)                                # (nspans, 1)

        # S[j, a] = sum_{bl, br} E_j[bl, br] * exp(rule)[bl, br, a]
        # (N matmuls per *diagonal* instead of N per cell; avoids an (N,N)->(1,N*N)
        #  value reshape that Mosaic may not support.)
        s_all = jnp.zeros((nspans, N), f32)
        for bl in range(N):
            e_bl = estack_ref[pl.ds(bl, nspans, stride=N), :]                # (nspans, N_br)
            s_all = s_all + jnp.dot(e_bl, exprule_ref[bl],
                                    preferred_element_type=f32)              # (nspans, N_a)

        node_diag = node_ref[pl.ds(i, nspans, stride=L + 1), :]              # (nspans, N)
        span_diag = span_ref[pl.ds(i, nspans, stride=L + 1), :]              # (nspans, 1)
        new_diag = ms + jnp.log(s_all) + node_diag + span_diag               # (nspans, N)
        for j in range(nspans):
            r = j * (L + 1) + i
            chart_ref[r:r + 1, :] = new_diag[j:j + 1, :]

    # ---------- read out span (0, seq_len - 1) ----------
    slen = seqlen_ref[b]
    logits_ref[0] = chart_ref[pl.ds(slen - 1, 1), :] + rootmask_ref[...]


def crfcfg_forward_pallas(seq_hiddens, phrase_hiddens, seq_masks, p):
    B, L, H = seq_hiddens.shape
    N = p["wp"].shape[1]
    seq_lens = jnp.sum(seq_masks, axis=-1).astype(jnp.int32)
    phrase_flat = phrase_hiddens.reshape(B, L * L, H)

    # ---- batch-invariant grammar preprocessing, hoisted out of the kernel ----
    pos_unary_eff = p["pos_unary_scores"] + (p["pos_unary_mask"] - 1.0) * BIG_RULE
    mu = jnp.max(pos_unary_eff)
    eu = jnp.exp(pos_unary_eff - mu)                                   # (N, N) [a, p]
    rule_eff = p["rule_scores"] + (p["rule_mask"] - 1.0) * BIG_NODE
    mr = jnp.max(rule_eff)
    exprule = jnp.exp(jnp.transpose(rule_eff, (1, 2, 0)) - mr)         # (N, N, N) [bl, br, a]

    # fold posnode mask + pos-unary shift into the posnode bias, rule shift into span bias
    bp_eff = (p["bp"] + (p["posnode_mask"] - 1.0) * BIG_NODE + mu).reshape(1, N)
    wns = jnp.concatenate([p["wn"], p["ws"]], axis=1)                  # (H, N+1) fused head
    bns = jnp.concatenate([p["bn"], p["bs"] + mr], axis=0).reshape(1, N + 1)
    rootmask_add = ((p["root_mask"] - 1.0) * BIG_NODE).reshape(1, N)

    # TODO(synk): for production sizes (large L, H) chunk the (1, L*L, H) phrase
    # block with a nested pltpu.emit_pipeline and cast head matmuls to bf16 to fit
    # v7x's 64 MiB VMEM; at these test sizes the whole block fits comfortably.
    grid_spec = pltpu.PrefetchScalarGridSpec(
        num_scalar_prefetch=1,
        grid=(B,),
        in_specs=[
            pl.BlockSpec((1, L, H), lambda b, sl: (b, 0, 0)),        # seq_hiddens
            pl.BlockSpec((1, L * L, H), lambda b, sl: (b, 0, 0)),    # phrase_hiddens (flat)
            pl.BlockSpec((H, N), lambda b, sl: (0, 0)),              # Wp
            pl.BlockSpec((1, N), lambda b, sl: (0, 0)),              # bp (+ posmask + mu)
            pl.BlockSpec((H, N + 1), lambda b, sl: (0, 0)),          # [Wn | Ws]
            pl.BlockSpec((1, N + 1), lambda b, sl: (0, 0)),          # [bn | bs + mr]
            pl.BlockSpec((N, N), lambda b, sl: (0, 0)),              # exp(pos_unary - mu)
            pl.BlockSpec((N, N, N), lambda b, sl: (0, 0, 0)),        # exp(rule - mr) [bl,br,a]
            pl.BlockSpec((1, N), lambda b, sl: (0, 0)),              # root mask (additive)
        ],
        out_specs=pl.BlockSpec((1, 1, N), lambda b, sl: (b, 0, 0)),
        scratch_shapes=[
            pltpu.VMEM((L * L, N), jnp.float32),     # inside chart (row-major flat)
            pltpu.VMEM((L * L, N), jnp.float32),     # node scores (flat)
            pltpu.VMEM((L * L, 1), jnp.float32),     # span scores (flat)
            pltpu.VMEM((L * N, N), jnp.float32),     # per-diagonal exp'd pair matrices
        ],
    )
    out = pl.pallas_call(
        functools.partial(_crfcfg_kernel, L, N),
        out_shape=jax.ShapeDtypeStruct((B, 1, N), jnp.float32),
        grid_spec=grid_spec,
        compiler_params=pltpu.CompilerParams(
            dimension_semantics=("parallel",),
            vmem_limit_bytes=48 * 1024 * 1024),
    )(seq_lens, seq_hiddens, phrase_flat,
      p["wp"], bp_eff, wns, bns, eu, exprule, rootmask_add)
    return out.reshape(B, N)


def crfcfg_reference(seq_hiddens, phrase_hiddens, seq_lens, p):
    """Pure-JAX transcription of CRFCFGMixin.forward (output_keys={'logits'})."""
    B, L, H = seq_hiddens.shape
    N = p["wp"].shape[1]
    posnode = (seq_hiddens @ p["wp"] + p["bp"]
               + (p["posnode_mask"][None, None, :] - 1.0) * BIG_NODE)
    node = jnp.einsum("blmh,hn->blmn", phrase_hiddens, p["wn"]) + p["bn"]
    span = jnp.einsum("blmh,ho->blmo", phrase_hiddens, p["ws"])[..., 0] + p["bs"][0]
    pos_unary = p["pos_unary_scores"] + (p["pos_unary_mask"] - 1.0) * BIG_RULE
    rule = p["rule_scores"] + (p["rule_mask"] - 1.0) * BIG_NODE
    idx = jnp.arange(L)
    prenode = node[:, idx, idx, :]
    first = jax.scipy.special.logsumexp(
        pos_unary[None, None] + prenode[..., :, None] + posnode[:, :, None, :], axis=-1)
    chart = jnp.zeros((B, L, L, N), jnp.float32).at[:, idx, idx, :].set(first)
    for i in range(1, L):
        for j in range(L - i):
            e = j + i
            left = chart[:, j, j:e, :]
            right = chart[:, j + 1:e + 1, e, :]
            pair = left[..., :, None] + right[..., None, :]
            nl = node[:, j, j:e, :]
            nr = node[:, j + 1:e + 1, e, :]
            ch = nl[..., :, None] + nr[..., None, :]
            t = (rule[None, None]
                 + (pair + ch)[:, :, None, :, :]
                 + node[:, j, e, :][:, None, :, None, None]
                 + span[:, j, e][:, None, None, None, None])
            new = jax.scipy.special.logsumexp(t, axis=(1, 3, 4))
            chart = chart.at[:, j, e, :].set(new)
    logits = (chart[jnp.arange(B), 0, seq_lens - 1, :]
              + (p["root_mask"][None, :] - 1.0) * BIG_NODE)
    return logits


if __name__ == "__main__":
    B, L, H, N = 2, 8, 32, 4
    key = jax.random.PRNGKey(0)
    ks = jax.random.split(key, 8)

    seq_hiddens = jax.random.normal(ks[0], (B, L, H), jnp.float32)
    phrase_hiddens = jax.random.normal(ks[1], (B, L, L, H), jnp.float32)
    lens = jnp.array([L, 5], jnp.int32)
    seq_masks = (jnp.arange(L)[None, :] < lens[:, None]).astype(jnp.int32)

    params = {
        # nn.Linear(hidden_dim, n_nodes) heads, stored as (H, N) so y = x @ W + b
        "wp": 0.1 * jax.random.normal(ks[2], (H, N), jnp.float32),
        "bp": 0.1 * jax.random.normal(ks[3], (N,), jnp.float32),
        "wn": 0.1 * jax.random.normal(ks[4], (H, N), jnp.float32),
        "bn": 0.1 * jax.random.normal(ks[5], (N,), jnp.float32),
        "ws": 0.1 * jax.random.normal(ks[6], (H, 1), jnp.float32),
        "bs": 0.1 * jax.random.normal(ks[7], (1,), jnp.float32),
        # grammar parameters are initialized to zeros (as in __init__),
        # default masks (roots/posnodes/rules=None) are all-ones.
        "rule_scores": jnp.zeros((N, N, N), jnp.float32),
        "pos_unary_scores": jnp.zeros((N, N), jnp.float32),
        "rule_mask": jnp.ones((N, N, N), jnp.float32),
        "pos_unary_mask": jnp.ones((N, N), jnp.float32),
        "root_mask": jnp.ones((N,), jnp.float32),
        "posnode_mask": jnp.ones((N,), jnp.float32),
    }

    logits = crfcfg_forward_pallas(seq_hiddens, phrase_hiddens, seq_masks, params)
    logits = jax.block_until_ready(logits)

    seq_lens = jnp.sum(seq_masks, axis=-1).astype(jnp.int32)
    ref = jax.block_until_ready(
        crfcfg_reference(seq_hiddens, phrase_hiddens, seq_lens, params))

    if not np.allclose(np.asarray(logits), np.asarray(ref), rtol=2e-3, atol=2e-3):
        raise AssertionError(
            f"mismatch:\nkernel=\n{np.asarray(logits)}\nref=\n{np.asarray(ref)}")
    print("KERNEL_OK")
</pallas_src>

<mosaic_0001>
module attributes {stable_mosaic.version = 11 : i64} {
  func.func @_crfcfg_kernel(%arg0: i32, %arg1: memref<2xi32, #tpu.memory_space<smem>>, %arg2: memref<1x8x32xf32, #tpu.memory_space<vmem>>, %arg3: memref<1x64x32xf32, #tpu.memory_space<vmem>>, %arg4: memref<32x4xf32, #tpu.memory_space<vmem>>, %arg5: memref<1x4xf32, #tpu.memory_space<vmem>>, %arg6: memref<32x5xf32, #tpu.memory_space<vmem>>, %arg7: memref<1x5xf32, #tpu.memory_space<vmem>>, %arg8: memref<4x4xf32, #tpu.memory_space<vmem>>, %arg9: memref<4x4x4xf32, #tpu.memory_space<vmem>>, %arg10: memref<1x4xf32, #tpu.memory_space<vmem>>, %arg11: memref<1x1x4xf32, #tpu.memory_space<vmem>>, %arg12: memref<64x4xf32, #tpu.memory_space<vmem>>, %arg13: memref<64x4xf32, #tpu.memory_space<vmem>>, %arg14: memref<64x1xf32, #tpu.memory_space<vmem>>, %arg15: memref<32x4xf32, #tpu.memory_space<vmem>>) attributes {dimension_semantics = [#tpu.dimension_semantics<parallel>], iteration_bounds = array<i64: 2>, scalar_prefetch = 1 : i64, scratch_operands = 4 : i64, tpu.core_type = #tpu.core_type<tc>, window_params = [{transform_indices = @transform_0, window_bounds = array<i64: 1, 8, 32>}, {transform_indices = @transform_1, window_bounds = array<i64: 1, 64, 32>}, {pipeline_mode = #tpu.pipeline_mode<synchronous>, transform_indices = @transform_2, window_bounds = array<i64: 32, 4>}, {pipeline_mode = #tpu.pipeline_mode<synchronous>, transform_indices = @transform_3, window_bounds = array<i64: 1, 4>}, {pipeline_mode = #tpu.pipeline_mode<synchronous>, transform_indices = @transform_4, window_bounds = array<i64: 32, 5>}, {pipeline_mode = #tpu.pipeline_mode<synchronous>, transform_indices = @transform_5, window_bounds = array<i64: 1, 5>}, {pipeline_mode = #tpu.pipeline_mode<synchronous>, transform_indices = @transform_6, window_bounds = array<i64: 4, 4>}, {pipeline_mode = #tpu.pipeline_mode<synchronous>, transform_indices = @transform_7, window_bounds = array<i64: 4, 4, 4>}, {pipeline_mode = #tpu.pipeline_mode<synchronous>, transform_indices = @transform_8, window_bounds = array<i64: 1, 4>}, {transform_indices = @transform_9, window_bounds = array<i64: 1, 1, 4>}]} {
    %c0 = arith.constant 0 : index
    %c0_0 = arith.constant 0 : index
    %c0_1 = arith.constant 0 : index
    %0 = vector.load %arg3[%c0, %c0_0, %c0_1] : memref<1x64x32xf32, #tpu.memory_space<vmem>>, vector<1x64x32xf32>
    %1 = vector.shape_cast %0 : vector<1x64x32xf32> to vector<64x32xf32>
    %c0_2 = arith.constant 0 : index
    %c0_3 = arith.constant 0 : index
    %2 = vector.load %arg6[%c0_2, %c0_3] : memref<32x5xf32, #tpu.memory_space<vmem>>, vector<32x5xf32>
    %cst = arith.constant dense<0.000000e+00> : vector<64x5xf32>
    %3 = tpu.matmul %1, %2, %cst {dimension_numbers = #tpu.dot_dimension_numbers<[1], [0], [0], [1], [0, 0, 1, 1], [], []>} : vector<64x32xf32>, vector<32x5xf32>, vector<64x5xf32> -> vector<64x5xf32>
    %c0_4 = arith.constant 0 : index
    %c0_5 = arith.constant 0 : index
    %4 = vector.load %arg7[%c0_4, %c0_5] : memref<1x5xf32, #tpu.memory_space<vmem>>, vector<1x5xf32>
    %5 = vector.broadcast %4 : vector<1x5xf32> to vector<64x5xf32>
    %6 = arith.addf %3, %5 : vector<64x5xf32>
    %7 = vector.extract_strided_slice %6 {offsets = [0, 0], sizes = [64, 4], strides = [1, 1]} : vector<64x5xf32> to vector<64x4xf32>
    %c0_6 = arith.constant 0 : index
    %c0_7 = arith.constant 0 : index
    %8 = vector.load %arg13[%c0_6, %c0_7] : memref<64x4xf32, #tpu.memory_space<vmem>>, vector<64x4xf32>
    tpu.vector_store %arg13[%c0_6, %c0_7], %7 {strides = array<i32>} : memref<64x4xf32, #tpu.memory_space<vmem>>, vector<64x4xf32>,
    %9 = vector.extract_strided_slice %6 {offsets = [0, 4], sizes = [64, 1], strides = [1, 1]} : vector<64x5xf32> to vector<64x1xf32>
    %c0_8 = arith.constant 0 : index
    %c0_9 = arith.constant 0 : index
    %10 = vector.load %arg14[%c0_8, %c0_9] : memref<64x1xf32, #tpu.memory_space<vmem>>, vector<64x1xf32>
    tpu.vector_store %arg14[%c0_8, %c0_9], %9 {strides = array<i32>} : memref<64x1xf32, #tpu.memory_space<vmem>>, vector<64x1xf32>,
    %c0_10 = arith.constant 0 : index
    %c0_11 = arith.constant 0 : index
    %c0_12 = arith.constant 0 : index
    %11 = vector.load %arg2[%c0_10, %c0_11, %c0_12] : memref<1x8x32xf32, #tpu.memory_space<vmem>>, vector<1x8x32xf32>
    %12 = vector.shape_cast %11 : vector<1x8x32xf32> to vector<8x32xf32>
    %c0_13 = arith.constant 0 : index
    %c0_14 = arith.constant 0 : index
    %13 = vector.load %arg4[%c0_13, %c0_14] : memref<32x4xf32, #tpu.memory_space<vmem>>, vector<32x4xf32>
    %cst_15 = arith.constant dense<0.000000e+00> : vector<8x4xf32>
    %14 = tpu.matmul %12, %13, %cst_15 {dimension_numbers = #tpu.dot_dimension_numbers<[1], [0], [0], [1], [0, 0, 1, 1], [], []>} : vector<8x32xf32>, vector<32x4xf32>, vector<8x4xf32> -> vector<8x4xf32>
    %c0_16 = arith.constant 0 : index
    %c0_17 = arith.constant 0 : index
    %15 = vector.load %arg5[%c0_16, %c0_17] : memref<1x4xf32, #tpu.memory_space<vmem>>, vector<1x4xf32>
    %16 = vector.broadcast %15 : vector<1x4xf32> to vector<8x4xf32>
    %17 = arith.addf %14, %16 : vector<8x4xf32>
    %cst_18 = arith.constant dense<0xFF800000> : vector<8xf32>
    %18 = vector.multi_reduction <maximumf>, %17, %cst_18 [1] : vector<8x4xf32> to vector<8xf32>
    %19 = vector.shape_cast %18 : vector<8xf32> to vector<8x1xf32>
    %20 = vector.broadcast %19 : vector<8x1xf32> to vector<8x4xf32>
    %21 = arith.subf %17, %20 : vector<8x4xf32>
    %22 = math.exp %21 : vector<8x4xf32>
    %c0_19 = arith.constant 0 : index
    %c0_20 = arith.constant 0 : index
    %23 = vector.load %arg8[%c0_19, %c0_20] : memref<4x4xf32, #tpu.memory_space<vmem>>, vector<4x4xf32>
    %cst_21 = arith.constant dense<0.000000e+00> : vector<8x4xf32>
    %24 = tpu.matmul %22, %23, %cst_21 {dimension_numbers = #tpu.dot_dimension_numbers<[1], [1], [0], [0], [0, 0, 1, 0], [], []>} : vector<8x4xf32>, vector<4x4xf32>, vector<8x4xf32> -> vector<8x4xf32>
    %c0_22 = arith.constant 0 : index
    %c0_23 = arith.constant 0 : index
    %25 = tpu.strided_load %arg13[%c0_22, %c0_23] {strides = array<i32: 9, 1>} : memref<64x4xf32, #tpu.memory_space<vmem>>, vector<8x4xf32>
    %26 = vector.broadcast %19 : vector<8x1xf32> to vector<8x4xf32>
    %27 = arith.addf %25, %26 : vector<8x4xf32>
    %28 = math.log %24 : vector<8x4xf32>
    %29 = arith.addf %27, %28 : vector<8x4xf32>
    %30 = vector.extract_strided_slice %29 {offsets = [0, 0], sizes = [1, 4], strides = [1, 1]} : vector<8x4xf32> to vector<1x4xf32>
    %c0_24 = arith.constant 0 : index
    %c0_25 = arith.constant 0 : index
    %31 = vector.load %arg12[%c0_24, %c0_25] : memref<64x4xf32, #tpu.memory_space<vmem>>, vector<1x4xf32>
    tpu.vector_store %arg12[%c0_24, %c0_25], %30 {strides = array<i32>} : memref<64x4xf32, #tpu.memory_space<vmem>>, vector<1x4xf32>,
    %32 = vector.extract_strided_slice %29 {offsets = [1, 0], sizes = [1, 4], strides = [1, 1]} : vector<8x4xf32> to vector<1x4xf32>
    %c9 = arith.constant 9 : index
    %c0_26 = arith.constant 0 : index
    %33 = vector.load %arg12[%c9, %c0_26] : memref<64x4xf32, #tpu.memory_space<vmem>>, vector<1x4xf32>
    tpu.vector_store %arg12[%c9, %c0_26], %32 {strides = array<i32>} : memref<64x4xf32, #tpu.memory_space<vmem>>, vector<1x4xf32>,
    %34 = vector.extract_strided_slice %29 {offsets = [2, 0], sizes = [1, 4], strides = [1, 1]} : vector<8x4xf32> to vector<1x4xf32>
    %c18 = arith.constant 18 : index
    %c0_27 = arith.constant 0 : index
    %35 = vector.load %arg12[%c18, %c0_27] : memref<64x4xf32, #tpu.memory_space<vmem>>, vector<1x4xf32>
    tpu.vector_store %arg12[%c18, %c0_27], %34 {strides = array<i32>} : memref<64x4xf32, #tpu.memory_space<vmem>>, vector<1x4xf32>,
    %36 = vector.extract_strided_slice %29 {offsets = [3, 0], sizes = [1, 4], strides = [1, 1]} : vector<8x4xf32> to vector<1x4xf32>
    %c27 = arith.constant 27 : index
    %c0_28 = arith.constant 0 : index
    %37 = vector.load %arg12[%c27, %c0_28] : memref<64x4xf32, #tpu.memory_space<vmem>>, vector<1x4xf32>
    tpu.vector_store %arg12[%c27, %c0_28], %36 {strides = array<i32>} : memref<64x4xf32, #tpu.memory_space<vmem>>, vector<1x4xf32>,
    %38 = vector.extract_strided_slice %29 {offsets = [4, 0], sizes = [1, 4], strides = [1, 1]} : vector<8x4xf32> to vector<1x4xf32>
    %c36 = arith.constant 36 : index
    %c0_29 = arith.constant 0 : index
    %39 = vector.load %arg12[%c36, %c0_29] : memref<64x4xf32, #tpu.memory_space<vmem>>, vector<1x4xf32>
    tpu.vector_store %arg12[%c36, %c0_29], %38 {strides = array<i32>} : memref<64x4xf32, #tpu.memory_space<vmem>>, vector<1x4xf32>,
    %40 = vector.extract_strided_slice %29 {offsets = [5, 0], sizes = [1, 4], strides = [1, 1]} : vector<8x4xf32> to vector<1x4xf32>
    %c45 = arith.constant 45 : index
    %c0_30 = arith.constant 0 : index
    %41 = vector.load %arg12[%c45, %c0_30] : memref<64x4xf32, #tpu.memory_space<vmem>>, vector<1x4xf32>
    tpu.vector_store %arg12[%c45, %c0_30], %40 {strides = array<i32>} : memref<64x4xf32, #tpu.memory_space<vmem>>, vector<1x4xf32>,
    %42 = vector.extract_strided_slice %29 {offsets = [6, 0], sizes = [1, 4], strides = [1, 1]} : vector<8x4xf32> to vector<1x4xf32>
    %c54 = arith.constant 54 : index
    %c0_31 = arith.constant 0 : index
    %43 = vector.load %arg12[%c54, %c0_31] : memref<64x4xf32, #tpu.memory_space<vmem>>, vector<1x4xf32>
    tpu.vector_store %arg12[%c54, %c0_31], %42 {strides = array<i32>} : memref<64x4xf32, #tpu.memory_space<vmem>>, vector<1x4xf32>,
    %44 = vector.extract_strided_slice %29 {offsets = [7, 0], sizes = [1, 4], strides = [1, 1]} : vector<8x4xf32> to vector<1x4xf32>
    %c63 = arith.constant 63 : index
    %c0_32 = arith.constant 0 : index
    %45 = vector.load %arg12[%c63, %c0_32] : memref<64x4xf32, #tpu.memory_space<vmem>>, vector<1x4xf32>
    tpu.vector_store %arg12[%c63, %c0_32], %44 {strides = array<i32>} : memref<64x4xf32, #tpu.memory_space<vmem>>, vector<1x4xf32>,
    %c0_33 = arith.constant 0 : index
    %c0_34 = arith.constant 0 : index
    %46 = vector.load %arg12[%c0_33, %c0_34] : memref<64x4xf32, #tpu.memory_space<vmem>>, vector<1x4xf32>
    %c0_35 = arith.constant 0 : index
    %c0_36 = arith.constant 0 : index
    %47 = vector.load %arg13[%c0_35, %c0_36] : memref<64x4xf32, #tpu.memory_space<vmem>>, vector<1x4xf32>
    %48 = arith.addf %46, %47 : vector<1x4xf32>
    %c9_37 = arith.constant 9 : index
    %c0_38 = arith.constant 0 : index
    %49 = tpu.strided_load %arg12[%c9_37, %c0_38] {strides = array<i32: 8, 1>} : memref<64x4xf32, #tpu.memory_space<vmem>>, vector<1x4xf32>
    %c9_39 = arith.constant 9 : index
    %c0_40 = arith.constant 0 : index
    %50 = tpu.strided_load %arg13[%c9_39, %c0_40] {strides = array<i32: 8, 1>} : memref<64x4xf32, #tpu.memory_space<vmem>>, vector<1x4xf32>
    %51 = arith.addf %49, %50 : vector<1x4xf32>
    %cst_41 = arith.constant dense<0xFF800000> : vector<1xf32>
    %52 = vector.multi_reduction <maximumf>, %48, %cst_41 [1] : vector<1x4xf32> to vector<1xf32>
    %53 = vector.shape_cast %52 : vector<1xf32> to vector<1x1xf32>
    %cst_42 = arith.constant dense<0xFF800000> : vector<1xf32>
    %54 = vector.multi_reduction <maximumf>, %53, %cst_42 [0] : vector<1x1xf32> to vector<1xf32>
    %55 = vector.shape_cast %54 : vector<1xf32> to vector<1x1xf32>
    %cst_43 = arith.constant dense<0xFF800000> : vector<1xf32>
    %56 = vector.multi_reduction <maximumf>, %51, %cst_43 [1] : vector<1x4xf32> to vector<1xf32>
    %57 = vector.shape_cast %56 : vector<1xf32> to vector<1x1xf32>
    %cst_44 = arith.constant dense<0xFF800000> : vector<1xf32>
    %58 = vector.multi_reduction <maximumf>, %57, %cst_44 [0] : vector<1x1xf32> to vector<1xf32>
    %59 = vector.shape_cast %58 : vector<1xf32> to vector<1x1xf32>
    %60 = vector.broadcast %55 : vector<1x1xf32> to vector<1x4xf32>
    %61 = arith.subf %48, %60 : vector<1x4xf32>
    %62 = math.exp %61 : vector<1x4xf32>
    %63 = vector.broadcast %59 : vector<1x1xf32> to vector<1x4xf32>
    %64 = arith.subf %51, %63 : vector<1x4xf32>
    %65 = math.exp %64 : vector<1x4xf32>
    %cst_45 = arith.constant dense<0.000000e+00> : vector<4x4xf32>
    %66 = tpu.matmul %62, %65, %cst_45 {dimension_numbers = #tpu.dot_dimension_numbers<[0], [0], [1], [1], [0, 1, 1, 1], [], []>} : vector<1x4xf32>, vector<1x4xf32>, vector<4x4xf32> -> vector<4x4xf32>
    %c0_46 = arith.constant 0 : index
    %c0_47 = arith.constant 0 : index
    %67 = vector.load %arg15[%c0_46, %c0_47] : memref<32x4xf32, #tpu.memory_space<vmem>>, vector<4x4xf32>
    tpu.vector_store %arg15[%c0_46, %c0_47], %66 {strides = array<i32>} : memref<32x4xf32, #tpu.memory_space<vmem>>, vector<4x4xf32>,
    %68 = arith.addf %55, %59 : vector<1x1xf32>
    %c9_48 = arith.constant 9 : index
    %c0_49 = arith.constant 0 : index
    %69 = vector.load %arg12[%c9_48, %c0_49] : memref<64x4xf32, #tpu.memory_space<vmem>>, vector<1x4xf32>
    %c9_50 = arith.constant 9 : index
    %c0_51 = arith.constant 0 : index
    %70 = vector.load %arg13[%c9_50, %c0_51] : memref<64x4xf32, #tpu.memory_space<vmem>>, vector<1x4xf32>
    %71 = arith.addf %69, %70 : vector<1x4xf32>
    %c18_52 = arith.constant 18 : index
    %c0_53 = arith.constant 0 : index
    %72 = tpu.strided_load %arg12[%c18_52, %c0_53] {strides = array<i32: 8, 1>} : memref<64x4xf32, #tpu.memory_space<vmem>>, vector<1x4xf32>
    %c18_54 = arith.constant 18 : index
    %c0_55 = arith.constant 0 : index
    %73 = tpu.strided_load %arg13[%c18_54, %c0_55] {strides = array<i32: 8, 1>} : memref<64x4xf32, #tpu.memory_space<vmem>>, vector<1x4xf32>
    %74 = arith.addf %72, %73 : vector<1x4xf32>
    %cst_56 = arith.constant dense<0xFF800000> : vector<1xf32>
    %75 = vector.multi_reduction <maximumf>, %71, %cst_56 [1] : vector<1x4xf32> to vector<1xf32>
    %76 = vector.shape_cast %75 : vector<1xf32> to vector<1x1xf32>
    %cst_57 = arith.constant dense<0xFF800000> : vector<1xf32>
    %77 = vector.multi_reduction <maximumf>, %76, %cst_57 [0] : vector<1x1xf32> to vector<1xf32>
    %78 = vector.shape_cast %77 : vector<1xf32> to vector<1x1xf32>
    %cst_58 = arith.constant dense<0xFF800000> : vector<1xf32>
    %79 = vector.multi_reduction <maximumf>, %74, %cst_58 [1] : vector<1x4xf32> to vector<1xf32>
    %80 = vector.shape_cast %79 : vector<1xf32> to vector<1x1xf32>
    %cst_59 = arith.constant dense<0xFF800000> : vector<1xf32>
    %81 = vector.multi_reduction <maximumf>, %80, %cst_59 [0] : vector<1x1xf32> to vector<1xf32>
    %82 = vector.shape_cast %81 : vector<1xf32> to vector<1x1xf32>
    %83 = vector.broadcast %78 : vector<1x1xf32> to vector<1x4xf32>
    %84 = arith.subf %71, %83 : vector<1x4xf32>
    %85 = math.exp %84 : vector<1x4xf32>
    %86 = vector.broadcast %82 : vector<1x1xf32> to vector<1x4xf32>
    %87 = arith.subf %74, %86 : vector<1x4xf32>
    %88 = math.exp %87 : vector<1x4xf32>
    %cst_60 = arith.constant dense<0.000000e+00> : vector<4x4xf32>
    %89 = tpu.matmul %85, %88, %cst_60 {dimension_numbers = #tpu.dot_dimension_numbers<[0], [0], [1], [1], [0, 1, 1, 1], [], []>} : vector<1x4xf32>, vector<1x4xf32>, vector<4x4xf32> -> vector<4x4xf32>
    %c4 = arith.constant 4 : index
    %c0_61 = arith.constant 0 : index
    %90 = vector.load %arg15[%c4, %c0_61] : memref<32x4xf32, #tpu.memory_space<vmem>>, vector<4x4xf32>
    tpu.vector_store %arg15[%c4, %c0_61], %89 {strides = array<i32>} : memref<32x4xf32, #tpu.memory_space<vmem>>, vector<4x4xf32>,
    %91 = arith.addf %78, %82 : vector<1x1xf32>
    %c18_62 = arith.constant 18 : index
    %c0_63 = arith.constant 0 : index
    %92 = vector.load %arg12[%c18_62, %c0_63] : memref<64x4xf32, #tpu.memory_space<vmem>>, vector<1x4xf32>
    %c18_64 = arith.constant 18 : index
    %c0_65 = arith.constant 0 : index
    %93 = vector.load %arg13[%c18_64, %c0_65] : memref<64x4xf32, #tpu.memory_space<vmem>>, vector<1x4xf32>
    %94 = arith.addf %92, %93 : vector<1x4xf32>
    %c27_66 = arith.constant 27 : index
    %c0_67 = arith.constant 0 : index
    %95 = tpu.strided_load %arg12[%c27_66, %c0_67] {strides = array<i32: 8, 1>} : memref<64x4xf32, #tpu.memory_space<vmem>>, vector<1x4xf32>
    %c27_68 = arith.constant 27 : index
    %c0_69 = arith.constant 0 : index
    %96 = tpu.strided_load %arg13[%c27_68, %c0_69] {strides = array<i32: 8, 1>} : memref<64x4xf32, #tpu.memory_space<vmem>>, vector<1x4xf32>
    %97 = arith.addf %95, %96 : vector<1x4xf32>
    %cst_70 = arith.constant dense<0xFF800000> : vector<1xf32>
    %98 = vector.multi_reduction <maximumf>, %94, %cst_70 [1] : vector<1x4xf32> to vector<1xf32>
    %99 = vector.shape_cast %98 : vector<1xf32> to vector<1x1xf32>
    %cst_71 = arith.constant dense<0xFF800000> : vector<1xf32>
    %100 = vector.multi_reduction <maximumf>, %99, %cst_71 [0] : vector<1x1xf32> to vector<1xf32>
    %101 = vector.shape_cast %100 : vector<1xf32> to vector<1x1xf32>
    %cst_72 = arith.constant dense<0xFF800000> : vector<1xf32>
    %102 = vector.multi_reduction <maximumf>, %97, %cst_72 [1] : vector<1x4xf32> to vector<1xf32>
    %103 = vector.shape_cast %102 : vector<1xf32> to vector<1x1xf32>
    %cst_73 = arith.constant dense<0xFF800000> : vector<1xf32>
    %104 = vector.multi_reduction <maximumf>, %103, %cst_73 [0] : vector<1x1xf32> to vector<1xf32>
    %105 = vector.shape_cast %104 : vector<1xf32> to vector<1x1xf32>
    %106 = vector.broadcast %101 : vector<1x1xf32> to vector<1x4xf32>
    %107 = arith.subf %94, %106 : vector<1x4xf32>
    %108 = math.exp %107 : vector<1x4xf32>
    %109 = vector.broadcast %105 : vector<1x1xf32> to vector<1x4xf32>
    %110 = arith.subf %97, %109 : vector<1x4xf32>
    %111 = math.exp %110 : vector<1x4xf32>
    %cst_74 = arith.constant dense<0.000000e+00> : vector<4x4xf32>
    %112 = tpu.matmul %108, %111, %cst_74 {dimension_numbers = #tpu.dot_dimension_numbers<[0], [0], [1], [1], [0, 1, 1, 1], [], []>} : vector<1x4xf32>, vector<1x4xf32>, vector<4x4xf32> -> vector<4x4xf32>
    %c8 = arith.constant 8 : index
    %c0_75 = arith.constant 0 : index
    %113 = vector.load %arg15[%c8, %c0_75] : memref<32x4xf32, #tpu.memory_space<vmem>>, vector<4x4xf32>
    tpu.vector_store %arg15[%c8, %c0_75], %112 {strides = array<i32>} : memref<32x4xf32, #tpu.memory_space<vmem>>, vector<4x4xf32>,
    %114 = arith.addf %101, %105 : vector<1x1xf32>
    %c27_76 = arith.constant 27 : index
    %c0_77 = arith.constant 0 : index
    %115 = vector.load %arg12[%c27_76, %c0_77] : memref<64x4xf32, #tpu.memory_space<vmem>>, vector<1x4xf32>
    %c27_78 = arith.constant 27 : index
    %c0_79 = arith.constant 0 : index
    %116 = vector.load %arg13[%c27_78, %c0_79] : memref<64x4xf32, #tpu.memory_space<vmem>>, vector<1x4xf32>
    %117 = arith.addf %115, %116 : vector<1x4xf32>
    %c36_80 = arith.constant 36 : index
    %c0_81 = arith.constant 0 : index
    %118 = tpu.strided_load %arg12[%c36_80, %c0_81] {strides = array<i32: 8, 1>} : memref<64x4xf32, #tpu.memory_space<vmem>>, vector<1x4xf32>
    %c36_82 = arith.constant 36 : index
    %c0_83 = arith.constant 0 : index
    %119 = tpu.strided_load %arg13[%c36_82, %c0_83] {strides = array<i32: 8, 1>} : memref<64x4xf32, #tpu.memory_space<vmem>>, vector<1x4xf32>
    %120 = arith.addf %118, %119 : vector<1x4xf32>
    %cst_84 = arith.constant dense<0xFF800000> : vector<1xf32>
    %121 = vector.multi_reduction <maximumf>, %117, %cst_84 [1] : vector<1x4xf32> to vector<1xf32>
    %122 = vector.shape_cast %121 : vector<1xf32> to vector<1x1xf32>
    %cst_85 = arith.constant dense<0xFF800000> : vector<1xf32>
    %123 = vector.multi_reduction <maximumf>, %122, %cst_85 [0] : vector<1x1xf32> to vector<1xf32>
    %124 = vector.shape_cast %123 : vector<1xf32> to vector<1x1xf32>
    %cst_86 = arith.constant dense<0xFF800000> : vector<1xf32>
    %125 = vector.multi_reduction <maximumf>, %120, %cst_86 [1] : vector<1x4xf32> to vector<1xf32>
    %126 = vector.shape_cast %125 : vector<1xf32> to vector<1x1xf32>
    %cst_87 = arith.constant dense<0xFF800000> : vector<1xf32>
    %127 = vector.multi_reduction <maximumf>, %126, %cst_87 [0] : vector<1x1xf32> to vector<1xf32>
    %128 = vector.shape_cast %127 : vector<1xf32> to vector<1x1xf32>
    %129 = vector.broadcast %124 : vector<1x1xf32> to vector<1x4xf32>
    %130 = arith.subf %117, %129 : vector<1x4xf32>
    %131 = math.exp %130 : vector<1x4xf32>
    %132 = vector.broadcast %128 : vector<1x1xf32> to vector<1x4xf32>
    %133 = arith.subf %120, %132 : vector<1x4xf32>
    %134 = math.exp %133 : vector<1x4xf32>
    %cst_88 = arith.constant dense<0.000000e+00> : vector<4x4xf32>
    %135 = tpu.matmul %131, %134, %cst_88 {dimension_numbers = #tpu.dot_dimension_numbers<[0], [0], [1], [1], [0, 1, 1, 1], [], []>} : vector<1x4xf32>, vector<1x4xf32>, vector<4x4xf32> -> vector<4x4xf32>
    %c12 = arith.constant 12 : index
    %c0_89 = arith.constant 0 : index
    %136 = vector.load %arg15[%c12, %c0_89] : memref<32x4xf32, #tpu.memory_space<vmem>>, vector<4x4xf32>
    tpu.vector_store %arg15[%c12, %c0_89], %135 {strides = array<i32>} : memref<32x4xf32, #tpu.memory_space<vmem>>, vector<4x4xf32>,
    %137 = arith.addf %124, %128 : vector<1x1xf32>
    %c36_90 = arith.constant 36 : index
    %c0_91 = arith.constant 0 : index
    %138 = vector.load %arg12[%c36_90, %c0_91] : memref<64x4xf32, #tpu.memory_space<vmem>>, vector<1x4xf32>
    %c36_92 = arith.constant 36 : index
    %c0_93 = arith.constant 0 : index
    %139 = vector.load %arg13[%c36_92, %c0_93] : memref<64x4xf32, #tpu.memory_space<vmem>>, vector<1x4xf32>
    %140 = arith.addf %138, %139 : vector<1x4xf32>
    %c45_94 = arith.constant 45 : index
    %c0_95 = arith.constant 0 : index
    %141 = tpu.strided_load %arg12[%c45_94, %c0_95] {strides = array<i32: 8, 1>} : memref<64x4xf32, #tpu.memory_space<vmem>>, vector<1x4xf32>
    %c45_96 = arith.constant 45 : index
    %c0_97 = arith.constant 0 : index
    %142 = tpu.strided_load %arg13[%c45_96, %c0_97] {strides = array<i32: 8, 1>} : memref<64x4xf32, #tpu.memory_space<vmem>>, vector<1x4xf32>
    %143 = arith.addf %141, %142 : vector<1x4xf32>
    %cst_98 = arith.constant dense<0xFF800000> : vector<1xf32>
    %144 = vector.multi_reduction <maximumf>, %140, %cst_98 [1] : vector<1x4xf32> to vector<1xf32>
    %145 = vector.shape_cast %144 : vector<1xf32> to vector<1x1xf32>
    %cst_99 = arith.constant dense<0xFF800000> : vector<1xf32>
    %146 = vector.multi_reduction <maximumf>, %145, %cst_99 [0] : vector<1x1xf32> to vector<1xf32>
    %147 = vector.shape_cast %146 : vector<1xf32> to vector<1x1xf32>
    %cst_100 = arith.constant dense<0xFF800000> : vector<1xf32>
    %148 = vector.multi_reduction <maximumf>, %143, %cst_100 [1] : vector<1x4xf32> to vector<1xf32>
    %149 = vector.shape_cast %148 : vector<1xf32> to vector<1x1xf32>
    %cst_101 = arith.constant dense<0xFF800000> : vector<1xf32>
    %150 = vector.multi_reduction <maximumf>, %149, %cst_101 [0] : vector<1x1xf32> to vector<1xf32>
    %151 = vector.shape_cast %150 : vector<1xf32> to vector<1x1xf32>
    %152 = vector.broadcast %147 : vector<1x1xf32> to vector<1x4xf32>
    %153 = arith.subf %140, %152 : vector<1x4xf32>
    %154 = math.exp %153 : vector<1x4xf32>
    %155 = vector.broadcast %151 : vector<1x1xf32> to vector<1x4xf32>
    %156 = arith.subf %143, %155 : vector<1x4xf32>
    %157 = math.exp %156 : vector<1x4xf32>
    %cst_102 = arith.constant dense<0.000000e+00> : vector<4x4xf32>
    %158 = tpu.matmul %154, %157, %cst_102 {dimension_numbers = #tpu.dot_dimension_numbers<[0], [0], [1], [1], [0, 1, 1, 1], [], []>} : vector<1x4xf32>, vector<1x4xf32>, vector<4x4xf32> -> vector<4x4xf32>
    %c16 = arith.constant 16 : index
    %c0_103 = arith.constant 0 : index
    %159 = vector.load %arg15[%c16, %c0_103] : memref<32x4xf32, #tpu.memory_space<vmem>>, vector<4x4xf32>
    tpu.vector_store %arg15[%c16, %c0_103], %158 {strides = array<i32>} : memref<32x4xf32, #tpu.memory_space<vmem>>, vector<4x4xf32>,
    %160 = arith.addf %147, %151 : vector<1x1xf32>
    %c45_104 = arith.constant 45 : index
    %c0_105 = arith.constant 0 : index
    %161 = vector.load %arg12[%c45_104, %c0_105] : memref<64x4xf32, #tpu.memory_space<vmem>>, vector<1x4xf32>
    %c45_106 = arith.constant 45 : index
    %c0_107 = arith.constant 0 : index
    %162 = vector.load %arg13[%c45_106, %c0_107] : memref<64x4xf32, #tpu.memory_space<vmem>>, vector<1x4xf32>
    %163 = arith.addf %161, %162 : vector<1x4xf32>
    %c54_108 = arith.constant 54 : index
    %c0_109 = arith.constant 0 : index
    %164 = tpu.strided_load %arg12[%c54_108, %c0_109] {strides = array<i32: 8, 1>} : memref<64x4xf32, #tpu.memory_space<vmem>>, vector<1x4xf32>
    %c54_110 = arith.constant 54 : index
    %c0_111 = arith.constant 0 : index
    %165 = tpu.strided_load %arg13[%c54_110, %c0_111] {strides = array<i32: 8, 1>} : memref<64x4xf32, #tpu.memory_space<vmem>>, vector<1x4xf32>
    %166 = arith.addf %164, %165 : vector<1x4xf32>
    %cst_112 = arith.constant dense<0xFF800000> : vector<1xf32>
    %167 = vector.multi_reduction <maximumf>, %163, %cst_112 [1] : vector<1x4xf32> to vector<1xf32>
    %168 = vector.shape_cast %167 : vector<1xf32> to vector<1x1xf32>
    %cst_113 = arith.constant dense<0xFF800000> : vector<1xf32>
    %169 = vector.multi_reduction <maximumf>, %168, %cst_113 [0] : vector<1x1xf32> to vector<1xf32>
    %170 = vector.shape_cast %169 : vector<1xf32> to vector<1x1xf32>
    %cst_114 = arith.constant dense<0xFF800000> : vector<1xf32>
    %171 = vector.multi_reduction <maximumf>, %166, %cst_114 [1] : vector<1x4xf32> to vector<1xf32>
    %172 = vector.shape_cast %171 : vector<1xf32> to vector<1x1xf32>
    %cst_115 = arith.constant dense<0xFF800000> : vector<1xf32>
    %173 = vector.multi_reduction <maximumf>, %172, %cst_115 [0] : vector<1x1xf32> to vector<1xf32>
    %174 = vector.shape_cast %173 : vector<1xf32> to vector<1x1xf32>
    %175 = vector.broadcast %170 : vector<1x1xf32> to vector<1x4xf32>
    %176 = arith.subf %163, %175 : vector<1x4xf32>
    %177 = math.exp %176 : vector<1x4xf32>
    %178 = vector.broadcast %174 : vector<1x1xf32> to vector<1x4xf32>
    %179 = arith.subf %166, %178 : vector<1x4xf32>
    %180 = math.exp %179 : vector<1x4xf32>
    %cst_116 = arith.constant dense<0.000000e+00> : vector<4x4xf32>
    %181 = tpu.matmul %177, %180, %cst_116 {dimension_numbers = #tpu.dot_dimension_numbers<[0], [0], [1], [1], [0, 1, 1, 1], [], []>} : vector<1x4xf32>, vector<1x4xf32>, vector<4x4xf32> -> vector<4x4xf32>
    %c20 = arith.constant 20 : index
    %c0_117 = arith.constant 0 : index
    %182 = vector.load %arg15[%c20, %c0_117] : memref<32x4xf32, #tpu.memory_space<vmem>>, vector<4x4xf32>
    tpu.vector_store %arg15[%c20, %c0_117], %181 {strides = array<i32>} : memref<32x4xf32, #tpu.memory_space<vmem>>, vector<4x4xf32>,
    %183 = arith.addf %170, %174 : vector<1x1xf32>
    %c54_118 = arith.constant 54 : index
    %c0_119 = arith.constant 0 : index
    %184 = vector.load %arg12[%c54_118, %c0_119] : memref<64x4xf32, #tpu.memory_space<vmem>>, vector<1x4xf32>
    %c54_120 = arith.constant 54 : index
    %c0_121 = arith.constant 0 : index
    %185 = vector.load %arg13[%c54_120, %c0_121] : memref<64x4xf32, #tpu.memory_space<vmem>>, vector<1x4xf32>
    %186 = arith.addf %184, %185 : vector<1x4xf32>
    %c63_122 = arith.constant 63 : index
    %c0_123 = arith.constant 0 : index
    %187 = tpu.strided_load %arg12[%c63_122, %c0_123] {strides = array<i32: 8, 1>} : memref<64x4xf32, #tpu.memory_space<vmem>>, vector<1x4xf32>
    %c63_124 = arith.constant 63 : index
    %c0_125 = arith.constant 0 : index
    %188 = tpu.strided_load %arg13[%c63_124, %c0_125] {strides = array<i32: 8, 1>} : memref<64x4xf32, #tpu.memory_space<vmem>>, vector<1x4xf32>
    %189 = arith.addf %187, %188 : vector<1x4xf32>
    %cst_126 = arith.constant dense<0xFF800000> : vector<1xf32>
    %190 = vector.multi_reduction <maximumf>, %186, %cst_126 [1] : vector<1x4xf32> to vector<1xf32>
    %191 = vector.shape_cast %190 : vector<1xf32> to vector<1x1xf32>
    %cst_127 = arith.constant dense<0xFF800000> : vector<1xf32>
    %192 = vector.multi_reduction <maximumf>, %191, %cst_127 [0] : vector<1x1xf32> to vector<1xf32>
    %193 = vector.shape_cast %192 : vector<1xf32> to vector<1x1xf32>
    %cst_128 = arith.constant dense<0xFF800000> : vector<1xf32>
    %194 = vector.multi_reduction <maximumf>, %189, %cst_128 [1] : vector<1x4xf32> to vector<1xf32>
    %195 = vector.shape_cast %194 : vector<1xf32> to vector<1x1xf32>
    %cst_129 = arith.constant dense<0xFF800000> : vector<1xf32>
    %196 = vector.multi_reduction <maximumf>, %195, %cst_129 [0] : vector<1x1xf32> to vector<1xf32>
    %197 = vector.shape_cast %196 : vector<1xf32> to vector<1x1xf32>
    %198 = vector.broadcast %193 : vector<1x1xf32> to vector<1x4xf32>
    %199 = arith.subf %186, %198 : vector<1x4xf32>
    %200 = math.exp %199 : vector<1x4xf32>
    %201 = vector.broadcast %197 : vector<1x1xf32> to vector<1x4xf32>
    %202 = arith.subf %189, %201 : vector<1x4xf32>
    %203 = math.exp %202 : vector<1x4xf32>
    %cst_130 = arith.constant dense<0.000000e+00> : vector<4x4xf32>
    %204 = tpu.matmul %200, %203, %cst_130 {dimension_numbers = #tpu.dot_dimension_numbers<[0], [0], [1], [1], [0, 1, 1, 1], [], []>} : vector<1x4xf32>, vector<1x4xf32>, vector<4x4xf32> -> vector<4x4xf32>
    %c24 = arith.constant 24 : index
    %c0_131 = arith.constant 0 : index
    %205 = vector.load %arg15[%c24, %c0_131] : memref<32x4xf32, #tpu.memory_space<vmem>>, vector<4x4xf32>
    tpu.vector_store %arg15[%c24, %c0_131], %204 {strides = array<i32>} : memref<32x4xf32, #tpu.memory_space<vmem>>, vector<4x4xf32>,
    %206 = arith.addf %193, %197 : vector<1x1xf32>
    %207 = tpu.concatenate %68, %91, %114, %137, %160, %183, %206 in 0 : vector<1x1xf32>, vector<1x1xf32>, vector<1x1xf32>, vector<1x1xf32>, vector<1x1xf32>, vector<1x1xf32>, vector<1x1xf32> -> vector<7x1xf32>
    %cst_132 = arith.constant 0.000000e+00 : f32
    %208 = vector.broadcast %cst_132 : f32 to vector<7x4xf32>
    %c0_133 = arith.constant 0 : index
    %c0_134 = arith.constant 0 : index
    %209 = tpu.strided_load %arg15[%c0_133, %c0_134] {strides = array<i32: 4, 1>} : memref<32x4xf32, #tpu.memory_space<vmem>>, vector<7x4xf32>
    %c0_135 = arith.constant 0 : index
    %c0_136 = arith.constant 0 : index
    %c0_137 = arith.constant 0 : index
    %210 = vector.load %arg9[%c0_135, %c0_136, %c0_137] : memref<4x4x4xf32, #tpu.memory_space<vmem>>, vector<1x4x4xf32>
    %211 = vector.shape_cast %210 : vector<1x4x4xf32> to vector<4x4xf32>
    %cst_138 = arith.constant dense<0.000000e+00> : vector<7x4xf32>
    %212 = tpu.matmul %209, %211, %cst_138 {dimension_numbers = #tpu.dot_dimension_numbers<[1], [0], [0], [1], [0, 0, 1, 1], [], []>} : vector<7x4xf32>, vector<4x4xf32>, vector<7x4xf32> -> vector<7x4xf32>
    %213 = arith.addf %208, %212 : vector<7x4xf32>
    %c1 = arith.constant 1 : index
    %c0_139 = arith.constant 0 : index
    %214 = tpu.strided_load %arg15[%c1, %c0_139] {strides = array<i32: 4, 1>} : memref<32x4xf32, #tpu.memory_space<vmem>>, vector<7x4xf32>
    %c1_140 = arith.constant 1 : index
    %c0_141 = arith.constant 0 : index
    %c0_142 = arith.constant 0 : index
    %215 = vector.load %arg9[%c1_140, %c0_141, %c0_142] : memref<4x4x4xf32, #tpu.memory_space<vmem>>, vector<1x4x4xf32>
    %216 = vector.shape_cast %215 : vector<1x4x4xf32> to vector<4x4xf32>
    %cst_143 = arith.constant dense<0.000000e+00> : vector<7x4xf32>
    %217 = tpu.matmul %214, %216, %cst_143 {dimension_numbers = #tpu.dot_dimension_numbers<[1], [0], [0], [1], [0, 0, 1, 1], [], []>} : vector<7x4xf32>, vector<4x4xf32>, vector<7x4xf32> -> vector<7x4xf32>
    %218 = arith.addf %213, %217 : vector<7x4xf32>
    %c2 = arith.constant 2 : index
    %c0_144 = arith.constant 0 : index
    %219 = tpu.strided_load %arg15[%c2, %c0_144] {strides = array<i32: 4, 1>} : memref<32x4xf32, #tpu.memory_space<vmem>>, vector<7x4xf32>
    %c2_145 = arith.constant 2 : index
    %c0_146 = arith.constant 0 : index
    %c0_147 = arith.constant 0 : index
    %220 = vector.load %arg9[%c2_145, %c0_146, %c0_147] : memref<4x4x4xf32, #tpu.memory_space<vmem>>, vector<1x4x4xf32>
    %221 = vector.shape_cast %220 : vector<1x4x4xf32> to vector<4x4xf32>
    %cst_148 = arith.constant dense<0.000000e+00> : vector<7x4xf32>
    %222 = tpu.matmul %219, %221, %cst_148 {dimension_numbers = #tpu.dot_dimension_numbers<[1], [0], [0], [1], [0, 0, 1, 1], [], []>} : vector<7x4xf32>, vector<4x4xf32>, vector<7x4xf32> -> vector<7x4xf32>
    %223 = arith.addf %218, %222 : vector<7x4xf32>
    %c3 = arith.constant 3 : index
    %c0_149 = arith.constant 0 : index
    %224 = tpu.strided_load %arg15[%c3, %c0_149] {strides = array<i32: 4, 1>} : memref<32x4xf32, #tpu.memory_space<vmem>>, vector<7x4xf32>
    %c3_150 = arith.constant 3 : index
    %c0_151 = arith.constant 0 : index
    %c0_152 = arith.constant 0 : index
    %225 = vector.load %arg9[%c3_150, %c0_151, %c0_152] : memref<4x4x4xf32, #tpu.memory_space<vmem>>, vector<1x4x4xf32>
    %226 = vector.shape_cast %225 : vector<1x4x4xf32> to vector<4x4xf32>
    %cst_153 = arith.constant dense<0.000000e+00> : vector<7x4xf32>
    %227 = tpu.matmul %224, %226, %cst_153 {dimension_numbers = #tpu.dot_dimension_numbers<[1], [0], [0], [1], [0, 0, 1, 1], [], []>} : vector<7x4xf32>, vector<4x4xf32>, vector<7x4xf32> -> vector<7x4xf32>
    %228 = arith.addf %223, %227 : vector<7x4xf32>
    %c1_154 = arith.constant 1 : index
    %c0_155 = arith.constant 0 : index
    %229 = tpu.strided_load %arg13[%c1_154, %c0_155] {strides = array<i32: 9, 1>} : memref<64x4xf32, #tpu.memory_space<vmem>>, vector<7x4xf32>
    %c1_156 = arith.constant 1 : index
    %c0_157 = arith.constant 0 : index
    %230 = tpu.strided_load %arg14[%c1_156, %c0_157] {strides = array<i32: 9, 1>} : memref<64x1xf32, #tpu.memory_space<vmem>>, vector<7x1xf32>
    %231 = math.log %228 : vector<7x4xf32>
    %232 = vector.broadcast %207 : vector<7x1xf32> to vector<7x4xf32>
    %233 = arith.addf %232, %231 : vector<7x4xf32>
    %234 = arith.addf %233, %229 : vector<7x4xf32>
    %235 = vector.broadcast %230 : vector<7x1xf32> to vector<7x4xf32>
    %236 = arith.addf %234, %235 : vector<7x4xf32>
    %237 = vector.extract_strided_slice %236 {offsets = [0, 0], sizes = [1, 4], strides = [1, 1]} : vector<7x4xf32> to vector<1x4xf32>
    %c1_158 = arith.constant 1 : index
    %c0_159 = arith.constant 0 : index
    %238 = vector.load %arg12[%c1_158, %c0_159] : memref<64x4xf32, #tpu.memory_space<vmem>>, vector<1x4xf32>
    tpu.vector_store %arg12[%c1_158, %c0_159], %237 {strides = array<i32>} : memref<64x4xf32, #tpu.memory_space<vmem>>, vector<1x4xf32>,
    %239 = vector.extract_strided_slice %236 {offsets = [1, 0], sizes = [1, 4], strides = [1, 1]} : vector<7x4xf32> to vector<1x4xf32>
    %c10 = arith.constant 10 : index
    %c0_160 = arith.constant 0 : index
    %240 = vector.load %arg12[%c10, %c0_160] : memref<64x4xf32, #tpu.memory_space<vmem>>, vector<1x4xf32>
    tpu.vector_store %arg12[%c10, %c0_160], %239 {strides = array<i32>} : memref<64x4xf32, #tpu.memory_space<vmem>>, vector<1x4xf32>,
    %241 = vector.extract_strided_slice %236 {offsets = [2, 0], sizes = [1, 4], strides = [1, 1]} : vector<7x4xf32> to vector<1x4xf32>
    %c19 = arith.constant 19 : index
    %c0_161 = arith.constant 0 : index
    %242 = vector.load %arg12[%c19, %c0_161] : memref<64x4xf32, #tpu.memory_space<vmem>>, vector<1x4xf32>
    tpu.vector_store %arg12[%c19, %c0_161], %241 {strides = array<i32>} : memref<64x4xf32, #tpu.memory_space<vmem>>, vector<1x4xf32>,
    %243 = vector.extract_strided_slice %236 {offsets = [3, 0], sizes = [1, 4], strides = [1, 1]} : vector<7x4xf32> to vector<1x4xf32>
    %c28 = arith.constant 28 : index
    %c0_162 = arith.constant 0 : index
    %244 = vector.load %arg12[%c28, %c0_162] : memref<64x4xf32, #tpu.memory_space<vmem>>, vector<1x4xf32>
    tpu.vector_store %arg12[%c28, %c0_162], %243 {strides = array<i32>} : memref<64x4xf32, #tpu.memory_space<vmem>>, vector<1x4xf32>,
    %245 = vector.extract_strided_slice %236 {offsets = [4, 0], sizes = [1, 4], strides = [1, 1]} : vector<7x4xf32> to vector<1x4xf32>
    %c37 = arith.constant 37 : index
    %c0_163 = arith.constant 0 : index
    %246 = vector.load %arg12[%c37, %c0_163] : memref<64x4xf32, #tpu.memory_space<vmem>>, vector<1x4xf32>
    tpu.vector_store %arg12[%c37, %c0_163], %245 {strides = array<i32>} : memref<64x4xf32, #tpu.memory_space<vmem>>, vector<1x4xf32>,
    %247 = vector.extract_strided_slice %236 {offsets = [5, 0], sizes = [1, 4], strides = [1, 1]} : vector<7x4xf32> to vector<1x4xf32>
    %c46 = arith.constant 46 : index
    %c0_164 = arith.constant 0 : index
    %248 = vector.load %arg12[%c46, %c0_164] : memref<64x4xf32, #tpu.memory_space<vmem>>, vector<1x4xf32>
    tpu.vector_store %arg12[%c46, %c0_164], %247 {strides = array<i32>} : memref<64x4xf32, #tpu.memory_space<vmem>>, vector<1x4xf32>,
    %249 = vector.extract_strided_slice %236 {offsets = [6, 0], sizes = [1, 4], strides = [1, 1]} : vector<7x4xf32> to vector<1x4xf32>
    %c55 = arith.constant 55 : index
    %c0_165 = arith.constant 0 : index
    %250 = vector.load %arg12[%c55, %c0_165] : memref<64x4xf32, #tpu.memory_space<vmem>>, vector<1x4xf32>
    tpu.vector_store %arg12[%c55, %c0_165], %249 {strides = array<i32>} : memref<64x4xf32, #tpu.memory_space<vmem>>, vector<1x4xf32>,
    %c0_166 = arith.constant 0 : index
    %c0_167 = arith.constant 0 : index
    %251 = vector.load %arg12[%c0_166, %c0_167] : memref<64x4xf32, #tpu.memory_space<vmem>>, vector<2x4xf32>
    %c0_168 = arith.constant 0 : index
    %c0_169 = arith.constant 0 : index
    %252 = vector.load %arg13[%c0_168, %c0_169] : memref<64x4xf32, #tpu.memory_space<vmem>>, vector<2x4xf32>
    %253 = arith.addf %251, %252 : vector<2x4xf32>
    %c10_170 = arith.constant 10 : index
    %c0_171 = arith.constant 0 : index
    %254 = tpu.strided_load %arg12[%c10_170, %c0_171] {strides = array<i32: 8, 1>} : memref<64x4xf32, #tpu.memory_space<vmem>>, vector<2x4xf32>
    %c10_172 = arith.constant 10 : index
    %c0_173 = arith.constant 0 : index
    %255 = tpu.strided_load %arg13[%c10_172, %c0_173] {strides = array<i32: 8, 1>} : memref<64x4xf32, #tpu.memory_space<vmem>>, vector<2x4xf32>
    %256 = arith.addf %254, %255 : vector<2x4xf32>
    %cst_174 = arith.constant dense<0xFF800000> : vector<2xf32>
    %257 = vector.multi_reduction <maximumf>, %253, %cst_174 [1] : vector<2x4xf32> to vector<2xf32>
    %258 = vector.shape_cast %257 : vector<2xf32> to vector<2x1xf32>
    %cst_175 = arith.constant dense<0xFF800000> : vector<1xf32>
    %259 = vector.multi_reduction <maximumf>, %258, %cst_175 [0] : vector<2x1xf32> to vector<1xf32>
    %260 = vector.shape_cast %259 : vector<1xf32> to vector<1x1xf32>
    %cst_176 = arith.constant dense<0xFF800000> : vector<2xf32>
    %261 = vector.multi_reduction <maximumf>, %256, %cst_176 [1] : vector<2x4xf32> to vector<2xf32>
    %262 = vector.shape_cast %261 : vector<2xf32> to vector<2x1xf32>
    %cst_177 = arith.constant dense<0xFF800000> : vector<1xf32>
    %263 = vector.multi_reduction <maximumf>, %262, %cst_177 [0] : vector<2x1xf32> to vector<1xf32>
    %264 = vector.shape_cast %263 : vector<1xf32> to vector<1x1xf32>
    %265 = vector.broadcast %260 : vector<1x1xf32> to vector<2x4xf32>
    %266 = arith.subf %253, %265 : vector<2x4xf32>
    %267 = math.exp %266 : vector<2x4xf32>
    %268 = vector.broadcast %264 : vector<1x1xf32> to vector<2x4xf32>
    %269 = arith.subf %256, %268 : vector<2x4xf32>
    %270 = math.exp %269 : vector<2x4xf32>
    %cst_178 = arith.constant dense<0.000000e+00> : vector<4x4xf32>
    %271 = tpu.matmul %267, %270, %cst_178 {dimension_numbers = #tpu.dot_dimension_numbers<[0], [0], [1], [1], [0, 1, 1, 1], [], []>} : vector<2x4xf32>, vector<2x4xf32>, vector<4x4xf32> -> vector<4x4xf32>
    %c0_179 = arith.constant 0 : index
    %c0_180 = arith.constant 0 : index
    %272 = vector.load %arg15[%c0_179, %c0_180] : memref<32x4xf32, #tpu.memory_space<vmem>>, vector<4x4xf32>
    tpu.vector_store %arg15[%c0_179, %c0_180], %271 {strides = array<i32>} : memref<32x4xf32, #tpu.memory_space<vmem>>, vector<4x4xf32>,
    %273 = arith.addf %260, %264 : vector<1x1xf32>
    %c9_181 = arith.constant 9 : index
    %c0_182 = arith.constant 0 : index
    %274 = vector.load %arg12[%c9_181, %c0_182] : memref<64x4xf32, #tpu.memory_space<vmem>>, vector<2x4xf32>
    %c9_183 = arith.constant 9 : index
    %c0_184 = arith.constant 0 : index
    %275 = vector.load %arg13[%c9_183, %c0_184] : memref<64x4xf32, #tpu.memory_space<vmem>>, vector<2x4xf32>
    %276 = arith.addf %274, %275 : vector<2x4xf32>
    %c19_185 = arith.constant 19 : index
    %c0_186 = arith.constant 0 : index
    %277 = tpu.strided_load %arg12[%c19_185, %c0_186] {strides = array<i32: 8, 1>} : memref<64x4xf32, #tpu.memory_space<vmem>>, vector<2x4xf32>
    %c19_187 = arith.constant 19 : index
    %c0_188 = arith.constant 0 : index
    %278 = tpu.strided_load %arg13[%c19_187, %c0_188] {strides = array<i32: 8, 1>} : memref<64x4xf32, #tpu.memory_space<vmem>>, vector<2x4xf32>
    %279 = arith.addf %277, %278 : vector<2x4xf32>
    %cst_189 = arith.constant dense<0xFF800000> : vector<2xf32>
    %280 = vector.multi_reduction <maximumf>, %276, %cst_189 [1] : vector<2x4xf32> to vector<2xf32>
    %281 = vector.shape_cast %280 : vector<2xf32> to vector<2x1xf32>
    %cst_190 = arith.constant dense<0xFF800000> : vector<1xf32>
    %282 = vector.multi_reduction <maximumf>, %281, %cst_190 [0] : vector<2x1xf32> to vector<1xf32>
    %283 = vector.shape_cast %282 : vector<1xf32> to vector<1x1xf32>
    %cst_191 = arith.constant dense<0xFF800000> : vector<2xf32>
    %284 = vector.multi_reduction <maximumf>, %279, %cst_191 [1] : vector<2x4xf32> to vector<2xf32>
    %285 = vector.shape_cast %284 : vector<2xf32> to vector<2x1xf32>
    %cst_192 = arith.constant dense<0xFF800000> : vector<1xf32>
    %286 = vector.multi_reduction <maximumf>, %285, %cst_192 [0] : vector<2x1xf32> to vector<1xf32>
    %287 = vector.shape_cast %286 : vector<1xf32> to vector<1x1xf32>
    %288 = vector.broadcast %283 : vector<1x1xf32> to vector<2x4xf32>
    %289 = arith.subf %276, %288 : vector<2x4xf32>
    %290 = math.exp %289 : vector<2x4xf32>
    %291 = vector.broadcast %287 : vector<1x1xf32> to vector<2x4xf32>
    %292 = arith.subf %279, %291 : vector<2x4xf32>
    %293 = math.exp %292 : vector<2x4xf32>
    %cst_193 = arith.constant dense<0.000000e+00> : vector<4x4xf32>
    %294 = tpu.matmul %290, %293, %cst_193 {dimension_numbers = #tpu.dot_dimension_numbers<[0], [0], [1], [1], [0, 1, 1, 1], [], []>} : vector<2x4xf32>, vector<2x4xf32>, vector<4x4xf32> -> vector<4x4xf32>
    %c4_194 = arith.constant 4 : index
    %c0_195 = arith.constant 0 : index
    %295 = vector.load %arg15[%c4_194, %c0_195] : memref<32x4xf32, #tpu.memory_space<vmem>>, vector<4x4xf32>
    tpu.vector_store %arg15[%c4_194, %c0_195], %294 {strides = array<i32>} : memref<32x4xf32, #tpu.memory_space<vmem>>, vector<4x4xf32>,
    %296 = arith.addf %283, %287 : vector<1x1xf32>
    %c18_196 = arith.constant 18 : index
    %c0_197 = arith.constant 0 : index
    %297 = vector.load %arg12[%c18_196, %c0_197] : memref<64x4xf32, #tpu.memory_space<vmem>>, vector<2x4xf32>
    %c18_198 = arith.constant 18 : index
    %c0_199 = arith.constant 0 : index
    %298 = vector.load %arg13[%c18_198, %c0_199] : memref<64x4xf32, #tpu.memory_space<vmem>>, vector<2x4xf32>
    %299 = arith.addf %297, %298 : vector<2x4xf32>
    %c28_200 = arith.constant 28 : index
    %c0_201 = arith.constant 0 : index
    %300 = tpu.strided_load %arg12[%c28_200, %c0_201] {strides = array<i32: 8, 1>} : memref<64x4xf32, #tpu.memory_space<vmem>>, vector<2x4xf32>
    %c28_202 = arith.constant 28 : index
    %c0_203 = arith.constant 0 : index
    %301 = tpu.strided_load %arg13[%c28_202, %c0_203] {strides = array<i32: 8, 1>} : memref<64x4xf32, #tpu.memory_space<vmem>>, vector<2x4xf32>
    %302 = arith.addf %300, %301 : vector<2x4xf32>
    %cst_204 = arith.constant dense<0xFF800000> : vector<2xf32>
    %303 = vector.multi_reduction <maximumf>, %299, %cst_204 [1] : vector<2x4xf32> to vector<2xf32>
    %304 = vector.shape_cast %303 : vector<2xf32> to vector<2x1xf32>
    %cst_205 = arith.constant dense<0xFF800000> : vector<1xf32>
    %305 = vector.multi_reduction <maximumf>, %304, %cst_205 [0] : vector<2x1xf32> to vector<1xf32>
    %306 = vector.shape_cast %305 : vector<1xf32> to vector<1x1xf32>
    %cst_206 = arith.constant dense<0xFF800000> : vector<2xf32>
    %307 = vector.multi_reduction <maximumf>, %302, %cst_206 [1] : vector<2x4xf32> to vector<2xf32>
    %308 = vector.shape_cast %307 : vector<2xf32> to vector<2x1xf32>
    %cst_207 = arith.constant dense<0xFF800000> : vector<1xf32>
    %309 = vector.multi_reduction <maximumf>, %308, %cst_207 [0] : vector<2x1xf32> to vector<1xf32>
    %310 = vector.shape_cast %309 : vector<1xf32> to vector<1x1xf32>
    %311 = vector.broadcast %306 : vector<1x1xf32> to vector<2x4xf32>
    %312 = arith.subf %299, %311 : vector<2x4xf32>
    %313 = math.exp %312 : vector<2x4xf32>
    %314 = vector.broadcast %310 : vector<1x1xf32> to vector<2x4xf32>
    %315 = arith.subf %302, %314 : vector<2x4xf32>
    %316 = math.exp %315 : vector<2x4xf32>
    %cst_208 = arith.constant dense<0.000000e+00> : vector<4x4xf32>
    %317 = tpu.matmul %313, %316, %cst_208 {dimension_numbers = #tpu.dot_dimension_numbers<[0], [0], [1], [1], [0, 1, 1, 1], [], []>} : vector<2x4xf32>, vector<2x4xf32>, vector<4x4xf32> -> vector<4x4xf32>
    %c8_209 = arith.constant 8 : index
    %c0_210 = arith.constant 0 : index
    %318 = vector.load %arg15[%c8_209, %c0_210] : memref<32x4xf32, #tpu.memory_space<vmem>>, vector<4x4xf32>
    tpu.vector_store %arg15[%c8_209, %c0_210], %317 {strides = array<i32>} : memref<32x4xf32, #tpu.memory_space<vmem>>, vector<4x4xf32>,
    %319 = arith.addf %306, %310 : vector<1x1xf32>
    %c27_211 = arith.constant 27 : index
    %c0_212 = arith.constant 0 : index
    %320 = vector.load %arg12[%c27_211, %c0_212] : memref<64x4xf32, #tpu.memory_space<vmem>>, vector<2x4xf32>
    %c27_213 = arith.constant 27 : index
    %c0_214 = arith.constant 0 : index
    %321 = vector.load %arg13[%c27_213, %c0_214] : memref<64x4xf32, #tpu.memory_space<vmem>>, vector<2x4xf32>
    %322 = arith.addf %320, %321 : vector<2x4xf32>
    %c37_215 = arith.constant 37 : index
    %c0_216 = arith.constant 0 : index
    %323 = tpu.strided_load %arg12[%c37_215, %c0_216] {strides = array<i32: 8, 1>} : memref<64x4xf32, #tpu.memory_space<vmem>>, vector<2x4xf32>
    %c37_217 = arith.constant 37 : index
    %c0_218 = arith.constant 0 : index
    %324 = tpu.strided_load %arg13[%c37_217, %c0_218] {strides = array<i32: 8, 1>} : memref<64x4xf32, #tpu.memory_space<vmem>>, vector<2x4xf32>
    %325 = arith.addf %323, %324 : vector<2x4xf32>
    %cst_219 = arith.constant dense<0xFF800000> : vector<2xf32>
    %326 = vector.multi_reduction <maximumf>, %322, %cst_219 [1] : vector<2x4xf32> to vector<2xf32>
    %327 = vector.shape_cast %326 : vector<2xf32> to vector<2x1xf32>
    %cst_220 = arith.constant dense<0xFF800000> : vector<1xf32>
    %328 = vector.multi_reduction <maximumf>, %327, %cst_220 [0] : vector<2x1xf32> to vector<1xf32>
    %329 = vector.shape_cast %328 : vector<1xf32> to vector<1x1xf32>
    %cst_221 = arith.constant dense<0xFF800000> : vector<2xf32>
    %330 = vector.multi_reduction <maximumf>, %325, %cst_221 [1] : vector<2x4xf32> to vector<2xf32>
    %331 = vector.shape_cast %330 : vector<2xf32> to vector<2x1xf32>
    %cst_222 = arith.constant dense<0xFF800000> : vector<1xf32>
    %332 = vector.multi_reduction <maximumf>, %331, %cst_222 [0] : vector<2x1xf32> to vector<1xf32>
    %333 = vector.shape_cast %332 : vector<1xf32> to vector<1x1xf32>
    %334 = vector.broadcast %329 : vector<1x1xf32> to vector<2x4xf32>
    %335 = arith.subf %322, %334 : vector<2x4xf32>
    %336 = math.exp %335 : vector<2x4xf32>
    %337 = vector.broadcast %333 : vector<1x1xf32> to vector<2x4xf32>
    %338 = arith.subf %325, %337 : vector<2x4xf32>
    %339 = math.exp %338 : vector<2x4xf32>
    %cst_223 = arith.constant dense<0.000000e+00> : vector<4x4xf32>
    %340 = tpu.matmul %336, %339, %cst_223 {dimension_numbers = #tpu.dot_dimension_numbers<[0], [0], [1], [1], [0, 1, 1, 1], [], []>} : vector<2x4xf32>, vector<2x4xf32>, vector<4x4xf32> -> vector<4x4xf32>
    %c12_224 = arith.constant 12 : index
    %c0_225 = arith.constant 0 : index
    %341 = vector.load %arg15[%c12_224, %c0_225] : memref<32x4xf32, #tpu.memory_space<vmem>>, vector<4x4xf32>
    tpu.vector_store %arg15[%c12_224, %c0_225], %340 {strides = array<i32>} : memref<32x4xf32, #tpu.memory_space<vmem>>, vector<4x4xf32>,
    %342 = arith.addf %329, %333 : vector<1x1xf32>
    %c36_226 = arith.constant 36 : index
    %c0_227 = arith.constant 0 : index
    %343 = vector.load %arg12[%c36_226, %c0_227] : memref<64x4xf32, #tpu.memory_space<vmem>>, vector<2x4xf32>
    %c36_228 = arith.constant 36 : index
    %c0_229 = arith.constant 0 : index
    %344 = vector.load %arg13[%c36_228, %c0_229] : memref<64x4xf32, #tpu.memory_space<vmem>>, vector<2x4xf32>
    %345 = arith.addf %343, %344 : vector<2x4xf32>
    %c46_230 = arith.constant 46 : index
    %c0_231 = arith.constant 0 : index
    %346 = tpu.strided_load %arg12[%c46_230, %c0_231] {strides = array<i32: 8, 1>} : memref<64x4xf32, #tpu.memory_space<vmem>>, vector<2x4xf32>
    %c46_232 = arith.constant 46 : index
    %c0_233 = arith.constant 0 : index
    %347 = tpu.strided_load %arg13[%c46_232, %c0_233] {strides = array<i32: 8, 1>} : memref<64x4xf32, #tpu.memory_space<vmem>>, vector<2x4xf32>
    %348 = arith.addf %346, %347 : vector<2x4xf32>
    %cst_234 = arith.constant dense<0xFF800000> : vector<2xf32>
    %349 = vector.multi_reduction <maximumf>, %345, %cst_234 [1] : vector<2x4xf32> to vector<2xf32>
    %350 = vector.shape_cast %349 : vector<2xf32> to vector<2x1xf32>
    %cst_235 = arith.constant dense<0xFF800000> : vector<1xf32>
    %351 = vector.multi_reduction <maximumf>, %350, %cst_235 [0] : vector<2x1xf32> to vector<1xf32>
    %352 = vector.shape_cast %351 : vector<1xf32> to vector<1x1xf32>
    %cst_236 = arith.constant dense<0xFF800000> : vector<2xf32>
    %353 = vector.multi_reduction <maximumf>, %348, %cst_236 [1] : vector<2x4xf32> to vector<2xf32>
    %354 = vector.shape_cast %353 : vector<2xf32> to vector<2x1xf32>
    %cst_237 = arith.constant dense<0xFF800000> : vector<1xf32>
    %355 = vector.multi_reduction <maximumf>, %354, %cst_237 [0] : vector<2x1xf32> to vector<1xf32>
    %356 = vector.shape_cast %355 : vector<1xf32> to vector<1x1xf32>
    %357 = vector.broadcast %352 : vector<1x1xf32> to vector<2x4xf32>
    %358 = arith.subf %345, %357 : vector<2x4xf32>
    %359 = math.exp %358 : vector<2x4xf32>
    %360 = vector.broadcast %356 : vector<1x1xf32> to vector<2x4xf32>
    %361 = arith.subf %348, %360 : vector<2x4xf32>
    %362 = math.exp %361 : vector<2x4xf32>
    %cst_238 = arith.constant dense<0.000000e+00> : vector<4x4xf32>
    %363 = tpu.matmul %359, %362, %cst_238 {dimension_numbers = #tpu.dot_dimension_numbers<[0], [0], [1], [1], [0, 1, 1, 1], [], []>} : vector<2x4xf32>, vector<2x4xf32>, vector<4x4xf32> -> vector<4x4xf32>
    %c16_239 = arith.constant 16 : index
    %c0_240 = arith.constant 0 : index
    %364 = vector.load %arg15[%c16_239, %c0_240] : memref<32x4xf32, #tpu.memory_space<vmem>>, vector<4x4xf32>
    tpu.vector_store %arg15[%c16_239, %c0_240], %363 {strides = array<i32>} : memref<32x4xf32, #tpu.memory_space<vmem>>, vector<4x4xf32>,
    %365 = arith.addf %352, %356 : vector<1x1xf32>
    %c45_241 = arith.constant 45 : index
    %c0_242 = arith.constant 0 : index
    %366 = vector.load %arg12[%c45_241, %c0_242] : memref<64x4xf32, #tpu.memory_space<vmem>>, vector<2x4xf32>
    %c45_243 = arith.constant 45 : index
    %c0_244 = arith.constant 0 : index
    %367 = vector.load %arg13[%c45_243, %c0_244] : memref<64x4xf32, #tpu.memory_space<vmem>>, vector<2x4xf32>
    %368 = arith.addf %366, %367 : vector<2x4xf32>
    %c55_245 = arith.constant 55 : index
    %c0_246 = arith.constant 0 : index
    %369 = tpu.strided_load %arg12[%c55_245, %c0_246] {strides = array<i32: 8, 1>} : memref<64x4xf32, #tpu.memory_space<vmem>>, vector<2x4xf32>
    %c55_247 = arith.constant 55 : index
    %c0_248 = arith.constant 0 : index
    %370 = tpu.strided_load %arg13[%c55_247, %c0_248] {strides = array<i32: 8, 1>} : memref<64x4xf32, #tpu.memory_space<vmem>>, vector<2x4xf32>
    %371 = arith.addf %369, %370 : vector<2x4xf32>
    %cst_249 = arith.constant dense<0xFF800000> : vector<2xf32>
    %372 = vector.multi_reduction <maximumf>, %368, %cst_249 [1] : vector<2x4xf32> to vector<2xf32>
    %373 = vector.shape_cast %372 : vector<2xf32> to vector<2x1xf32>
    %cst_250 = arith.constant dense<0xFF800000> : vector<1xf32>
    %374 = vector.multi_reduction <maximumf>, %373, %cst_250 [0] : vector<2x1xf32> to vector<1xf32>
    %375 = vector.shape_cast %374 : vector<1xf32> to vector<1x1xf32>
    %cst_251 = arith.constant dense<0xFF800000> : vector<2xf32>
    %376 = vector.multi_reduction <maximumf>, %371, %cst_251 [1] : vector<2x4xf32> to vector<2xf32>
    %377 = vector.shape_cast %376 : vector<2xf32> to vector<2x1xf32>
    %cst_252 = arith.constant dense<0xFF800000> : vector<1xf32>
    %378 = vector.multi_reduction <maximumf>, %377, %cst_252 [0] : vector<2x1xf32> to vector<1xf32>
    %379 = vector.shape_cast %378 : vector<1xf32> to vector<1x1xf32>
    %380 = vector.broadcast %375 : vector<1x1xf32> to vector<2x4xf32>
    %381 = arith.subf %368, %380 : vector<2x4xf32>
    %382 = math.exp %381 : vector<2x4xf32>
    %383 = vector.broadcast %379 : vector<1x1xf32> to vector<2x4xf32>
    %384 = arith.subf %371, %383 : vector<2x4xf32>
    %385 = math.exp %384 : vector<2x4xf32>
    %cst_253 = arith.constant dense<0.000000e+00> : vector<4x4xf32>
    %386 = tpu.matmul %382, %385, %cst_253 {dimension_numbers = #tpu.dot_dimension_numbers<[0], [0], [1], [1], [0, 1, 1, 1], [], []>} : vector<2x4xf32>, vector<2x4xf32>, vector<4x4xf32> -> vector<4x4xf32>
    %c20_254 = arith.constant 20 : index
    %c0_255 = arith.constant 0 : index
    %387 = vector.load %arg15[%c20_254, %c0_255] : memref<32x4xf32, #tpu.memory_space<vmem>>, vector<4x4xf32>
    tpu.vector_store %arg15[%c20_254, %c0_255], %386 {strides = array<i32>} : memref<32x4xf32, #tpu.memory_space<vmem>>, vector<4x4xf32>,
    %388 = arith.addf %375, %379 : vector<1x1xf32>
    %389 = tpu.concatenate %273, %296, %319, %342, %365, %388 in 0 : vector<1x1xf32>, vector<1x1xf32>, vector<1x1xf32>, vector<1x1xf32>, vector<1x1xf32>, vector<1x1xf32> -> vector<6x1xf32>
    %cst_256 = arith.constant 0.000000e+00 : f32
    %390 = vector.broadcast %cst_256 : f32 to vector<6x4xf32>
    %c0_257 = arith.constant 0 : index
    %c0_258 = arith.constant 0 : index
    %391 = tpu.strided_load %arg15[%c0_257, %c0_258] {strides = array<i32: 4, 1>} : memref<32x4xf32, #tpu.memory_space<vmem>>, vector<6x4xf32>
    %c0_259 = arith.constant 0 : index
    %c0_260 = arith.constant 0 : index
    %c0_261 = arith.constant 0 : index
    %392 = vector.load %arg9[%c0_259, %c0_260, %c0_261] : memref<4x4x4xf32, #tpu.memory_space<vmem>>, vector<1x4x4xf32>
    %393 = vector.shape_cast %392 : vector<1x4x4xf32> to vector<4x4xf32>
    %cst_262 = arith.constant dense<0.000000e+00> : vector<6x4xf32>
    %394 = tpu.matmul %391, %393, %cst_262 {dimension_numbers = #tpu.dot_dimension_numbers<[1], [0], [0], [1], [0, 0, 1, 1], [], []>} : vector<6x4xf32>, vector<4x4xf32>, vector<6x4xf32> -> vector<6x4xf32>
    %395 = arith.addf %390, %394 : vector<6x4xf32>
    %c1_263 = arith.constant 1 : index
    %c0_264 = arith.constant 0 : index
    %396 = tpu.strided_load %arg15[%c1_263, %c0_264] {strides = array<i32: 4, 1>} : memref<32x4xf32, #tpu.memory_space<vmem>>, vector<6x4xf32>
    %c1_265 = arith.constant 1 : index
    %c0_266 = arith.constant 0 : index
    %c0_267 = arith.constant 0 : index
    %397 = vector.load %arg9[%c1_265, %c0_266, %c0_267] : memref<4x4x4xf32, #tpu.memory_space<vmem>>, vector<1x4x4xf32>
    %398 = vector.shape_cast %397 : vector<1x4x4xf32> to vector<4x4xf32>
    %cst_268 = arith.constant dense<0.000000e+00> : vector<6x4xf32>
    %399 = tpu.matmul %396, %398, %cst_268 {dimension_numbers = #tpu.dot_dimension_numbers<[1], [0], [0], [1], [0, 0, 1, 1], [], []>} : vector<6x4xf32>, vector<4x4xf32>, vector<6x4xf32> -> vector<6x4xf32>
    %400 = arith.addf %395, %399 : vector<6x4xf32>
    %c2_269 = arith.constant 2 : index
    %c0_270 = arith.constant 0 : index
    %401 = tpu.strided_load %arg15[%c2_269, %c0_270] {strides = array<i32: 4, 1>} : memref<32x4xf32, #tpu.memory_space<vmem>>, vector<6x4xf32>
    %c2_271 = arith.constant 2 : index
    %c0_272 = arith.constant 0 : index
    %c0_273 = arith.constant 0 : index
    %402 = vector.load %arg9[%c2_271, %c0_272, %c0_273] : memref<4x4x4xf32, #tpu.memory_space<vmem>>, vector<1x4x4xf32>
    %403 = vector.shape_cast %402 : vector<1x4x4xf32> to vector<4x4xf32>
    %cst_274 = arith.constant dense<0.000000e+00> : vector<6x4xf32>
    %404 = tpu.matmul %401, %403, %cst_274 {dimension_numbers = #tpu.dot_dimension_numbers<[1], [0], [0], [1], [0, 0, 1, 1], [], []>} : vector<6x4xf32>, vector<4x4xf32>, vector<6x4xf32> -> vector<6x4xf32>
    %405 = arith.addf %400, %404 : vector<6x4xf32>
    %c3_275 = arith.constant 3 : index
    %c0_276 = arith.constant 0 : index
    %406 = tpu.strided_load %arg15[%c3_275, %c0_276] {strides = array<i32: 4, 1>} : memref<32x4xf32, #tpu.memory_space<vmem>>, vector<6x4xf32>
    %c3_277 = arith.constant 3 : index
    %c0_278 = arith.constant 0 : index
    %c0_279 = arith.constant 0 : index
    %407 = vector.load %arg9[%c3_277, %c0_278, %c0_279] : memref<4x4x4xf32, #tpu.memory_space<vmem>>, vector<1x4x4xf32>
    %408 = vector.shape_cast %407 : vector<1x4x4xf32> to vector<4x4xf32>
    %cst_280 = arith.constant dense<0.000000e+00> : vector<6x4xf32>
    %409 = tpu.matmul %406, %408, %cst_280 {dimension_numbers = #tpu.dot_dimension_numbers<[1], [0], [0], [1], [0, 0, 1, 1], [], []>} : vector<6x4xf32>, vector<4x4xf32>, vector<6x4xf32> -> vector<6x4xf32>
    %410 = arith.addf %405, %409 : vector<6x4xf32>
    %c2_281 = arith.constant 2 : index
    %c0_282 = arith.constant 0 : index
    %411 = tpu.strided_load %arg13[%c2_281, %c0_282] {strides = array<i32: 9, 1>} : memref<64x4xf32, #tpu.memory_space<vmem>>, vector<6x4xf32>
    %c2_283 = arith.constant 2 : index
    %c0_284 = arith.constant 0 : index
    %412 = tpu.strided_load %arg14[%c2_283, %c0_284] {strides = array<i32: 9, 1>} : memref<64x1xf32, #tpu.memory_space<vmem>>, vector<6x1xf32>
    %413 = math.log %410 : vector<6x4xf32>
    %414 = vector.broadcast %389 : vector<6x1xf32> to vector<6x4xf32>
    %415 = arith.addf %414, %413 : vector<6x4xf32>
    %416 = arith.addf %415, %411 : vector<6x4xf32>
    %417 = vector.broadcast %412 : vector<6x1xf32> to vector<6x4xf32>
    %418 = arith.addf %416, %417 : vector<6x4xf32>
    %419 = vector.extract_strided_slice %418 {offsets = [0, 0], sizes = [1, 4], strides = [1, 1]} : vector<6x4xf32> to vector<1x4xf32>
    %c2_285 = arith.constant 2 : index
    %c0_286 = arith.constant 0 : index
    %420 = vector.load %arg12[%c2_285, %c0_286] : memref<64x4xf32, #tpu.memory_space<vmem>>, vector<1x4xf32>
    tpu.vector_store %arg12[%c2_285, %c0_286], %419 {strides = array<i32>} : memref<64x4xf32, #tpu.memory_space<vmem>>, vector<1x4xf32>,
    %421 = vector.extract_strided_slice %418 {offsets = [1, 0], sizes = [1, 4], strides = [1, 1]} : vector<6x4xf32> to vector<1x4xf32>
    %c11 = arith.constant 11 : index
    %c0_287 = arith.constant 0 : index
    %422 = vector.load %arg12[%c11, %c0_287] : memref<64x4xf32, #tpu.memory_space<vmem>>, vector<1x4xf32>
    tpu.vector_store %arg12[%c11, %c0_287], %421 {strides = array<i32>} : memref<64x4xf32, #tpu.memory_space<vmem>>, vector<1x4xf32>,
    %423 = vector.extract_strided_slice %418 {offsets = [2, 0], sizes = [1, 4], strides = [1, 1]} : vector<6x4xf32> to vector<1x4xf32>
    %c20_288 = arith.constant 20 : index
    %c0_289 = arith.constant 0 : index
    %424 = vector.load %arg12[%c20_288, %c0_289] : memref<64x4xf32, #tpu.memory_space<vmem>>, vector<1x4xf32>
    tpu.vector_store %arg12[%c20_288, %c0_289], %423 {strides = array<i32>} : memref<64x4xf32, #tpu.memory_space<vmem>>, vector<1x4xf32>,
    %425 = vector.extract_strided_slice %418 {offsets = [3, 0], sizes = [1, 4], strides = [1, 1]} : vector<6x4xf32> to vector<1x4xf32>
    %c29 = arith.constant 29 : index
    %c0_290 = arith.constant 0 : index
    %426 = vector.load %arg12[%c29, %c0_290] : memref<64x4xf32, #tpu.memory_space<vmem>>, vector<1x4xf32>
    tpu.vector_store %arg12[%c29, %c0_290], %425 {strides = array<i32>} : memref<64x4xf32, #tpu.memory_space<vmem>>, vector<1x4xf32>,
    %427 = vector.extract_strided_slice %418 {offsets = [4, 0], sizes = [1, 4], strides = [1, 1]} : vector<6x4xf32> to vector<1x4xf32>
    %c38 = arith.constant 38 : index
    %c0_291 = arith.constant 0 : index
    %428 = vector.load %arg12[%c38, %c0_291] : memref<64x4xf32, #tpu.memory_space<vmem>>, vector<1x4xf32>
    tpu.vector_store %arg12[%c38, %c0_291], %427 {strides = array<i32>} : memref<64x4xf32, #tpu.memory_space<vmem>>, vector<1x4xf32>,
    %429 = vector.extract_strided_slice %418 {offsets = [5, 0], sizes = [1, 4], strides = [1, 1]} : vector<6x4xf32> to vector<1x4xf32>
    %c47 = arith.constant 47 : index
    %c0_292 = arith.constant 0 : index
    %430 = vector.load %arg12[%c47, %c0_292] : memref<64x4xf32, #tpu.memory_space<vmem>>, vector<1x4xf32>
    tpu.vector_store %arg12[%c47, %c0_292], %429 {strides = array<i32>} : memref<64x4xf32, #tpu.memory_space<vmem>>, vector<1x4xf32>,
    %c0_293 = arith.constant 0 : index
    %c0_294 = arith.constant 0 : index
    %431 = vector.load %arg12[%c0_293, %c0_294] : memref<64x4xf32, #tpu.memory_space<vmem>>, vector<3x4xf32>
    %c0_295 = arith.constant 0 : index
    %c0_296 = arith.constant 0 : index
    %432 = vector.load %arg13[%c0_295, %c0_296] : memref<64x4xf32, #tpu.memory_space<vmem>>, vector<3x4xf32>
    %433 = arith.addf %431, %432 : vector<3x4xf32>
    %c11_297 = arith.constant 11 : index
    %c0_298 = arith.constant 0 : index
    %434 = tpu.strided_load %arg12[%c11_297, %c0_298] {strides = array<i32: 8, 1>} : memref<64x4xf32, #tpu.memory_space<vmem>>, vector<3x4xf32>
    %c11_299 = arith.constant 11 : index
    %c0_300 = arith.constant 0 : index
    %435 = tpu.strided_load %arg13[%c11_299, %c0_300] {strides = array<i32: 8, 1>} : memref<64x4xf32, #tpu.memory_space<vmem>>, vector<3x4xf32>
    %436 = arith.addf %434, %435 : vector<3x4xf32>
    %cst_301 = arith.constant dense<0xFF800000> : vector<3xf32>
    %437 = vector.multi_reduction <maximumf>, %433, %cst_301 [1] : vector<3x4xf32> to vector<3xf32>
    %438 = vector.shape_cast %437 : vector<3xf32> to vector<3x1xf32>
    %cst_302 = arith.constant dense<0xFF800000> : vector<1xf32>
    %439 = vector.multi_reduction <maximumf>, %438, %cst_302 [0] : vector<3x1xf32> to vector<1xf32>
    %440 = vector.shape_cast %439 : vector<1xf32> to vector<1x1xf32>
    %cst_303 = arith.constant dense<0xFF800000> : vector<3xf32>
    %441 = vector.multi_reduction <maximumf>, %436, %cst_303 [1] : vector<3x4xf32> to vector<3xf32>
    %442 = vector.shape_cast %441 : vector<3xf32> to vector<3x1xf32>
    %cst_304 = arith.constant dense<0xFF800000> : vector<1xf32>
    %443 = vector.multi_reduction <maximumf>, %442, %cst_304 [0] : vector<3x1xf32> to vector<1xf32>
    %444 = vector.shape_cast %443 : vector<1xf32> to vector<1x1xf32>
    %445 = vector.broadcast %440 : vector<1x1xf32> to vector<3x4xf32>
    %446 = arith.subf %433, %445 : vector<3x4xf32>
    %447 = math.exp %446 : vector<3x4xf32>
    %448 = vector.broadcast %444 : vector<1x1xf32> to vector<3x4xf32>
    %449 = arith.subf %436, %448 : vector<3x4xf32>
    %450 = math.exp %449 : vector<3x4xf32>
    %cst_305 = arith.constant dense<0.000000e+00> : vector<4x4xf32>
    %451 = tpu.matmul %447, %450, %cst_305 {dimension_numbers = #tpu.dot_dimension_numbers<[0], [0], [1], [1], [0, 1, 1, 1], [], []>} : vector<3x4xf32>, vector<3x4xf32>, vector<4x4xf32> -> vector<4x4xf32>
    %c0_306 = arith.constant 0 : index
    %c0_307 = arith.constant 0 : index
    %452 = vector.load %arg15[%c0_306, %c0_307] : memref<32x4xf32, #tpu.memory_space<vmem>>, vector<4x4xf32>
    tpu.vector_store %arg15[%c0_306, %c0_307], %451 {strides = array<i32>} : memref<32x4xf32, #tpu.memory_space<vmem>>, vector<4x4xf32>,
    %453 = arith.addf %440, %444 : vector<1x1xf32>
    %c9_308 = arith.constant 9 : index
    %c0_309 = arith.constant 0 : index
    %454 = vector.load %arg12[%c9_308, %c0_309] : memref<64x4xf32, #tpu.memory_space<vmem>>, vector<3x4xf32>
    %c9_310 = arith.constant 9 : index
    %c0_311 = arith.constant 0 : index
    %455 = vector.load %arg13[%c9_310, %c0_311] : memref<64x4xf32, #tpu.memory_space<vmem>>, vector<3x4xf32>
    %456 = arith.addf %454, %455 : vector<3x4xf32>
    %c20_312 = arith.constant 20 : index
    %c0_313 = arith.constant 0 : index
    %457 = tpu.strided_load %arg12[%c20_312, %c0_313] {strides = array<i32: 8, 1>} : memref<64x4xf32, #tpu.memory_space<vmem>>, vector<3x4xf32>
    %c20_314 = arith.constant 20 : index
    %c0_315 = arith.constant 0 : index
    %458 = tpu.strided_load %arg13[%c20_314, %c0_315] {strides = array<i32: 8, 1>} : memref<64x4xf32, #tpu.memory_space<vmem>>, vector<3x4xf32>
    %459 = arith.addf %457, %458 : vector<3x4xf32>
    %cst_316 = arith.constant dense<0xFF800000> : vector<3xf32>
    %460 = vector.multi_reduction <maximumf>, %456, %cst_316 [1] : vector<3x4xf32> to vector<3xf32>
    %461 = vector.shape_cast %460 : vector<3xf32> to vector<3x1xf32>
    %cst_317 = arith.constant dense<0xFF800000> : vector<1xf32>
    %462 = vector.multi_reduction <maximumf>, %461, %cst_317 [0] : vector<3x1xf32> to vector<1xf32>
    %463 = vector.shape_cast %462 : vector<1xf32> to vector<1x1xf32>
    %cst_318 = arith.constant dense<0xFF800000> : vector<3xf32>
    %464 = vector.multi_reduction <maximumf>, %459, %cst_318 [1] : vector<3x4xf32> to vector<3xf32>
    %465 = vector.shape_cast %464 : vector<3xf32> to vector<3x1xf32>
    %cst_319 = arith.constant dense<0xFF800000> : vector<1xf32>
    %466 = vector.multi_reduction <maximumf>, %465, %cst_319 [0] : vector<3x1xf32> to vector<1xf32>
    %467 = vector.shape_cast %466 : vector<1xf32> to vector<1x1xf32>
    %468 = vector.broadcast %463 : vector<1x1xf32> to vector<3x4xf32>
    %469 = arith.subf %456, %468 : vector<3x4xf32>
    %470 = math.exp %469 : vector<3x4xf32>
    %471 = vector.broadcast %467 : vector<1x1xf32> to vector<3x4xf32>
    %472 = arith.subf %459, %471 : vector<3x4xf32>
    %473 = math.exp %472 : vector<3x4xf32>
    %cst_320 = arith.constant dense<0.000000e+00> : vector<4x4xf32>
    %474 = tpu.matmul %470, %473, %cst_320 {dimension_numbers = #tpu.dot_dimension_numbers<[0], [0], [1], [1], [0, 1, 1, 1], [], []>} : vector<3x4xf32>, vector<3x4xf32>, vector<4x4xf32> -> vector<4x4xf32>
    %c4_321 = arith.constant 4 : index
    %c0_322 = arith.constant 0 : index
    %475 = vector.load %arg15[%c4_321, %c0_322] : memref<32x4xf32, #tpu.memory_space<vmem>>, vector<4x4xf32>
    tpu.vector_store %arg15[%c4_321, %c0_322], %474 {strides = array<i32>} : memref<32x4xf32, #tpu.memory_space<vmem>>, vector<4x4xf32>,
    %476 = arith.addf %463, %467 : vector<1x1xf32>
    %c18_323 = arith.constant 18 : index
    %c0_324 = arith.constant 0 : index
    %477 = vector.load %arg12[%c18_323, %c0_324] : memref<64x4xf32, #tpu.memory_space<vmem>>, vector<3x4xf32>
    %c18_325 = arith.constant 18 : index
    %c0_326 = arith.constant 0 : index
    %478 = vector.load %arg13[%c18_325, %c0_326] : memref<64x4xf32, #tpu.memory_space<vmem>>, vector<3x4xf32>
    %479 = arith.addf %477, %478 : vector<3x4xf32>
    %c29_327 = arith.constant 29 : index
    %c0_328 = arith.constant 0 : index
    %480 = tpu.strided_load %arg12[%c29_327, %c0_328] {strides = array<i32: 8, 1>} : memref<64x4xf32, #tpu.memory_space<vmem>>, vector<3x4xf32>
    %c29_329 = arith.constant 29 : index
    %c0_330 = arith.constant 0 : index
    %481 = tpu.strided_load %arg13[%c29_329, %c0_330] {strides = array<i32: 8, 1>} : memref<64x4xf32, #tpu.memory_space<vmem>>, vector<3x4xf32>
    %482 = arith.addf %480, %481 : vector<3x4xf32>
    %cst_331 = arith.constant dense<0xFF800000> : vector<3xf32>
    %483 = vector.multi_reduction <maximumf>, %479, %cst_331 [1] : vector<3x4xf32> to vector<3xf32>
    %484 = vector.shape_cast %483 : vector<3xf32> to vector<3x1xf32>
    %cst_332 = arith.constant dense<0xFF800000> : vector<1xf32>
    %485 = vector.multi_reduction <maximumf>, %484, %cst_332 [0] : vector<3x1xf32> to vector<1xf32>
    %486 = vector.shape_cast %485 : vector<1xf32> to vector<1x1xf32>
    %cst_333 = arith.constant dense<0xFF800000> : vector<3xf32>
    %487 = vector.multi_reduction <maximumf>, %482, %cst_333 [1] : vector<3x4xf32> to vector<3xf32>
    %488 = vector.shape_cast %487 : vector<3xf32> to vector<3x1xf32>
    %cst_334 = arith.constant dense<0xFF800000> : vector<1xf32>
    %489 = vector.multi_reduction <maximumf>, %488, %cst_334 [0] : vector<3x1xf32> to vector<1xf32>
    %490 = vector.shape_cast %489 : vector<1xf32> to vector<1x1xf32>
    %491 = vector.broadcast %486 : vector<1x1xf32> to vector<3x4xf32>
    %492 = arith.subf %479, %491 : vector<3x4xf32>
    %493 = math.exp %492 : vector<3x4xf32>
    %494 = vector.broadcast %490 : vector<1x1xf32> to vector<3x4xf32>
    %495 = arith.subf %482, %494 : vector<3x4xf32>
    %496 = math.exp %495 : vector<3x4xf32>
    %cst_335 = arith.constant dense<0.000000e+00> : vector<4x4xf32>
    %497 = tpu.matmul %493, %496, %cst_335 {dimension_numbers = #tpu.dot_dimension_numbers<[0], [0], [1], [1], [0, 1, 1, 1], [], []>} : vector<3x4xf32>, vector<3x4xf32>, vector<4x4xf32> -> vector<4x4xf32>
    %c8_336 = arith.constant 8 : index
    %c0_337 = arith.constant 0 : index
    %498 = vector.load %arg15[%c8_336, %c0_337] : memref<32x4xf32, #tpu.memory_space<vmem>>, vector<4x4xf32>
    tpu.vector_store %arg15[%c8_336, %c0_337], %497 {strides = array<i32>} : memref<32x4xf32, #tpu.memory_space<vmem>>, vector<4x4xf32>,
    %499 = arith.addf %486, %490 : vector<1x1xf32>
    %c27_338 = arith.constant 27 : index
    %c0_339 = arith.constant 0 : index
    %500 = vector.load %arg12[%c27_338, %c0_339] : memref<64x4xf32, #tpu.memory_space<vmem>>, vector<3x4xf32>
    %c27_340 = arith.constant 27 : index
    %c0_341 = arith.constant 0 : index
    %501 = vector.load %arg13[%c27_340, %c0_341] : memref<64x4xf32, #tpu.memory_space<vmem>>, vector<3x4xf32>
    %502 = arith.addf %500, %501 : vector<3x4xf32>
    %c38_342 = arith.constant 38 : index
    %c0_343 = arith.constant 0 : index
    %503 = tpu.strided_load %arg12[%c38_342, %c0_343] {strides = array<i32: 8, 1>} : memref<64x4xf32, #tpu.memory_space<vmem>>, vector<3x4xf32>
    %c38_344 = arith.constant 38 : index
    %c0_345 = arith.constant 0 : index
    %504 = tpu.strided_load %arg13[%c38_344, %c0_345] {strides = array<i32: 8, 1>} : memref<64x4xf32, #tpu.memory_space<vmem>>, vector<3x4xf32>
    %505 = arith.addf %503, %504 : vector<3x4xf32>
    %cst_346 = arith.constant dense<0xFF800000> : vector<3xf32>
    %506 = vector.multi_reduction <maximumf>, %502, %cst_346 [1] : vector<3x4xf32> to vector<3xf32>
    %507 = vector.shape_cast %506 : vector<3xf32> to vector<3x1xf32>
    %cst_347 = arith.constant dense<0xFF800000> : vector<1xf32>
    %508 = vector.multi_reduction <maximumf>, %507, %cst_347 [0] : vector<3x1xf32> to vector<1xf32>
    %509 = vector.shape_cast %508 : vector<1xf32> to vector<1x1xf32>
    %cst_348 = arith.constant dense<0xFF800000> : vector<3xf32>
    %510 = vector.multi_reduction <maximumf>, %505, %cst_348 [1] : vector<3x4xf32> to vector<3xf32>
    %511 = vector.shape_cast %510 : vector<3xf32> to vector<3x1xf32>
    %cst_349 = arith.constant dense<0xFF800000> : vector<1xf32>
    %512 = vector.multi_reduction <maximumf>, %511, %cst_349 [0] : vector<3x1xf32> to vector<1xf32>
    %513 = vector.shape_cast %512 : vector<1xf32> to vector<1x1xf32>
    %514 = vector.broadcast %509 : vector<1x1xf32> to vector<3x4xf32>
    %515 = arith.subf %502, %514 : vector<3x4xf32>
    %516 = math.exp %515 : vector<3x4xf32>
    %517 = vector.broadcast %513 : vector<1x1xf32> to vector<3x4xf32>
    %518 = arith.subf %505, %517 : vector<3x4xf32>
    %519 = math.exp %518 : vector<3x4xf32>
    %cst_350 = arith.constant dense<0.000000e+00> : vector<4x4xf32>
    %520 = tpu.matmul %516, %519, %cst_350 {dimension_numbers = #tpu.dot_dimension_numbers<[0], [0], [1], [1], [0, 1, 1, 1], [], []>} : vector<3x4xf32>, vector<3x4xf32>, vector<4x4xf32> -> vector<4x4xf32>
    %c12_351 = arith.constant 12 : index
    %c0_352 = arith.constant 0 : index
    %521 = vector.load %arg15[%c12_351, %c0_352] : memref<32x4xf32, #tpu.memory_space<vmem>>, vector<4x4xf32>
    tpu.vector_store %arg15[%c12_351, %c0_352], %520 {strides = array<i32>} : memref<32x4xf32, #tpu.memory_space<vmem>>, vector<4x4xf32>,
    %522 = arith.addf %509, %513 : vector<1x1xf32>
    %c36_353 = arith.constant 36 : index
    %c0_354 = arith.constant 0 : index
    %523 = vector.load %arg12[%c36_353, %c0_354] : memref<64x4xf32, #tpu.memory_space<vmem>>, vector<3x4xf32>
    %c36_355 = arith.constant 36 : index
    %c0_356 = arith.constant 0 : index
    %524 = vector.load %arg13[%c36_355, %c0_356] : memref<64x4xf32, #tpu.memory_space<vmem>>, vector<3x4xf32>
    %525 = arith.addf %523, %524 : vector<3x4xf32>
    %c47_357 = arith.constant 47 : index
    %c0_358 = arith.constant 0 : index
    %526 = tpu.strided_load %arg12[%c47_357, %c0_358] {strides = array<i32: 8, 1>} : memref<64x4xf32, #tpu.memory_space<vmem>>, vector<3x4xf32>
    %c47_359 = arith.constant 47 : index
    %c0_360 = arith.constant 0 : index
    %527 = tpu.strided_load %arg13[%c47_359, %c0_360] {strides = array<i32: 8, 1>} : memref<64x4xf32, #tpu.memory_space<vmem>>, vector<3x4xf32>
    %528 = arith.addf %526, %527 : vector<3x4xf32>
    %cst_361 = arith.constant dense<0xFF800000> : vector<3xf32>
    %529 = vector.multi_reduction <maximumf>, %525, %cst_361 [1] : vector<3x4xf32> to vector<3xf32>
    %530 = vector.shape_cast %529 : vector<3xf32> to vector<3x1xf32>
    %cst_362 = arith.constant dense<0xFF800000> : vector<1xf32>
    %531 = vector.multi_reduction <maximumf>, %530, %cst_362 [0] : vector<3x1xf32> to vector<1xf32>
    %532 = vector.shape_cast %531 : vector<1xf32> to vector<1x1xf32>
    %cst_363 = arith.constant dense<0xFF800000> : vector<3xf32>
    %533 = vector.multi_reduction <maximumf>, %528, %cst_363 [1] : vector<3x4xf32> to vector<3xf32>
    %534 = vector.shape_cast %533 : vector<3xf32> to vector<3x1xf32>
    %cst_364 = arith.constant dense<0xFF800000> : vector<1xf32>
    %535 = vector.multi_reduction <maximumf>, %534, %cst_364 [0] : vector<3x1xf32> to vector<1xf32>
    %536 = vector.shape_cast %535 : vector<1xf32> to vector<1x1xf32>
    %537 = vector.broadcast %532 : vector<1x1xf32> to vector<3x4xf32>
    %538 = arith.subf %525, %537 : vector<3x4xf32>
    %539 = math.exp %538 : vector<3x4xf32>
    %540 = vector.broadcast %536 : vector<1x1xf32> to vector<3x4xf32>
    %541 = arith.subf %528, %540 : vector<3x4xf32>
    %542 = math.exp %541 : vector<3x4xf32>
    %cst_365 = arith.constant dense<0.000000e+00> : vector<4x4xf32>
    %543 = tpu.matmul %539, %542, %cst_365 {dimension_numbers = #tpu.dot_dimension_numbers<[0], [0], [1], [1], [0, 1, 1, 1], [], []>} : vector<3x4xf32>, vector<3x4xf32>, vector<4x4xf32> -> vector<4x4xf32>
    %c16_366 = arith.constant 16 : index
    %c0_367 = arith.constant 0 : index
    %544 = vector.load %arg15[%c16_366, %c0_367] : memref<32x4xf32, #tpu.memory_space<vmem>>, vector<4x4xf32>
    tpu.vector_store %arg15[%c16_366, %c0_367], %543 {strides = array<i32>} : memref<32x4xf32, #tpu.memory_space<vmem>>, vector<4x4xf32>,
    %545 = arith.addf %532, %536 : vector<1x1xf32>
    %546 = tpu.concatenate %453, %476, %499, %522, %545 in 0 : vector<1x1xf32>, vector<1x1xf32>, vector<1x1xf32>, vector<1x1xf32>, vector<1x1xf32> -> vector<5x1xf32>
    %cst_368 = arith.constant 0.000000e+00 : f32
    %547 = vector.broadcast %cst_368 : f32 to vector<5x4xf32>
    %c0_369 = arith.constant 0 : index
    %c0_370 = arith.constant 0 : index
    %548 = tpu.strided_load %arg15[%c0_369, %c0_370] {strides = array<i32: 4, 1>} : memref<32x4xf32, #tpu.memory_space<vmem>>, vector<5x4xf32>
    %c0_371 = arith.constant 0 : index
    %c0_372 = arith.constant 0 : index
    %c0_373 = arith.constant 0 : index
    %549 = vector.load %arg9[%c0_371, %c0_372, %c0_373] : memref<4x4x4xf32, #tpu.memory_space<vmem>>, vector<1x4x4xf32>
    %550 = vector.shape_cast %549 : vector<1x4x4xf32> to vector<4x4xf32>
    %cst_374 = arith.constant dense<0.000000e+00> : vector<5x4xf32>
    %551 = tpu.matmul %548, %550, %cst_374 {dimension_numbers = #tpu.dot_dimension_numbers<[1], [0], [0], [1], [0, 0, 1, 1], [], []>} : vector<5x4xf32>, vector<4x4xf32>, vector<5x4xf32> -> vector<5x4xf32>
    %552 = arith.addf %547, %551 : vector<5x4xf32>
    %c1_375 = arith.constant 1 : index
    %c0_376 = arith.constant 0 : index
    %553 = tpu.strided_load %arg15[%c1_375, %c0_376] {strides = array<i32: 4, 1>} : memref<32x4xf32, #tpu.memory_space<vmem>>, vector<5x4xf32>
    %c1_377 = arith.constant 1 : index
    %c0_378 = arith.constant 0 : index
    %c0_379 = arith.constant 0 : index
    %554 = vector.load %arg9[%c1_377, %c0_378, %c0_379] : memref<4x4x4xf32, #tpu.memory_space<vmem>>, vector<1x4x4xf32>
    %555 = vector.shape_cast %554 : vector<1x4x4xf32> to vector<4x4xf32>
    %cst_380 = arith.constant dense<0.000000e+00> : vector<5x4xf32>
    %556 = tpu.matmul %553, %555, %cst_380 {dimension_numbers = #tpu.dot_dimension_numbers<[1], [0], [0], [1], [0, 0, 1, 1], [], []>} : vector<5x4xf32>, vector<4x4xf32>, vector<5x4xf32> -> vector<5x4xf32>
    %557 = arith.addf %552, %556 : vector<5x4xf32>
    %c2_381 = arith.constant 2 : index
    %c0_382 = arith.constant 0 : index
    %558 = tpu.strided_load %arg15[%c2_381, %c0_382] {strides = array<i32: 4, 1>} : memref<32x4xf32, #tpu.memory_space<vmem>>, vector<5x4xf32>
    %c2_383 = arith.constant 2 : index
    %c0_384 = arith.constant 0 : index
    %c0_385 = arith.constant 0 : index
    %559 = vector.load %arg9[%c2_383, %c0_384, %c0_385] : memref<4x4x4xf32, #tpu.memory_space<vmem>>, vector<1x4x4xf32>
    %560 = vector.shape_cast %559 : vector<1x4x4xf32> to vector<4x4xf32>
    %cst_386 = arith.constant dense<0.000000e+00> : vector<5x4xf32>
    %561 = tpu.matmul %558, %560, %cst_386 {dimension_numbers = #tpu.dot_dimension_numbers<[1], [0], [0], [1], [0, 0, 1, 1], [], []>} : vector<5x4xf32>, vector<4x4xf32>, vector<5x4xf32> -> vector<5x4xf32>
    %562 = arith.addf %557, %561 : vector<5x4xf32>
    %c3_387 = arith.constant 3 : index
    %c0_388 = arith.constant 0 : index
    %563 = tpu.strided_load %arg15[%c3_387, %c0_388] {strides = array<i32: 4, 1>} : memref<32x4xf32, #tpu.memory_space<vmem>>, vector<5x4xf32>
    %c3_389 = arith.constant 3 : index
    %c0_390 = arith.constant 0 : index
    %c0_391 = arith.constant 0 : index
    %564 = vector.load %arg9[%c3_389, %c0_390, %c0_391] : memref<4x4x4xf32, #tpu.memory_space<vmem>>, vector<1x4x4xf32>
    %565 = vector.shape_cast %564 : vector<1x4x4xf32> to vector<4x4xf32>
    %cst_392 = arith.constant dense<0.000000e+00> : vector<5x4xf32>
    %566 = tpu.matmul %563, %565, %cst_392 {dimension_numbers = #tpu.dot_dimension_numbers<[1], [0], [0], [1], [0, 0, 1, 1], [], []>} : vector<5x4xf32>, vector<4x4xf32>, vector<5x4xf32> -> vector<5x4xf32>
    %567 = arith.addf %562, %566 : vector<5x4xf32>
    %c3_393 = arith.constant 3 : index
    %c0_394 = arith.constant 0 : index
    %568 = tpu.strided_load %arg13[%c3_393, %c0_394] {strides = array<i32: 9, 1>} : memref<64x4xf32, #tpu.memory_space<vmem>>, vector<5x4xf32>
    %c3_395 = arith.constant 3 : index
    %c0_396 = arith.constant 0 : index
    %569 = tpu.strided_load %arg14[%c3_395, %c0_396] {strides = array<i32: 9, 1>} : memref<64x1xf32, #tpu.memory_space<vmem>>, vector<5x1xf32>
    %570 = math.log %567 : vector<5x4xf32>
    %571 = vector.broadcast %546 : vector<5x1xf32> to vector<5x4xf32>
    %572 = arith.addf %571, %570 : vector<5x4xf32>
    %573 = arith.addf %572, %568 : vector<5x4xf32>
    %574 = vector.broadcast %569 : vector<5x1xf32> to vector<5x4xf32>
    %575 = arith.addf %573, %574 : vector<5x4xf32>
    %576 = vector.extract_strided_slice %575 {offsets = [0, 0], sizes = [1, 4], strides = [1, 1]} : vector<5x4xf32> to vector<1x4xf32>
    %c3_397 = arith.constant 3 : index
    %c0_398 = arith.constant 0 : index
    %577 = vector.load %arg12[%c3_397, %c0_398] : memref<64x4xf32, #tpu.memory_space<vmem>>, vector<1x4xf32>
    tpu.vector_store %arg12[%c3_397, %c0_398], %576 {strides = array<i32>} : memref<64x4xf32, #tpu.memory_space<vmem>>, vector<1x4xf32>,
    %578 = vector.extract_strided_slice %575 {offsets = [1, 0], sizes = [1, 4], strides = [1, 1]} : vector<5x4xf32> to vector<1x4xf32>
    %c12_399 = arith.constant 12 : index
    %c0_400 = arith.constant 0 : index
    %579 = vector.load %arg12[%c12_399, %c0_400] : memref<64x4xf32, #tpu.memory_space<vmem>>, vector<1x4xf32>
    tpu.vector_store %arg12[%c12_399, %c0_400], %578 {strides = array<i32>} : memref<64x4xf32, #tpu.memory_space<vmem>>, vector<1x4xf32>,
    %580 = vector.extract_strided_slice %575 {offsets = [2, 0], sizes = [1, 4], strides = [1, 1]} : vector<5x4xf32> to vector<1x4xf32>
    %c21 = arith.constant 21 : index
    %c0_401 = arith.constant 0 : index
    %581 = vector.load %arg12[%c21, %c0_401] : memref<64x4xf32, #tpu.memory_space<vmem>>, vector<1x4xf32>
    tpu.vector_store %arg12[%c21, %c0_401], %580 {strides = array<i32>} : memref<64x4xf32, #tpu.memory_space<vmem>>, vector<1x4xf32>,
    %582 = vector.extract_strided_slice %575 {offsets = [3, 0], sizes = [1, 4], strides = [1, 1]} : vector<5x4xf32> to vector<1x4xf32>
    %c30 = arith.constant 30 : index
    %c0_402 = arith.constant 0 : index
    %583 = vector.load %arg12[%c30, %c0_402] : memref<64x4xf32, #tpu.memory_space<vmem>>, vector<1x4xf32>
    tpu.vector_store %arg12[%c30, %c0_402], %582 {strides = array<i32>} : memref<64x4xf32, #tpu.memory_space<vmem>>, vector<1x4xf32>,
    %584 = vector.extract_strided_slice %575 {offsets = [4, 0], sizes = [1, 4], strides = [1, 1]} : vector<5x4xf32> to vector<1x4xf32>
    %c39 = arith.constant 39 : index
    %c0_403 = arith.constant 0 : index
    %585 = vector.load %arg12[%c39, %c0_403] : memref<64x4xf32, #tpu.memory_space<vmem>>, vector<1x4xf32>
    tpu.vector_store %arg12[%c39, %c0_403], %584 {strides = array<i32>} : memref<64x4xf32, #tpu.memory_space<vmem>>, vector<1x4xf32>,
    %c0_404 = arith.constant 0 : index
    %c0_405 = arith.constant 0 : index
    %586 = vector.load %arg12[%c0_404, %c0_405] : memref<64x4xf32, #tpu.memory_space<vmem>>, vector<4x4xf32>
    %c0_406 = arith.constant 0 : index
    %c0_407 = arith.constant 0 : index
    %587 = vector.load %arg13[%c0_406, %c0_407] : memref<64x4xf32, #tpu.memory_space<vmem>>, vector<4x4xf32>
    %588 = arith.addf %586, %587 : vector<4x4xf32>
    %c12_408 = arith.constant 12 : index
    %c0_409 = arith.constant 0 : index
    %589 = tpu.strided_load %arg12[%c12_408, %c0_409] {strides = array<i32: 8, 1>} : memref<64x4xf32, #tpu.memory_space<vmem>>, vector<4x4xf32>
    %c12_410 = arith.constant 12 : index
    %c0_411 = arith.constant 0 : index
    %590 = tpu.strided_load %arg13[%c12_410, %c0_411] {strides = array<i32: 8, 1>} : memref<64x4xf32, #tpu.memory_space<vmem>>, vector<4x4xf32>
    %591 = arith.addf %589, %590 : vector<4x4xf32>
    %cst_412 = arith.constant dense<0xFF800000> : vector<4xf32>
    %592 = vector.multi_reduction <maximumf>, %588, %cst_412 [1] : vector<4x4xf32> to vector<4xf32>
    %593 = vector.shape_cast %592 : vector<4xf32> to vector<4x1xf32>
    %cst_413 = arith.constant dense<0xFF800000> : vector<1xf32>
    %594 = vector.multi_reduction <maximumf>, %593, %cst_413 [0] : vector<4x1xf32> to vector<1xf32>
    %595 = vector.shape_cast %594 : vector<1xf32> to vector<1x1xf32>
    %cst_414 = arith.constant dense<0xFF800000> : vector<4xf32>
    %596 = vector.multi_reduction <maximumf>, %591, %cst_414 [1] : vector<4x4xf32> to vector<4xf32>
    %597 = vector.shape_cast %596 : vector<4xf32> to vector<4x1xf32>
    %cst_415 = arith.constant dense<0xFF800000> : vector<1xf32>
    %598 = vector.multi_reduction <maximumf>, %597, %cst_415 [0] : vector<4x1xf32> to vector<1xf32>
    %599 = vector.shape_cast %598 : vector<1xf32> to vector<1x1xf32>
    %600 = vector.broadcast %595 : vector<1x1xf32> to vector<4x4xf32>
    %601 = arith.subf %588, %600 : vector<4x4xf32>
    %602 = math.exp %601 : vector<4x4xf32>
    %603 = vector.broadcast %599 : vector<1x1xf32> to vector<4x4xf32>
    %604 = arith.subf %591, %603 : vector<4x4xf32>
    %605 = math.exp %604 : vector<4x4xf32>
    %cst_416 = arith.constant dense<0.000000e+00> : vector<4x4xf32>
    %606 = tpu.matmul %602, %605, %cst_416 {dimension_numbers = #tpu.dot_dimension_numbers<[0], [0], [1], [1], [0, 1, 1, 1], [], []>} : vector<4x4xf32>, vector<4x4xf32>, vector<4x4xf32> -> vector<4x4xf32>
    %c0_417 = arith.constant 0 : index
    %c0_418 = arith.constant 0 : index
    %607 = vector.load %arg15[%c0_417, %c0_418] : memref<32x4xf32, #tpu.memory_space<vmem>>, vector<4x4xf32>
    tpu.vector_store %arg15[%c0_417, %c0_418], %606 {strides = array<i32>} : memref<32x4xf32, #tpu.memory_space<vmem>>, vector<4x4xf32>,
    %608 = arith.addf %595, %599 : vector<1x1xf32>
    %c9_419 = arith.constant 9 : index
    %c0_420 = arith.constant 0 : index
    %609 = vector.load %arg12[%c9_419, %c0_420] : memref<64x4xf32, #tpu.memory_space<vmem>>, vector<4x4xf32>
    %c9_421 = arith.constant 9 : index
    %c0_422 = arith.constant 0 : index
    %610 = vector.load %arg13[%c9_421, %c0_422] : memref<64x4xf32, #tpu.memory_space<vmem>>, vector<4x4xf32>
    %611 = arith.addf %609, %610 : vector<4x4xf32>
    %c21_423 = arith.constant 21 : index
    %c0_424 = arith.constant 0 : index
    %612 = tpu.strided_load %arg12[%c21_423, %c0_424] {strides = array<i32: 8, 1>} : memref<64x4xf32, #tpu.memory_space<vmem>>, vector<4x4xf32>
    %c21_425 = arith.constant 21 : index
    %c0_426 = arith.constant 0 : index
    %613 = tpu.strided_load %arg13[%c21_425, %c0_426] {strides = array<i32: 8, 1>} : memref<64x4xf32, #tpu.memory_space<vmem>>, vector<4x4xf32>
    %614 = arith.addf %612, %613 : vector<4x4xf32>
    %cst_427 = arith.constant dense<0xFF800000> : vector<4xf32>
    %615 = vector.multi_reduction <maximumf>, %611, %cst_427 [1] : vector<4x4xf32> to vector<4xf32>
    %616 = vector.shape_cast %615 : vector<4xf32> to vector<4x1xf32>
    %cst_428 = arith.constant dense<0xFF800000> : vector<1xf32>
    %617 = vector.multi_reduction <maximumf>, %616, %cst_428 [0] : vector<4x1xf32> to vector<1xf32>
    %618 = vector.shape_cast %617 : vector<1xf32> to vector<1x1xf32>
    %cst_429 = arith.constant dense<0xFF800000> : vector<4xf32>
    %619 = vector.multi_reduction <maximumf>, %614, %cst_429 [1] : vector<4x4xf32> to vector<4xf32>
    %620 = vector.shape_cast %619 : vector<4xf32> to vector<4x1xf32>
    %cst_430 = arith.constant dense<0xFF800000> : vector<1xf32>
    %621 = vector.multi_reduction <maximumf>, %620, %cst_430 [0] : vector<4x1xf32> to vector<1xf32>
    %622 = vector.shape_cast %621 : vector<1xf32> to vector<1x1xf32>
    %623 = vector.broadcast %618 : vector<1x1xf32> to vector<4x4xf32>
    %624 = arith.subf %611, %623 : vector<4x4xf32>
    %625 = math.exp %624 : vector<4x4xf32>
    %626 = vector.broadcast %622 : vector<1x1xf32> to vector<4x4xf32>
    %627 = arith.subf %614, %626 : vector<4x4xf32>
    %628 = math.exp %627 : vector<4x4xf32>
    %cst_431 = arith.constant dense<0.000000e+00> : vector<4x4xf32>
    %629 = tpu.matmul %625, %628, %cst_431 {dimension_numbers = #tpu.dot_dimension_numbers<[0], [0], [1], [1], [0, 1, 1, 1], [], []>} : vector<4x4xf32>, vector<4x4xf32>, vector<4x4xf32> -> vector<4x4xf32>
    %c4_432 = arith.constant 4 : index
    %c0_433 = arith.constant 0 : index
    %630 = vector.load %arg15[%c4_432, %c0_433] : memref<32x4xf32, #tpu.memory_space<vmem>>, vector<4x4xf32>
    tpu.vector_store %arg15[%c4_432, %c0_433], %629 {strides = array<i32>} : memref<32x4xf32, #tpu.memory_space<vmem>>, vector<4x4xf32>,
    %631 = arith.addf %618, %622 : vector<1x1xf32>
    %c18_434 = arith.constant 18 : index
    %c0_435 = arith.constant 0 : index
    %632 = vector.load %arg12[%c18_434, %c0_435] : memref<64x4xf32, #tpu.memory_space<vmem>>, vector<4x4xf32>
    %c18_436 = arith.constant 18 : index
    %c0_437 = arith.constant 0 : index
    %633 = vector.load %arg13[%c18_436, %c0_437] : memref<64x4xf32, #tpu.memory_space<vmem>>, vector<4x4xf32>
    %634 = arith.addf %632, %633 : vector<4x4xf32>
    %c30_438 = arith.constant 30 : index
    %c0_439 = arith.constant 0 : index
    %635 = tpu.strided_load %arg12[%c30_438, %c0_439] {strides = array<i32: 8, 1>} : memref<64x4xf32, #tpu.memory_space<vmem>>, vector<4x4xf32>
    %c30_440 = arith.constant 30 : index
    %c0_441 = arith.constant 0 : index
    %636 = tpu.strided_load %arg13[%c30_440, %c0_441] {strides = array<i32: 8, 1>} : memref<64x4xf32, #tpu.memory_space<vmem>>, vector<4x4xf32>
    %637 = arith.addf %635, %636 : vector<4x4xf32>
    %cst_442 = arith.constant dense<0xFF800000> : vector<4xf32>
    %638 = vector.multi_reduction <maximumf>, %634, %cst_442 [1] : vector<4x4xf32> to vector<4xf32>
    %639 = vector.shape_cast %638 : vector<4xf32> to vector<4x1xf32>
    %cst_443 = arith.constant dense<0xFF800000> : vector<1xf32>
    %640 = vector.multi_reduction <maximumf>, %639, %cst_443 [0] : vector<4x1xf32> to vector<1xf32>
    %641 = vector.shape_cast %640 : vector<1xf32> to vector<1x1xf32>
    %cst_444 = arith.constant dense<0xFF800000> : vector<4xf32>
    %642 = vector.multi_reduction <maximumf>, %637, %cst_444 [1] : vector<4x4xf32> to vector<4xf32>
    %643 = vector.shape_cast %642 : vector<4xf32> to vector<4x1xf32>
    %cst_445 = arith.constant dense<0xFF800000> : vector<1xf32>
    %644 = vector.multi_reduction <maximumf>, %643, %cst_445 [0] : vector<4x1xf32> to vector<1xf32>
    %645 = vector.shape_cast %644 : vector<1xf32> to vector<1x1xf32>
    %646 = vector.broadcast %641 : vector<1x1xf32> to vector<4x4xf32>
    %647 = arith.subf %634, %646 : vector<4x4xf32>
    %648 = math.exp %647 : vector<4x4xf32>
    %649 = vector.broadcast %645 : vector<1x1xf32> to vector<4x4xf32>
    %650 = arith.subf %637, %649 : vector<4x4xf32>
    %651 = math.exp %650 : vector<4x4xf32>
    %cst_446 = arith.constant dense<0.000000e+00> : vector<4x4xf32>
    %652 = tpu.matmul %648, %651, %cst_446 {dimension_numbers = #tpu.dot_dimension_numbers<[0], [0], [1], [1], [0, 1, 1, 1], [], []>} : vector<4x4xf32>, vector<4x4xf32>, vector<4x4xf32> -> vector<4x4xf32>
    %c8_447 = arith.constant 8 : index
    %c0_448 = arith.constant 0 : index
    %653 = vector.load %arg15[%c8_447, %c0_448] : memref<32x4xf32, #tpu.memory_space<vmem>>, vector<4x4xf32>
    tpu.vector_store %arg15[%c8_447, %c0_448], %652 {strides = array<i32>} : memref<32x4xf32, #tpu.memory_space<vmem>>, vector<4x4xf32>,
    %654 = arith.addf %641, %645 : vector<1x1xf32>
    %c27_449 = arith.constant 27 : index
    %c0_450 = arith.constant 0 : index
    %655 = vector.load %arg12[%c27_449, %c0_450] : memref<64x4xf32, #tpu.memory_space<vmem>>, vector<4x4xf32>
    %c27_451 = arith.constant 27 : index
    %c0_452 = arith.constant 0 : index
    %656 = vector.load %arg13[%c27_451, %c0_452] : memref<64x4xf32, #tpu.memory_space<vmem>>, vector<4x4xf32>
    %657 = arith.addf %655, %656 : vector<4x4xf32>
    %c39_453 = arith.constant 39 : index
    %c0_454 = arith.constant 0 : index
    %658 = tpu.strided_load %arg12[%c39_453, %c0_454] {strides = array<i32: 8, 1>} : memref<64x4xf32, #tpu.memory_space<vmem>>, vector<4x4xf32>
    %c39_455 = arith.constant 39 : index
    %c0_456 = arith.constant 0 : index
    %659 = tpu.strided_load %arg13[%c39_455, %c0_456] {strides = array<i32: 8, 1>} : memref<64x4xf32, #tpu.memory_space<vmem>>, vector<4x4xf32>
    %660 = arith.addf %658, %659 : vector<4x4xf32>
    %cst_457 = arith.constant dense<0xFF800000> : vector<4xf32>
    %661 = vector.multi_reduction <maximumf>, %657, %cst_457 [1] : vector<4x4xf32> to vector<4xf32>
    %662 = vector.shape_cast %661 : vector<4xf32> to vector<4x1xf32>
    %cst_458 = arith.constant dense<0xFF800000> : vector<1xf32>
    %663 = vector.multi_reduction <maximumf>, %662, %cst_458 [0] : vector<4x1xf32> to vector<1xf32>
    %664 = vector.shape_cast %663 : vector<1xf32> to vector<1x1xf32>
    %cst_459 = arith.constant dense<0xFF800000> : vector<4xf32>
    %665 = vector.multi_reduction <maximumf>, %660, %cst_459 [1] : vector<4x4xf32> to vector<4xf32>
    %666 = vector.shape_cast %665 : vector<4xf32> to vector<4x1xf32>
    %cst_460 = arith.constant dense<0xFF800000> : vector<1xf32>
    %667 = vector.multi_reduction <maximumf>, %666, %cst_460 [0] : vector<4x1xf32> to vector<1xf32>
    %668 = vector.shape_cast %667 : vector<1xf32> to vector<1x1xf32>
    %669 = vector.broadcast %664 : vector<1x1xf32> to vector<4x4xf32>
    %670 = arith.subf %657, %669 : vector<4x4xf32>
    %671 = math.exp %670 : vector<4x4xf32>
    %672 = vector.broadcast %668 : vector<1x1xf32> to vector<4x4xf32>
    %673 = arith.subf %660, %672 : vector<4x4xf32>
    %674 = math.exp %673 : vector<4x4xf32>
    %cst_461 = arith.constant dense<0.000000e+00> : vector<4x4xf32>
    %675 = tpu.matmul %671, %674, %cst_461 {dimension_numbers = #tpu.dot_dimension_numbers<[0], [0], [1], [1], [0, 1, 1, 1], [], []>} : vector<4x4xf32>, vector<4x4xf32>, vector<4x4xf32> -> vector<4x4xf32>
    %c12_462 = arith.constant 12 : index
    %c0_463 = arith.constant 0 : index
    %676 = vector.load %arg15[%c12_462, %c0_463] : memref<32x4xf32, #tpu.memory_space<vmem>>, vector<4x4xf32>
    tpu.vector_store %arg15[%c12_462, %c0_463], %675 {strides = array<i32>} : memref<32x4xf32, #tpu.memory_space<vmem>>, vector<4x4xf32>,
    %677 = arith.addf %664, %668 : vector<1x1xf32>
    %678 = tpu.concatenate %608, %631, %654, %677 in 0 : vector<1x1xf32>, vector<1x1xf32>, vector<1x1xf32>, vector<1x1xf32> -> vector<4x1xf32>
    %cst_464 = arith.constant 0.000000e+00 : f32
    %679 = vector.broadcast %cst_464 : f32 to vector<4x4xf32>
    %c0_465 = arith.constant 0 : index
    %c0_466 = arith.constant 0 : index
    %680 = tpu.strided_load %arg15[%c0_465, %c0_466] {strides = array<i32: 4, 1>} : memref<32x4xf32, #tpu.memory_space<vmem>>, vector<4x4xf32>
    %c0_467 = arith.constant 0 : index
    %c0_468 = arith.constant 0 : index
    %c0_469 = arith.constant 0 : index
    %681 = vector.load %arg9[%c0_467, %c0_468, %c0_469] : memref<4x4x4xf32, #tpu.memory_space<vmem>>, vector<1x4x4xf32>
    %682 = vector.shape_cast %681 : vector<1x4x4xf32> to vector<4x4xf32>
    %cst_470 = arith.constant dense<0.000000e+00> : vector<4x4xf32>
    %683 = tpu.matmul %680, %682, %cst_470 {dimension_numbers = #tpu.dot_dimension_numbers<[1], [0], [0], [1], [0, 0, 1, 1], [], []>} : vector<4x4xf32>, vector<4x4xf32>, vector<4x4xf32> -> vector<4x4xf32>
    %684 = arith.addf %679, %683 : vector<4x4xf32>
    %c1_471 = arith.constant 1 : index
    %c0_472 = arith.constant 0 : index
    %685 = tpu.strided_load %arg15[%c1_471, %c0_472] {strides = array<i32: 4, 1>} : memref<32x4xf32, #tpu.memory_space<vmem>>, vector<4x4xf32>
    %c1_473 = arith.constant 1 : index
    %c0_474 = arith.constant 0 : index
    %c0_475 = arith.constant 0 : index
    %686 = vector.load %arg9[%c1_473, %c0_474, %c0_475] : memref<4x4x4xf32, #tpu.memory_space<vmem>>, vector<1x4x4xf32>
    %687 = vector.shape_cast %686 : vector<1x4x4xf32> to vector<4x4xf32>
    %cst_476 = arith.constant dense<0.000000e+00> : vector<4x4xf32>
    %688 = tpu.matmul %685, %687, %cst_476 {dimension_numbers = #tpu.dot_dimension_numbers<[1], [0], [0], [1], [0, 0, 1, 1], [], []>} : vector<4x4xf32>, vector<4x4xf32>, vector<4x4xf32> -> vector<4x4xf32>
    %689 = arith.addf %684, %688 : vector<4x4xf32>
    %c2_477 = arith.constant 2 : index
    %c0_478 = arith.constant 0 : index
    %690 = tpu.strided_load %arg15[%c2_477, %c0_478] {strides = array<i32: 4, 1>} : memref<32x4xf32, #tpu.memory_space<vmem>>, vector<4x4xf32>
    %c2_479 = arith.constant 2 : index
    %c0_480 = arith.constant 0 : index
    %c0_481 = arith.constant 0 : index
    %691 = vector.load %arg9[%c2_479, %c0_480, %c0_481] : memref<4x4x4xf32, #tpu.memory_space<vmem>>, vector<1x4x4xf32>
    %692 = vector.shape_cast %691 : vector<1x4x4xf32> to vector<4x4xf32>
    %cst_482 = arith.constant dense<0.000000e+00> : vector<4x4xf32>
    %693 = tpu.matmul %690, %692, %cst_482 {dimension_numbers = #tpu.dot_dimension_numbers<[1], [0], [0], [1], [0, 0, 1, 1], [], []>} : vector<4x4xf32>, vector<4x4xf32>, vector<4x4xf32> -> vector<4x4xf32>
    %694 = arith.addf %689, %693 : vector<4x4xf32>
    %c3_483 = arith.constant 3 : index
    %c0_484 = arith.constant 0 : index
    %695 = tpu.strided_load %arg15[%c3_483, %c0_484] {strides = array<i32: 4, 1>} : memref<32x4xf32, #tpu.memory_space<vmem>>, vector<4x4xf32>
    %c3_485 = arith.constant 3 : index
    %c0_486 = arith.constant 0 : index
    %c0_487 = arith.constant 0 : index
    %696 = vector.load %arg9[%c3_485, %c0_486, %c0_487] : memref<4x4x4xf32, #tpu.memory_space<vmem>>, vector<1x4x4xf32>
    %697 = vector.shape_cast %696 : vector<1x4x4xf32> to vector<4x4xf32>
    %cst_488 = arith.constant dense<0.000000e+00> : vector<4x4xf32>
    %698 = tpu.matmul %695, %697, %cst_488 {dimension_numbers = #tpu.dot_dimension_numbers<[1], [0], [0], [1], [0, 0, 1, 1], [], []>} : vector<4x4xf32>, vector<4x4xf32>, vector<4x4xf32> -> vector<4x4xf32>
    %699 = arith.addf %694, %698 : vector<4x4xf32>
    %c4_489 = arith.constant 4 : index
    %c0_490 = arith.constant 0 : index
    %700 = tpu.strided_load %arg13[%c4_489, %c0_490] {strides = array<i32: 9, 1>} : memref<64x4xf32, #tpu.memory_space<vmem>>, vector<4x4xf32>
    %c4_491 = arith.constant 4 : index
    %c0_492 = arith.constant 0 : index
    %701 = tpu.strided_load %arg14[%c4_491, %c0_492] {strides = array<i32: 9, 1>} : memref<64x1xf32, #tpu.memory_space<vmem>>, vector<4x1xf32>
    %702 = math.log %699 : vector<4x4xf32>
    %703 = vector.broadcast %678 : vector<4x1xf32> to vector<4x4xf32>
    %704 = arith.addf %703, %702 : vector<4x4xf32>
    %705 = arith.addf %704, %700 : vector<4x4xf32>
    %706 = vector.broadcast %701 : vector<4x1xf32> to vector<4x4xf32>
    %707 = arith.addf %705, %706 : vector<4x4xf32>
    %708 = vector.extract_strided_slice %707 {offsets = [0, 0], sizes = [1, 4], strides = [1, 1]} : vector<4x4xf32> to vector<1x4xf32>
    %c4_493 = arith.constant 4 : index
    %c0_494 = arith.constant 0 : index
    %709 = vector.load %arg12[%c4_493, %c0_494] : memref<64x4xf32, #tpu.memory_space<vmem>>, vector<1x4xf32>
    tpu.vector_store %arg12[%c4_493, %c0_494], %708 {strides = array<i32>} : memref<64x4xf32, #tpu.memory_space<vmem>>, vector<1x4xf32>,
    %710 = vector.extract_strided_slice %707 {offsets = [1, 0], sizes = [1, 4], strides = [1, 1]} : vector<4x4xf32> to vector<1x4xf32>
    %c13 = arith.constant 13 : index
    %c0_495 = arith.constant 0 : index
    %711 = vector.load %arg12[%c13, %c0_495] : memref<64x4xf32, #tpu.memory_space<vmem>>, vector<1x4xf32>
    tpu.vector_store %arg12[%c13, %c0_495], %710 {strides = array<i32>} : memref<64x4xf32, #tpu.memory_space<vmem>>, vector<1x4xf32>,
    %712 = vector.extract_strided_slice %707 {offsets = [2, 0], sizes = [1, 4], strides = [1, 1]} : vector<4x4xf32> to vector<1x4xf32>
    %c22 = arith.constant 22 : index
    %c0_496 = arith.constant 0 : index
    %713 = vector.load %arg12[%c22, %c0_496] : memref<64x4xf32, #tpu.memory_space<vmem>>, vector<1x4xf32>
    tpu.vector_store %arg12[%c22, %c0_496], %712 {strides = array<i32>} : memref<64x4xf32, #tpu.memory_space<vmem>>, vector<1x4xf32>,
    %714 = vector.extract_strided_slice %707 {offsets = [3, 0], sizes = [1, 4], strides = [1, 1]} : vector<4x4xf32> to vector<1x4xf32>
    %c31 = arith.constant 31 : index
    %c0_497 = arith.constant 0 : index
    %715 = vector.load %arg12[%c31, %c0_497] : memref<64x4xf32, #tpu.memory_space<vmem>>, vector<1x4xf32>
    tpu.vector_store %arg12[%c31, %c0_497], %714 {strides = array<i32>} : memref<64x4xf32, #tpu.memory_space<vmem>>, vector<1x4xf32>,
    %c0_498 = arith.constant 0 : index
    %c0_499 = arith.constant 0 : index
    %716 = vector.load %arg12[%c0_498, %c0_499] : memref<64x4xf32, #tpu.memory_space<vmem>>, vector<5x4xf32>
    %c0_500 = arith.constant 0 : index
    %c0_501 = arith.constant 0 : index
    %717 = vector.load %arg13[%c0_500, %c0_501] : memref<64x4xf32, #tpu.memory_space<vmem>>, vector<5x4xf32>
    %718 = arith.addf %716, %717 : vector<5x4xf32>
    %c13_502 = arith.constant 13 : index
    %c0_503 = arith.constant 0 : index
    %719 = tpu.strided_load %arg12[%c13_502, %c0_503] {strides = array<i32: 8, 1>} : memref<64x4xf32, #tpu.memory_space<vmem>>, vector<5x4xf32>
    %c13_504 = arith.constant 13 : index
    %c0_505 = arith.constant 0 : index
    %720 = tpu.strided_load %arg13[%c13_504, %c0_505] {strides = array<i32: 8, 1>} : memref<64x4xf32, #tpu.memory_space<vmem>>, vector<5x4xf32>
    %721 = arith.addf %719, %720 : vector<5x4xf32>
    %cst_506 = arith.constant dense<0xFF800000> : vector<5xf32>
    %722 = vector.multi_reduction <maximumf>, %718, %cst_506 [1] : vector<5x4xf32> to vector<5xf32>
    %723 = vector.shape_cast %722 : vector<5xf32> to vector<5x1xf32>
    %cst_507 = arith.constant dense<0xFF800000> : vector<1xf32>
    %724 = vector.multi_reduction <maximumf>, %723, %cst_507 [0] : vector<5x1xf32> to vector<1xf32>
    %725 = vector.shape_cast %724 : vector<1xf32> to vector<1x1xf32>
    %cst_508 = arith.constant dense<0xFF800000> : vector<5xf32>
    %726 = vector.multi_reduction <maximumf>, %721, %cst_508 [1] : vector<5x4xf32> to vector<5xf32>
    %727 = vector.shape_cast %726 : vector<5xf32> to vector<5x1xf32>
    %cst_509 = arith.constant dense<0xFF800000> : vector<1xf32>
    %728 = vector.multi_reduction <maximumf>, %727, %cst_509 [0] : vector<5x1xf32> to vector<1xf32>
    %729 = vector.shape_cast %728 : vector<1xf32> to vector<1x1xf32>
    %730 = vector.broadcast %725 : vector<1x1xf32> to vector<5x4xf32>
    %731 = arith.subf %718, %730 : vector<5x4xf32>
    %732 = math.exp %731 : vector<5x4xf32>
    %733 = vector.broadcast %729 : vector<1x1xf32> to vector<5x4xf32>
    %734 = arith.subf %721, %733 : vector<5x4xf32>
    %735 = math.exp %734 : vector<5x4xf32>
    %cst_510 = arith.constant dense<0.000000e+00> : vector<4x4xf32>
    %736 = tpu.matmul %732, %735, %cst_510 {dimension_numbers = #tpu.dot_dimension_numbers<[0], [0], [1], [1], [0, 1, 1, 1], [], []>} : vector<5x4xf32>, vector<5x4xf32>, vector<4x4xf32> -> vector<4x4xf32>
    %c0_511 = arith.constant 0 : index
    %c0_512 = arith.constant 0 : index
    %737 = vector.load %arg15[%c0_511, %c0_512] : memref<32x4xf32, #tpu.memory_space<vmem>>, vector<4x4xf32>
    tpu.vector_store %arg15[%c0_511, %c0_512], %736 {strides = array<i32>} : memref<32x4xf32, #tpu.memory_space<vmem>>, vector<4x4xf32>,
    %738 = arith.addf %725, %729 : vector<1x1xf32>
    %c9_513 = arith.constant 9 : index
    %c0_514 = arith.constant 0 : index
    %739 = vector.load %arg12[%c9_513, %c0_514] : memref<64x4xf32, #tpu.memory_space<vmem>>, vector<5x4xf32>
    %c9_515 = arith.constant 9 : index
    %c0_516 = arith.constant 0 : index
    %740 = vector.load %arg13[%c9_515, %c0_516] : memref<64x4xf32, #tpu.memory_space<vmem>>, vector<5x4xf32>
    %741 = arith.addf %739, %740 : vector<5x4xf32>
    %c22_517 = arith.constant 22 : index
    %c0_518 = arith.constant 0 : index
    %742 = tpu.strided_load %arg12[%c22_517, %c0_518] {strides = array<i32: 8, 1>} : memref<64x4xf32, #tpu.memory_space<vmem>>, vector<5x4xf32>
    %c22_519 = arith.constant 22 : index
    %c0_520 = arith.constant 0 : index
    %743 = tpu.strided_load %arg13[%c22_519, %c0_520] {strides = array<i32: 8, 1>} : memref<64x4xf32, #tpu.memory_space<vmem>>, vector<5x4xf32>
    %744 = arith.addf %742, %743 : vector<5x4xf32>
    %cst_521 = arith.constant dense<0xFF800000> : vector<5xf32>
    %745 = vector.multi_reduction <maximumf>, %741, %cst_521 [1] : vector<5x4xf32> to vector<5xf32>
    %746 = vector.shape_cast %745 : vector<5xf32> to vector<5x1xf32>
    %cst_522 = arith.constant dense<0xFF800000> : vector<1xf32>
    %747 = vector.multi_reduction <maximumf>, %746, %cst_522 [0] : vector<5x1xf32> to vector<1xf32>
    %748 = vector.shape_cast %747 : vector<1xf32> to vector<1x1xf32>
    %cst_523 = arith.constant dense<0xFF800000> : vector<5xf32>
    %749 = vector.multi_reduction <maximumf>, %744, %cst_523 [1] : vector<5x4xf32> to vector<5xf32>
    %750 = vector.shape_cast %749 : vector<5xf32> to vector<5x1xf32>
    %cst_524 = arith.constant dense<0xFF800000> : vector<1xf32>
    %751 = vector.multi_reduction <maximumf>, %750, %cst_524 [0] : vector<5x1xf32> to vector<1xf32>
    %752 = vector.shape_cast %751 : vector<1xf32> to vector<1x1xf32>
    %753 = vector.broadcast %748 : vector<1x1xf32> to vector<5x4xf32>
    %754 = arith.subf %741, %753 : vector<5x4xf32>
    %755 = math.exp %754 : vector<5x4xf32>
    %756 = vector.broadcast %752 : vector<1x1xf32> to vector<5x4xf32>
    %757 = arith.subf %744, %756 : vector<5x4xf32>
    %758 = math.exp %757 : vector<5x4xf32>
    %cst_525 = arith.constant dense<0.000000e+00> : vector<4x4xf32>
    %759 = tpu.matmul %755, %758, %cst_525 {dimension_numbers = #tpu.dot_dimension_numbers<[0], [0], [1], [1], [0, 1, 1, 1], [], []>} : vector<5x4xf32>, vector<5x4xf32>, vector<4x4xf32> -> vector<4x4xf32>
    %c4_526 = arith.constant 4 : index
    %c0_527 = arith.constant 0 : index
    %760 = vector.load %arg15[%c4_526, %c0_527] : memref<32x4xf32, #tpu.memory_space<vmem>>, vector<4x4xf32>
    tpu.vector_store %arg15[%c4_526, %c0_527], %759 {strides = array<i32>} : memref<32x4xf32, #tpu.memory_space<vmem>>, vector<4x4xf32>,
    %761 = arith.addf %748, %752 : vector<1x1xf32>
    %c18_528 = arith.constant 18 : index
    %c0_529 = arith.constant 0 : index
    %762 = vector.load %arg12[%c18_528, %c0_529] : memref<64x4xf32, #tpu.memory_space<vmem>>, vector<5x4xf32>
    %c18_530 = arith.constant 18 : index
    %c0_531 = arith.constant 0 : index
    %763 = vector.load %arg13[%c18_530, %c0_531] : memref<64x4xf32, #tpu.memory_space<vmem>>, vector<5x4xf32>
    %764 = arith.addf %762, %763 : vector<5x4xf32>
    %c31_532 = arith.constant 31 : index
    %c0_533 = arith.constant 0 : index
    %765 = tpu.strided_load %arg12[%c31_532, %c0_533] {strides = array<i32: 8, 1>} : memref<64x4xf32, #tpu.memory_space<vmem>>, vector<5x4xf32>
    %c31_534 = arith.constant 31 : index
    %c0_535 = arith.constant 0 : index
    %766 = tpu.strided_load %arg13[%c31_534, %c0_535] {strides = array<i32: 8, 1>} : memref<64x4xf32, #tpu.memory_space<vmem>>, vector<5x4xf32>
    %767 = arith.addf %765, %766 : vector<5x4xf32>
    %cst_536 = arith.constant dense<0xFF800000> : vector<5xf32>
    %768 = vector.multi_reduction <maximumf>, %764, %cst_536 [1] : vector<5x4xf32> to vector<5xf32>
    %769 = vector.shape_cast %768 : vector<5xf32> to vector<5x1xf32>
    %cst_537 = arith.constant dense<0xFF800000> : vector<1xf32>
    %770 = vector.multi_reduction <maximumf>, %769, %cst_537 [0] : vector<5x1xf32> to vector<1xf32>
    %771 = vector.shape_cast %770 : vector<1xf32> to vector<1x1xf32>
    %cst_538 = arith.constant dense<0xFF800000> : vector<5xf32>
    %772 = vector.multi_reduction <maximumf>, %767, %cst_538 [1] : vector<5x4xf32> to vector<5xf32>
    %773 = vector.shape_cast %772 : vector<5xf32> to vector<5x1xf32>
    %cst_539 = arith.constant dense<0xFF800000> : vector<1xf32>
    %774 = vector.multi_reduction <maximumf>, %773, %cst_539 [0] : vector<5x1xf32> to vector<1xf32>
    %775 = vector.shape_cast %774 : vector<1xf32> to vector<1x1xf32>
    %776 = vector.broadcast %771 : vector<1x1xf32> to vector<5x4xf32>
    %777 = arith.subf %764, %776 : vector<5x4xf32>
    %778 = math.exp %777 : vector<5x4xf32>
    %779 = vector.broadcast %775 : vector<1x1xf32> to vector<5x4xf32>
    %780 = arith.subf %767, %779 : vector<5x4xf32>
    %781 = math.exp %780 : vector<5x4xf32>
    %cst_540 = arith.constant dense<0.000000e+00> : vector<4x4xf32>
    %782 = tpu.matmul %778, %781, %cst_540 {dimension_numbers = #tpu.dot_dimension_numbers<[0], [0], [1], [1], [0, 1, 1, 1], [], []>} : vector<5x4xf32>, vector<5x4xf32>, vector<4x4xf32> -> vector<4x4xf32>
    %c8_541 = arith.constant 8 : index
    %c0_542 = arith.constant 0 : index
    %783 = vector.load %arg15[%c8_541, %c0_542] : memref<32x4xf32, #tpu.memory_space<vmem>>, vector<4x4xf32>
    tpu.vector_store %arg15[%c8_541, %c0_542], %782 {strides = array<i32>} : memref<32x4xf32, #tpu.memory_space<vmem>>, vector<4x4xf32>,
    %784 = arith.addf %771, %775 : vector<1x1xf32>
    %785 = tpu.concatenate %738, %761, %784 in 0 : vector<1x1xf32>, vector<1x1xf32>, vector<1x1xf32> -> vector<3x1xf32>
    %cst_543 = arith.constant 0.000000e+00 : f32
    %786 = vector.broadcast %cst_543 : f32 to vector<3x4xf32>
    %c0_544 = arith.constant 0 : index
    %c0_545 = arith.constant 0 : index
    %787 = tpu.strided_load %arg15[%c0_544, %c0_545] {strides = array<i32: 4, 1>} : memref<32x4xf32, #tpu.memory_space<vmem>>, vector<3x4xf32>
    %c0_546 = arith.constant 0 : index
    %c0_547 = arith.constant 0 : index
    %c0_548 = arith.constant 0 : index
    %788 = vector.load %arg9[%c0_546, %c0_547, %c0_548] : memref<4x4x4xf32, #tpu.memory_space<vmem>>, vector<1x4x4xf32>
    %789 = vector.shape_cast %788 : vector<1x4x4xf32> to vector<4x4xf32>
    %cst_549 = arith.constant dense<0.000000e+00> : vector<3x4xf32>
    %790 = tpu.matmul %787, %789, %cst_549 {dimension_numbers = #tpu.dot_dimension_numbers<[1], [0], [0], [1], [0, 0, 1, 1], [], []>} : vector<3x4xf32>, vector<4x4xf32>, vector<3x4xf32> -> vector<3x4xf32>
    %791 = arith.addf %786, %790 : vector<3x4xf32>
    %c1_550 = arith.constant 1 : index
    %c0_551 = arith.constant 0 : index
    %792 = tpu.strided_load %arg15[%c1_550, %c0_551] {strides = array<i32: 4, 1>} : memref<32x4xf32, #tpu.memory_space<vmem>>, vector<3x4xf32>
    %c1_552 = arith.constant 1 : index
    %c0_553 = arith.constant 0 : index
    %c0_554 = arith.constant 0 : index
    %793 = vector.load %arg9[%c1_552, %c0_553, %c0_554] : memref<4x4x4xf32, #tpu.memory_space<vmem>>, vector<1x4x4xf32>
    %794 = vector.shape_cast %793 : vector<1x4x4xf32> to vector<4x4xf32>
    %cst_555 = arith.constant dense<0.000000e+00> : vector<3x4xf32>
    %795 = tpu.matmul %792, %794, %cst_555 {dimension_numbers = #tpu.dot_dimension_numbers<[1], [0], [0], [1], [0, 0, 1, 1], [], []>} : vector<3x4xf32>, vector<4x4xf32>, vector<3x4xf32> -> vector<3x4xf32>
    %796 = arith.addf %791, %795 : vector<3x4xf32>
    %c2_556 = arith.constant 2 : index
    %c0_557 = arith.constant 0 : index
    %797 = tpu.strided_load %arg15[%c2_556, %c0_557] {strides = array<i32: 4, 1>} : memref<32x4xf32, #tpu.memory_space<vmem>>, vector<3x4xf32>
    %c2_558 = arith.constant 2 : index
    %c0_559 = arith.constant 0 : index
    %c0_560 = arith.constant 0 : index
    %798 = vector.load %arg9[%c2_558, %c0_559, %c0_560] : memref<4x4x4xf32, #tpu.memory_space<vmem>>, vector<1x4x4xf32>
    %799 = vector.shape_cast %798 : vector<1x4x4xf32> to vector<4x4xf32>
    %cst_561 = arith.constant dense<0.000000e+00> : vector<3x4xf32>
    %800 = tpu.matmul %797, %799, %cst_561 {dimension_numbers = #tpu.dot_dimension_numbers<[1], [0], [0], [1], [0, 0, 1, 1], [], []>} : vector<3x4xf32>, vector<4x4xf32>, vector<3x4xf32> -> vector<3x4xf32>
    %801 = arith.addf %796, %800 : vector<3x4xf32>
    %c3_562 = arith.constant 3 : index
    %c0_563 = arith.constant 0 : index
    %802 = tpu.strided_load %arg15[%c3_562, %c0_563] {strides = array<i32: 4, 1>} : memref<32x4xf32, #tpu.memory_space<vmem>>, vector<3x4xf32>
    %c3_564 = arith.constant 3 : index
    %c0_565 = arith.constant 0 : index
    %c0_566 = arith.constant 0 : index
    %803 = vector.load %arg9[%c3_564, %c0_565, %c0_566] : memref<4x4x4xf32, #tpu.memory_space<vmem>>, vector<1x4x4xf32>
    %804 = vector.shape_cast %803 : vector<1x4x4xf32> to vector<4x4xf32>
    %cst_567 = arith.constant dense<0.000000e+00> : vector<3x4xf32>
    %805 = tpu.matmul %802, %804, %cst_567 {dimension_numbers = #tpu.dot_dimension_numbers<[1], [0], [0], [1], [0, 0, 1, 1], [], []>} : vector<3x4xf32>, vector<4x4xf32>, vector<3x4xf32> -> vector<3x4xf32>
    %806 = arith.addf %801, %805 : vector<3x4xf32>
    %c5 = arith.constant 5 : index
    %c0_568 = arith.constant 0 : index
    %807 = tpu.strided_load %arg13[%c5, %c0_568] {strides = array<i32: 9, 1>} : memref<64x4xf32, #tpu.memory_space<vmem>>, vector<3x4xf32>
    %c5_569 = arith.constant 5 : index
    %c0_570 = arith.constant 0 : index
    %808 = tpu.strided_load %arg14[%c5_569, %c0_570] {strides = array<i32: 9, 1>} : memref<64x1xf32, #tpu.memory_space<vmem>>, vector<3x1xf32>
    %809 = math.log %806 : vector<3x4xf32>
    %810 = vector.broadcast %785 : vector<3x1xf32> to vector<3x4xf32>
    %811 = arith.addf %810, %809 : vector<3x4xf32>
    %812 = arith.addf %811, %807 : vector<3x4xf32>
    %813 = vector.broadcast %808 : vector<3x1xf32> to vector<3x4xf32>
    %814 = arith.addf %812, %813 : vector<3x4xf32>
    %815 = vector.extract_strided_slice %814 {offsets = [0, 0], sizes = [1, 4], strides = [1, 1]} : vector<3x4xf32> to vector<1x4xf32>
    %c5_571 = arith.constant 5 : index
    %c0_572 = arith.constant 0 : index
    %816 = vector.load %arg12[%c5_571, %c0_572] : memref<64x4xf32, #tpu.memory_space<vmem>>, vector<1x4xf32>
    tpu.vector_store %arg12[%c5_571, %c0_572], %815 {strides = array<i32>} : memref<64x4xf32, #tpu.memory_space<vmem>>, vector<1x4xf32>,
    %817 = vector.extract_strided_slice %814 {offsets = [1, 0], sizes = [1, 4], strides = [1, 1]} : vector<3x4xf32> to vector<1x4xf32>
    %c14 = arith.constant 14 : index
    %c0_573 = arith.constant 0 : index
    %818 = vector.load %arg12[%c14, %c0_573] : memref<64x4xf32, #tpu.memory_space<vmem>>, vector<1x4xf32>
    tpu.vector_store %arg12[%c14, %c0_573], %817 {strides = array<i32>} : memref<64x4xf32, #tpu.memory_space<vmem>>, vector<1x4xf32>,
    %819 = vector.extract_strided_slice %814 {offsets = [2, 0], sizes = [1, 4], strides = [1, 1]} : vector<3x4xf32> to vector<1x4xf32>
    %c23 = arith.constant 23 : index
    %c0_574 = arith.constant 0 : index
    %820 = vector.load %arg12[%c23, %c0_574] : memref<64x4xf32, #tpu.memory_space<vmem>>, vector<1x4xf32>
    tpu.vector_store %arg12[%c23, %c0_574], %819 {strides = array<i32>} : memref<64x4xf32, #tpu.memory_space<vmem>>, vector<1x4xf32>,
    %c0_575 = arith.constant 0 : index
    %c0_576 = arith.constant 0 : index
    %821 = vector.load %arg12[%c0_575, %c0_576] : memref<64x4xf32, #tpu.memory_space<vmem>>, vector<6x4xf32>
    %c0_577 = arith.constant 0 : index
    %c0_578 = arith.constant 0 : index
    %822 = vector.load %arg13[%c0_577, %c0_578] : memref<64x4xf32, #tpu.memory_space<vmem>>, vector<6x4xf32>
    %823 = arith.addf %821, %822 : vector<6x4xf32>
    %c14_579 = arith.constant 14 : index
    %c0_580 = arith.constant 0 : index
    %824 = tpu.strided_load %arg12[%c14_579, %c0_580] {strides = array<i32: 8, 1>} : memref<64x4xf32, #tpu.memory_space<vmem>>, vector<6x4xf32>
    %c14_581 = arith.constant 14 : index
    %c0_582 = arith.constant 0 : index
    %825 = tpu.strided_load %arg13[%c14_581, %c0_582] {strides = array<i32: 8, 1>} : memref<64x4xf32, #tpu.memory_space<vmem>>, vector<6x4xf32>
    %826 = arith.addf %824, %825 : vector<6x4xf32>
    %cst_583 = arith.constant dense<0xFF800000> : vector<6xf32>
    %827 = vector.multi_reduction <maximumf>, %823, %cst_583 [1] : vector<6x4xf32> to vector<6xf32>
    %828 = vector.shape_cast %827 : vector<6xf32> to vector<6x1xf32>
    %cst_584 = arith.constant dense<0xFF800000> : vector<1xf32>
    %829 = vector.multi_reduction <maximumf>, %828, %cst_584 [0] : vector<6x1xf32> to vector<1xf32>
    %830 = vector.shape_cast %829 : vector<1xf32> to vector<1x1xf32>
    %cst_585 = arith.constant dense<0xFF800000> : vector<6xf32>
    %831 = vector.multi_reduction <maximumf>, %826, %cst_585 [1] : vector<6x4xf32> to vector<6xf32>
    %832 = vector.shape_cast %831 : vector<6xf32> to vector<6x1xf32>
    %cst_586 = arith.constant dense<0xFF800000> : vector<1xf32>
    %833 = vector.multi_reduction <maximumf>, %832, %cst_586 [0] : vector<6x1xf32> to vector<1xf32>
    %834 = vector.shape_cast %833 : vector<1xf32> to vector<1x1xf32>
    %835 = vector.broadcast %830 : vector<1x1xf32> to vector<6x4xf32>
    %836 = arith.subf %823, %835 : vector<6x4xf32>
    %837 = math.exp %836 : vector<6x4xf32>
    %838 = vector.broadcast %834 : vector<1x1xf32> to vector<6x4xf32>
    %839 = arith.subf %826, %838 : vector<6x4xf32>
    %840 = math.exp %839 : vector<6x4xf32>
    %cst_587 = arith.constant dense<0.000000e+00> : vector<4x4xf32>
    %841 = tpu.matmul %837, %840, %cst_587 {dimension_numbers = #tpu.dot_dimension_numbers<[0], [0], [1], [1], [0, 1, 1, 1], [], []>} : vector<6x4xf32>, vector<6x4xf32>, vector<4x4xf32> -> vector<4x4xf32>
    %c0_588 = arith.constant 0 : index
    %c0_589 = arith.constant 0 : index
    %842 = vector.load %arg15[%c0_588, %c0_589] : memref<32x4xf32, #tpu.memory_space<vmem>>, vector<4x4xf32>
    tpu.vector_store %arg15[%c0_588, %c0_589], %841 {strides = array<i32>} : memref<32x4xf32, #tpu.memory_space<vmem>>, vector<4x4xf32>,
    %843 = arith.addf %830, %834 : vector<1x1xf32>
    %c9_590 = arith.constant 9 : index
    %c0_591 = arith.constant 0 : index
    %844 = vector.load %arg12[%c9_590, %c0_591] : memref<64x4xf32, #tpu.memory_space<vmem>>, vector<6x4xf32>
    %c9_592 = arith.constant 9 : index
    %c0_593 = arith.constant 0 : index
    %845 = vector.load %arg13[%c9_592, %c0_593] : memref<64x4xf32, #tpu.memory_space<vmem>>, vector<6x4xf32>
    %846 = arith.addf %844, %845 : vector<6x4xf32>
    %c23_594 = arith.constant 23 : index
    %c0_595 = arith.constant 0 : index
    %847 = tpu.strided_load %arg12[%c23_594, %c0_595] {strides = array<i32: 8, 1>} : memref<64x4xf32, #tpu.memory_space<vmem>>, vector<6x4xf32>
    %c23_596 = arith.constant 23 : index
    %c0_597 = arith.constant 0 : index
    %848 = tpu.strided_load %arg13[%c23_596, %c0_597] {strides = array<i32: 8, 1>} : memref<64x4xf32, #tpu.memory_space<vmem>>, vector<6x4xf32>
    %849 = arith.addf %847, %848 : vector<6x4xf32>
    %cst_598 = arith.constant dense<0xFF800000> : vector<6xf32>
    %850 = vector.multi_reduction <maximumf>, %846, %cst_598 [1] : vector<6x4xf32> to vector<6xf32>
    %851 = vector.shape_cast %850 : vector<6xf32> to vector<6x1xf32>
    %cst_599 = arith.constant dense<0xFF800000> : vector<1xf32>
    %852 = vector.multi_reduction <maximumf>, %851, %cst_599 [0] : vector<6x1xf32> to vector<1xf32>
    %853 = vector.shape_cast %852 : vector<1xf32> to vector<1x1xf32>
    %cst_600 = arith.constant dense<0xFF800000> : vector<6xf32>
    %854 = vector.multi_reduction <maximumf>, %849, %cst_600 [1] : vector<6x4xf32> to vector<6xf32>
    %855 = vector.shape_cast %854 : vector<6xf32> to vector<6x1xf32>
    %cst_601 = arith.constant dense<0xFF800000> : vector<1xf32>
    %856 = vector.multi_reduction <maximumf>, %855, %cst_601 [0] : vector<6x1xf32> to vector<1xf32>
    %857 = vector.shape_cast %856 : vector<1xf32> to vector<1x1xf32>
    %858 = vector.broadcast %853 : vector<1x1xf32> to vector<6x4xf32>
    %859 = arith.subf %846, %858 : vector<6x4xf32>
    %860 = math.exp %859 : vector<6x4xf32>
    %861 = vector.broadcast %857 : vector<1x1xf32> to vector<6x4xf32>
    %862 = arith.subf %849, %861 : vector<6x4xf32>
    %863 = math.exp %862 : vector<6x4xf32>
    %cst_602 = arith.constant dense<0.000000e+00> : vector<4x4xf32>
    %864 = tpu.matmul %860, %863, %cst_602 {dimension_numbers = #tpu.dot_dimension_numbers<[0], [0], [1], [1], [0, 1, 1, 1], [], []>} : vector<6x4xf32>, vector<6x4xf32>, vector<4x4xf32> -> vector<4x4xf32>
    %c4_603 = arith.constant 4 : index
    %c0_604 = arith.constant 0 : index
    %865 = vector.load %arg15[%c4_603, %c0_604] : memref<32x4xf32, #tpu.memory_space<vmem>>, vector<4x4xf32>
    tpu.vector_store %arg15[%c4_603, %c0_604], %864 {strides = array<i32>} : memref<32x4xf32, #tpu.memory_space<vmem>>, vector<4x4xf32>,
    %866 = arith.addf %853, %857 : vector<1x1xf32>
    %867 = tpu.concatenate %843, %866 in 0 : vector<1x1xf32>, vector<1x1xf32> -> vector<2x1xf32>
    %cst_605 = arith.constant 0.000000e+00 : f32
    %868 = vector.broadcast %cst_605 : f32 to vector<2x4xf32>
    %c0_606 = arith.constant 0 : index
    %c0_607 = arith.constant 0 : index
    %869 = tpu.strided_load %arg15[%c0_606, %c0_607] {strides = array<i32: 4, 1>} : memref<32x4xf32, #tpu.memory_space<vmem>>, vector<2x4xf32>
    %c0_608 = arith.constant 0 : index
    %c0_609 = arith.constant 0 : index
    %c0_610 = arith.constant 0 : index
    %870 = vector.load %arg9[%c0_608, %c0_609, %c0_610] : memref<4x4x4xf32, #tpu.memory_space<vmem>>, vector<1x4x4xf32>
    %871 = vector.shape_cast %870 : vector<1x4x4xf32> to vector<4x4xf32>
    %cst_611 = arith.constant dense<0.000000e+00> : vector<2x4xf32>
    %872 = tpu.matmul %869, %871, %cst_611 {dimension_numbers = #tpu.dot_dimension_numbers<[1], [0], [0], [1], [0, 0, 1, 1], [], []>} : vector<2x4xf32>, vector<4x4xf32>, vector<2x4xf32> -> vector<2x4xf32>
    %873 = arith.addf %868, %872 : vector<2x4xf32>
    %c1_612 = arith.constant 1 : index
    %c0_613 = arith.constant 0 : index
    %874 = tpu.strided_load %arg15[%c1_612, %c0_613] {strides = array<i32: 4, 1>} : memref<32x4xf32, #tpu.memory_space<vmem>>, vector<2x4xf32>
    %c1_614 = arith.constant 1 : index
    %c0_615 = arith.constant 0 : index
    %c0_616 = arith.constant 0 : index
    %875 = vector.load %arg9[%c1_614, %c0_615, %c0_616] : memref<4x4x4xf32, #tpu.memory_space<vmem>>, vector<1x4x4xf32>
    %876 = vector.shape_cast %875 : vector<1x4x4xf32> to vector<4x4xf32>
    %cst_617 = arith.constant dense<0.000000e+00> : vector<2x4xf32>
    %877 = tpu.matmul %874, %876, %cst_617 {dimension_numbers = #tpu.dot_dimension_numbers<[1], [0], [0], [1], [0, 0, 1, 1], [], []>} : vector<2x4xf32>, vector<4x4xf32>, vector<2x4xf32> -> vector<2x4xf32>
    %878 = arith.addf %873, %877 : vector<2x4xf32>
    %c2_618 = arith.constant 2 : index
    %c0_619 = arith.constant 0 : index
    %879 = tpu.strided_load %arg15[%c2_618, %c0_619] {strides = array<i32: 4, 1>} : memref<32x4xf32, #tpu.memory_space<vmem>>, vector<2x4xf32>
    %c2_620 = arith.constant 2 : index
    %c0_621 = arith.constant 0 : index
    %c0_622 = arith.constant 0 : index
    %880 = vector.load %arg9[%c2_620, %c0_621, %c0_622] : memref<4x4x4xf32, #tpu.memory_space<vmem>>, vector<1x4x4xf32>
    %881 = vector.shape_cast %880 : vector<1x4x4xf32> to vector<4x4xf32>
    %cst_623 = arith.constant dense<0.000000e+00> : vector<2x4xf32>
    %882 = tpu.matmul %879, %881, %cst_623 {dimension_numbers = #tpu.dot_dimension_numbers<[1], [0], [0], [1], [0, 0, 1, 1], [], []>} : vector<2x4xf32>, vector<4x4xf32>, vector<2x4xf32> -> vector<2x4xf32>
    %883 = arith.addf %878, %882 : vector<2x4xf32>
    %c3_624 = arith.constant 3 : index
    %c0_625 = arith.constant 0 : index
    %884 = tpu.strided_load %arg15[%c3_624, %c0_625] {strides = array<i32: 4, 1>} : memref<32x4xf32, #tpu.memory_space<vmem>>, vector<2x4xf32>
    %c3_626 = arith.constant 3 : index
    %c0_627 = arith.constant 0 : index
    %c0_628 = arith.constant 0 : index
    %885 = vector.load %arg9[%c3_626, %c0_627, %c0_628] : memref<4x4x4xf32, #tpu.memory_space<vmem>>, vector<1x4x4xf32>
    %886 = vector.shape_cast %885 : vector<1x4x4xf32> to vector<4x4xf32>
    %cst_629 = arith.constant dense<0.000000e+00> : vector<2x4xf32>
    %887 = tpu.matmul %884, %886, %cst_629 {dimension_numbers = #tpu.dot_dimension_numbers<[1], [0], [0], [1], [0, 0, 1, 1], [], []>} : vector<2x4xf32>, vector<4x4xf32>, vector<2x4xf32> -> vector<2x4xf32>
    %888 = arith.addf %883, %887 : vector<2x4xf32>
    %c6 = arith.constant 6 : index
    %c0_630 = arith.constant 0 : index
    %889 = tpu.strided_load %arg13[%c6, %c0_630] {strides = array<i32: 9, 1>} : memref<64x4xf32, #tpu.memory_space<vmem>>, vector<2x4xf32>
    %c6_631 = arith.constant 6 : index
    %c0_632 = arith.constant 0 : index
    %890 = tpu.strided_load %arg14[%c6_631, %c0_632] {strides = array<i32: 9, 1>} : memref<64x1xf32, #tpu.memory_space<vmem>>, vector<2x1xf32>
    %891 = math.log %888 : vector<2x4xf32>
    %892 = vector.broadcast %867 : vector<2x1xf32> to vector<2x4xf32>
    %893 = arith.addf %892, %891 : vector<2x4xf32>
    %894 = arith.addf %893, %889 : vector<2x4xf32>
    %895 = vector.broadcast %890 : vector<2x1xf32> to vector<2x4xf32>
    %896 = arith.addf %894, %895 : vector<2x4xf32>
    %897 = vector.extract_strided_slice %896 {offsets = [0, 0], sizes = [1, 4], strides = [1, 1]} : vector<2x4xf32> to vector<1x4xf32>
    %c6_633 = arith.constant 6 : index
    %c0_634 = arith.constant 0 : index
    %898 = vector.load %arg12[%c6_633, %c0_634] : memref<64x4xf32, #tpu.memory_space<vmem>>, vector<1x4xf32>
    tpu.vector_store %arg12[%c6_633, %c0_634], %897 {strides = array<i32>} : memref<64x4xf32, #tpu.memory_space<vmem>>, vector<1x4xf32>,
    %899 = vector.extract_strided_slice %896 {offsets = [1, 0], sizes = [1, 4], strides = [1, 1]} : vector<2x4xf32> to vector<1x4xf32>
    %c15 = arith.constant 15 : index
    %c0_635 = arith.constant 0 : index
    %900 = vector.load %arg12[%c15, %c0_635] : memref<64x4xf32, #tpu.memory_space<vmem>>, vector<1x4xf32>
    tpu.vector_store %arg12[%c15, %c0_635], %899 {strides = array<i32>} : memref<64x4xf32, #tpu.memory_space<vmem>>, vector<1x4xf32>,
    %c0_636 = arith.constant 0 : index
    %c0_637 = arith.constant 0 : index
    %901 = vector.load %arg12[%c0_636, %c0_637] : memref<64x4xf32, #tpu.memory_space<vmem>>, vector<7x4xf32>
    %c0_638 = arith.constant 0 : index
    %c0_639 = arith.constant 0 : index
    %902 = vector.load %arg13[%c0_638, %c0_639] : memref<64x4xf32, #tpu.memory_space<vmem>>, vector<7x4xf32>
    %903 = arith.addf %901, %902 : vector<7x4xf32>
    %c15_640 = arith.constant 15 : index
    %c0_641 = arith.constant 0 : index
    %904 = tpu.strided_load %arg12[%c15_640, %c0_641] {strides = array<i32: 8, 1>} : memref<64x4xf32, #tpu.memory_space<vmem>>, vector<7x4xf32>
    %c15_642 = arith.constant 15 : index
    %c0_643 = arith.constant 0 : index
    %905 = tpu.strided_load %arg13[%c15_642, %c0_643] {strides = array<i32: 8, 1>} : memref<64x4xf32, #tpu.memory_space<vmem>>, vector<7x4xf32>
    %906 = arith.addf %904, %905 : vector<7x4xf32>
    %cst_644 = arith.constant dense<0xFF800000> : vector<7xf32>
    %907 = vector.multi_reduction <maximumf>, %903, %cst_644 [1] : vector<7x4xf32> to vector<7xf32>
    %908 = vector.shape_cast %907 : vector<7xf32> to vector<7x1xf32>
    %cst_645 = arith.constant dense<0xFF800000> : vector<1xf32>
    %909 = vector.multi_reduction <maximumf>, %908, %cst_645 [0] : vector<7x1xf32> to vector<1xf32>
    %910 = vector.shape_cast %909 : vector<1xf32> to vector<1x1xf32>
    %cst_646 = arith.constant dense<0xFF800000> : vector<7xf32>
    %911 = vector.multi_reduction <maximumf>, %906, %cst_646 [1] : vector<7x4xf32> to vector<7xf32>
    %912 = vector.shape_cast %911 : vector<7xf32> to vector<7x1xf32>
    %cst_647 = arith.constant dense<0xFF800000> : vector<1xf32>
    %913 = vector.multi_reduction <maximumf>, %912, %cst_647 [0] : vector<7x1xf32> to vector<1xf32>
    %914 = vector.shape_cast %913 : vector<1xf32> to vector<1x1xf32>
    %915 = vector.broadcast %910 : vector<1x1xf32> to vector<7x4xf32>
    %916 = arith.subf %903, %915 : vector<7x4xf32>
    %917 = math.exp %916 : vector<7x4xf32>
    %918 = vector.broadcast %914 : vector<1x1xf32> to vector<7x4xf32>
    %919 = arith.subf %906, %918 : vector<7x4xf32>
    %920 = math.exp %919 : vector<7x4xf32>
    %cst_648 = arith.constant dense<0.000000e+00> : vector<4x4xf32>
    %921 = tpu.matmul %917, %920, %cst_648 {dimension_numbers = #tpu.dot_dimension_numbers<[0], [0], [1], [1], [0, 1, 1, 1], [], []>} : vector<7x4xf32>, vector<7x4xf32>, vector<4x4xf32> -> vector<4x4xf32>
    %c0_649 = arith.constant 0 : index
    %c0_650 = arith.constant 0 : index
    %922 = vector.load %arg15[%c0_649, %c0_650] : memref<32x4xf32, #tpu.memory_space<vmem>>, vector<4x4xf32>
    tpu.vector_store %arg15[%c0_649, %c0_650], %921 {strides = array<i32>} : memref<32x4xf32, #tpu.memory_space<vmem>>, vector<4x4xf32>,
    %923 = arith.addf %910, %914 : vector<1x1xf32>
    %cst_651 = arith.constant 0.000000e+00 : f32
    %924 = vector.broadcast %cst_651 : f32 to vector<1x4xf32>
    %c0_652 = arith.constant 0 : index
    %c0_653 = arith.constant 0 : index
    %925 = tpu.strided_load %arg15[%c0_652, %c0_653] {strides = array<i32: 4, 1>} : memref<32x4xf32, #tpu.memory_space<vmem>>, vector<1x4xf32>
    %c0_654 = arith.constant 0 : index
    %c0_655 = arith.constant 0 : index
    %c0_656 = arith.constant 0 : index
    %926 = vector.load %arg9[%c0_654, %c0_655, %c0_656] : memref<4x4x4xf32, #tpu.memory_space<vmem>>, vector<1x4x4xf32>
    %927 = vector.shape_cast %926 : vector<1x4x4xf32> to vector<4x4xf32>
    %cst_657 = arith.constant dense<0.000000e+00> : vector<1x4xf32>
    %928 = tpu.matmul %925, %927, %cst_657 {dimension_numbers = #tpu.dot_dimension_numbers<[1], [0], [0], [1], [0, 0, 1, 1], [], []>} : vector<1x4xf32>, vector<4x4xf32>, vector<1x4xf32> -> vector<1x4xf32>
    %929 = arith.addf %924, %928 : vector<1x4xf32>
    %c1_658 = arith.constant 1 : index
    %c0_659 = arith.constant 0 : index
    %930 = tpu.strided_load %arg15[%c1_658, %c0_659] {strides = array<i32: 4, 1>} : memref<32x4xf32, #tpu.memory_space<vmem>>, vector<1x4xf32>
    %c1_660 = arith.constant 1 : index
    %c0_661 = arith.constant 0 : index
    %c0_662 = arith.constant 0 : index
    %931 = vector.load %arg9[%c1_660, %c0_661, %c0_662] : memref<4x4x4xf32, #tpu.memory_space<vmem>>, vector<1x4x4xf32>
    %932 = vector.shape_cast %931 : vector<1x4x4xf32> to vector<4x4xf32>
    %cst_663 = arith.constant dense<0.000000e+00> : vector<1x4xf32>
    %933 = tpu.matmul %930, %932, %cst_663 {dimension_numbers = #tpu.dot_dimension_numbers<[1], [0], [0], [1], [0, 0, 1, 1], [], []>} : vector<1x4xf32>, vector<4x4xf32>, vector<1x4xf32> -> vector<1x4xf32>
    %934 = arith.addf %929, %933 : vector<1x4xf32>
    %c2_664 = arith.constant 2 : index
    %c0_665 = arith.constant 0 : index
    %935 = tpu.strided_load %arg15[%c2_664, %c0_665] {strides = array<i32: 4, 1>} : memref<32x4xf32, #tpu.memory_space<vmem>>, vector<1x4xf32>
    %c2_666 = arith.constant 2 : index
    %c0_667 = arith.constant 0 : index
    %c0_668 = arith.constant 0 : index
    %936 = vector.load %arg9[%c2_666, %c0_667, %c0_668] : memref<4x4x4xf32, #tpu.memory_space<vmem>>, vector<1x4x4xf32>
    %937 = vector.shape_cast %936 : vector<1x4x4xf32> to vector<4x4xf32>
    %cst_669 = arith.constant dense<0.000000e+00> : vector<1x4xf32>
    %938 = tpu.matmul %935, %937, %cst_669 {dimension_numbers = #tpu.dot_dimension_numbers<[1], [0], [0], [1], [0, 0, 1, 1], [], []>} : vector<1x4xf32>, vector<4x4xf32>, vector<1x4xf32> -> vector<1x4xf32>
    %939 = arith.addf %934, %938 : vector<1x4xf32>
    %c3_670 = arith.constant 3 : index
    %c0_671 = arith.constant 0 : index
    %940 = tpu.strided_load %arg15[%c3_670, %c0_671] {strides = array<i32: 4, 1>} : memref<32x4xf32, #tpu.memory_space<vmem>>, vector<1x4xf32>
    %c3_672 = arith.constant 3 : index
    %c0_673 = arith.constant 0 : index
    %c0_674 = arith.constant 0 : index
    %941 = vector.load %arg9[%c3_672, %c0_673, %c0_674] : memref<4x4x4xf32, #tpu.memory_space<vmem>>, vector<1x4x4xf32>
    %942 = vector.shape_cast %941 : vector<1x4x4xf32> to vector<4x4xf32>
    %cst_675 = arith.constant dense<0.000000e+00> : vector<1x4xf32>
    %943 = tpu.matmul %940, %942, %cst_675 {dimension_numbers = #tpu.dot_dimension_numbers<[1], [0], [0], [1], [0, 0, 1, 1], [], []>} : vector<1x4xf32>, vector<4x4xf32>, vector<1x4xf32> -> vector<1x4xf32>
    %944 = arith.addf %939, %943 : vector<1x4xf32>
    %c7 = arith.constant 7 : index
    %c0_676 = arith.constant 0 : index
    %945 = tpu.strided_load %arg13[%c7, %c0_676] {strides = array<i32: 9, 1>} : memref<64x4xf32, #tpu.memory_space<vmem>>, vector<1x4xf32>
    %c7_677 = arith.constant 7 : index
    %c0_678 = arith.constant 0 : index
    %946 = tpu.strided_load %arg14[%c7_677, %c0_678] {strides = array<i32: 9, 1>} : memref<64x1xf32, #tpu.memory_space<vmem>>, vector<1x1xf32>
    %947 = math.log %944 : vector<1x4xf32>
    %948 = vector.broadcast %923 : vector<1x1xf32> to vector<1x4xf32>
    %949 = arith.addf %948, %947 : vector<1x4xf32>
    %950 = arith.addf %949, %945 : vector<1x4xf32>
    %951 = vector.broadcast %946 : vector<1x1xf32> to vector<1x4xf32>
    %952 = arith.addf %950, %951 : vector<1x4xf32>
    %c7_679 = arith.constant 7 : index
    %c0_680 = arith.constant 0 : index
    %953 = vector.load %arg12[%c7_679, %c0_680] : memref<64x4xf32, #tpu.memory_space<vmem>>, vector<1x4xf32>
    tpu.vector_store %arg12[%c7_679, %c0_680], %952 {strides = array<i32>} : memref<64x4xf32, #tpu.memory_space<vmem>>, vector<1x4xf32>,
    %954 = arith.index_cast %arg0 : i32 to index
    %955 = memref.load %arg1[%954] : memref<2xi32, #tpu.memory_space<smem>>
    %c1_i32 = arith.constant 1 : i32
    %956 = arith.subi %955, %c1_i32 : i32
    %957 = arith.index_cast %956 : i32 to index
    %c0_681 = arith.constant 0 : index
    %958 = vector.load %arg12[%957, %c0_681] : memref<64x4xf32, #tpu.memory_space<vmem>>, vector<1x4xf32>
    %c0_682 = arith.constant 0 : index
    %c0_683 = arith.constant 0 : index
    %959 = vector.load %arg10[%c0_682, %c0_683] : memref<1x4xf32, #tpu.memory_space<vmem>>, vector<1x4xf32>
    %960 = arith.addf %958, %959 : vector<1x4xf32>
    %c0_684 = arith.constant 0 : index
    %c0_685 = arith.constant 0 : index
    %c0_686 = arith.constant 0 : index
    %961 = vector.load %arg11[%c0_684, %c0_685, %c0_686] : memref<1x1x4xf32, #tpu.memory_space<vmem>>, vector<1x1x4xf32>
    %962 = vector.shape_cast %961 : vector<1x1x4xf32> to vector<1x4xf32>
    %963 = vector.shape_cast %960 : vector<1x4xf32> to vector<1x1x4xf32>
    tpu.vector_store %arg11[%c0_684, %c0_685, %c0_686], %963 {strides = array<i32>} : memref<1x1x4xf32, #tpu.memory_space<vmem>>, vector<1x1x4xf32>,
    return
  }
  func.func @transform_0(%arg0: i32, %arg1: memref<2xi32, #tpu.memory_space<smem>>) -> (i32, i32, i32) {
    %c0_i32 = arith.constant 0 : i32
    %c0_i32_0 = arith.constant 0 : i32
    %c0_i32_1 = arith.constant 0 : i32
    return %arg0, %c0_i32, %c0_i32_0 : i32, i32, i32
  }
  func.func @transform_1(%arg0: i32, %arg1: memref<2xi32, #tpu.memory_space<smem>>) -> (i32, i32, i32) {
    %c0_i32 = arith.constant 0 : i32
    %c0_i32_0 = arith.constant 0 : i32
    %c0_i32_1 = arith.constant 0 : i32
    return %arg0, %c0_i32, %c0_i32_0 : i32, i32, i32
  }
  func.func @transform_2(%arg0: i32, %arg1: memref<2xi32, #tpu.memory_space<smem>>) -> (i32, i32) {
    %c0_i32 = arith.constant 0 : i32
    %c0_i32_0 = arith.constant 0 : i32
    %c0_i32_1 = arith.constant 0 : i32
    return %c0_i32, %c0_i32_0 : i32, i32
  }
  func.func @transform_3(%arg0: i32, %arg1: memref<2xi32, #tpu.memory_space<smem>>) -> (i32, i32) {
    %c0_i32 = arith.constant 0 : i32
    %c0_i32_0 = arith.constant 0 : i32
    %c0_i32_1 = arith.constant 0 : i32
    return %c0_i32, %c0_i32_0 : i32, i32
  }
  func.func @transform_4(%arg0: i32, %arg1: memref<2xi32, #tpu.memory_space<smem>>) -> (i32, i32) {
    %c0_i32 = arith.constant 0 : i32
    %c0_i32_0 = arith.constant 0 : i32
    %c0_i32_1 = arith.constant 0 : i32
    return %c0_i32, %c0_i32_0 : i32, i32
  }
  func.func @transform_5(%arg0: i32, %arg1: memref<2xi32, #tpu.memory_space<smem>>) -> (i32, i32) {
    %c0_i32 = arith.constant 0 : i32
    %c0_i32_0 = arith.constant 0 : i32
    %c0_i32_1 = arith.constant 0 : i32
    return %c0_i32, %c0_i32_0 : i32, i32
  }
  func.func @transform_6(%arg0: i32, %arg1: memref<2xi32, #tpu.memory_space<smem>>) -> (i32, i32) {
    %c0_i32 = arith.constant 0 : i32
    %c0_i32_0 = arith.constant 0 : i32
    %c0_i32_1 = arith.constant 0 : i32
    return %c0_i32, %c0_i32_0 : i32, i32
  }
  func.func @transform_7(%arg0: i32, %arg1: memref<2xi32, #tpu.memory_space<smem>>) -> (i32, i32, i32) {
    %c0_i32 = arith.constant 0 : i32
    %c0_i32_0 = arith.constant 0 : i32
    %c0_i32_1 = arith.constant 0 : i32
    %c0_i32_2 = arith.constant 0 : i32
    return %c0_i32, %c0_i32_0, %c0_i32_1 : i32, i32, i32
  }
  func.func @transform_8(%arg0: i32, %arg1: memref<2xi32, #tpu.memory_space<smem>>) -> (i32, i32) {
    %c0_i32 = arith.constant 0 : i32
    %c0_i32_0 = arith.constant 0 : i32
    %c0_i32_1 = arith.constant 0 : i32
    return %c0_i32, %c0_i32_0 : i32, i32
  }
  func.func @transform_9(%arg0: i32, %arg1: memref<2xi32, #tpu.memory_space<smem>>) -> (i32, i32, i32) {
    %c0_i32 = arith.constant 0 : i32
    %c0_i32_0 = arith.constant 0 : i32
    %c0_i32_1 = arith.constant 0 : i32
    return %arg0, %c0_i32, %c0_i32_0 : i32, i32, i32
  }
}

</mosaic_0001>

<llo_original>
// kernel: tpu_custom_call.1
$region0: #{tpu_custom_call.1}
  #allocation0 [shape = 'u32[]', space=smem, size = 0x4, offset = 0x4, fixed_abs, tag = 'smem constant byte address 0x4 - core index']
  #allocation1 [shape = 'u32[144,128]{1,0:T(1,128)}', space=vmem, size = 0x12000, scoped, tag = 'internal scratch']
  #allocation2 [shape = 'f32[64,4]{1,0:T(8,128)}', space=vmem, size = 0x8000, scoped, tag = 'scratch operand']
  #allocation3 [shape = 'f32[64,4]{1,0:T(8,128)}', space=vmem, size = 0x8000, scoped, tag = 'scratch operand']
  #allocation4 [shape = 'f32[64,1]{1,0:T(8,128)}', space=vmem, size = 0x8000, scoped, tag = 'scratch operand']
  #allocation5 [shape = 'f32[32,4]{1,0:T(8,128)}', space=vmem, size = 0x4000, scoped, tag = 'scratch operand']
  #allocation6 [shape = 's32[1]{0}', space=sflag, size = 0x4, scoped, tag = 'scoped memory for tpu_custom_call.1']
  #allocation7 [shape = 'u8[512]{0}', space=smem, size = 0x200, scoped, tag = 'prefetched SMEM operand 0']
  %s0 = inlined_call_operand.vmem [shape: s32[2], index: 0, kind: input, shape index: {}]
  %s1 = inlined_call_operand.vmem [shape: f32[2,8,32], index: 1, kind: input, shape index: {}]
  %s2 = inlined_call_operand.vmem [shape: f32[2,64,32], index: 2, kind: input, shape index: {}]
  %s3 = inlined_call_operand.vmem [shape: f32[32,4], index: 3, kind: input, shape index: {}]
  %s4 = inlined_call_operand.vmem [shape: f32[1,4], index: 4, kind: input, shape index: {}]
  %s5 = inlined_call_operand.vmem [shape: f32[32,5], index: 5, kind: input, shape index: {}]
  %s6 = inlined_call_operand.vmem [shape: f32[1,5], index: 6, kind: input, shape index: {}]
  %s7 = inlined_call_operand.vmem [shape: f32[4,4], index: 7, kind: input, shape index: {}]
  %s8 = inlined_call_operand.vmem [shape: f32[4,4,4], index: 8, kind: input, shape index: {}]
  %s9 = inlined_call_operand.vmem [shape: f32[1,4], index: 9, kind: input, shape index: {}]
  %s10 = inlined_call_operand.hbm [shape: f32[2,1,4], index: 10, kind: output, shape index: {}]
  %s11 = sld [smem:[#allocation0]]
  $region69: #{tpu_custom_call.1} parent=0
    _
  %s13 = ssub.s32 1, %s11
  %s14 = scalar_select 0, %s13, %s11
  %s15 = sshll.u32 %s0, 4
  %s16 = int_to_ptr.vmem [resolvable:$true] %s15
  %18 = dma.vmem_to_smem %s16, 16, [#allocation7], [#allocation6]
  %19 = dma.done [#allocation6], 16
  %20 = sfence
  $region1: #{tpu_custom_call.1} parent=0
    #allocation8 [shape = 'u8[1024]{0}', space=vmem, size = 0x400, scoped, tag = 'output window, operand 0']
    #allocation9 [shape = 's32[2]{0}', space=sflag, size = 0x8, scoped, tag = 'scoped memory for tpu_custom_call.1']
    %21 = vsyncpa [#allocation9], 0
    %s22 = scalar_lea.sflag [#allocation9], 1
    %23 = vsyncpa %s22, 0
    loop: start=0, step=1, limit=4
    $region2: #{tpu_custom_call.1} parent=1 // loop_pre_header
      _
    $region3: #{tpu_custom_call.1} parent=1 // loop_header
      %s25 = sphi 0, %s29
      %p26 = scmp.ge.s32.totalorder %s25, 4
      %s35 = sphi 0, %s37
      %s38 = sphi 0, %s35
      %s39 = sphi 0, %s38
      %s55 = sphi 0, %s39
      %s61 = sphi 0, %s63
      %s64 = sphi 0, %s61
      %s65 = sphi 0, %s64
      %s81 = sphi 0, %s65
      %s85 = sphi 0, %s85
      %s87 = sphi 0, %s85
      %s88 = sphi 0, %s87
      %s102 = sphi 0, %s88
      %s106 = sphi 0, %s106
      %s108 = sphi 0, %s106
      %s109 = sphi 0, %s108
      %s123 = sphi 0, %s109
      %s127 = sphi 0, %s127
      %s129 = sphi 0, %s127
      %s130 = sphi 0, %s129
      %s144 = sphi 0, %s130
      %s148 = sphi 0, %s148
      %s150 = sphi 0, %s148
      %s151 = sphi 0, %s150
      %s165 = sphi 0, %s151
      %s169 = sphi 0, %s169
      %s171 = sphi 0, %s169
      %s172 = sphi 0, %s171
      %s186 = sphi 0, %s172
      %s190 = sphi 0, %s190
      %s192 = sphi 0, %s190
      %s193 = sphi 0, %s192
      %s207 = sphi 0, %s193
      %s211 = sphi 0, %s211
      %s213 = sphi 0, %s211
      %s214 = sphi 0, %s213
      %s228 = sphi 0, %s214
      %s234 = sphi 0, %s236
      %s237 = sphi 0, %s234
      %s238 = sphi 0, %s237
      %s254 = sphi 0, %s238
    $region4: #{tpu_custom_call.1} parent=1 // loop_header_branch
      %28 = sbr.rel (%p26) target = $region8
    $region5: #{tpu_custom_call.1} parent=1 // loop_body
      %s30 = ssub.s32 %s25, 1
      %s31 = ssub.s32 %s25, 2
      %s32 = sadd.s32 %s25, 1
      %s33 = ssub.s32 %s25, %s32
      %p34 = scmp.eq.s32.totalorder %s33, 0
      %s36 = sadd.s32 %s35, 1
      %s37 = scalar_select %p34, %s35, %s36
      %p40 = pneg %p34
      %p41 = scmp.eq.s32.totalorder %s25, 1
      %p42 = por %p40, %p41
      %p43 = scmp.ne.s32.totalorder %s35, %s38
      %p44 = scmp.eq.s32.totalorder %s25, 0
      %p45 = por %p43, %p44
      %p46 = scmp.ne.s32.totalorder %s35, %s38
      %p47 = scmp.eq.s32.totalorder %s30, 1
      %p48 = por %p46, %p47
      %p49 = scmp.ne.s32.totalorder %s38, %s39
      %p50 = scmp.eq.s32.totalorder %s30, 0
      %p51 = por %p49, %p50
      %p52 = scmp.ne.s32.totalorder %s38, %s39
      %p53 = scmp.eq.s32.totalorder %s31, 1
      %p54 = por %p52, %p53
      %p56 = scmp.ne.s32.totalorder %s39, %s55
      %p57 = scmp.eq.s32.totalorder %s31, 0
      %p58 = por %p56, %p57
      %s59 = ssub.s32 %s25, %s32
      %p60 = scmp.eq.s32.totalorder %s59, 0
      %s62 = sadd.s32 %s61, 1
      %s63 = scalar_select %p60, %s61, %s62
      %p66 = pneg %p60
      %p67 = scmp.eq.s32.totalorder %s25, 1
      %p68 = por %p66, %p67
      %p69 = scmp.ne.s32.totalorder %s61, %s64
      %p70 = scmp.eq.s32.totalorder %s25, 0
      %p71 = por %p69, %p70
      %p72 = scmp.ne.s32.totalorder %s61, %s64
      %p73 = scmp.eq.s32.totalorder %s30, 1
      %p74 = por %p72, %p73
      %p75 = scmp.ne.s32.totalorder %s64, %s65
      %p76 = scmp.eq.s32.totalorder %s30, 0
      %p77 = por %p75, %p76
      %p78 = scmp.ne.s32.totalorder %s64, %s65
      %p79 = scmp.eq.s32.totalorder %s31, 1
      %p80 = por %p78, %p79
      %p82 = scmp.ne.s32.totalorder %s65, %s81
      %p83 = scmp.eq.s32.totalorder %s31, 0
      %p84 = por %p82, %p83
      %s86 = sadd.s32 %s85, 1
      %p89 = scmp.eq.s32.totalorder %s25, 1
      %p90 = scmp.ne.s32.totalorder %s85, %s87
      %p91 = scmp.eq.s32.totalorder %s25, 0
      %p92 = por %p90, %p91
      %p93 = scmp.ne.s32.totalorder %s85, %s87
      %p94 = scmp.eq.s32.totalorder %s30, 1
      %p95 = por %p93, %p94
      %p96 = scmp.ne.s32.totalorder %s87, %s88
      %p97 = scmp.eq.s32.totalorder %s30, 0
      %p98 = por %p96, %p97
      %p99 = scmp.ne.s32.totalorder %s87, %s88
      %p100 = scmp.eq.s32.totalorder %s31, 1
      %p101 = por %p99, %p100
      %p103 = scmp.ne.s32.totalorder %s88, %s102
      %p104 = scmp.eq.s32.totalorder %s31, 0
      %p105 = por %p103, %p104
      %s107 = sadd.s32 %s106, 1
      %p110 = scmp.eq.s32.totalorder %s25, 1
      %p111 = scmp.ne.s32.totalorder %s106, %s108
      %p112 = scmp.eq.s32.totalorder %s25, 0
      %p113 = por %p111, %p112
      %p114 = scmp.ne.s32.totalorder %s106, %s108
      %p115 = scmp.eq.s32.totalorder %s30, 1
      %p116 = por %p114, %p115
      %p117 = scmp.ne.s32.totalorder %s108, %s109
      %p118 = scmp.eq.s32.totalorder %s30, 0
      %p119 = por %p117, %p118
      %p120 = scmp.ne.s32.totalorder %s108, %s109
      %p121 = scmp.eq.s32.totalorder %s31, 1
      %p122 = por %p120, %p121
      %p124 = scmp.ne.s32.totalorder %s109, %s123
      %p125 = scmp.eq.s32.totalorder %s31, 0
      %p126 = por %p124, %p125
      %s128 = sadd.s32 %s127, 1
      %p131 = scmp.eq.s32.totalorder %s25, 1
      %p132 = scmp.ne.s32.totalorder %s127, %s129
      %p133 = scmp.eq.s32.totalorder %s25, 0
      %p134 = por %p132, %p133
      %p135 = scmp.ne.s32.totalorder %s127, %s129
      %p136 = scmp.eq.s32.totalorder %s30, 1
      %p137 = por %p135, %p136
      %p138 = scmp.ne.s32.totalorder %s129, %s130
      %p139 = scmp.eq.s32.totalorder %s30, 0
      %p140 = por %p138, %p139
      %p141 = scmp.ne.s32.totalorder %s129, %s130
      %p142 = scmp.eq.s32.totalorder %s31, 1
      %p143 = por %p141, %p142
      %p145 = scmp.ne.s32.totalorder %s130, %s144
      %p146 = scmp.eq.s32.totalorder %s31, 0
      %p147 = por %p145, %p146
      %s149 = sadd.s32 %s148, 1
      %p152 = scmp.eq.s32.totalorder %s25, 1
      %p153 = scmp.ne.s32.totalorder %s148, %s150
      %p154 = scmp.eq.s32.totalorder %s25, 0
      %p155 = por %p153, %p154
      %p156 = scmp.ne.s32.totalorder %s148, %s150
      %p157 = scmp.eq.s32.totalorder %s30, 1
      %p158 = por %p156, %p157
      %p159 = scmp.ne.s32.totalorder %s150, %s151
      %p160 = scmp.eq.s32.totalorder %s30, 0
      %p161 = por %p159, %p160
      %p162 = scmp.ne.s32.totalorder %s150, %s151
      %p163 = scmp.eq.s32.totalorder %s31, 1
      %p164 = por %p162, %p163
      %p166 = scmp.ne.s32.totalorder %s151, %s165
      %p167 = scmp.eq.s32.totalorder %s31, 0
      %p168 = por %p166, %p167
      %s170 = sadd.s32 %s169, 1
      %p173 = scmp.eq.s32.totalorder %s25, 1
      %p174 = scmp.ne.s32.totalorder %s169, %s171
      %p175 = scmp.eq.s32.totalorder %s25, 0
      %p176 = por %p174, %p175
      %p177 = scmp.ne.s32.totalorder %s169, %s171
      %p178 = scmp.eq.s32.totalorder %s30, 1
      %p179 = por %p177, %p178
      %p180 = scmp.ne.s32.totalorder %s171, %s172
      %p181 = scmp.eq.s32.totalorder %s30, 0
      %p182 = por %p180, %p181
      %p183 = scmp.ne.s32.totalorder %s171, %s172
      %p184 = scmp.eq.s32.totalorder %s31, 1
      %p185 = por %p183, %p184
      %p187 = scmp.ne.s32.totalorder %s172, %s186
      %p188 = scmp.eq.s32.totalorder %s31, 0
      %p189 = por %p187, %p188
      %s191 = sadd.s32 %s190, 1
      %p194 = scmp.eq.s32.totalorder %s25, 1
      %p195 = scmp.ne.s32.totalorder %s190, %s192
      %p196 = scmp.eq.s32.totalorder %s25, 0
      %p197 = por %p195, %p196
      %p198 = scmp.ne.s32.totalorder %s190, %s192
      %p199 = scmp.eq.s32.totalorder %s30, 1
      %p200 = por %p198, %p199
      %p201 = scmp.ne.s32.totalorder %s192, %s193
      %p202 = scmp.eq.s32.totalorder %s30, 0
      %p203 = por %p201, %p202
      %p204 = scmp.ne.s32.totalorder %s192, %s193
      %p205 = scmp.eq.s32.totalorder %s31, 1
      %p206 = por %p204, %p205
      %p208 = scmp.ne.s32.totalorder %s193, %s207
      %p209 = scmp.eq.s32.totalorder %s31, 0
      %p210 = por %p208, %p209
      %s212 = sadd.s32 %s211, 1
      %p215 = scmp.eq.s32.totalorder %s25, 1
      %p216 = scmp.ne.s32.totalorder %s211, %s213
      %p217 = scmp.eq.s32.totalorder %s25, 0
      %p218 = por %p216, %p217
      %p219 = scmp.ne.s32.totalorder %s211, %s213
      %p220 = scmp.eq.s32.totalorder %s30, 1
      %p221 = por %p219, %p220
      %p222 = scmp.ne.s32.totalorder %s213, %s214
      %p223 = scmp.eq.s32.totalorder %s30, 0
      %p224 = por %p222, %p223
      %p225 = scmp.ne.s32.totalorder %s213, %s214
      %p226 = scmp.eq.s32.totalorder %s31, 1
      %p227 = por %p225, %p226
      %p229 = scmp.ne.s32.totalorder %s214, %s228
      %p230 = scmp.eq.s32.totalorder %s31, 0
      %p231 = por %p229, %p230
      %s232 = ssub.s32 %s25, %s32
      %p233 = scmp.eq.s32.totalorder %s232, 0
      %s235 = sadd.s32 %s234, 1
      %s236 = scalar_select %p233, %s234, %s235
      %p239 = pneg %p233
      %p240 = scmp.eq.s32.totalorder %s25, 1
      %p241 = por %p239, %p240
      %p242 = scmp.ne.s32.totalorder %s234, %s237
      %p243 = scmp.eq.s32.totalorder %s25, 0
      %p244 = por %p242, %p243
      %p245 = scmp.ne.s32.totalorder %s234, %s237
      %p246 = scmp.eq.s32.totalorder %s30, 1
      %p247 = por %p245, %p246
      %p248 = scmp.ne.s32.totalorder %s237, %s238
      %p249 = scmp.eq.s32.totalorder %s30, 0
      %p250 = por %p248, %p249
      %p251 = scmp.ne.s32.totalorder %s237, %s238
      %p252 = scmp.eq.s32.totalorder %s31, 1
      %p253 = por %p251, %p252
      %p255 = scmp.ne.s32.totalorder %s238, %s254
      %p256 = scmp.eq.s32.totalorder %s31, 0
      %p257 = por %p255, %p256
      %p258 = scmp.le.s32.totalorder 1, %s25
      %p259 = scmp.lt.s32.totalorder %s25, 3
      %p260 = pnand %p258, %p259
      %p261 = pneg %p260
      // Predicated region
      $region9: #{tpu_custom_call.1} parent=5 // pred_check
        _
      $region10: #{tpu_custom_call.1} parent=5 // pred_check_branch
        %263 = sbr.rel (%p260) target = $region12
      $region11: #{tpu_custom_call.1} parent=5 // pred_region
        %s264 = ssub.s32 %s25, 1
        // Predicated region
        $region13: #{tpu_custom_call.1} parent=11 // pred_check
          %p265 = pneg %p98
        $region14: #{tpu_custom_call.1} parent=11 // pred_check_branch
          %267 = sbr.rel (%p265) target = $region16
        $region15: #{tpu_custom_call.1} parent=11 // pred_region
          _
        $region16: #{tpu_custom_call.1} parent=11 // pred_fallthru
          _
        // Predicated region
        $region17: #{tpu_custom_call.1} parent=11 // pred_check
          %p268 = pneg %p119
        $region18: #{tpu_custom_call.1} parent=11 // pred_check_branch
          %270 = sbr.rel (%p268) target = $region20
        $region19: #{tpu_custom_call.1} parent=11 // pred_region
          _
        $region20: #{tpu_custom_call.1} parent=11 // pred_fallthru
          _
        // Predicated region
        $region21: #{tpu_custom_call.1} parent=11 // pred_check
          %p271 = pneg %p140
        $region22: #{tpu_custom_call.1} parent=11 // pred_check_branch
          %273 = sbr.rel (%p271) target = $region24
        $region23: #{tpu_custom_call.1} parent=11 // pred_region
          _
        $region24: #{tpu_custom_call.1} parent=11 // pred_fallthru
          _
        // Predicated region
        $region25: #{tpu_custom_call.1} parent=11 // pred_check
          %p274 = pneg %p161
        $region26: #{tpu_custom_call.1} parent=11 // pred_check_branch
          %276 = sbr.rel (%p274) target = $region28
        $region27: #{tpu_custom_call.1} parent=11 // pred_region
          _
        $region28: #{tpu_custom_call.1} parent=11 // pred_fallthru
          _
        // Predicated region
        $region29: #{tpu_custom_call.1} parent=11 // pred_check
          %p277 = pneg %p182
        $region30: #{tpu_custom_call.1} parent=11 // pred_check_branch
          %279 = sbr.rel (%p277) target = $region32
        $region31: #{tpu_custom_call.1} parent=11 // pred_region
          _
        $region32: #{tpu_custom_call.1} parent=11 // pred_fallthru
          _
        // Predicated region
        $region33: #{tpu_custom_call.1} parent=11 // pred_check
          %p280 = pneg %p203
        $region34: #{tpu_custom_call.1} parent=11 // pred_check_branch
          %282 = sbr.rel (%p280) target = $region36
        $region35: #{tpu_custom_call.1} parent=11 // pred_region
          _
        $region36: #{tpu_custom_call.1} parent=11 // pred_fallthru
          _
        // Predicated region
        $region37: #{tpu_custom_call.1} parent=11 // pred_check
          %p283 = pneg %p224
        $region38: #{tpu_custom_call.1} parent=11 // pred_check_branch
          %285 = sbr.rel (%p283) target = $region40
        $region39: #{tpu_custom_call.1} parent=11 // pred_region
          _
        $region40: #{tpu_custom_call.1} parent=11 // pred_fallthru
          _
      $region12: #{tpu_custom_call.1} parent=5 // pred_fallthru
        _
      %p286 = scmp.lt.s32.totalorder %s25, 2
      // Predicated region
      $region41: #{tpu_custom_call.1} parent=5 // pred_check
        %p287 = pneg %p286
      $region42: #{tpu_custom_call.1} parent=5 // pred_check_branch
        %289 = sbr.rel (%p287) target = $region44
      $region43: #{tpu_custom_call.1} parent=5 // pred_region
        // Predicated region
        $region45: #{tpu_custom_call.1} parent=43 // pred_check
          %p290 = pneg %p45
        $region46: #{tpu_custom_call.1} parent=43 // pred_check_branch
          %292 = sbr.rel (%p290) target = $region48
        $region47: #{tpu_custom_call.1} parent=43 // pred_region
          %p293 = scmp.lt.s32.totalorder %s25, 1
          %s294 = scalar_select %p293, %s25, 1
          %s295 = smul.addr %s294, 8
          %s296 = scalar_lea.vmem %s1, %s295
        $region48: #{tpu_custom_call.1} parent=43 // pred_fallthru
          _
        // Predicated region
        $region49: #{tpu_custom_call.1} parent=43 // pred_check
          %p297 = pneg %p71
        $region50: #{tpu_custom_call.1} parent=43 // pred_check_branch
          %299 = sbr.rel (%p297) target = $region52
        $region51: #{tpu_custom_call.1} parent=43 // pred_region
          %p300 = scmp.lt.s32.totalorder %s25, 1
          %s301 = scalar_select %p300, %s25, 1
          %s302 = smul.addr %s301, 8
          %s303 = smul.addr %s302, 8
          %s304 = scalar_lea.vmem %s2, %s303
        $region52: #{tpu_custom_call.1} parent=43 // pred_fallthru
          _
      $region44: #{tpu_custom_call.1} parent=5 // pred_fallthru
        _
      %p305 = scmp.le.s32.totalorder 1, %s25
      %p306 = scmp.lt.s32.totalorder %s25, 3
      %p307 = pnand %p305, %p306
      %p308 = pneg %p307
      // Predicated region
      $region53: #{tpu_custom_call.1} parent=5 // pred_check
        _
      $region54: #{tpu_custom_call.1} parent=5 // pred_check_branch
        %310 = sbr.rel (%p307) target = $region56
      $region55: #{tpu_custom_call.1} parent=5 // pred_region
        %s311 = ssub.s32 %s25, 1
        %p312 = scmp.lt.s32.totalorder %s30, 1
        %s313 = scalar_select %p312, %s30, 1
        %s314 = smul.addr %s313, 8
        %s315 = scalar_lea.vmem %s1, %s314
        %p316 = pneg %p51
        %p317 = pneg %p48
        %p318 = scmp.lt.s32.totalorder %s30, 1
        %s319 = scalar_select %p318, %s30, 1
        %s320 = smul.addr %s319, 8
        %s321 = smul.addr %s320, 8
        %s322 = scalar_lea.vmem %s2, %s321
        %p323 = pneg %p77
        %p324 = pneg %p74
        %p325 = pneg %p98
        %p326 = pneg %p95
        %p327 = pneg %p119
        %p328 = pneg %p116
        %p329 = pneg %p140
        %p330 = pneg %p137
        %p331 = pneg %p161
        %p332 = pneg %p158
        %p333 = pneg %p182
        %p334 = pneg %p179
        %p335 = pneg %p203
        %p336 = pneg %p200
        %p337 = pneg %p224
        %p338 = pneg %p221
        %p339 = pneg %p250
        %p340 = pneg %p247
        %s341 = sand.u32 %s237, 1
        %s342 = scalar_lea.sflag [#allocation9], %s341
        %s343 = sand.u32 %s237, 1
        %s344 = scalar_lea.vmem [#allocation8], %s343
        %p345 = scmp.lt.s32.totalorder %s30, 1
        %s346 = scalar_select %p345, %s30, 1
        %s347 = smul.addr %s346, 8
        %s348 = scalar_lea.vmem %s1, %s347
        %p349 = scmp.lt.s32.totalorder %s30, 1
        %s350 = scalar_select %p349, %s30, 1
        %s351 = smul.addr %s350, 8
        %s352 = smul.addr %s351, 8
        %s353 = scalar_lea.vmem %s2, %s352
        %v354 = vld [vmem:[%s353] sm:$0xff]
        %v355 = vld [vmem:[%s353 + $0x8] sm:$0xff]
        %v356 = vld [vmem:[%s353 + $0x10] sm:$0xff]
        %v357 = vld [vmem:[%s353 + $0x18] sm:$0xff]
        %v358 = vld [vmem:[%s353 + $0x20] sm:$0xff]
        %v359 = vld [vmem:[%s353 + $0x28] sm:$0xff]
        %v360 = vld [vmem:[%s353 + $0x30] sm:$0xff]
        %v361 = vld [vmem:[%s353 + $0x38] sm:$0xff]
        %v362 = vld [vmem:[%s5] sm:$0xff]
        %v363 = vld [vmem:[%s5 + $0x8] sm:$0xff]
        %v364 = vld [vmem:[%s5 + $0x10] sm:$0xff]
        %v365 = vld [vmem:[%s5 + $0x18] sm:$0xff]
        %v366 = vld [vmem:[%s6] sm:$0x1]
        %v368 = vlaneseq
        %v369 = vshrl.u32 %v368, 7
        %v370 = vsub.s32 0, %v369
        %v371 = vrot.slane %v366, %v370
        %vm373 = vcmask 261120
        %v375 = vsel %vm373, %v354, 0
        %v378 = vsel %vm373, %v355, 0
        %v381 = vsel %vm373, %v356, 0
        %v384 = vsel %vm373, %v357, 0
        %v387 = vsel %vm373, %v358, 0
        %v390 = vsel %vm373, %v359, 0
        %v393 = vsel %vm373, %v360, 0
        %v396 = vsel %vm373, %v361, 0
        %398 = vmatprep.subr.mxu0 0.0
        %399 = vmatpush1.msra.mxu0 %v362
        %400 = vmatprep.subr.mxu0 0.0
        %401 = vmatpush1.msra.mxu0 %v363
        %402 = vmatprep.subr.mxu0 0.0
        %403 = vmatpush1.msra.mxu0 %v364
        %404 = vmatprep.subr.mxu0 0.0
        %405 = vmatpush1.msra.mxu0 %v365
        %406 = vmatprep.subr.mxu0 0.0
        %407 = vmatpush1.msra.mxu0 0.0
        %408 = vmatprep.subr.mxu0 0.0
        %409 = vmatpush1.msra.mxu0 0.0
        %410 = vmatprep.subr.mxu0 0.0
        %411 = vmatpush1.msra.mxu0 0.0
        %412 = vmatprep.subr.mxu0 0.0
        %413 = vmatpush1.msra.mxu0 0.0
        %414 = vmatprep.subr.mxu0 0.0
        %415 = vmatpush1.msra.mxu0 0.0
        %416 = vmatprep.subr.mxu0 0.0
        %417 = vmatpush1.msra.mxu0 0.0
        %418 = vmatprep.subr.mxu0 0.0
        %419 = vmatpush1.msra.mxu0 0.0
        %420 = vmatprep.subr.mxu0 0.0
        %421 = vmatpush1.msra.mxu0 0.0
        %422 = vmatprep.subr.mxu0 0.0
        %423 = vmatpush1.msra.mxu0 0.0
        %424 = vmatprep.subr.mxu0 0.0
        %425 = vmatpush1.msra.mxu0 0.0
        %426 = vmatprep.subr.mxu0 0.0
        %427 = vmatpush1.msra.mxu0 0.0
        %428 = vmatprep.subr.mxu0 0.0
        %429 = vmatpush1.msra.mxu0 0.0
        %430 = vmatprep.subr.mxu0 0.0
        %431 = vmatpush1.msra.mxu0 0.0
        %432 = vmatprep.subr.mxu0 0.0
        %433 = vmatpush1.msra.mxu0 0.0
        %434 = vmatprep.subr.mxu0 0.0
        %435 = vmatpush1.msra.mxu0 0.0
        %436 = vmatprep.subr.mxu0 0.0
        %437 = vmatpush1.msra.mxu0 0.0
        %438 = vmatprep.subr.mxu0 0.0
        %439 = vmatpush1.msra.mxu0 0.0
        %440 = vmatprep.subr.mxu0 0.0
        %441 = vmatpush1.msra.mxu0 0.0
        %442 = vmatprep.subr.mxu0 0.0
        %443 = vmatpush1.msra.mxu0 0.0
        %444 = vmatprep.subr.mxu0 0.0
        %445 = vmatpush1.msra.mxu0 0.0
        %446 = vmatprep.subr.mxu0 0.0
        %447 = vmatpush1.msra.mxu0 0.0
        %448 = vmatprep.subr.mxu0 0.0
        %449 = vmatpush1.msra.mxu0 0.0
        %450 = vmatprep.subr.mxu0 0.0
        %451 = vmatpush1.msra.mxu0 0.0
        %452 = vmatprep.subr.mxu0 0.0
        %453 = vmatpush1.msra.mxu0 0.0
        %454 = vmatprep.subr.mxu0 0.0
        %455 = vmatpush1.msra.mxu0 0.0
        %456 = vmatprep.subr.mxu0 0.0
        %457 = vmatpush1.msra.mxu0 0.0
        %458 = vmatprep.subr.mxu0 0.0
        %459 = vmatpush1.msra.mxu0 0.0
        %460 = vmatprep.subr.mxu0 0.0
        %461 = vmatpush1.msra.mxu0 0.0
        %462 = vmatprep.mubr.f32.mxu0 0.0
        %463 = vmatmul.mubr.f32.gmra.mrb[0].mxu0 %v375
        %v464 = vpop.f32.mrb[0].mxu0
        %v465 = vadd.f32 %v371, %v464
        %v466 = vpop.f32.mrb[0].mxu0
        %467 = vmatprep.mubr.f32.mxu0 0.0
        %468 = vmatmul.mubr.f32.gmra.mrb[0].mxu0 %v378
        %v469 = vpop.f32.mrb[0].mxu0
        %v470 = vadd.f32 %v371, %v469
        %v471 = vpop.f32.mrb[0].mxu0
        %472 = vmatprep.mubr.f32.mxu0 0.0
        %473 = vmatmul.mubr.f32.gmra.mrb[0].mxu0 %v381
        %v474 = vpop.f32.mrb[0].mxu0
        %v475 = vadd.f32 %v371, %v474
        %v476 = vpop.f32.mrb[0].mxu0
        %477 = vmatprep.mubr.f32.mxu0 0.0
        %478 = vmatmul.mubr.f32.gmra.mrb[0].mxu0 %v384
        %v479 = vpop.f32.mrb[0].mxu0
        %v480 = vadd.f32 %v371, %v479
        %v481 = vpop.f32.mrb[0].mxu0
        %482 = vmatprep.mubr.f32.mxu0 0.0
        %483 = vmatmul.mubr.f32.gmra.mrb[0].mxu0 %v387
        %v484 = vpop.f32.mrb[0].mxu0
        %v485 = vadd.f32 %v371, %v484
        %v486 = vpop.f32.mrb[0].mxu0
        %487 = vmatprep.mubr.f32.mxu0 0.0
        %488 = vmatmul.mubr.f32.gmra.mrb[0].mxu0 %v390
        %v489 = vpop.f32.mrb[0].mxu0
        %v490 = vadd.f32 %v371, %v489
        %v491 = vpop.f32.mrb[0].mxu0
        %492 = vmatprep.mubr.f32.mxu0 0.0
        %493 = vmatmul.mubr.f32.gmra.mrb[0].mxu0 %v393
        %v494 = vpop.f32.mrb[0].mxu0
        %v495 = vadd.f32 %v371, %v494
        %v496 = vpop.f32.mrb[0].mxu0
        %497 = vmatprep.mubr.f32.mxu0 0.0
        %498 = vmatmul.mubr.f32.gmra.mrb[0].mxu0 %v396
        %v499 = vpop.f32.mrb[0].mxu0
        %v500 = vadd.f32 %v371, %v499
        %v501 = vpop.f32.mrb[0].mxu0
        %502 = vdwg.mxu0
        %vm503 = vcmask 31744
        %504 = vst.msk [vmem:[#allocation3] sm:$0xff] %vm503, %v465
        %505 = vst.msk [vmem:[#allocation3 + $0x8] sm:$0xff] %vm503, %v470
        %506 = vst.msk [vmem:[#allocation3 + $0x10] sm:$0xff] %vm503, %v475
        %507 = vst.msk [vmem:[#allocation3 + $0x18] sm:$0xff] %vm503, %v480
        %508 = vst.msk [vmem:[#allocation3 + $0x20] sm:$0xff] %vm503, %v485
        %509 = vst.msk [vmem:[#allocation3 + $0x28] sm:$0xff] %vm503, %v490
        %510 = vst.msk [vmem:[#allocation3 + $0x30] sm:$0xff] %vm503, %v495
        %511 = vst.msk [vmem:[#allocation3 + $0x38] sm:$0xff] %vm503, %v500
        %520 = vrot.lane.b32.xlu0 %v465, 124
        %v521 = vpop.permute.xlu0 %520
        %522 = vrot.lane.b32.xlu0 %v470, 124
        %v523 = vpop.permute.xlu0 %522
        %524 = vrot.lane.b32.xlu0 %v475, 124
        %v525 = vpop.permute.xlu0 %524
        %526 = vrot.lane.b32.xlu0 %v480, 124
        %v527 = vpop.permute.xlu0 %526
        %528 = vrot.lane.b32.xlu0 %v485, 124
        %v529 = vpop.permute.xlu0 %528
        %530 = vrot.lane.b32.xlu0 %v490, 124
        %v531 = vpop.permute.xlu0 %530
        %532 = vrot.lane.b32.xlu0 %v495, 124
        %v533 = vpop.permute.xlu0 %532
        %534 = vrot.lane.b32.xlu0 %v500, 124
        %v535 = vpop.permute.xlu0 %534
        %vm544 = vcmask 7168
        %545 = vst.msk [vmem:[#allocation4] sm:$0xff] %vm544, %v521
        %546 = vst.msk [vmem:[#allocation4 + $0x8] sm:$0xff] %vm544, %v523
        %547 = vst.msk [vmem:[#allocation4 + $0x10] sm:$0xff] %vm544, %v525
        %548 = vst.msk [vmem:[#allocation4 + $0x18] sm:$0xff] %vm544, %v527
        %549 = vst.msk [vmem:[#allocation4 + $0x20] sm:$0xff] %vm544, %v529
        %550 = vst.msk [vmem:[#allocation4 + $0x28] sm:$0xff] %vm544, %v531
        %551 = vst.msk [vmem:[#allocation4 + $0x30] sm:$0xff] %vm544, %v533
        %552 = vst.msk [vmem:[#allocation4 + $0x38] sm:$0xff] %vm544, %v535
        %v553 = vld [vmem:[%s348] sm:$0xff]
        %v554 = vld [vmem:[%s3] sm:$0xff]
        %v555 = vld [vmem:[%s3 + $0x8] sm:$0xff]
        %v556 = vld [vmem:[%s3 + $0x10] sm:$0xff]
        %v557 = vld [vmem:[%s3 + $0x18] sm:$0xff]
        %v558 = vld [vmem:[%s4] sm:$0x1]
        %v560 = vlaneseq
        %v561 = vshrl.u32 %v560, 7
        %v562 = vsub.s32 0, %v561
        %v563 = vrot.slane %v558, %v562
        %v566 = vsel %vm373, %v553, 0
        %568 = vmatprep.subr.mxu0 0.0
        %569 = vmatpush1.msra.mxu0 %v554
        %570 = vmatprep.subr.mxu0 0.0
        %571 = vmatpush1.msra.mxu0 %v555
        %572 = vmatprep.subr.mxu0 0.0
        %573 = vmatpush1.msra.mxu0 %v556
        %574 = vmatprep.subr.mxu0 0.0
        %575 = vmatpush1.msra.mxu0 %v557
        %576 = vmatprep.subr.mxu0 0.0
        %577 = vmatpush1.msra.mxu0 0.0
        %578 = vmatprep.subr.mxu0 0.0
        %579 = vmatpush1.msra.mxu0 0.0
        %580 = vmatprep.subr.mxu0 0.0
        %581 = vmatpush1.msra.mxu0 0.0
        %582 = vmatprep.subr.mxu0 0.0
        %583 = vmatpush1.msra.mxu0 0.0
        %584 = vmatprep.subr.mxu0 0.0
        %585 = vmatpush1.msra.mxu0 0.0
        %586 = vmatprep.subr.mxu0 0.0
        %587 = vmatpush1.msra.mxu0 0.0
        %588 = vmatprep.subr.mxu0 0.0
        %589 = vmatpush1.msra.mxu0 0.0
        %590 = vmatprep.subr.mxu0 0.0
        %591 = vmatpush1.msra.mxu0 0.0
        %592 = vmatprep.subr.mxu0 0.0
        %593 = vmatpush1.msra.mxu0 0.0
        %594 = vmatprep.subr.mxu0 0.0
        %595 = vmatpush1.msra.mxu0 0.0
        %596 = vmatprep.subr.mxu0 0.0
        %597 = vmatpush1.msra.mxu0 0.0
        %598 = vmatprep.subr.mxu0 0.0
        %599 = vmatpush1.msra.mxu0 0.0
        %600 = vmatprep.subr.mxu0 0.0
        %601 = vmatpush1.msra.mxu0 0.0
        %602 = vmatprep.subr.mxu0 0.0
        %603 = vmatpush1.msra.mxu0 0.0
        %604 = vmatprep.subr.mxu0 0.0
        %605 = vmatpush1.msra.mxu0 0.0
        %606 = vmatprep.subr.mxu0 0.0
        %607 = vmatpush1.msra.mxu0 0.0
        %608 = vmatprep.subr.mxu0 0.0
        %609 = vmatpush1.msra.mxu0 0.0
        %610 = vmatprep.subr.mxu0 0.0
        %611 = vmatpush1.msra.mxu0 0.0
        %612 = vmatprep.subr.mxu0 0.0
        %613 = vmatpush1.msra.mxu0 0.0
        %614 = vmatprep.subr.mxu0 0.0
        %615 = vmatpush1.msra.mxu0 0.0
        %616 = vmatprep.subr.mxu0 0.0
        %617 = vmatpush1.msra.mxu0 0.0
        %618 = vmatprep.subr.mxu0 0.0
        %619 = vmatpush1.msra.mxu0 0.0
        %620 = vmatprep.subr.mxu0 0.0
        %621 = vmatpush1.msra.mxu0 0.0
        %622 = vmatprep.subr.mxu0 0.0
        %623 = vmatpush1.msra.mxu0 0.0
        %624 = vmatprep.subr.mxu0 0.0
        %625 = vmatpush1.msra.mxu0 0.0
        %626 = vmatprep.subr.mxu0 0.0
        %627 = vmatpush1.msra.mxu0 0.0
        %628 = vmatprep.subr.mxu0 0.0
        %629 = vmatpush1.msra.mxu0 0.0
        %630 = vmatprep.subr.mxu0 0.0
        %631 = vmatpush1.msra.mxu0 0.0
        %632 = vmatprep.mubr.f32.mxu0 0.0
        %633 = vmatmul.mubr.f32.gmra.mrb[0].mxu0 %v566
        %v634 = vpop.f32.mrb[0].mxu0
        %v635 = vadd.f32 %v563, %v634
        %v636 = vpop.f32.mrb[0].mxu0
        %637 = vdwg.mxu0
        %v638 = vsel %vm503, %v635, -inf
        %639 = vmax.xlane.f32.xlu0 %v638
        %v640 = vpop.xlane.xlu0 %639
        %v641 = vsub.f32 %v635, %v640
        %v642 = vmul.f32 %v641, 1.442695
        %v643 = vpow.pop %v642
        %v644 = vld [vmem:[%s7] sm:$0xf]
        %v646 = vsel %vm503, %v643, 0
        %v649 = vsel %vm503, %v644, 0
        %651 = vmatprep.subr.mxu0 0.0
        %652 = vmatpush1.xpose.msra.mxu0 %v649
        %653 = vmatprep.subr.mxu0 0.0
        %654 = vmatpush1.xpose.msra.mxu0 0.0
        %655 = vmatprep.subr.mxu0 0.0
        %656 = vmatpush1.xpose.msra.mxu0 0.0
        %657 = vmatprep.subr.mxu0 0.0
        %658 = vmatpush1.xpose.msra.mxu0 0.0
        %659 = vmatprep.subr.mxu0 0.0
        %660 = vmatpush1.xpose.msra.mxu0 0.0
        %661 = vmatprep.subr.mxu0 0.0
        %662 = vmatpush1.xpose.msra.mxu0 0.0
        %663 = vmatprep.subr.mxu0 0.0
        %664 = vmatpush1.xpose.msra.mxu0 0.0
        %665 = vmatprep.subr.mxu0 0.0
        %666 = vmatpush1.xpose.msra.mxu0 0.0
        %667 = vmatprep.subr.mxu0 0.0
        %668 = vmatpush1.xpose.msra.mxu0 0.0
        %669 = vmatprep.subr.mxu0 0.0
        %670 = vmatpush1.xpose.msra.mxu0 0.0
        %671 = vmatprep.subr.mxu0 0.0
        %672 = vmatpush1.xpose.msra.mxu0 0.0
        %673 = vmatprep.subr.mxu0 0.0
        %674 = vmatpush1.xpose.msra.mxu0 0.0
        %675 = vmatprep.subr.mxu0 0.0
        %676 = vmatpush1.xpose.msra.mxu0 0.0
        %677 = vmatprep.subr.mxu0 0.0
        %678 = vmatpush1.xpose.msra.mxu0 0.0
        %679 = vmatprep.subr.mxu0 0.0
        %680 = vmatpush1.xpose.msra.mxu0 0.0
        %681 = vmatprep.subr.mxu0 0.0
        %682 = vmatpush1.xpose.msra.mxu0 0.0
        %683 = vmatprep.subr.mxu0 0.0
        %684 = vmatpush1.xpose.msra.mxu0 0.0
        %685 = vmatprep.subr.mxu0 0.0
        %686 = vmatpush1.xpose.msra.mxu0 0.0
        %687 = vmatprep.subr.mxu0 0.0
        %688 = vmatpush1.xpose.msra.mxu0 0.0
        %689 = vmatprep.subr.mxu0 0.0
        %690 = vmatpush1.xpose.msra.mxu0 0.0
        %691 = vmatprep.subr.mxu0 0.0
        %692 = vmatpush1.xpose.msra.mxu0 0.0
        %693 = vmatprep.subr.mxu0 0.0
        %694 = vmatpush1.xpose.msra.mxu0 0.0
        %695 = vmatprep.subr.mxu0 0.0
        %696 = vmatpush1.xpose.msra.mxu0 0.0
        %697 = vmatprep.subr.mxu0 0.0
        %698 = vmatpush1.xpose.msra.mxu0 0.0
        %699 = vmatprep.subr.mxu0 0.0
        %700 = vmatpush1.xpose.msra.mxu0 0.0
        %701 = vmatprep.subr.mxu0 0.0
        %702 = vmatpush1.xpose.msra.mxu0 0.0
        %703 = vmatprep.subr.mxu0 0.0
        %704 = vmatpush1.xpose.msra.mxu0 0.0
        %705 = vmatprep.subr.mxu0 0.0
        %706 = vmatpush1.xpose.msra.mxu0 0.0
        %707 = vmatprep.subr.mxu0 0.0
        %708 = vmatpush1.xpose.msra.mxu0 0.0
        %709 = vmatprep.subr.mxu0 0.0
        %710 = vmatpush1.xpose.msra.mxu0 0.0
        %711 = vmatprep.subr.mxu0 0.0
        %712 = vmatpush1.xpose.msra.mxu0 0.0
        %713 = vmatprep.subr.mxu0 0.0
        %714 = vmatpush1.xpose.msra.mxu0 0.0
        %715 = vmatprep.mubr.f32.mxu0 0.0
        %716 = vmatmul.mubr.f32.gmra.mrb[0].mxu0 %v646
        %v717 = vpop.f32.mrb[0].mxu0
        %v718 = vadd.f32 0.0, %v717
        %v719 = vpop.f32.mrb[0].mxu0
        %720 = vdwg.mxu0
        %v721 = vld [vmem:[#allocation3] ss:$9 sm:$0xff]
        %v722 = vadd.f32 %v721, %v640
        %v723 = vlog2.pop %v718
        %v724 = vmul.f32 %v723, 0.6931472
        %v725 = vadd.f32 %v722, %v724
        %vm726 = vcmask 24576
        %727 = vst.msk [vmem:[#allocation2] sm:$0x1] %vm726, %v725
        %vm728 = vcmask 25601
        %729 = vst.msk [vmem:[#allocation2 + $0x8] sm:$0x2] %vm728, %v725
        %vm730 = vcmask 26626
        %731 = vst.msk [vmem:[#allocation2 + $0x10] sm:$0x4] %vm730, %v725
        %vm732 = vcmask 27651
        %733 = vst.msk [vmem:[#allocation2 + $0x18] sm:$0x8] %vm732, %v725
        %vm734 = vcmask 28676
        %735 = vst.msk [vmem:[#allocation2 + $0x20] sm:$0x10] %vm734, %v725
        %vm736 = vcmask 29701
        %737 = vst.msk [vmem:[#allocation2 + $0x28] sm:$0x20] %vm736, %v725
        %vm738 = vcmask 30726
        %739 = vst.msk [vmem:[#allocation2 + $0x30] sm:$0x40] %vm738, %v725
        %vm740 = vcmask 31751
        %741 = vst.msk [vmem:[#allocation2 + $0x38] sm:$0x80] %vm740, %v725
        %v742 = vld [vmem:[#allocation2] sm:$0x1]
        %v743 = vld [vmem:[#allocation3] sm:$0x1]
        %v744 = vadd.f32 %v742, %v743
        %s745 = scalar_lea.vmem [#allocation2], 9
        %v746 = vld [vmem:[%s745] ss:$8 sm:$0x1]
        %s747 = scalar_lea.vmem [#allocation3], 9
        %v748 = vld [vmem:[%s747] ss:$8 sm:$0x1]
        %v749 = vadd.f32 %v746, %v748
        %v750 = vsel %vm726, %v744, -inf
        %751 = vmax.xlane.f32.xlu0 %v750
        %v752 = vpop.xlane.xlu0 %751
        %v753 = vsel %vm726, %v749, -inf
        %754 = vmax.xlane.f32.xlu0 %v753
        %v755 = vpop.xlane.xlu0 %754
        %v756 = vsub.f32 %v744, %v752
        %v757 = vmul.f32 %v756, 1.442695
        %v758 = vpow.pop %v757
        %v759 = vsub.f32 %v749, %v755
        %v760 = vmul.f32 %v759, 1.442695
        %v761 = vpow.pop %v760
        %762 = vxpose.xlu0.b32.start [1/16] %v758, 128
        %763 = vxpose.xlu0.b32.cont [2/16] 0.0, 128
        %764 = vxpose.xlu0.b32.cont [3/16] 0.0, 128
        %765 = vxpose.xlu0.b32.cont [4/16] 0.0, 128
        %766 = vxpose.xlu0.b32.cont [5/16] 0.0, 128
        %767 = vxpose.xlu0.b32.cont [6/16] 0.0, 128
        %768 = vxpose.xlu0.b32.cont [7/16] 0.0, 128
        %769 = vxpose.xlu0.b32.cont [8/16] 0.0, 128
        %770 = vxpose.xlu0.b32.cont [9/16] 0.0, 128
        %771 = vxpose.xlu0.b32.cont [10/16] 0.0, 128
        %772 = vxpose.xlu0.b32.cont [11/16] 0.0, 128
        %773 = vxpose.xlu0.b32.cont [12/16] 0.0, 128
        %774 = vxpose.xlu0.b32.cont [13/16] 0.0, 128
        %775 = vxpose.xlu0.b32.cont [14/16] 0.0, 128
        %776 = vxpose.xlu0.b32.cont [15/16] 0.0, 128
        %777 = vxpose.xlu0.b32.end [16/16] 0.0, 128
        %v778 = vpop.trf.xlu0
        %v779 = vpop.trf.xlu0
        %v780 = vpop.trf.xlu0
        %v781 = vpop.trf.xlu0
        %v782 = vpop.trf.xlu0
        %v783 = vpop.trf.xlu0
        %v784 = vpop.trf.xlu0
        %v785 = vpop.trf.xlu0
        %v786 = vpop.trf.xlu0
        %v787 = vpop.trf.xlu0
        %v788 = vpop.trf.xlu0
        %v789 = vpop.trf.xlu0
        %v790 = vpop.trf.xlu0
        %v791 = vpop.trf.xlu0
        %v792 = vpop.trf.xlu0
        %v793 = vpop.trf.xlu0
        %v795 = vsel %vm544, %v778, 0
        %vm797 = vcmask 1040384
        %v799 = vsel %vm797, %v761, 0
        %801 = vmatprep.subr.mxu0 0.0
        %802 = vmatpush1.msra.mxu0 %v799
        %803 = vmatprep.subr.mxu0 0.0
        %804 = vmatpush1.msra.mxu0 0.0
        %805 = vmatprep.subr.mxu0 0.0
        %806 = vmatpush1.msra.mxu0 0.0
        %807 = vmatprep.subr.mxu0 0.0
        %808 = vmatpush1.msra.mxu0 0.0
        %809 = vmatprep.subr.mxu0 0.0
        %810 = vmatpush1.msra.mxu0 0.0
        %811 = vmatprep.subr.mxu0 0.0
        %812 = vmatpush1.msra.mxu0 0.0
        %813 = vmatprep.subr.mxu0 0.0
        %814 = vmatpush1.msra.mxu0 0.0
        %815 = vmatprep.subr.mxu0 0.0
        %816 = vmatpush1.msra.mxu0 0.0
        %817 = vmatprep.subr.mxu0 0.0
        %818 = vmatpush1.msra.mxu0 0.0
        %819 = vmatprep.subr.mxu0 0.0
        %820 = vmatpush1.msra.mxu0 0.0
        %821 = vmatprep.subr.mxu0 0.0
        %822 = vmatpush1.msra.mxu0 0.0
        %823 = vmatprep.subr.mxu0 0.0
        %824 = vmatpush1.msra.mxu0 0.0
        %825 = vmatprep.subr.mxu0 0.0
        %826 = vmatpush1.msra.mxu0 0.0
        %827 = vmatprep.subr.mxu0 0.0
        %828 = vmatpush1.msra.mxu0 0.0
        %829 = vmatprep.subr.mxu0 0.0
        %830 = vmatpush1.msra.mxu0 0.0
        %831 = vmatprep.subr.mxu0 0.0
        %832 = vmatpush1.msra.mxu0 0.0
        %833 = vmatprep.subr.mxu0 0.0
        %834 = vmatpush1.msra.mxu0 0.0
        %835 = vmatprep.subr.mxu0 0.0
        %836 = vmatpush1.msra.mxu0 0.0
        %837 = vmatprep.subr.mxu0 0.0
        %838 = vmatpush1.msra.mxu0 0.0
        %839 = vmatprep.subr.mxu0 0.0
        %840 = vmatpush1.msra.mxu0 0.0
        %841 = vmatprep.subr.mxu0 0.0
        %842 = vmatpush1.msra.mxu0 0.0
        %843 = vmatprep.subr.mxu0 0.0
        %844 = vmatpush1.msra.mxu0 0.0
        %845 = vmatprep.subr.mxu0 0.0
        %846 = vmatpush1.msra.mxu0 0.0
        %847 = vmatprep.subr.mxu0 0.0
        %848 = vmatpush1.msra.mxu0 0.0
        %849 = vmatprep.subr.mxu0 0.0
        %850 = vmatpush1.msra.mxu0 0.0
        %851 = vmatprep.subr.mxu0 0.0
        %852 = vmatpush1.msra.mxu0 0.0
        %853 = vmatprep.subr.mxu0 0.0
        %854 = vmatpush1.msra.mxu0 0.0
        %855 = vmatprep.subr.mxu0 0.0
        %856 = vmatpush1.msra.mxu0 0.0
        %857 = vmatprep.subr.mxu0 0.0
        %858 = vmatpush1.msra.mxu0 0.0
        %859 = vmatprep.subr.mxu0 0.0
        %860 = vmatpush1.msra.mxu0 0.0
        %861 = vmatprep.subr.mxu0 0.0
        %862 = vmatpush1.msra.mxu0 0.0
        %863 = vmatprep.subr.mxu0 0.0
        %864 = vmatpush1.msra.mxu0 0.0
        %865 = vmatprep.mubr.f32.mxu0 0.0
        %866 = vmatmul.mubr.f32.gmra.mrb[0].mxu0 %v795
        %v867 = vpop.f32.mrb[0].mxu0
        %v868 = vadd.f32 0.0, %v867
        %v869 = vpop.f32.mrb[0].mxu0
        %870 = vdwg.mxu0
        %vm871 = vcmask 27648
        %872 = vst.msk [vmem:[#allocation5] sm:$0xf] %vm871, %v868
        %v873 = vadd.f32 %v752, %v755
        %v874 = vld [vmem:[#allocation2 + $0x9] sm:$0x1]
        %v875 = vld [vmem:[#allocation3 + $0x9] sm:$0x1]
        %v876 = vadd.f32 %v874, %v875
        %s877 = scalar_lea.vmem [#allocation2], 18
        %v878 = vld [vmem:[%s877] ss:$8 sm:$0x1]
        %s879 = scalar_lea.vmem [#allocation3], 18
        %v880 = vld [vmem:[%s879] ss:$8 sm:$0x1]
        %v881 = vadd.f32 %v878, %v880
        %v882 = vsel %vm726, %v876, -inf
        %883 = vmax.xlane.f32.xlu0 %v882
        %v884 = vpop.xlane.xlu0 %883
        %v885 = vsel %vm726, %v881, -inf
        %886 = vmax.xlane.f32.xlu0 %v885
        %v887 = vpop.xlane.xlu0 %886
        %v888 = vsub.f32 %v876, %v884
        %v889 = vmul.f32 %v888, 1.442695
        %v890 = vpow.pop %v889
        %v891 = vsub.f32 %v881, %v887
        %v892 = vmul.f32 %v891, 1.442695
        %v893 = vpow.pop %v892
        %894 = vxpose.xlu0.b32.start [1/16] %v890, 128
        %895 = vxpose.xlu0.b32.cont [2/16] 0.0, 128
        %896 = vxpose.xlu0.b32.cont [3/16] 0.0, 128
        %897 = vxpose.xlu0.b32.cont [4/16] 0.0, 128
        %898 = vxpose.xlu0.b32.cont [5/16] 0.0, 128
        %899 = vxpose.xlu0.b32.cont [6/16] 0.0, 128
        %900 = vxpose.xlu0.b32.cont [7/16] 0.0, 128
        %901 = vxpose.xlu0.b32.cont [8/16] 0.0, 128
        %902 = vxpose.xlu0.b32.cont [9/16] 0.0, 128
        %903 = vxpose.xlu0.b32.cont [10/16] 0.0, 128
        %904 = vxpose.xlu0.b32.cont [11/16] 0.0, 128
        %905 = vxpose.xlu0.b32.cont [12/16] 0.0, 128
        %906 = vxpose.xlu0.b32.cont [13/16] 0.0, 128
        %907 = vxpose.xlu0.b32.cont [14/16] 0.0, 128
        %908 = vxpose.xlu0.b32.cont [15/16] 0.0, 128
        %909 = vxpose.xlu0.b32.end [16/16] 0.0, 128
        %v910 = vpop.trf.xlu0
        %v911 = vpop.trf.xlu0
        %v912 = vpop.trf.xlu0
        %v913 = vpop.trf.xlu0
        %v914 = vpop.trf.xlu0
        %v915 = vpop.trf.xlu0
        %v916 = vpop.trf.xlu0
        %v917 = vpop.trf.xlu0
        %v918 = vpop.trf.xlu0
        %v919 = vpop.trf.xlu0
        %v920 = vpop.trf.xlu0
        %v921 = vpop.trf.xlu0
        %v922 = vpop.trf.xlu0
        %v923 = vpop.trf.xlu0
        %v924 = vpop.trf.xlu0
        %v925 = vpop.trf.xlu0
        %v927 = vsel %vm544, %v910, 0
        %v930 = vsel %vm797, %v893, 0
        %932 = vmatprep.subr.mxu0 0.0
        %933 = vmatpush1.msra.mxu0 %v930
        %934 = vmatprep.subr.mxu0 0.0
        %935 = vmatpush1.msra.mxu0 0.0
        %936 = vmatprep.subr.mxu0 0.0
        %937 = vmatpush1.msra.mxu0 0.0
        %938 = vmatprep.subr.mxu0 0.0
        %939 = vmatpush1.msra.mxu0 0.0
        %940 = vmatprep.subr.mxu0 0.0
        %941 = vmatpush1.msra.mxu0 0.0
        %942 = vmatprep.subr.mxu0 0.0
        %943 = vmatpush1.msra.mxu0 0.0
        %944 = vmatprep.subr.mxu0 0.0
        %945 = vmatpush1.msra.mxu0 0.0
        %946 = vmatprep.subr.mxu0 0.0
        %947 = vmatpush1.msra.mxu0 0.0
        %948 = vmatprep.subr.mxu0 0.0
        %949 = vmatpush1.msra.mxu0 0.0
        %950 = vmatprep.subr.mxu0 0.0
        %951 = vmatpush1.msra.mxu0 0.0
        %952 = vmatprep.subr.mxu0 0.0
        %953 = vmatpush1.msra.mxu0 0.0
        %954 = vmatprep.subr.mxu0 0.0
        %955 = vmatpush1.msra.mxu0 0.0
        %956 = vmatprep.subr.mxu0 0.0
        %957 = vmatpush1.msra.mxu0 0.0
        %958 = vmatprep.subr.mxu0 0.0
        %959 = vmatpush1.msra.mxu0 0.0
        %960 = vmatprep.subr.mxu0 0.0
        %961 = vmatpush1.msra.mxu0 0.0
        %962 = vmatprep.subr.mxu0 0.0
        %963 = vmatpush1.msra.mxu0 0.0
        %964 = vmatprep.subr.mxu0 0.0
        %965 = vmatpush1.msra.mxu0 0.0
        %966 = vmatprep.subr.mxu0 0.0
        %967 = vmatpush1.msra.mxu0 0.0
        %968 = vmatprep.subr.mxu0 0.0
        %969 = vmatpush1.msra.mxu0 0.0
        %970 = vmatprep.subr.mxu0 0.0
        %971 = vmatpush1.msra.mxu0 0.0
        %972 = vmatprep.subr.mxu0 0.0
        %973 = vmatpush1.msra.mxu0 0.0
        %974 = vmatprep.subr.mxu0 0.0
        %975 = vmatpush1.msra.mxu0 0.0
        %976 = vmatprep.subr.mxu0 0.0
        %977 = vmatpush1.msra.mxu0 0.0
        %978 = vmatprep.subr.mxu0 0.0
        %979 = vmatpush1.msra.mxu0 0.0
        %980 = vmatprep.subr.mxu0 0.0
        %981 = vmatpush1.msra.mxu0 0.0
        %982 = vmatprep.subr.mxu0 0.0
        %983 = vmatpush1.msra.mxu0 0.0
        %984 = vmatprep.subr.mxu0 0.0
        %985 = vmatpush1.msra.mxu0 0.0
        %986 = vmatprep.subr.mxu0 0.0
        %987 = vmatpush1.msra.mxu0 0.0
        %988 = vmatprep.subr.mxu0 0.0
        %989 = vmatpush1.msra.mxu0 0.0
        %990 = vmatprep.subr.mxu0 0.0
        %991 = vmatpush1.msra.mxu0 0.0
        %992 = vmatprep.subr.mxu0 0.0
        %993 = vmatpush1.msra.mxu0 0.0
        %994 = vmatprep.subr.mxu0 0.0
        %995 = vmatpush1.msra.mxu0 0.0
        %996 = vmatprep.mubr.f32.mxu0 0.0
        %997 = vmatmul.mubr.f32.gmra.mrb[0].mxu0 %v927
        %v998 = vpop.f32.mrb[0].mxu0
        %v999 = vadd.f32 0.0, %v998
        %v1000 = vpop.f32.mrb[0].mxu0
        %1001 = vdwg.mxu0
        %1002 = vst.msk [vmem:[#allocation5 + $0x4] sm:$0xf] %vm871, %v999
        %v1003 = vadd.f32 %v884, %v887
        %v1004 = vld [vmem:[#allocation2 + $0x12] sm:$0x1]
        %v1005 = vld [vmem:[#allocation3 + $0x12] sm:$0x1]
        %v1006 = vadd.f32 %v1004, %v1005
        %s1007 = scalar_lea.vmem [#allocation2], 27
        %v1008 = vld [vmem:[%s1007] ss:$8 sm:$0x1]
        %s1009 = scalar_lea.vmem [#allocation3], 27
        %v1010 = vld [vmem:[%s1009] ss:$8 sm:$0x1]
        %v1011 = vadd.f32 %v1008, %v1010
        %v1012 = vsel %vm726, %v1006, -inf
        %1013 = vmax.xlane.f32.xlu0 %v1012
        %v1014 = vpop.xlane.xlu0 %1013
        %v1015 = vsel %vm726, %v1011, -inf
        %1016 = vmax.xlane.f32.xlu0 %v1015
        %v1017 = vpop.xlane.xlu0 %1016
        %v1018 = vsub.f32 %v1006, %v1014
        %v1019 = vmul.f32 %v1018, 1.442695
        %v1020 = vpow.pop %v1019
        %v1021 = vsub.f32 %v1011, %v1017
        %v1022 = vmul.f32 %v1021, 1.442695
        %v1023 = vpow.pop %v1022
        %1024 = vxpose.xlu0.b32.start [1/16] %v1020, 128
        %1025 = vxpose.xlu0.b32.cont [2/16] 0.0, 128
        %1026 = vxpose.xlu0.b32.cont [3/16] 0.0, 128
        %1027 = vxpose.xlu0.b32.cont [4/16] 0.0, 128
        %1028 = vxpose.xlu0.b32.cont [5/16] 0.0, 128
        %1029 = vxpose.xlu0.b32.cont [6/16] 0.0, 128
        %1030 = vxpose.xlu0.b32.cont [7/16] 0.0, 128
        %1031 = vxpose.xlu0.b32.cont [8/16] 0.0, 128
        %1032 = vxpose.xlu0.b32.cont [9/16] 0.0, 128
        %1033 = vxpose.xlu0.b32.cont [10/16] 0.0, 128
        %1034 = vxpose.xlu0.b32.cont [11/16] 0.0, 128
        %1035 = vxpose.xlu0.b32.cont [12/16] 0.0, 128
        %1036 = vxpose.xlu0.b32.cont [13/16] 0.0, 128
        %1037 = vxpose.xlu0.b32.cont [14/16] 0.0, 128
        %1038 = vxpose.xlu0.b32.cont [15/16] 0.0, 128
        %1039 = vxpose.xlu0.b32.end [16/16] 0.0, 128
        %v1040 = vpop.trf.xlu0
        %v1041 = vpop.trf.xlu0
        %v1042 = vpop.trf.xlu0
        %v1043 = vpop.trf.xlu0
        %v1044 = vpop.trf.xlu0
        %v1045 = vpop.trf.xlu0
        %v1046 = vpop.trf.xlu0
        %v1047 = vpop.trf.xlu0
        %v1048 = vpop.trf.xlu0
        %v1049 = vpop.trf.xlu0
        %v1050 = vpop.trf.xlu0
        %v1051 = vpop.trf.xlu0
        %v1052 = vpop.trf.xlu0
        %v1053 = vpop.trf.xlu0
        %v1054 = vpop.trf.xlu0
        %v1055 = vpop.trf.xlu0
        %v1057 = vsel %vm544, %v1040, 0
        %v1060 = vsel %vm797, %v1023, 0
        %1062 = vmatprep.subr.mxu0 0.0
        %1063 = vmatpush1.msra.mxu0 %v1060
        %1064 = vmatprep.subr.mxu0 0.0
        %1065 = vmatpush1.msra.mxu0 0.0
        %1066 = vmatprep.subr.mxu0 0.0
        %1067 = vmatpush1.msra.mxu0 0.0
        %1068 = vmatprep.subr.mxu0 0.0
        %1069 = vmatpush1.msra.mxu0 0.0
        %1070 = vmatprep.subr.mxu0 0.0
        %1071 = vmatpush1.msra.mxu0 0.0
        %1072 = vmatprep.subr.mxu0 0.0
        %1073 = vmatpush1.msra.mxu0 0.0
        %1074 = vmatprep.subr.mxu0 0.0
        %1075 = vmatpush1.msra.mxu0 0.0
        %1076 = vmatprep.subr.mxu0 0.0
        %1077 = vmatpush1.msra.mxu0 0.0
        %1078 = vmatprep.subr.mxu0 0.0
        %1079 = vmatpush1.msra.mxu0 0.0
        %1080 = vmatprep.subr.mxu0 0.0
        %1081 = vmatpush1.msra.mxu0 0.0
        %1082 = vmatprep.subr.mxu0 0.0
        %1083 = vmatpush1.msra.mxu0 0.0
        %1084 = vmatprep.subr.mxu0 0.0
        %1085 = vmatpush1.msra.mxu0 0.0
        %1086 = vmatprep.subr.mxu0 0.0
        %1087 = vmatpush1.msra.mxu0 0.0
        %1088 = vmatprep.subr.mxu0 0.0
        %1089 = vmatpush1.msra.mxu0 0.0
        %1090 = vmatprep.subr.mxu0 0.0
        %1091 = vmatpush1.msra.mxu0 0.0
        %1092 = vmatprep.subr.mxu0 0.0
        %1093 = vmatpush1.msra.mxu0 0.0
        %1094 = vmatprep.subr.mxu0 0.0
        %1095 = vmatpush1.msra.mxu0 0.0
        %1096 = vmatprep.subr.mxu0 0.0
        %1097 = vmatpush1.msra.mxu0 0.0
        %1098 = vmatprep.subr.mxu0 0.0
        %1099 = vmatpush1.msra.mxu0 0.0
        %1100 = vmatprep.subr.mxu0 0.0
        %1101 = vmatpush1.msra.mxu0 0.0
        %1102 = vmatprep.subr.mxu0 0.0
        %1103 = vmatpush1.msra.mxu0 0.0
        %1104 = vmatprep.subr.mxu0 0.0
        %1105 = vmatpush1.msra.mxu0 0.0
        %1106 = vmatprep.subr.mxu0 0.0
        %1107 = vmatpush1.msra.mxu0 0.0
        %1108 = vmatprep.subr.mxu0 0.0
        %1109 = vmatpush1.msra.mxu0 0.0
        %1110 = vmatprep.subr.mxu0 0.0
        %1111 = vmatpush1.msra.mxu0 0.0
        %1112 = vmatprep.subr.mxu0 0.0
        %1113 = vmatpush1.msra.mxu0 0.0
        %1114 = vmatprep.subr.mxu0 0.0
        %1115 = vmatpush1.msra.mxu0 0.0
        %1116 = vmatprep.subr.mxu0 0.0
        %1117 = vmatpush1.msra.mxu0 0.0
        %1118 = vmatprep.subr.mxu0 0.0
        %1119 = vmatpush1.msra.mxu0 0.0
        %1120 = vmatprep.subr.mxu0 0.0
        %1121 = vmatpush1.msra.mxu0 0.0
        %1122 = vmatprep.subr.mxu0 0.0
        %1123 = vmatpush1.msra.mxu0 0.0
        %1124 = vmatprep.subr.mxu0 0.0
        %1125 = vmatpush1.msra.mxu0 0.0
        %1126 = vmatprep.mubr.f32.mxu0 0.0
        %1127 = vmatmul.mubr.f32.gmra.mrb[0].mxu0 %v1057
        %v1128 = vpop.f32.mrb[0].mxu0
        %v1129 = vadd.f32 0.0, %v1128
        %v1130 = vpop.f32.mrb[0].mxu0
        %1131 = vdwg.mxu0
        %1132 = vst.msk [vmem:[#allocation5 + $0x8] sm:$0xf] %vm871, %v1129
        %v1133 = vadd.f32 %v1014, %v1017
        %v1134 = vld [vmem:[#allocation2 + $0x1b] sm:$0x1]
        %v1135 = vld [vmem:[#allocation3 + $0x1b] sm:$0x1]
        %v1136 = vadd.f32 %v1134, %v1135
        %s1137 = scalar_lea.vmem [#allocation2], 36
        %v1138 = vld [vmem:[%s1137] ss:$8 sm:$0x1]
        %s1139 = scalar_lea.vmem [#allocation3], 36
        %v1140 = vld [vmem:[%s1139] ss:$8 sm:$0x1]
        %v1141 = vadd.f32 %v1138, %v1140
        %v1142 = vsel %vm726, %v1136, -inf
        %1143 = vmax.xlane.f32.xlu0 %v1142
        %v1144 = vpop.xlane.xlu0 %1143
        %v1145 = vsel %vm726, %v1141, -inf
        %1146 = vmax.xlane.f32.xlu0 %v1145
        %v1147 = vpop.xlane.xlu0 %1146
        %v1148 = vsub.f32 %v1136, %v1144
        %v1149 = vmul.f32 %v1148, 1.442695
        %v1150 = vpow.pop %v1149
        %v1151 = vsub.f32 %v1141, %v1147
        %v1152 = vmul.f32 %v1151, 1.442695
        %v1153 = vpow.pop %v1152
        %1154 = vxpose.xlu0.b32.start [1/16] %v1150, 128
        %1155 = vxpose.xlu0.b32.cont [2/16] 0.0, 128
        %1156 = vxpose.xlu0.b32.cont [3/16] 0.0, 128
        %1157 = vxpose.xlu0.b32.cont [4/16] 0.0, 128
        %1158 = vxpose.xlu0.b32.cont [5/16] 0.0, 128
        %1159 = vxpose.xlu0.b32.cont [6/16] 0.0, 128
        %1160 = vxpose.xlu0.b32.cont [7/16] 0.0, 128
        %1161 = vxpose.xlu0.b32.cont [8/16] 0.0, 128
        %1162 = vxpose.xlu0.b32.cont [9/16] 0.0, 128
        %1163 = vxpose.xlu0.b32.cont [10/16] 0.0, 128
        %1164 = vxpose.xlu0.b32.cont [11/16] 0.0, 128
        %1165 = vxpose.xlu0.b32.cont [12/16] 0.0, 128
        %1166 = vxpose.xlu0.b32.cont [13/16] 0.0, 128
        %1167 = vxpose.xlu0.b32.cont [14/16] 0.0, 128
        %1168 = vxpose.xlu0.b32.cont [15/16] 0.0, 128
        %1169 = vxpose.xlu0.b32.end [16/16] 0.0, 128
        %v1170 = vpop.trf.xlu0
        %v1171 = vpop.trf.xlu0
        %v1172 = vpop.trf.xlu0
        %v1173 = vpop.trf.xlu0
        %v1174 = vpop.trf.xlu0
        %v1175 = vpop.trf.xlu0
        %v1176 = vpop.trf.xlu0
        %v1177 = vpop.trf.xlu0
        %v1178 = vpop.trf.xlu0
        %v1179 = vpop.trf.xlu0
        %v1180 = vpop.trf.xlu0
        %v1181 = vpop.trf.xlu0
        %v1182 = vpop.trf.xlu0
        %v1183 = vpop.trf.xlu0
        %v1184 = vpop.trf.xlu0
        %v1185 = vpop.trf.xlu0
        %v1187 = vsel %vm544, %v1170, 0
        %v1190 = vsel %vm797, %v1153, 0
        %1192 = vmatprep.subr.mxu0 0.0
        %1193 = vmatpush1.msra.mxu0 %v1190
        %1194 = vmatprep.subr.mxu0 0.0
        %1195 = vmatpush1.msra.mxu0 0.0
        %1196 = vmatprep.subr.mxu0 0.0
        %1197 = vmatpush1.msra.mxu0 0.0
        %1198 = vmatprep.subr.mxu0 0.0
        %1199 = vmatpush1.msra.mxu0 0.0
        %1200 = vmatprep.subr.mxu0 0.0
        %1201 = vmatpush1.msra.mxu0 0.0
        %1202 = vmatprep.subr.mxu0 0.0
        %1203 = vmatpush1.msra.mxu0 0.0
        %1204 = vmatprep.subr.mxu0 0.0
        %1205 = vmatpush1.msra.mxu0 0.0
        %1206 = vmatprep.subr.mxu0 0.0
        %1207 = vmatpush1.msra.mxu0 0.0
        %1208 = vmatprep.subr.mxu0 0.0
        %1209 = vmatpush1.msra.mxu0 0.0
        %1210 = vmatprep.subr.mxu0 0.0
        %1211 = vmatpush1.msra.mxu0 0.0
        %1212 = vmatprep.subr.mxu0 0.0
        %1213 = vmatpush1.msra.mxu0 0.0
        %1214 = vmatprep.subr.mxu0 0.0
        %1215 = vmatpush1.msra.mxu0 0.0
        %1216 = vmatprep.subr.mxu0 0.0
        %1217 = vmatpush1.msra.mxu0 0.0
        %1218 = vmatprep.subr.mxu0 0.0
        %1219 = vmatpush1.msra.mxu0 0.0
        %1220 = vmatprep.subr.mxu0 0.0
        %1221 = vmatpush1.msra.mxu0 0.0
        %1222 = vmatprep.subr.mxu0 0.0
        %1223 = vmatpush1.msra.mxu0 0.0
        %1224 = vmatprep.subr.mxu0 0.0
        %1225 = vmatpush1.msra.mxu0 0.0
        %1226 = vmatprep.subr.mxu0 0.0
        %1227 = vmatpush1.msra.mxu0 0.0
        %1228 = vmatprep.subr.mxu0 0.0
        %1229 = vmatpush1.msra.mxu0 0.0
        %1230 = vmatprep.subr.mxu0 0.0
        %1231 = vmatpush1.msra.mxu0 0.0
        %1232 = vmatprep.subr.mxu0 0.0
        %1233 = vmatpush1.msra.mxu0 0.0
        %1234 = vmatprep.subr.mxu0 0.0
        %1235 = vmatpush1.msra.mxu0 0.0
        %1236 = vmatprep.subr.mxu0 0.0
        %1237 = vmatpush1.msra.mxu0 0.0
        %1238 = vmatprep.subr.mxu0 0.0
        %1239 = vmatpush1.msra.mxu0 0.0
        %1240 = vmatprep.subr.mxu0 0.0
        %1241 = vmatpush1.msra.mxu0 0.0
        %1242 = vmatprep.subr.mxu0 0.0
        %1243 = vmatpush1.msra.mxu0 0.0
        %1244 = vmatprep.subr.mxu0 0.0
        %1245 = vmatpush1.msra.mxu0 0.0
        %1246 = vmatprep.subr.mxu0 0.0
        %1247 = vmatpush1.msra.mxu0 0.0
        %1248 = vmatprep.subr.mxu0 0.0
        %1249 = vmatpush1.msra.mxu0 0.0
        %1250 = vmatprep.subr.mxu0 0.0
        %1251 = vmatpush1.msra.mxu0 0.0
        %1252 = vmatprep.subr.mxu0 0.0
        %1253 = vmatpush1.msra.mxu0 0.0
        %1254 = vmatprep.subr.mxu0 0.0
        %1255 = vmatpush1.msra.mxu0 0.0
        %1256 = vmatprep.mubr.f32.mxu0 0.0
        %1257 = vmatmul.mubr.f32.gmra.mrb[0].mxu0 %v1187
        %v1258 = vpop.f32.mrb[0].mxu0
        %v1259 = vadd.f32 0.0, %v1258
        %v1260 = vpop.f32.mrb[0].mxu0
        %1261 = vdwg.mxu0
        %1262 = vst.msk [vmem:[#allocation5 + $0xc] sm:$0xf] %vm871, %v1259
        %v1263 = vadd.f32 %v1144, %v1147
        %v1264 = vld [vmem:[#allocation2 + $0x24] sm:$0x1]
        %v1265 = vld [vmem:[#allocation3 + $0x24] sm:$0x1]
        %v1266 = vadd.f32 %v1264, %v1265
        %s1267 = scalar_lea.vmem [#allocation2], 45
        %v1268 = vld [vmem:[%s1267] ss:$8 sm:$0x1]
        %s1269 = scalar_lea.vmem [#allocation3], 45
        %v1270 = vld [vmem:[%s1269] ss:$8 sm:$0x1]
        %v1271 = vadd.f32 %v1268, %v1270
        %v1272 = vsel %vm726, %v1266, -inf
        %1273 = vmax.xlane.f32.xlu0 %v1272
        %v1274 = vpop.xlane.xlu0 %1273
        %v1275 = vsel %vm726, %v1271, -inf
        %1276 = vmax.xlane.f32.xlu0 %v1275
        %v1277 = vpop.xlane.xlu0 %1276
        %v1278 = vsub.f32 %v1266, %v1274
        %v1279 = vmul.f32 %v1278, 1.442695
        %v1280 = vpow.pop %v1279
        %v1281 = vsub.f32 %v1271, %v1277
        %v1282 = vmul.f32 %v1281, 1.442695
        %v1283 = vpow.pop %v1282
        %1284 = vxpose.xlu0.b32.start [1/16] %v1280, 128
        %1285 = vxpose.xlu0.b32.cont [2/16] 0.0, 128
        %1286 = vxpose.xlu0.b32.cont [3/16] 0.0, 128
        %1287 = vxpose.xlu0.b32.cont [4/16] 0.0, 128
        %1288 = vxpose.xlu0.b32.cont [5/16] 0.0, 128
        %1289 = vxpose.xlu0.b32.cont [6/16] 0.0, 128
        %1290 = vxpose.xlu0.b32.cont [7/16] 0.0, 128
        %1291 = vxpose.xlu0.b32.cont [8/16] 0.0, 128
        %1292 = vxpose.xlu0.b32.cont [9/16] 0.0, 128
        %1293 = vxpose.xlu0.b32.cont [10/16] 0.0, 128
        %1294 = vxpose.xlu0.b32.cont [11/16] 0.0, 128
        %1295 = vxpose.xlu0.b32.cont [12/16] 0.0, 128
        %1296 = vxpose.xlu0.b32.cont [13/16] 0.0, 128
        %1297 = vxpose.xlu0.b32.cont [14/16] 0.0, 128
        %1298 = vxpose.xlu0.b32.cont [15/16] 0.0, 128
        %1299 = vxpose.xlu0.b32.end [16/16] 0.0, 128
        %v1300 = vpop.trf.xlu0
        %v1301 = vpop.trf.xlu0
        %v1302 = vpop.trf.xlu0
        %v1303 = vpop.trf.xlu0
        %v1304 = vpop.trf.xlu0
        %v1305 = vpop.trf.xlu0
        %v1306 = vpop.trf.xlu0
        %v1307 = vpop.trf.xlu0
        %v1308 = vpop.trf.xlu0
        %v1309 = vpop.trf.xlu0
        %v1310 = vpop.trf.xlu0
        %v1311 = vpop.trf.xlu0
        %v1312 = vpop.trf.xlu0
        %v1313 = vpop.trf.xlu0
        %v1314 = vpop.trf.xlu0
        %v1315 = vpop.trf.xlu0
        %v1317 = vsel %vm544, %v1300, 0
        %v1320 = vsel %vm797, %v1283, 0
        %1322 = vmatprep.subr.mxu0 0.0
        %1323 = vmatpush1.msra.mxu0 %v1320
        %1324 = vmatprep.subr.mxu0 0.0
        %1325 = vmatpush1.msra.mxu0 0.0
        %1326 = vmatprep.subr.mxu0 0.0
        %1327 = vmatpush1.msra.mxu0 0.0
        %1328 = vmatprep.subr.mxu0 0.0
        %1329 = vmatpush1.msra.mxu0 0.0
        %1330 = vmatprep.subr.mxu0 0.0
        %1331 = vmatpush1.msra.mxu0 0.0
        %1332 = vmatprep.subr.mxu0 0.0
        %1333 = vmatpush1.msra.mxu0 0.0
        %1334 = vmatprep.subr.mxu0 0.0
        %1335 = vmatpush1.msra.mxu0 0.0
        %1336 = vmatprep.subr.mxu0 0.0
        %1337 = vmatpush1.msra.mxu0 0.0
        %1338 = vmatprep.subr.mxu0 0.0
        %1339 = vmatpush1.msra.mxu0 0.0
        %1340 = vmatprep.subr.mxu0 0.0
        %1341 = vmatpush1.msra.mxu0 0.0
        %1342 = vmatprep.subr.mxu0 0.0
        %1343 = vmatpush1.msra.mxu0 0.0
        %1344 = vmatprep.subr.mxu0 0.0
        %1345 = vmatpush1.msra.mxu0 0.0
        %1346 = vmatprep.subr.mxu0 0.0
        %1347 = vmatpush1.msra.mxu0 0.0
        %1348 = vmatprep.subr.mxu0 0.0
        %1349 = vmatpush1.msra.mxu0 0.0
        %1350 = vmatprep.subr.mxu0 0.0
        %1351 = vmatpush1.msra.mxu0 0.0
        %1352 = vmatprep.subr.mxu0 0.0
        %1353 = vmatpush1.msra.mxu0 0.0
        %1354 = vmatprep.subr.mxu0 0.0
        %1355 = vmatpush1.msra.mxu0 0.0
        %1356 = vmatprep.subr.mxu0 0.0
        %1357 = vmatpush1.msra.mxu0 0.0
        %1358 = vmatprep.subr.mxu0 0.0
        %1359 = vmatpush1.msra.mxu0 0.0
        %1360 = vmatprep.subr.mxu0 0.0
        %1361 = vmatpush1.msra.mxu0 0.0
        %1362 = vmatprep.subr.mxu0 0.0
        %1363 = vmatpush1.msra.mxu0 0.0
        %1364 = vmatprep.subr.mxu0 0.0
        %1365 = vmatpush1.msra.mxu0 0.0
        %1366 = vmatprep.subr.mxu0 0.0
        %1367 = vmatpush1.msra.mxu0 0.0
        %1368 = vmatprep.subr.mxu0 0.0
        %1369 = vmatpush1.msra.mxu0 0.0
        %1370 = vmatprep.subr.mxu0 0.0
        %1371 = vmatpush1.msra.mxu0 0.0
        %1372 = vmatprep.subr.mxu0 0.0
        %1373 = vmatpush1.msra.mxu0 0.0
        %1374 = vmatprep.subr.mxu0 0.0
        %1375 = vmatpush1.msra.mxu0 0.0
        %1376 = vmatprep.subr.mxu0 0.0
        %1377 = vmatpush1.msra.mxu0 0.0
        %1378 = vmatprep.subr.mxu0 0.0
        %1379 = vmatpush1.msra.mxu0 0.0
        %1380 = vmatprep.subr.mxu0 0.0
        %1381 = vmatpush1.msra.mxu0 0.0
        %1382 = vmatprep.subr.mxu0 0.0
        %1383 = vmatpush1.msra.mxu0 0.0
        %1384 = vmatprep.subr.mxu0 0.0
        %1385 = vmatpush1.msra.mxu0 0.0
        %1386 = vmatprep.mubr.f32.mxu0 0.0
        %1387 = vmatmul.mubr.f32.gmra.mrb[0].mxu0 %v1317
        %v1388 = vpop.f32.mrb[0].mxu0
        %v1389 = vadd.f32 0.0, %v1388
        %v1390 = vpop.f32.mrb[0].mxu0
        %1391 = vdwg.mxu0
        %1392 = vst.msk [vmem:[#allocation5 + $0x10] sm:$0xf] %vm871, %v1389
        %v1393 = vadd.f32 %v1274, %v1277
        %v1394 = vld [vmem:[#allocation2 + $0x2d] sm:$0x1]
        %v1395 = vld [vmem:[#allocation3 + $0x2d] sm:$0x1]
        %v1396 = vadd.f32 %v1394, %v1395
        %s1397 = scalar_lea.vmem [#allocation2], 54
        %v1398 = vld [vmem:[%s1397] ss:$8 sm:$0x1]
        %s1399 = scalar_lea.vmem [#allocation3], 54
        %v1400 = vld [vmem:[%s1399] ss:$8 sm:$0x1]
        %v1401 = vadd.f32 %v1398, %v1400
        %v1402 = vsel %vm726, %v1396, -inf
        %1403 = vmax.xlane.f32.xlu0 %v1402
        %v1404 = vpop.xlane.xlu0 %1403
        %v1405 = vsel %vm726, %v1401, -inf
        %1406 = vmax.xlane.f32.xlu0 %v1405
        %v1407 = vpop.xlane.xlu0 %1406
        %v1408 = vsub.f32 %v1396, %v1404
        %v1409 = vmul.f32 %v1408, 1.442695
        %v1410 = vpow.pop %v1409
        %v1411 = vsub.f32 %v1401, %v1407
        %v1412 = vmul.f32 %v1411, 1.442695
        %v1413 = vpow.pop %v1412
        %1414 = vxpose.xlu0.b32.start [1/16] %v1410, 128
        %1415 = vxpose.xlu0.b32.cont [2/16] 0.0, 128
        %1416 = vxpose.xlu0.b32.cont [3/16] 0.0, 128
        %1417 = vxpose.xlu0.b32.cont [4/16] 0.0, 128
        %1418 = vxpose.xlu0.b32.cont [5/16] 0.0, 128
        %1419 = vxpose.xlu0.b32.cont [6/16] 0.0, 128
        %1420 = vxpose.xlu0.b32.cont [7/16] 0.0, 128
        %1421 = vxpose.xlu0.b32.cont [8/16] 0.0, 128
        %1422 = vxpose.xlu0.b32.cont [9/16] 0.0, 128
        %1423 = vxpose.xlu0.b32.cont [10/16] 0.0, 128
        %1424 = vxpose.xlu0.b32.cont [11/16] 0.0, 128
        %1425 = vxpose.xlu0.b32.cont [12/16] 0.0, 128
        %1426 = vxpose.xlu0.b32.cont [13/16] 0.0, 128
        %1427 = vxpose.xlu0.b32.cont [14/16] 0.0, 128
        %1428 = vxpose.xlu0.b32.cont [15/16] 0.0, 128
        %1429 = vxpose.xlu0.b32.end [16/16] 0.0, 128
        %v1430 = vpop.trf.xlu0
        %v1431 = vpop.trf.xlu0
        %v1432 = vpop.trf.xlu0
        %v1433 = vpop.trf.xlu0
        %v1434 = vpop.trf.xlu0
        %v1435 = vpop.trf.xlu0
        %v1436 = vpop.trf.xlu0
        %v1437 = vpop.trf.xlu0
        %v1438 = vpop.trf.xlu0
        %v1439 = vpop.trf.xlu0
        %v1440 = vpop.trf.xlu0
        %v1441 = vpop.trf.xlu0
        %v1442 = vpop.trf.xlu0
        %v1443 = vpop.trf.xlu0
        %v1444 = vpop.trf.xlu0
        %v1445 = vpop.trf.xlu0
        %v1447 = vsel %vm544, %v1430, 0
        %v1450 = vsel %vm797, %v1413, 0
        %1452 = vmatprep.subr.mxu0 0.0
        %1453 = vmatpush1.msra.mxu0 %v1450
        %1454 = vmatprep.subr.mxu0 0.0
        %1455 = vmatpush1.msra.mxu0 0.0
        %1456 = vmatprep.subr.mxu0 0.0
        %1457 = vmatpush1.msra.mxu0 0.0
        %1458 = vmatprep.subr.mxu0 0.0
        %1459 = vmatpush1.msra.mxu0 0.0
        %1460 = vmatprep.subr.mxu0 0.0
        %1461 = vmatpush1.msra.mxu0 0.0
        %1462 = vmatprep.subr.mxu0 0.0
        %1463 = vmatpush1.msra.mxu0 0.0
        %1464 = vmatprep.subr.mxu0 0.0
        %1465 = vmatpush1.msra.mxu0 0.0
        %1466 = vmatprep.subr.mxu0 0.0
        %1467 = vmatpush1.msra.mxu0 0.0
        %1468 = vmatprep.subr.mxu0 0.0
        %1469 = vmatpush1.msra.mxu0 0.0
        %1470 = vmatprep.subr.mxu0 0.0
        %1471 = vmatpush1.msra.mxu0 0.0
        %1472 = vmatprep.subr.mxu0 0.0
        %1473 = vmatpush1.msra.mxu0 0.0
        %1474 = vmatprep.subr.mxu0 0.0
        %1475 = vmatpush1.msra.mxu0 0.0
        %1476 = vmatprep.subr.mxu0 0.0
        %1477 = vmatpush1.msra.mxu0 0.0
        %1478 = vmatprep.subr.mxu0 0.0
        %1479 = vmatpush1.msra.mxu0 0.0
        %1480 = vmatprep.subr.mxu0 0.0
        %1481 = vmatpush1.msra.mxu0 0.0
        %1482 = vmatprep.subr.mxu0 0.0
        %1483 = vmatpush1.msra.mxu0 0.0
        %1484 = vmatprep.subr.mxu0 0.0
        %1485 = vmatpush1.msra.mxu0 0.0
        %1486 = vmatprep.subr.mxu0 0.0
        %1487 = vmatpush1.msra.mxu0 0.0
        %1488 = vmatprep.subr.mxu0 0.0
        %1489 = vmatpush1.msra.mxu0 0.0
        %1490 = vmatprep.subr.mxu0 0.0
        %1491 = vmatpush1.msra.mxu0 0.0
        %1492 = vmatprep.subr.mxu0 0.0
        %1493 = vmatpush1.msra.mxu0 0.0
        %1494 = vmatprep.subr.mxu0 0.0
        %1495 = vmatpush1.msra.mxu0 0.0
        %1496 = vmatprep.subr.mxu0 0.0
        %1497 = vmatpush1.msra.mxu0 0.0
        %1498 = vmatprep.subr.mxu0 0.0
        %1499 = vmatpush1.msra.mxu0 0.0
        %1500 = vmatprep.subr.mxu0 0.0
        %1501 = vmatpush1.msra.mxu0 0.0
        %1502 = vmatprep.subr.mxu0 0.0
        %1503 = vmatpush1.msra.mxu0 0.0
        %1504 = vmatprep.subr.mxu0 0.0
        %1505 = vmatpush1.msra.mxu0 0.0
        %1506 = vmatprep.subr.mxu0 0.0
        %1507 = vmatpush1.msra.mxu0 0.0
        %1508 = vmatprep.subr.mxu0 0.0
        %1509 = vmatpush1.msra.mxu0 0.0
        %1510 = vmatprep.subr.mxu0 0.0
        %1511 = vmatpush1.msra.mxu0 0.0
        %1512 = vmatprep.subr.mxu0 0.0
        %1513 = vmatpush1.msra.mxu0 0.0
        %1514 = vmatprep.subr.mxu0 0.0
        %1515 = vmatpush1.msra.mxu0 0.0
        %1516 = vmatprep.mubr.f32.mxu0 0.0
        %1517 = vmatmul.mubr.f32.gmra.mrb[0].mxu0 %v1447
        %v1518 = vpop.f32.mrb[0].mxu0
        %v1519 = vadd.f32 0.0, %v1518
        %v1520 = vpop.f32.mrb[0].mxu0
        %1521 = vdwg.mxu0
        %1522 = vst.msk [vmem:[#allocation5 + $0x14] sm:$0xf] %vm871, %v1519
        %v1523 = vadd.f32 %v1404, %v1407
        %v1524 = vld [vmem:[#allocation2 + $0x36] sm:$0x1]
        %v1525 = vld [vmem:[#allocation3 + $0x36] sm:$0x1]
        %v1526 = vadd.f32 %v1524, %v1525
        %s1527 = scalar_lea.vmem [#allocation2], 63
        %v1528 = vld [vmem:[%s1527] ss:$8 sm:$0x1]
        %s1529 = scalar_lea.vmem [#allocation3], 63
        %v1530 = vld [vmem:[%s1529] ss:$8 sm:$0x1]
        %v1531 = vadd.f32 %v1528, %v1530
        %v1532 = vsel %vm726, %v1526, -inf
        %1533 = vmax.xlane.f32.xlu0 %v1532
        %v1534 = vpop.xlane.xlu0 %1533
        %v1535 = vsel %vm726, %v1531, -inf
        %1536 = vmax.xlane.f32.xlu0 %v1535
        %v1537 = vpop.xlane.xlu0 %1536
        %v1538 = vsub.f32 %v1526, %v1534
        %v1539 = vmul.f32 %v1538, 1.442695
        %v1540 = vpow.pop %v1539
        %v1541 = vsub.f32 %v1531, %v1537
        %v1542 = vmul.f32 %v1541, 1.442695
        %v1543 = vpow.pop %v1542
        %1544 = vxpose.xlu0.b32.start [1/16] %v1540, 128
        %1545 = vxpose.xlu0.b32.cont [2/16] 0.0, 128
        %1546 = vxpose.xlu0.b32.cont [3/16] 0.0, 128
        %1547 = vxpose.xlu0.b32.cont [4/16] 0.0, 128
        %1548 = vxpose.xlu0.b32.cont [5/16] 0.0, 128
        %1549 = vxpose.xlu0.b32.cont [6/16] 0.0, 128
        %1550 = vxpose.xlu0.b32.cont [7/16] 0.0, 128
        %1551 = vxpose.xlu0.b32.cont [8/16] 0.0, 128
        %1552 = vxpose.xlu0.b32.cont [9/16] 0.0, 128
        %1553 = vxpose.xlu0.b32.cont [10/16] 0.0, 128
        %1554 = vxpose.xlu0.b32.cont [11/16] 0.0, 128
        %1555 = vxpose.xlu0.b32.cont [12/16] 0.0, 128
        %1556 = vxpose.xlu0.b32.cont [13/16] 0.0, 128
        %1557 = vxpose.xlu0.b32.cont [14/16] 0.0, 128
        %1558 = vxpose.xlu0.b32.cont [15/16] 0.0, 128
        %1559 = vxpose.xlu0.b32.end [16/16] 0.0, 128
        %v1560 = vpop.trf.xlu0
        %v1561 = vpop.trf.xlu0
        %v1562 = vpop.trf.xlu0
        %v1563 = vpop.trf.xlu0
        %v1564 = vpop.trf.xlu0
        %v1565 = vpop.trf.xlu0
        %v1566 = vpop.trf.xlu0
        %v1567 = vpop.trf.xlu0
        %v1568 = vpop.trf.xlu0
        %v1569 = vpop.trf.xlu0
        %v1570 = vpop.trf.xlu0
        %v1571 = vpop.trf.xlu0
        %v1572 = vpop.trf.xlu0
        %v1573 = vpop.trf.xlu0
        %v1574 = vpop.trf.xlu0
        %v1575 = vpop.trf.xlu0
        %v1577 = vsel %vm544, %v1560, 0
        %v1580 = vsel %vm797, %v1543, 0
        %1582 = vmatprep.subr.mxu0 0.0
        %1583 = vmatpush1.msra.mxu0 %v1580
        %1584 = vmatprep.subr.mxu0 0.0
        %1585 = vmatpush1.msra.mxu0 0.0
        %1586 = vmatprep.subr.mxu0 0.0
        %1587 = vmatpush1.msra.mxu0 0.0
        %1588 = vmatprep.subr.mxu0 0.0
        %1589 = vmatpush1.msra.mxu0 0.0
        %1590 = vmatprep.subr.mxu0 0.0
        %1591 = vmatpush1.msra.mxu0 0.0
        %1592 = vmatprep.subr.mxu0 0.0
        %1593 = vmatpush1.msra.mxu0 0.0
        %1594 = vmatprep.subr.mxu0 0.0
        %1595 = vmatpush1.msra.mxu0 0.0
        %1596 = vmatprep.subr.mxu0 0.0
        %1597 = vmatpush1.msra.mxu0 0.0
        %1598 = vmatprep.subr.mxu0 0.0
        %1599 = vmatpush1.msra.mxu0 0.0
        %1600 = vmatprep.subr.mxu0 0.0
        %1601 = vmatpush1.msra.mxu0 0.0
        %1602 = vmatprep.subr.mxu0 0.0
        %1603 = vmatpush1.msra.mxu0 0.0
        %1604 = vmatprep.subr.mxu0 0.0
        %1605 = vmatpush1.msra.mxu0 0.0
        %1606 = vmatprep.subr.mxu0 0.0
        %1607 = vmatpush1.msra.mxu0 0.0
        %1608 = vmatprep.subr.mxu0 0.0
        %1609 = vmatpush1.msra.mxu0 0.0
        %1610 = vmatprep.subr.mxu0 0.0
        %1611 = vmatpush1.msra.mxu0 0.0
        %1612 = vmatprep.subr.mxu0 0.0
        %1613 = vmatpush1.msra.mxu0 0.0
        %1614 = vmatprep.subr.mxu0 0.0
        %1615 = vmatpush1.msra.mxu0 0.0
        %1616 = vmatprep.subr.mxu0 0.0
        %1617 = vmatpush1.msra.mxu0 0.0
        %1618 = vmatprep.subr.mxu0 0.0
        %1619 = vmatpush1.msra.mxu0 0.0
        %1620 = vmatprep.subr.mxu0 0.0
        %1621 = vmatpush1.msra.mxu0 0.0
        %1622 = vmatprep.subr.mxu0 0.0
        %1623 = vmatpush1.msra.mxu0 0.0
        %1624 = vmatprep.subr.mxu0 0.0
        %1625 = vmatpush1.msra.mxu0 0.0
        %1626 = vmatprep.subr.mxu0 0.0
        %1627 = vmatpush1.msra.mxu0 0.0
        %1628 = vmatprep.subr.mxu0 0.0
        %1629 = vmatpush1.msra.mxu0 0.0
        %1630 = vmatprep.subr.mxu0 0.0
        %1631 = vmatpush1.msra.mxu0 0.0
        %1632 = vmatprep.subr.mxu0 0.0
        %1633 = vmatpush1.msra.mxu0 0.0
        %1634 = vmatprep.subr.mxu0 0.0
        %1635 = vmatpush1.msra.mxu0 0.0
        %1636 = vmatprep.subr.mxu0 0.0
        %1637 = vmatpush1.msra.mxu0 0.0
        %1638 = vmatprep.subr.mxu0 0.0
        %1639 = vmatpush1.msra.mxu0 0.0
        %1640 = vmatprep.subr.mxu0 0.0
        %1641 = vmatpush1.msra.mxu0 0.0
        %1642 = vmatprep.subr.mxu0 0.0
        %1643 = vmatpush1.msra.mxu0 0.0
        %1644 = vmatprep.subr.mxu0 0.0
        %1645 = vmatpush1.msra.mxu0 0.0
        %1646 = vmatprep.mubr.f32.mxu0 0.0
        %1647 = vmatmul.mubr.f32.gmra.mrb[0].mxu0 %v1577
        %v1648 = vpop.f32.mrb[0].mxu0
        %v1649 = vadd.f32 0.0, %v1648
        %v1650 = vpop.f32.mrb[0].mxu0
        %1651 = vdwg.mxu0
        %1652 = vst.msk [vmem:[#allocation5 + $0x18] sm:$0xf] %vm871, %v1649
        %v1653 = vadd.f32 %v1534, %v1537
        %v1655 = vrot.slane %v1003, 7
        %v1658 = vrot.slane %v1133, 6
        %v1661 = vrot.slane %v1263, 5
        %v1664 = vrot.slane %v1393, 4
        %v1667 = vrot.slane %v1523, 3
        %v1670 = vrot.slane %v1653, 2
        %v1672 = vsel %vm797, %v873, %v1655
        %vm1673 = vcmask 1041408
        %v1674 = vsel %vm1673, %v1672, %v1658
        %vm1675 = vcmask 1042432
        %v1676 = vsel %vm1675, %v1674, %v1661
        %vm1677 = vcmask 1043456
        %v1678 = vsel %vm1677, %v1676, %v1664
        %vm1679 = vcmask 1044480
        %v1680 = vsel %vm1679, %v1678, %v1667
        %vm1681 = vcmask 1045504
        %v1682 = vsel %vm1681, %v1680, %v1670
        %v1683 = vld [vmem:[#allocation5] ss:$4 sm:$0x7f]
        %v1684 = vld [vmem:[%s8] sm:$0xf]
        %s1685 = scalar_lea.vmem [#allocation5], 1
        %v1686 = vld [vmem:[%s1685] ss:$4 sm:$0x7f]
        %s1687 = scalar_lea.vmem %s8, 4
        %v1688 = vld [vmem:[%s1687] sm:$0xf]
        %v1690 = vsel %vm503, %v1686, 0
        %v1693 = vsel %vm1677, %v1688, 0
        %1695 = vmatprep.subr.mxu0 0.0
        %1696 = vmatpush1.msra.mxu0 %v1693
        %1697 = vmatprep.subr.mxu0 0.0
        %1698 = vmatpush1.msra.mxu0 0.0
        %1699 = vmatprep.subr.mxu0 0.0
        %1700 = vmatpush1.msra.mxu0 0.0
        %1701 = vmatprep.subr.mxu0 0.0
        %1702 = vmatpush1.msra.mxu0 0.0
        %1703 = vmatprep.subr.mxu0 0.0
        %1704 = vmatpush1.msra.mxu0 0.0
        %1705 = vmatprep.subr.mxu0 0.0
        %1706 = vmatpush1.msra.mxu0 0.0
        %1707 = vmatprep.subr.mxu0 0.0
        %1708 = vmatpush1.msra.mxu0 0.0
        %1709 = vmatprep.subr.mxu0 0.0
        %1710 = vmatpush1.msra.mxu0 0.0
        %1711 = vmatprep.subr.mxu0 0.0
        %1712 = vmatpush1.msra.mxu0 0.0
        %1713 = vmatprep.subr.mxu0 0.0
        %1714 = vmatpush1.msra.mxu0 0.0
        %1715 = vmatprep.subr.mxu0 0.0
        %1716 = vmatpush1.msra.mxu0 0.0
        %1717 = vmatprep.subr.mxu0 0.0
        %1718 = vmatpush1.msra.mxu0 0.0
        %1719 = vmatprep.subr.mxu0 0.0
        %1720 = vmatpush1.msra.mxu0 0.0
        %1721 = vmatprep.subr.mxu0 0.0
        %1722 = vmatpush1.msra.mxu0 0.0
        %1723 = vmatprep.subr.mxu0 0.0
        %1724 = vmatpush1.msra.mxu0 0.0
        %1725 = vmatprep.subr.mxu0 0.0
        %1726 = vmatpush1.msra.mxu0 0.0
        %1727 = vmatprep.subr.mxu0 0.0
        %1728 = vmatpush1.msra.mxu0 0.0
        %1729 = vmatprep.subr.mxu0 0.0
        %1730 = vmatpush1.msra.mxu0 0.0
        %1731 = vmatprep.subr.mxu0 0.0
        %1732 = vmatpush1.msra.mxu0 0.0
        %1733 = vmatprep.subr.mxu0 0.0
        %1734 = vmatpush1.msra.mxu0 0.0
        %1735 = vmatprep.subr.mxu0 0.0
        %1736 = vmatpush1.msra.mxu0 0.0
        %1737 = vmatprep.subr.mxu0 0.0
        %1738 = vmatpush1.msra.mxu0 0.0
        %1739 = vmatprep.subr.mxu0 0.0
        %1740 = vmatpush1.msra.mxu0 0.0
        %1741 = vmatprep.subr.mxu0 0.0
        %1742 = vmatpush1.msra.mxu0 0.0
        %1743 = vmatprep.subr.mxu0 0.0
        %1744 = vmatpush1.msra.mxu0 0.0
        %1745 = vmatprep.subr.mxu0 0.0
        %1746 = vmatpush1.msra.mxu0 0.0
        %1747 = vmatprep.subr.mxu0 0.0
        %1748 = vmatpush1.msra.mxu0 0.0
        %1749 = vmatprep.subr.mxu0 0.0
        %1750 = vmatpush1.msra.mxu0 0.0
        %1751 = vmatprep.subr.mxu0 0.0
        %1752 = vmatpush1.msra.mxu0 0.0
        %1753 = vmatprep.subr.mxu0 0.0
        %1754 = vmatpush1.msra.mxu0 0.0
        %1755 = vmatprep.subr.mxu0 0.0
        %1756 = vmatpush1.msra.mxu0 0.0
        %1757 = vmatprep.subr.mxu0 0.0
        %1758 = vmatpush1.msra.mxu0 0.0
        %1759 = vmatprep.mubr.f32.mxu0 0.0
        %1760 = vmatmul.mubr.f32.gmra.mrb[0].mxu0 %v1690
        %v1761 = vpop.f32.mrb[0].mxu0
        %v1762 = vadd.f32 0.0, %v1761
        %v1763 = vpop.f32.mrb[0].mxu0
        %1764 = vdwg.mxu0
        %v1766 = vsel %vm503, %v1683, 0
        %v1769 = vsel %vm1677, %v1684, 0
        %1771 = vmatprep.subr.mxu0 0.0
        %1772 = vmatpush1.msra.mxu0 %v1769
        %1773 = vmatprep.subr.mxu0 0.0
        %1774 = vmatpush1.msra.mxu0 0.0
        %1775 = vmatprep.subr.mxu0 0.0
        %1776 = vmatpush1.msra.mxu0 0.0
        %1777 = vmatprep.subr.mxu0 0.0
        %1778 = vmatpush1.msra.mxu0 0.0
        %1779 = vmatprep.subr.mxu0 0.0
        %1780 = vmatpush1.msra.mxu0 0.0
        %1781 = vmatprep.subr.mxu0 0.0
        %1782 = vmatpush1.msra.mxu0 0.0
        %1783 = vmatprep.subr.mxu0 0.0
        %1784 = vmatpush1.msra.mxu0 0.0
        %1785 = vmatprep.subr.mxu0 0.0
        %1786 = vmatpush1.msra.mxu0 0.0
        %1787 = vmatprep.subr.mxu0 0.0
        %1788 = vmatpush1.msra.mxu0 0.0
        %1789 = vmatprep.subr.mxu0 0.0
        %1790 = vmatpush1.msra.mxu0 0.0
        %1791 = vmatprep.subr.mxu0 0.0
        %1792 = vmatpush1.msra.mxu0 0.0
        %1793 = vmatprep.subr.mxu0 0.0
        %1794 = vmatpush1.msra.mxu0 0.0
        %1795 = vmatprep.subr.mxu0 0.0
        %1796 = vmatpush1.msra.mxu0 0.0
        %1797 = vmatprep.subr.mxu0 0.0
        %1798 = vmatpush1.msra.mxu0 0.0
        %1799 = vmatprep.subr.mxu0 0.0
        %1800 = vmatpush1.msra.mxu0 0.0
        %1801 = vmatprep.subr.mxu0 0.0
        %1802 = vmatpush1.msra.mxu0 0.0
        %1803 = vmatprep.subr.mxu0 0.0
        %1804 = vmatpush1.msra.mxu0 0.0
        %1805 = vmatprep.subr.mxu0 0.0
        %1806 = vmatpush1.msra.mxu0 0.0
        %1807 = vmatprep.subr.mxu0 0.0
        %1808 = vmatpush1.msra.mxu0 0.0
        %1809 = vmatprep.subr.mxu0 0.0
        %1810 = vmatpush1.msra.mxu0 0.0
        %1811 = vmatprep.subr.mxu0 0.0
        %1812 = vmatpush1.msra.mxu0 0.0
        %1813 = vmatprep.subr.mxu0 0.0
        %1814 = vmatpush1.msra.mxu0 0.0
        %1815 = vmatprep.subr.mxu0 0.0
        %1816 = vmatpush1.msra.mxu0 0.0
        %1817 = vmatprep.subr.mxu0 0.0
        %1818 = vmatpush1.msra.mxu0 0.0
        %1819 = vmatprep.subr.mxu0 0.0
        %1820 = vmatpush1.msra.mxu0 0.0
        %1821 = vmatprep.subr.mxu0 0.0
        %1822 = vmatpush1.msra.mxu0 0.0
        %1823 = vmatprep.subr.mxu0 0.0
        %1824 = vmatpush1.msra.mxu0 0.0
        %1825 = vmatprep.subr.mxu0 0.0
        %1826 = vmatpush1.msra.mxu0 0.0
        %1827 = vmatprep.subr.mxu0 0.0
        %1828 = vmatpush1.msra.mxu0 0.0
        %1829 = vmatprep.subr.mxu0 0.0
        %1830 = vmatpush1.msra.mxu0 0.0
        %1831 = vmatprep.subr.mxu0 0.0
        %1832 = vmatpush1.msra.mxu0 0.0
        %1833 = vmatprep.subr.mxu0 0.0
        %1834 = vmatpush1.msra.mxu0 0.0
        %1835 = vmatprep.mubr.f32.mxu0 0.0
        %1836 = vmatmul.mubr.f32.gmra.mrb[0].mxu0 %v1766
        %v1837 = vpop.f32.mrb[0].mxu0
        %v1838 = vadd.f32 %v1762, %v1837
        %v1839 = vpop.f32.mrb[0].mxu0
        %1840 = vdwg.mxu0
        %s1841 = scalar_lea.vmem [#allocation5], 2
        %v1842 = vld [vmem:[%s1841] ss:$4 sm:$0x7f]
        %s1843 = scalar_lea.vmem %s8, 8
        %v1844 = vld [vmem:[%s1843] sm:$0xf]
        %v1846 = vsel %vm503, %v1842, 0
        %v1849 = vsel %vm1677, %v1844, 0
        %1851 = vmatprep.subr.mxu0 0.0
        %1852 = vmatpush1.msra.mxu0 %v1849
        %1853 = vmatprep.subr.mxu0 0.0
        %1854 = vmatpush1.msra.mxu0 0.0
        %1855 = vmatprep.subr.mxu0 0.0
        %1856 = vmatpush1.msra.mxu0 0.0
        %1857 = vmatprep.subr.mxu0 0.0
        %1858 = vmatpush1.msra.mxu0 0.0
        %1859 = vmatprep.subr.mxu0 0.0
        %1860 = vmatpush1.msra.mxu0 0.0
        %1861 = vmatprep.subr.mxu0 0.0
        %1862 = vmatpush1.msra.mxu0 0.0
        %1863 = vmatprep.subr.mxu0 0.0
        %1864 = vmatpush1.msra.mxu0 0.0
        %1865 = vmatprep.subr.mxu0 0.0
        %1866 = vmatpush1.msra.mxu0 0.0
        %1867 = vmatprep.subr.mxu0 0.0
        %1868 = vmatpush1.msra.mxu0 0.0
        %1869 = vmatprep.subr.mxu0 0.0
        %1870 = vmatpush1.msra.mxu0 0.0
        %1871 = vmatprep.subr.mxu0 0.0
        %1872 = vmatpush1.msra.mxu0 0.0
        %1873 = vmatprep.subr.mxu0 0.0
        %1874 = vmatpush1.msra.mxu0 0.0
        %1875 = vmatprep.subr.mxu0 0.0
        %1876 = vmatpush1.msra.mxu0 0.0
        %1877 = vmatprep.subr.mxu0 0.0
        %1878 = vmatpush1.msra.mxu0 0.0
        %1879 = vmatprep.subr.mxu0 0.0
        %1880 = vmatpush1.msra.mxu0 0.0
        %1881 = vmatprep.subr.mxu0 0.0
        %1882 = vmatpush1.msra.mxu0 0.0
        %1883 = vmatprep.subr.mxu0 0.0
        %1884 = vmatpush1.msra.mxu0 0.0
        %1885 = vmatprep.subr.mxu0 0.0
        %1886 = vmatpush1.msra.mxu0 0.0
        %1887 = vmatprep.subr.mxu0 0.0
        %1888 = vmatpush1.msra.mxu0 0.0
        %1889 = vmatprep.subr.mxu0 0.0
        %1890 = vmatpush1.msra.mxu0 0.0
        %1891 = vmatprep.subr.mxu0 0.0
        %1892 = vmatpush1.msra.mxu0 0.0
        %1893 = vmatprep.subr.mxu0 0.0
        %1894 = vmatpush1.msra.mxu0 0.0
        %1895 = vmatprep.subr.mxu0 0.0
        %1896 = vmatpush1.msra.mxu0 0.0
        %1897 = vmatprep.subr.mxu0 0.0
        %1898 = vmatpush1.msra.mxu0 0.0
        %1899 = vmatprep.subr.mxu0 0.0
        %1900 = vmatpush1.msra.mxu0 0.0
        %1901 = vmatprep.subr.mxu0 0.0
        %1902 = vmatpush1.msra.mxu0 0.0
        %1903 = vmatprep.subr.mxu0 0.0
        %1904 = vmatpush1.msra.mxu0 0.0
        %1905 = vmatprep.subr.mxu0 0.0
        %1906 = vmatpush1.msra.mxu0 0.0
        %1907 = vmatprep.subr.mxu0 0.0
        %1908 = vmatpush1.msra.mxu0 0.0
        %1909 = vmatprep.subr.mxu0 0.0
        %1910 = vmatpush1.msra.mxu0 0.0
        %1911 = vmatprep.subr.mxu0 0.0
        %1912 = vmatpush1.msra.mxu0 0.0
        %1913 = vmatprep.subr.mxu0 0.0
        %1914 = vmatpush1.msra.mxu0 0.0
        %1915 = vmatprep.mubr.f32.mxu0 0.0
        %1916 = vmatmul.mubr.f32.gmra.mrb[0].mxu0 %v1846
        %v1917 = vpop.f32.mrb[0].mxu0
        %v1918 = vadd.f32 0.0, %v1917
        %v1919 = vpop.f32.mrb[0].mxu0
        %1920 = vdwg.mxu0
        %v1921 = vadd.f32 %v1838, %v1918
        %s1922 = scalar_lea.vmem [#allocation5], 3
        %v1923 = vld [vmem:[%s1922] ss:$4 sm:$0x7f]
        %s1924 = scalar_lea.vmem %s8, 12
        %v1925 = vld [vmem:[%s1924] sm:$0xf]
        %v1927 = vsel %vm503, %v1923, 0
        %v1930 = vsel %vm1677, %v1925, 0
        %1932 = vmatprep.subr.mxu0 0.0
        %1933 = vmatpush1.msra.mxu0 %v1930
        %1934 = vmatprep.subr.mxu0 0.0
        %1935 = vmatpush1.msra.mxu0 0.0
        %1936 = vmatprep.subr.mxu0 0.0
        %1937 = vmatpush1.msra.mxu0 0.0
        %1938 = vmatprep.subr.mxu0 0.0
        %1939 = vmatpush1.msra.mxu0 0.0
        %1940 = vmatprep.subr.mxu0 0.0
        %1941 = vmatpush1.msra.mxu0 0.0
        %1942 = vmatprep.subr.mxu0 0.0
        %1943 = vmatpush1.msra.mxu0 0.0
        %1944 = vmatprep.subr.mxu0 0.0
        %1945 = vmatpush1.msra.mxu0 0.0
        %1946 = vmatprep.subr.mxu0 0.0
        %1947 = vmatpush1.msra.mxu0 0.0
        %1948 = vmatprep.subr.mxu0 0.0
        %1949 = vmatpush1.msra.mxu0 0.0
        %1950 = vmatprep.subr.mxu0 0.0
        %1951 = vmatpush1.msra.mxu0 0.0
        %1952 = vmatprep.subr.mxu0 0.0
        %1953 = vmatpush1.msra.mxu0 0.0
        %1954 = vmatprep.subr.mxu0 0.0
        %1955 = vmatpush1.msra.mxu0 0.0
        %1956 = vmatprep.subr.mxu0 0.0
        %1957 = vmatpush1.msra.mxu0 0.0
        %1958 = vmatprep.subr.mxu0 0.0
        %1959 = vmatpush1.msra.mxu0 0.0
        %1960 = vmatprep.subr.mxu0 0.0
        %1961 = vmatpush1.msra.mxu0 0.0
        %1962 = vmatprep.subr.mxu0 0.0
        %1963 = vmatpush1.msra.mxu0 0.0
        %1964 = vmatprep.subr.mxu0 0.0
        %1965 = vmatpush1.msra.mxu0 0.0
        %1966 = vmatprep.subr.mxu0 0.0
        %1967 = vmatpush1.msra.mxu0 0.0
        %1968 = vmatprep.subr.mxu0 0.0
        %1969 = vmatpush1.msra.mxu0 0.0
        %1970 = vmatprep.subr.mxu0 0.0
        %1971 = vmatpush1.msra.mxu0 0.0
        %1972 = vmatprep.subr.mxu0 0.0
        %1973 = vmatpush1.msra.mxu0 0.0
        %1974 = vmatprep.subr.mxu0 0.0
        %1975 = vmatpush1.msra.mxu0 0.0
        %1976 = vmatprep.subr.mxu0 0.0
        %1977 = vmatpush1.msra.mxu0 0.0
        %1978 = vmatprep.subr.mxu0 0.0
        %1979 = vmatpush1.msra.mxu0 0.0
        %1980 = vmatprep.subr.mxu0 0.0
        %1981 = vmatpush1.msra.mxu0 0.0
        %1982 = vmatprep.subr.mxu0 0.0
        %1983 = vmatpush1.msra.mxu0 0.0
        %1984 = vmatprep.subr.mxu0 0.0
        %1985 = vmatpush1.msra.mxu0 0.0
        %1986 = vmatprep.subr.mxu0 0.0
        %1987 = vmatpush1.msra.mxu0 0.0
        %1988 = vmatprep.subr.mxu0 0.0
        %1989 = vmatpush1.msra.mxu0 0.0
        %1990 = vmatprep.subr.mxu0 0.0
        %1991 = vmatpush1.msra.mxu0 0.0
        %1992 = vmatprep.subr.mxu0 0.0
        %1993 = vmatpush1.msra.mxu0 0.0
        %1994 = vmatprep.subr.mxu0 0.0
        %1995 = vmatpush1.msra.mxu0 0.0
        %1996 = vmatprep.mubr.f32.mxu0 0.0
        %1997 = vmatmul.mubr.f32.gmra.mrb[0].mxu0 %v1927
        %v1998 = vpop.f32.mrb[0].mxu0
        %v1999 = vadd.f32 0.0, %v1998
        %v2000 = vpop.f32.mrb[0].mxu0
        %2001 = vdwg.mxu0
        %v2002 = vadd.f32 %v1921, %v1999
        %s2003 = scalar_lea.vmem [#allocation3], 1
        %v2004 = vld [vmem:[%s2003] ss:$9 sm:$0x7f]
        %s2005 = scalar_lea.vmem [#allocation4], 1
        %v2006 = vld [vmem:[%s2005] ss:$9 sm:$0x7f]
        %v2007 = vlog2.pop %v2002
        %v2008 = vmul.f32 %v2007, 0.6931472
        %2010 = vset.pattern.permute.xlu0 0
        %2011 = vperm.xlu0 %2010, %v1682
        %v2012 = vpop.permute.xlu0 %2011
        %v2014 = vadd.f32 %v2012, %v2008
        %v2015 = vadd.f32 %v2014, %v2004
        %2017 = vset.pattern.permute.xlu0 0
        %2018 = vperm.xlu0 %2017, %v2006
        %v2019 = vpop.permute.xlu0 %2018
        %v2021 = vadd.f32 %v2015, %v2019
        %2022 = vst.msk [vmem:[#allocation2 + $0x1] sm:$0x1] %vm726, %v2021
        %2023 = vst.msk [vmem:[#allocation2 + $0x9] sm:$0x2] %vm728, %v2021
        %2024 = vst.msk [vmem:[#allocation2 + $0x11] sm:$0x4] %vm730, %v2021
        %2025 = vst.msk [vmem:[#allocation2 + $0x19] sm:$0x8] %vm732, %v2021
        %2026 = vst.msk [vmem:[#allocation2 + $0x21] sm:$0x10] %vm734, %v2021
        %2027 = vst.msk [vmem:[#allocation2 + $0x29] sm:$0x20] %vm736, %v2021
        %2028 = vst.msk [vmem:[#allocation2 + $0x31] sm:$0x40] %vm738, %v2021
        %v2029 = vld [vmem:[#allocation2] sm:$0x3]
        %v2030 = vld [vmem:[#allocation3] sm:$0x3]
        %v2031 = vadd.f32 %v2029, %v2030
        %s2032 = scalar_lea.vmem [#allocation2], 10
        %v2033 = vld [vmem:[%s2032] ss:$8 sm:$0x3]
        %s2034 = scalar_lea.vmem [#allocation3], 10
        %v2035 = vld [vmem:[%s2034] ss:$8 sm:$0x3]
        %v2036 = vadd.f32 %v2033, %v2035
        %vm2037 = vcmask 25600
        %v2038 = vsel %vm2037, %v2031, -inf
        %2039 = vmax.xlane.f32.xlu0 %v2038
        %v2040 = vpop.xlane.xlu0 %2039
        %v2041 = vsel %vm1673, %v2040, -inf
        %v2042 = vrot.slane %v2041, 4
        %v2043 = vmax.f32 %v2041, %v2042
        %v2044 = vrot.slane %v2043, 2
        %v2045 = vmax.f32 %v2043, %v2044
        %v2046 = vrot.slane %v2045, 1
        %v2047 = vmax.f32 %v2045, %v2046
        %v2048 = vsel %vm2037, %v2036, -inf
        %2049 = vmax.xlane.f32.xlu0 %v2048
        %v2050 = vpop.xlane.xlu0 %2049
        %v2051 = vsel %vm1673, %v2050, -inf
        %v2052 = vrot.slane %v2051, 4
        %v2053 = vmax.f32 %v2051, %v2052
        %v2054 = vrot.slane %v2053, 2
        %v2055 = vmax.f32 %v2053, %v2054
        %v2056 = vrot.slane %v2055, 1
        %v2057 = vmax.f32 %v2055, %v2056
        %v2058 = vsub.f32 %v2031, %v2047
        %v2059 = vmul.f32 %v2058, 1.442695
        %v2060 = vpow.pop %v2059
        %v2061 = vsub.f32 %v2036, %v2057
        %v2062 = vmul.f32 %v2061, 1.442695
        %v2063 = vpow.pop %v2062
        %2064 = vxpose.xlu0.b32.start [1/16] %v2060, 128
        %2065 = vxpose.xlu0.b32.cont [2/16] 0.0, 128
        %2066 = vxpose.xlu0.b32.cont [3/16] 0.0, 128
        %2067 = vxpose.xlu0.b32.cont [4/16] 0.0, 128
        %2068 = vxpose.xlu0.b32.cont [5/16] 0.0, 128
        %2069 = vxpose.xlu0.b32.cont [6/16] 0.0, 128
        %2070 = vxpose.xlu0.b32.cont [7/16] 0.0, 128
        %2071 = vxpose.xlu0.b32.cont [8/16] 0.0, 128
        %2072 = vxpose.xlu0.b32.cont [9/16] 0.0, 128
        %2073 = vxpose.xlu0.b32.cont [10/16] 0.0, 128
        %2074 = vxpose.xlu0.b32.cont [11/16] 0.0, 128
        %2075 = vxpose.xlu0.b32.cont [12/16] 0.0, 128
        %2076 = vxpose.xlu0.b32.cont [13/16] 0.0, 128
        %2077 = vxpose.xlu0.b32.cont [14/16] 0.0, 128
        %2078 = vxpose.xlu0.b32.cont [15/16] 0.0, 128
        %2079 = vxpose.xlu0.b32.end [16/16] 0.0, 128
        %v2080 = vpop.trf.xlu0
        %v2081 = vpop.trf.xlu0
        %v2082 = vpop.trf.xlu0
        %v2083 = vpop.trf.xlu0
        %v2084 = vpop.trf.xlu0
        %v2085 = vpop.trf.xlu0
        %v2086 = vpop.trf.xlu0
        %v2087 = vpop.trf.xlu0
        %v2088 = vpop.trf.xlu0
        %v2089 = vpop.trf.xlu0
        %v2090 = vpop.trf.xlu0
        %v2091 = vpop.trf.xlu0
        %v2092 = vpop.trf.xlu0
        %v2093 = vpop.trf.xlu0
        %v2094 = vpop.trf.xlu0
        %v2095 = vpop.trf.xlu0
        %vm2096 = vcmask 15360
        %v2098 = vsel %vm2096, %v2080, 0
        %v2101 = vsel %vm1673, %v2063, 0
        %2103 = vmatprep.subr.mxu0 0.0
        %2104 = vmatpush1.msra.mxu0 %v2101
        %2105 = vmatprep.subr.mxu0 0.0
        %2106 = vmatpush1.msra.mxu0 0.0
        %2107 = vmatprep.subr.mxu0 0.0
        %2108 = vmatpush1.msra.mxu0 0.0
        %2109 = vmatprep.subr.mxu0 0.0
        %2110 = vmatpush1.msra.mxu0 0.0
        %2111 = vmatprep.subr.mxu0 0.0
        %2112 = vmatpush1.msra.mxu0 0.0
        %2113 = vmatprep.subr.mxu0 0.0
        %2114 = vmatpush1.msra.mxu0 0.0
        %2115 = vmatprep.subr.mxu0 0.0
        %2116 = vmatpush1.msra.mxu0 0.0
        %2117 = vmatprep.subr.mxu0 0.0
        %2118 = vmatpush1.msra.mxu0 0.0
        %2119 = vmatprep.subr.mxu0 0.0
        %2120 = vmatpush1.msra.mxu0 0.0
        %2121 = vmatprep.subr.mxu0 0.0
        %2122 = vmatpush1.msra.mxu0 0.0
        %2123 = vmatprep.subr.mxu0 0.0
        %2124 = vmatpush1.msra.mxu0 0.0
        %2125 = vmatprep.subr.mxu0 0.0
        %2126 = vmatpush1.msra.mxu0 0.0
        %2127 = vmatprep.subr.mxu0 0.0
        %2128 = vmatpush1.msra.mxu0 0.0
        %2129 = vmatprep.subr.mxu0 0.0
        %2130 = vmatpush1.msra.mxu0 0.0
        %2131 = vmatprep.subr.mxu0 0.0
        %2132 = vmatpush1.msra.mxu0 0.0
        %2133 = vmatprep.subr.mxu0 0.0
        %2134 = vmatpush1.msra.mxu0 0.0
        %2135 = vmatprep.subr.mxu0 0.0
        %2136 = vmatpush1.msra.mxu0 0.0
        %2137 = vmatprep.subr.mxu0 0.0
        %2138 = vmatpush1.msra.mxu0 0.0
        %2139 = vmatprep.subr.mxu0 0.0
        %2140 = vmatpush1.msra.mxu0 0.0
        %2141 = vmatprep.subr.mxu0 0.0
        %2142 = vmatpush1.msra.mxu0 0.0
        %2143 = vmatprep.subr.mxu0 0.0
        %2144 = vmatpush1.msra.mxu0 0.0
        %2145 = vmatprep.subr.mxu0 0.0
        %2146 = vmatpush1.msra.mxu0 0.0
        %2147 = vmatprep.subr.mxu0 0.0
        %2148 = vmatpush1.msra.mxu0 0.0
        %2149 = vmatprep.subr.mxu0 0.0
        %2150 = vmatpush1.msra.mxu0 0.0
        %2151 = vmatprep.subr.mxu0 0.0
        %2152 = vmatpush1.msra.mxu0 0.0
        %2153 = vmatprep.subr.mxu0 0.0
        %2154 = vmatpush1.msra.mxu0 0.0
        %2155 = vmatprep.subr.mxu0 0.0
        %2156 = vmatpush1.msra.mxu0 0.0
        %2157 = vmatprep.subr.mxu0 0.0
        %2158 = vmatpush1.msra.mxu0 0.0
        %2159 = vmatprep.subr.mxu0 0.0
        %2160 = vmatpush1.msra.mxu0 0.0
        %2161 = vmatprep.subr.mxu0 0.0
        %2162 = vmatpush1.msra.mxu0 0.0
        %2163 = vmatprep.subr.mxu0 0.0
        %2164 = vmatpush1.msra.mxu0 0.0
        %2165 = vmatprep.subr.mxu0 0.0
        %2166 = vmatpush1.msra.mxu0 0.0
        %2167 = vmatprep.mubr.f32.mxu0 0.0
        %2168 = vmatmul.mubr.f32.gmra.mrb[0].mxu0 %v2098
        %v2169 = vpop.f32.mrb[0].mxu0
        %v2170 = vadd.f32 0.0, %v2169
        %v2171 = vpop.f32.mrb[0].mxu0
        %2172 = vdwg.mxu0
        %2173 = vst.msk [vmem:[#allocation5] sm:$0xf] %vm871, %v2170
        %v2174 = vadd.f32 %v2047, %v2057
        %v2175 = vld [vmem:[#allocation2 + $0x9] sm:$0x3]
        %v2176 = vld [vmem:[#allocation3 + $0x9] sm:$0x3]
        %v2177 = vadd.f32 %v2175, %v2176
        %s2178 = scalar_lea.vmem [#allocation2], 19
        %v2179 = vld [vmem:[%s2178] ss:$8 sm:$0x3]
        %s2180 = scalar_lea.vmem [#allocation3], 19
        %v2181 = vld [vmem:[%s2180] ss:$8 sm:$0x3]
        %v2182 = vadd.f32 %v2179, %v2181
        %v2183 = vsel %vm2037, %v2177, -inf
        %2184 = vmax.xlane.f32.xlu0 %v2183
        %v2185 = vpop.xlane.xlu0 %2184
        %v2186 = vsel %vm1673, %v2185, -inf
        %v2187 = vrot.slane %v2186, 4
        %v2188 = vmax.f32 %v2186, %v2187
        %v2189 = vrot.slane %v2188, 2
        %v2190 = vmax.f32 %v2188, %v2189
        %v2191 = vrot.slane %v2190, 1
        %v2192 = vmax.f32 %v2190, %v2191
        %v2193 = vsel %vm2037, %v2182, -inf
        %2194 = vmax.xlane.f32.xlu0 %v2193
        %v2195 = vpop.xlane.xlu0 %2194
        %v2196 = vsel %vm1673, %v2195, -inf
        %v2197 = vrot.slane %v2196, 4
        %v2198 = vmax.f32 %v2196, %v2197
        %v2199 = vrot.slane %v2198, 2
        %v2200 = vmax.f32 %v2198, %v2199
        %v2201 = vrot.slane %v2200, 1
        %v2202 = vmax.f32 %v2200, %v2201
        %v2203 = vsub.f32 %v2177, %v2192
        %v2204 = vmul.f32 %v2203, 1.442695
        %v2205 = vpow.pop %v2204
        %v2206 = vsub.f32 %v2182, %v2202
        %v2207 = vmul.f32 %v2206, 1.442695
        %v2208 = vpow.pop %v2207
        %2209 = vxpose.xlu0.b32.start [1/16] %v2205, 128
        %2210 = vxpose.xlu0.b32.cont [2/16] 0.0, 128
        %2211 = vxpose.xlu0.b32.cont [3/16] 0.0, 128
        %2212 = vxpose.xlu0.b32.cont [4/16] 0.0, 128
        %2213 = vxpose.xlu0.b32.cont [5/16] 0.0, 128
        %2214 = vxpose.xlu0.b32.cont [6/16] 0.0, 128
        %2215 = vxpose.xlu0.b32.cont [7/16] 0.0, 128
        %2216 = vxpose.xlu0.b32.cont [8/16] 0.0, 128
        %2217 = vxpose.xlu0.b32.cont [9/16] 0.0, 128
        %2218 = vxpose.xlu0.b32.cont [10/16] 0.0, 128
        %2219 = vxpose.xlu0.b32.cont [11/16] 0.0, 128
        %2220 = vxpose.xlu0.b32.cont [12/16] 0.0, 128
        %2221 = vxpose.xlu0.b32.cont [13/16] 0.0, 128
        %2222 = vxpose.xlu0.b32.cont [14/16] 0.0, 128
        %2223 = vxpose.xlu0.b32.cont [15/16] 0.0, 128
        %2224 = vxpose.xlu0.b32.end [16/16] 0.0, 128
        %v2225 = vpop.trf.xlu0
        %v2226 = vpop.trf.xlu0
        %v2227 = vpop.trf.xlu0
        %v2228 = vpop.trf.xlu0
        %v2229 = vpop.trf.xlu0
        %v2230 = vpop.trf.xlu0
        %v2231 = vpop.trf.xlu0
        %v2232 = vpop.trf.xlu0
        %v2233 = vpop.trf.xlu0
        %v2234 = vpop.trf.xlu0
        %v2235 = vpop.trf.xlu0
        %v2236 = vpop.trf.xlu0
        %v2237 = vpop.trf.xlu0
        %v2238 = vpop.trf.xlu0
        %v2239 = vpop.trf.xlu0
        %v2240 = vpop.trf.xlu0
        %v2242 = vsel %vm2096, %v2225, 0
        %v2245 = vsel %vm1673, %v2208, 0
        %2247 = vmatprep.subr.mxu0 0.0
        %2248 = vmatpush1.msra.mxu0 %v2245
        %2249 = vmatprep.subr.mxu0 0.0
        %2250 = vmatpush1.msra.mxu0 0.0
        %2251 = vmatprep.subr.mxu0 0.0
        %2252 = vmatpush1.msra.mxu0 0.0
        %2253 = vmatprep.subr.mxu0 0.0
        %2254 = vmatpush1.msra.mxu0 0.0
        %2255 = vmatprep.subr.mxu0 0.0
        %2256 = vmatpush1.msra.mxu0 0.0
        %2257 = vmatprep.subr.mxu0 0.0
        %2258 = vmatpush1.msra.mxu0 0.0
        %2259 = vmatprep.subr.mxu0 0.0
        %2260 = vmatpush1.msra.mxu0 0.0
        %2261 = vmatprep.subr.mxu0 0.0
        %2262 = vmatpush1.msra.mxu0 0.0
        %2263 = vmatprep.subr.mxu0 0.0
        %2264 = vmatpush1.msra.mxu0 0.0
        %2265 = vmatprep.subr.mxu0 0.0
        %2266 = vmatpush1.msra.mxu0 0.0
        %2267 = vmatprep.subr.mxu0 0.0
        %2268 = vmatpush1.msra.mxu0 0.0
        %2269 = vmatprep.subr.mxu0 0.0
        %2270 = vmatpush1.msra.mxu0 0.0
        %2271 = vmatprep.subr.mxu0 0.0
        %2272 = vmatpush1.msra.mxu0 0.0
        %2273 = vmatprep.subr.mxu0 0.0
        %2274 = vmatpush1.msra.mxu0 0.0
        %2275 = vmatprep.subr.mxu0 0.0
        %2276 = vmatpush1.msra.mxu0 0.0
        %2277 = vmatprep.subr.mxu0 0.0
        %2278 = vmatpush1.msra.mxu0 0.0
        %2279 = vmatprep.subr.mxu0 0.0
        %2280 = vmatpush1.msra.mxu0 0.0
        %2281 = vmatprep.subr.mxu0 0.0
        %2282 = vmatpush1.msra.mxu0 0.0
        %2283 = vmatprep.subr.mxu0 0.0
        %2284 = vmatpush1.msra.mxu0 0.0
        %2285 = vmatprep.subr.mxu0 0.0
        %2286 = vmatpush1.msra.mxu0 0.0
        %2287 = vmatprep.subr.mxu0 0.0
        %2288 = vmatpush1.msra.mxu0 0.0
        %2289 = vmatprep.subr.mxu0 0.0
        %2290 = vmatpush1.msra.mxu0 0.0
        %2291 = vmatprep.subr.mxu0 0.0
        %2292 = vmatpush1.msra.mxu0 0.0
        %2293 = vmatprep.subr.mxu0 0.0
        %2294 = vmatpush1.msra.mxu0 0.0
        %2295 = vmatprep.subr.mxu0 0.0
        %2296 = vmatpush1.msra.mxu0 0.0
        %2297 = vmatprep.subr.mxu0 0.0
        %2298 = vmatpush1.msra.mxu0 0.0
        %2299 = vmatprep.subr.mxu0 0.0
        %2300 = vmatpush1.msra.mxu0 0.0
        %2301 = vmatprep.subr.mxu0 0.0
        %2302 = vmatpush1.msra.mxu0 0.0
        %2303 = vmatprep.subr.mxu0 0.0
        %2304 = vmatpush1.msra.mxu0 0.0
        %2305 = vmatprep.subr.mxu0 0.0
        %2306 = vmatpush1.msra.mxu0 0.0
        %2307 = vmatprep.subr.mxu0 0.0
        %2308 = vmatpush1.msra.mxu0 0.0
        %2309 = vmatprep.subr.mxu0 0.0
        %2310 = vmatpush1.msra.mxu0 0.0
        %2311 = vmatprep.mubr.f32.mxu0 0.0
        %2312 = vmatmul.mubr.f32.gmra.mrb[0].mxu0 %v2242
        %v2313 = vpop.f32.mrb[0].mxu0
        %v2314 = vadd.f32 0.0, %v2313
        %v2315 = vpop.f32.mrb[0].mxu0
        %2316 = vdwg.mxu0
        %2317 = vst.msk [vmem:[#allocation5 + $0x4] sm:$0xf] %vm871, %v2314
        %v2318 = vadd.f32 %v2192, %v2202
        %v2319 = vld [vmem:[#allocation2 + $0x12] sm:$0x3]
        %v2320 = vld [vmem:[#allocation3 + $0x12] sm:$0x3]
        %v2321 = vadd.f32 %v2319, %v2320
        %s2322 = scalar_lea.vmem [#allocation2], 28
        %v2323 = vld [vmem:[%s2322] ss:$8 sm:$0x3]
        %s2324 = scalar_lea.vmem [#allocation3], 28
        %v2325 = vld [vmem:[%s2324] ss:$8 sm:$0x3]
        %v2326 = vadd.f32 %v2323, %v2325
        %v2327 = vsel %vm2037, %v2321, -inf
        %2328 = vmax.xlane.f32.xlu0 %v2327
        %v2329 = vpop.xlane.xlu0 %2328
        %v2330 = vsel %vm1673, %v2329, -inf
        %v2331 = vrot.slane %v2330, 4
        %v2332 = vmax.f32 %v2330, %v2331
        %v2333 = vrot.slane %v2332, 2
        %v2334 = vmax.f32 %v2332, %v2333
        %v2335 = vrot.slane %v2334, 1
        %v2336 = vmax.f32 %v2334, %v2335
        %v2337 = vsel %vm2037, %v2326, -inf
        %2338 = vmax.xlane.f32.xlu0 %v2337
        %v2339 = vpop.xlane.xlu0 %2338
        %v2340 = vsel %vm1673, %v2339, -inf
        %v2341 = vrot.slane %v2340, 4
        %v2342 = vmax.f32 %v2340, %v2341
        %v2343 = vrot.slane %v2342, 2
        %v2344 = vmax.f32 %v2342, %v2343
        %v2345 = vrot.slane %v2344, 1
        %v2346 = vmax.f32 %v2344, %v2345
        %v2347 = vsub.f32 %v2321, %v2336
        %v2348 = vmul.f32 %v2347, 1.442695
        %v2349 = vpow.pop %v2348
        %v2350 = vsub.f32 %v2326, %v2346
        %v2351 = vmul.f32 %v2350, 1.442695
        %v2352 = vpow.pop %v2351
        %2353 = vxpose.xlu0.b32.start [1/16] %v2349, 128
        %2354 = vxpose.xlu0.b32.cont [2/16] 0.0, 128
        %2355 = vxpose.xlu0.b32.cont [3/16] 0.0, 128
        %2356 = vxpose.xlu0.b32.cont [4/16] 0.0, 128
        %2357 = vxpose.xlu0.b32.cont [5/16] 0.0, 128
        %2358 = vxpose.xlu0.b32.cont [6/16] 0.0, 128
        %2359 = vxpose.xlu0.b32.cont [7/16] 0.0, 128
        %2360 = vxpose.xlu0.b32.cont [8/16] 0.0, 128
        %2361 = vxpose.xlu0.b32.cont [9/16] 0.0, 128
        %2362 = vxpose.xlu0.b32.cont [10/16] 0.0, 128
        %2363 = vxpose.xlu0.b32.cont [11/16] 0.0, 128
        %2364 = vxpose.xlu0.b32.cont [12/16] 0.0, 128
        %2365 = vxpose.xlu0.b32.cont [13/16] 0.0, 128
        %2366 = vxpose.xlu0.b32.cont [14/16] 0.0, 128
        %2367 = vxpose.xlu0.b32.cont [15/16] 0.0, 128
        %2368 = vxpose.xlu0.b32.end [16/16] 0.0, 128
        %v2369 = vpop.trf.xlu0
        %v2370 = vpop.trf.xlu0
        %v2371 = vpop.trf.xlu0
        %v2372 = vpop.trf.xlu0
        %v2373 = vpop.trf.xlu0
        %v2374 = vpop.trf.xlu0
        %v2375 = vpop.trf.xlu0
        %v2376 = vpop.trf.xlu0
        %v2377 = vpop.trf.xlu0
        %v2378 = vpop.trf.xlu0
        %v2379 = vpop.trf.xlu0
        %v2380 = vpop.trf.xlu0
        %v2381 = vpop.trf.xlu0
        %v2382 = vpop.trf.xlu0
        %v2383 = vpop.trf.xlu0
        %v2384 = vpop.trf.xlu0
        %v2386 = vsel %vm2096, %v2369, 0
        %v2389 = vsel %vm1673, %v2352, 0
        %2391 = vmatprep.subr.mxu0 0.0
        %2392 = vmatpush1.msra.mxu0 %v2389
        %2393 = vmatprep.subr.mxu0 0.0
        %2394 = vmatpush1.msra.mxu0 0.0
        %2395 = vmatprep.subr.mxu0 0.0
        %2396 = vmatpush1.msra.mxu0 0.0
        %2397 = vmatprep.subr.mxu0 0.0
        %2398 = vmatpush1.msra.mxu0 0.0
        %2399 = vmatprep.subr.mxu0 0.0
        %2400 = vmatpush1.msra.mxu0 0.0
        %2401 = vmatprep.subr.mxu0 0.0
        %2402 = vmatpush1.msra.mxu0 0.0
        %2403 = vmatprep.subr.mxu0 0.0
        %2404 = vmatpush1.msra.mxu0 0.0
        %2405 = vmatprep.subr.mxu0 0.0
        %2406 = vmatpush1.msra.mxu0 0.0
        %2407 = vmatprep.subr.mxu0 0.0
        %2408 = vmatpush1.msra.mxu0 0.0
        %2409 = vmatprep.subr.mxu0 0.0
        %2410 = vmatpush1.msra.mxu0 0.0
        %2411 = vmatprep.subr.mxu0 0.0
        %2412 = vmatpush1.msra.mxu0 0.0
        %2413 = vmatprep.subr.mxu0 0.0
        %2414 = vmatpush1.msra.mxu0 0.0
        %2415 = vmatprep.subr.mxu0 0.0
        %2416 = vmatpush1.msra.mxu0 0.0
        %2417 = vmatprep.subr.mxu0 0.0
        %2418 = vmatpush1.msra.mxu0 0.0
        %2419 = vmatprep.subr.mxu0 0.0
        %2420 = vmatpush1.msra.mxu0 0.0
        %2421 = vmatprep.subr.mxu0 0.0
        %2422 = vmatpush1.msra.mxu0 0.0
        %2423 = vmatprep.subr.mxu0 0.0
        %2424 = vmatpush1.msra.mxu0 0.0
        %2425 = vmatprep.subr.mxu0 0.0
        %2426 = vmatpush1.msra.mxu0 0.0
        %2427 = vmatprep.subr.mxu0 0.0
        %2428 = vmatpush1.msra.mxu0 0.0
        %2429 = vmatprep.subr.mxu0 0.0
        %2430 = vmatpush1.msra.mxu0 0.0
        %2431 = vmatprep.subr.mxu0 0.0
        %2432 = vmatpush1.msra.mxu0 0.0
        %2433 = vmatprep.subr.mxu0 0.0
        %2434 = vmatpush1.msra.mxu0 0.0
        %2435 = vmatprep.subr.mxu0 0.0
        %2436 = vmatpush1.msra.mxu0 0.0
        %2437 = vmatprep.subr.mxu0 0.0
        %2438 = vmatpush1.msra.mxu0 0.0
        %2439 = vmatprep.subr.mxu0 0.0
        %2440 = vmatpush1.msra.mxu0 0.0
        %2441 = vmatprep.subr.mxu0 0.0
        %2442 = vmatpush1.msra.mxu0 0.0
        %2443 = vmatprep.subr.mxu0 0.0
        %2444 = vmatpush1.msra.mxu0 0.0
        %2445 = vmatprep.subr.mxu0 0.0
        %2446 = vmatpush1.msra.mxu0 0.0
        %2447 = vmatprep.subr.mxu0 0.0
        %2448 = vmatpush1.msra.mxu0 0.0
        %2449 = vmatprep.subr.mxu0 0.0
        %2450 = vmatpush1.msra.mxu0 0.0
        %2451 = vmatprep.subr.mxu0 0.0
        %2452 = vmatpush1.msra.mxu0 0.0
        %2453 = vmatprep.subr.mxu0 0.0
        %2454 = vmatpush1.msra.mxu0 0.0
        %2455 = vmatprep.mubr.f32.mxu0 0.0
        %2456 = vmatmul.mubr.f32.gmra.mrb[0].mxu0 %v2386
        %v2457 = vpop.f32.mrb[0].mxu0
        %v2458 = vadd.f32 0.0, %v2457
        %v2459 = vpop.f32.mrb[0].mxu0
        %2460 = vdwg.mxu0
        %2461 = vst.msk [vmem:[#allocation5 + $0x8] sm:$0xf] %vm871, %v2458
        %v2462 = vadd.f32 %v2336, %v2346
        %v2463 = vld [vmem:[#allocation2 + $0x1b] sm:$0x3]
        %v2464 = vld [vmem:[#allocation3 + $0x1b] sm:$0x3]
        %v2465 = vadd.f32 %v2463, %v2464
        %s2466 = scalar_lea.vmem [#allocation2], 37
        %v2467 = vld [vmem:[%s2466] ss:$8 sm:$0x3]
        %s2468 = scalar_lea.vmem [#allocation3], 37
        %v2469 = vld [vmem:[%s2468] ss:$8 sm:$0x3]
        %v2470 = vadd.f32 %v2467, %v2469
        %v2471 = vsel %vm2037, %v2465, -inf
        %2472 = vmax.xlane.f32.xlu0 %v2471
        %v2473 = vpop.xlane.xlu0 %2472
        %v2474 = vsel %vm1673, %v2473, -inf
        %v2475 = vrot.slane %v2474, 4
        %v2476 = vmax.f32 %v2474, %v2475
        %v2477 = vrot.slane %v2476, 2
        %v2478 = vmax.f32 %v2476, %v2477
        %v2479 = vrot.slane %v2478, 1
        %v2480 = vmax.f32 %v2478, %v2479
        %v2481 = vsel %vm2037, %v2470, -inf
        %2482 = vmax.xlane.f32.xlu0 %v2481
        %v2483 = vpop.xlane.xlu0 %2482
        %v2484 = vsel %vm1673, %v2483, -inf
        %v2485 = vrot.slane %v2484, 4
        %v2486 = vmax.f32 %v2484, %v2485
        %v2487 = vrot.slane %v2486, 2
        %v2488 = vmax.f32 %v2486, %v2487
        %v2489 = vrot.slane %v2488, 1
        %v2490 = vmax.f32 %v2488, %v2489
        %v2491 = vsub.f32 %v2465, %v2480
        %v2492 = vmul.f32 %v2491, 1.442695
        %v2493 = vpow.pop %v2492
        %v2494 = vsub.f32 %v2470, %v2490
        %v2495 = vmul.f32 %v2494, 1.442695
        %v2496 = vpow.pop %v2495
        %2497 = vxpose.xlu0.b32.start [1/16] %v2493, 128
        %2498 = vxpose.xlu0.b32.cont [2/16] 0.0, 128
        %2499 = vxpose.xlu0.b32.cont [3/16] 0.0, 128
        %2500 = vxpose.xlu0.b32.cont [4/16] 0.0, 128
        %2501 = vxpose.xlu0.b32.cont [5/16] 0.0, 128
        %2502 = vxpose.xlu0.b32.cont [6/16] 0.0, 128
        %2503 = vxpose.xlu0.b32.cont [7/16] 0.0, 128
        %2504 = vxpose.xlu0.b32.cont [8/16] 0.0, 128
        %2505 = vxpose.xlu0.b32.cont [9/16] 0.0, 128
        %2506 = vxpose.xlu0.b32.cont [10/16] 0.0, 128
        %2507 = vxpose.xlu0.b32.cont [11/16] 0.0, 128
        %2508 = vxpose.xlu0.b32.cont [12/16] 0.0, 128
        %2509 = vxpose.xlu0.b32.cont [13/16] 0.0, 128
        %2510 = vxpose.xlu0.b32.cont [14/16] 0.0, 128
        %2511 = vxpose.xlu0.b32.cont [15/16] 0.0, 128
        %2512 = vxpose.xlu0.b32.end [16/16] 0.0, 128
        %v2513 = vpop.trf.xlu0
        %v2514 = vpop.trf.xlu0
        %v2515 = vpop.trf.xlu0
        %v2516 = vpop.trf.xlu0
        %v2517 = vpop.trf.xlu0
        %v2518 = vpop.trf.xlu0
        %v2519 = vpop.trf.xlu0
        %v2520 = vpop.trf.xlu0
        %v2521 = vpop.trf.xlu0
        %v2522 = vpop.trf.xlu0
        %v2523 = vpop.trf.xlu0
        %v2524 = vpop.trf.xlu0
        %v2525 = vpop.trf.xlu0
        %v2526 = vpop.trf.xlu0
        %v2527 = vpop.trf.xlu0
        %v2528 = vpop.trf.xlu0
        %v2530 = vsel %vm2096, %v2513, 0
        %v2533 = vsel %vm1673, %v2496, 0
        %2535 = vmatprep.subr.mxu0 0.0
        %2536 = vmatpush1.msra.mxu0 %v2533
        %2537 = vmatprep.subr.mxu0 0.0
        %2538 = vmatpush1.msra.mxu0 0.0
        %2539 = vmatprep.subr.mxu0 0.0
        %2540 = vmatpush1.msra.mxu0 0.0
        %2541 = vmatprep.subr.mxu0 0.0
        %2542 = vmatpush1.msra.mxu0 0.0
        %2543 = vmatprep.subr.mxu0 0.0
        %2544 = vmatpush1.msra.mxu0 0.0
        %2545 = vmatprep.subr.mxu0 0.0
        %2546 = vmatpush1.msra.mxu0 0.0
        %2547 = vmatprep.subr.mxu0 0.0
        %2548 = vmatpush1.msra.mxu0 0.0
        %2549 = vmatprep.subr.mxu0 0.0
        %2550 = vmatpush1.msra.mxu0 0.0
        %2551 = vmatprep.subr.mxu0 0.0
        %2552 = vmatpush1.msra.mxu0 0.0
        %2553 = vmatprep.subr.mxu0 0.0
        %2554 = vmatpush1.msra.mxu0 0.0
        %2555 = vmatprep.subr.mxu0 0.0
        %2556 = vmatpush1.msra.mxu0 0.0
        %2557 = vmatprep.subr.mxu0 0.0
        %2558 = vmatpush1.msra.mxu0 0.0
        %2559 = vmatprep.subr.mxu0 0.0
        %2560 = vmatpush1.msra.mxu0 0.0
        %2561 = vmatprep.subr.mxu0 0.0
        %2562 = vmatpush1.msra.mxu0 0.0
        %2563 = vmatprep.subr.mxu0 0.0
        %2564 = vmatpush1.msra.mxu0 0.0
        %2565 = vmatprep.subr.mxu0 0.0
        %2566 = vmatpush1.msra.mxu0 0.0
        %2567 = vmatprep.subr.mxu0 0.0
        %2568 = vmatpush1.msra.mxu0 0.0
        %2569 = vmatprep.subr.mxu0 0.0
        %2570 = vmatpush1.msra.mxu0 0.0
        %2571 = vmatprep.subr.mxu0 0.0
        %2572 = vmatpush1.msra.mxu0 0.0
        %2573 = vmatprep.subr.mxu0 0.0
        %2574 = vmatpush1.msra.mxu0 0.0
        %2575 = vmatprep.subr.mxu0 0.0
        %2576 = vmatpush1.msra.mxu0 0.0
        %2577 = vmatprep.subr.mxu0 0.0
        %2578 = vmatpush1.msra.mxu0 0.0
        %2579 = vmatprep.subr.mxu0 0.0
        %2580 = vmatpush1.msra.mxu0 0.0
        %2581 = vmatprep.subr.mxu0 0.0
        %2582 = vmatpush1.msra.mxu0 0.0
        %2583 = vmatprep.subr.mxu0 0.0
        %2584 = vmatpush1.msra.mxu0 0.0
        %2585 = vmatprep.subr.mxu0 0.0
        %2586 = vmatpush1.msra.mxu0 0.0
        %2587 = vmatprep.subr.mxu0 0.0
        %2588 = vmatpush1.msra.mxu0 0.0
        %2589 = vmatprep.subr.mxu0 0.0
        %2590 = vmatpush1.msra.mxu0 0.0
        %2591 = vmatprep.subr.mxu0 0.0
        %2592 = vmatpush1.msra.mxu0 0.0
        %2593 = vmatprep.subr.mxu0 0.0
        %2594 = vmatpush1.msra.mxu0 0.0
        %2595 = vmatprep.subr.mxu0 0.0
        %2596 = vmatpush1.msra.mxu0 0.0
        %2597 = vmatprep.subr.mxu0 0.0
        %2598 = vmatpush1.msra.mxu0 0.0
        %2599 = vmatprep.mubr.f32.mxu0 0.0
        %2600 = vmatmul.mubr.f32.gmra.mrb[0].mxu0 %v2530
        %v2601 = vpop.f32.mrb[0].mxu0
        %v2602 = vadd.f32 0.0, %v2601
        %v2603 = vpop.f32.mrb[0].mxu0
        %2604 = vdwg.mxu0
        %2605 = vst.msk [vmem:[#allocation5 + $0xc] sm:$0xf] %vm871, %v2602
        %v2606 = vadd.f32 %v2480, %v2490
        %v2607 = vld [vmem:[#allocation2 + $0x24] sm:$0x3]
        %v2608 = vld [vmem:[#allocation3 + $0x24] sm:$0x3]
        %v2609 = vadd.f32 %v2607, %v2608
        %s2610 = scalar_lea.vmem [#allocation2], 46
        %v2611 = vld [vmem:[%s2610] ss:$8 sm:$0x3]
        %s2612 = scalar_lea.vmem [#allocation3], 46
        %v2613 = vld [vmem:[%s2612] ss:$8 sm:$0x3]
        %v2614 = vadd.f32 %v2611, %v2613
        %v2615 = vsel %vm2037, %v2609, -inf
        %2616 = vmax.xlane.f32.xlu0 %v2615
        %v2617 = vpop.xlane.xlu0 %2616
        %v2618 = vsel %vm1673, %v2617, -inf
        %v2619 = vrot.slane %v2618, 4
        %v2620 = vmax.f32 %v2618, %v2619
        %v2621 = vrot.slane %v2620, 2
        %v2622 = vmax.f32 %v2620, %v2621
        %v2623 = vrot.slane %v2622, 1
        %v2624 = vmax.f32 %v2622, %v2623
        %v2625 = vsel %vm2037, %v2614, -inf
        %2626 = vmax.xlane.f32.xlu0 %v2625
        %v2627 = vpop.xlane.xlu0 %2626
        %v2628 = vsel %vm1673, %v2627, -inf
        %v2629 = vrot.slane %v2628, 4
        %v2630 = vmax.f32 %v2628, %v2629
        %v2631 = vrot.slane %v2630, 2
        %v2632 = vmax.f32 %v2630, %v2631
        %v2633 = vrot.slane %v2632, 1
        %v2634 = vmax.f32 %v2632, %v2633
        %v2635 = vsub.f32 %v2609, %v2624
        %v2636 = vmul.f32 %v2635, 1.442695
        %v2637 = vpow.pop %v2636
        %v2638 = vsub.f32 %v2614, %v2634
        %v2639 = vmul.f32 %v2638, 1.442695
        %v2640 = vpow.pop %v2639
        %2641 = vxpose.xlu0.b32.start [1/16] %v2637, 128
        %2642 = vxpose.xlu0.b32.cont [2/16] 0.0, 128
        %2643 = vxpose.xlu0.b32.cont [3/16] 0.0, 128
        %2644 = vxpose.xlu0.b32.cont [4/16] 0.0, 128
        %2645 = vxpose.xlu0.b32.cont [5/16] 0.0, 128
        %2646 = vxpose.xlu0.b32.cont [6/16] 0.0, 128
        %2647 = vxpose.xlu0.b32.cont [7/16] 0.0, 128
        %2648 = vxpose.xlu0.b32.cont [8/16] 0.0, 128
        %2649 = vxpose.xlu0.b32.cont [9/16] 0.0, 128
        %2650 = vxpose.xlu0.b32.cont [10/16] 0.0, 128
        %2651 = vxpose.xlu0.b32.cont [11/16] 0.0, 128
        %2652 = vxpose.xlu0.b32.cont [12/16] 0.0, 128
        %2653 = vxpose.xlu0.b32.cont [13/16] 0.0, 128
        %2654 = vxpose.xlu0.b32.cont [14/16] 0.0, 128
        %2655 = vxpose.xlu0.b32.cont [15/16] 0.0, 128
        %2656 = vxpose.xlu0.b32.end [16/16] 0.0, 128
        %v2657 = vpop.trf.xlu0
        %v2658 = vpop.trf.xlu0
        %v2659 = vpop.trf.xlu0
        %v2660 = vpop.trf.xlu0
        %v2661 = vpop.trf.xlu0
        %v2662 = vpop.trf.xlu0
        %v2663 = vpop.trf.xlu0
        %v2664 = vpop.trf.xlu0
        %v2665 = vpop.trf.xlu0
        %v2666 = vpop.trf.xlu0
        %v2667 = vpop.trf.xlu0
        %v2668 = vpop.trf.xlu0
        %v2669 = vpop.trf.xlu0
        %v2670 = vpop.trf.xlu0
        %v2671 = vpop.trf.xlu0
        %v2672 = vpop.trf.xlu0
        %v2674 = vsel %vm2096, %v2657, 0
        %v2677 = vsel %vm1673, %v2640, 0
        %2679 = vmatprep.subr.mxu0 0.0
        %2680 = vmatpush1.msra.mxu0 %v2677
        %2681 = vmatprep.subr.mxu0 0.0
        %2682 = vmatpush1.msra.mxu0 0.0
        %2683 = vmatprep.subr.mxu0 0.0
        %2684 = vmatpush1.msra.mxu0 0.0
        %2685 = vmatprep.subr.mxu0 0.0
        %2686 = vmatpush1.msra.mxu0 0.0
        %2687 = vmatprep.subr.mxu0 0.0
        %2688 = vmatpush1.msra.mxu0 0.0
        %2689 = vmatprep.subr.mxu0 0.0
        %2690 = vmatpush1.msra.mxu0 0.0
        %2691 = vmatprep.subr.mxu0 0.0
        %2692 = vmatpush1.msra.mxu0 0.0
        %2693 = vmatprep.subr.mxu0 0.0
        %2694 = vmatpush1.msra.mxu0 0.0
        %2695 = vmatprep.subr.mxu0 0.0
        %2696 = vmatpush1.msra.mxu0 0.0
        %2697 = vmatprep.subr.mxu0 0.0
        %2698 = vmatpush1.msra.mxu0 0.0
        %2699 = vmatprep.subr.mxu0 0.0
        %2700 = vmatpush1.msra.mxu0 0.0
        %2701 = vmatprep.subr.mxu0 0.0
        %2702 = vmatpush1.msra.mxu0 0.0
        %2703 = vmatprep.subr.mxu0 0.0
        %2704 = vmatpush1.msra.mxu0 0.0
        %2705 = vmatprep.subr.mxu0 0.0
        %2706 = vmatpush1.msra.mxu0 0.0
        %2707 = vmatprep.subr.mxu0 0.0
        %2708 = vmatpush1.msra.mxu0 0.0
        %2709 = vmatprep.subr.mxu0 0.0
        %2710 = vmatpush1.msra.mxu0 0.0
        %2711 = vmatprep.subr.mxu0 0.0
        %2712 = vmatpush1.msra.mxu0 0.0
        %2713 = vmatprep.subr.mxu0 0.0
        %2714 = vmatpush1.msra.mxu0 0.0
        %2715 = vmatprep.subr.mxu0 0.0
        %2716 = vmatpush1.msra.mxu0 0.0
        %2717 = vmatprep.subr.mxu0 0.0
        %2718 = vmatpush1.msra.mxu0 0.0
        %2719 = vmatprep.subr.mxu0 0.0
        %2720 = vmatpush1.msra.mxu0 0.0
        %2721 = vmatprep.subr.mxu0 0.0
        %2722 = vmatpush1.msra.mxu0 0.0
        %2723 = vmatprep.subr.mxu0 0.0
        %2724 = vmatpush1.msra.mxu0 0.0
        %2725 = vmatprep.subr.mxu0 0.0
        %2726 = vmatpush1.msra.mxu0 0.0
        %2727 = vmatprep.subr.mxu0 0.0
        %2728 = vmatpush1.msra.mxu0 0.0
        %2729 = vmatprep.subr.mxu0 0.0
        %2730 = vmatpush1.msra.mxu0 0.0
        %2731 = vmatprep.subr.mxu0 0.0
        %2732 = vmatpush1.msra.mxu0 0.0
        %2733 = vmatprep.subr.mxu0 0.0
        %2734 = vmatpush1.msra.mxu0 0.0
        %2735 = vmatprep.subr.mxu0 0.0
        %2736 = vmatpush1.msra.mxu0 0.0
        %2737 = vmatprep.subr.mxu0 0.0
        %2738 = vmatpush1.msra.mxu0 0.0
        %2739 = vmatprep.subr.mxu0 0.0
        %2740 = vmatpush1.msra.mxu0 0.0
        %2741 = vmatprep.subr.mxu0 0.0
        %2742 = vmatpush1.msra.mxu0 0.0
        %2743 = vmatprep.mubr.f32.mxu0 0.0
        %2744 = vmatmul.mubr.f32.gmra.mrb[0].mxu0 %v2674
        %v2745 = vpop.f32.mrb[0].mxu0
        %v2746 = vadd.f32 0.0, %v2745
        %v2747 = vpop.f32.mrb[0].mxu0
        %2748 = vdwg.mxu0
        %2749 = vst.msk [vmem:[#allocation5 + $0x10] sm:$0xf] %vm871, %v2746
        %v2750 = vadd.f32 %v2624, %v2634
        %v2751 = vld [vmem:[#allocation2 + $0x2d] sm:$0x3]
        %v2752 = vld [vmem:[#allocation3 + $0x2d] sm:$0x3]
        %v2753 = vadd.f32 %v2751, %v2752
        %s2754 = scalar_lea.vmem [#allocation2], 55
        %v2755 = vld [vmem:[%s2754] ss:$8 sm:$0x3]
        %s2756 = scalar_lea.vmem [#allocation3], 55
        %v2757 = vld [vmem:[%s2756] ss:$8 sm:$0x3]
        %v2758 = vadd.f32 %v2755, %v2757
        %v2759 = vsel %vm2037, %v2753, -inf
        %2760 = vmax.xlane.f32.xlu0 %v2759
        %v2761 = vpop.xlane.xlu0 %2760
        %v2762 = vsel %vm1673, %v2761, -inf
        %v2763 = vrot.slane %v2762, 4
        %v2764 = vmax.f32 %v2762, %v2763
        %v2765 = vrot.slane %v2764, 2
        %v2766 = vmax.f32 %v2764, %v2765
        %v2767 = vrot.slane %v2766, 1
        %v2768 = vmax.f32 %v2766, %v2767
        %v2769 = vsel %vm2037, %v2758, -inf
        %2770 = vmax.xlane.f32.xlu0 %v2769
        %v2771 = vpop.xlane.xlu0 %2770
        %v2772 = vsel %vm1673, %v2771, -inf
        %v2773 = vrot.slane %v2772, 4
        %v2774 = vmax.f32 %v2772, %v2773
        %v2775 = vrot.slane %v2774, 2
        %v2776 = vmax.f32 %v2774, %v2775
        %v2777 = vrot.slane %v2776, 1
        %v2778 = vmax.f32 %v2776, %v2777
        %v2779 = vsub.f32 %v2753, %v2768
        %v2780 = vmul.f32 %v2779, 1.442695
        %v2781 = vpow.pop %v2780
        %v2782 = vsub.f32 %v2758, %v2778
        %v2783 = vmul.f32 %v2782, 1.442695
        %v2784 = vpow.pop %v2783
        %2785 = vxpose.xlu0.b32.start [1/16] %v2781, 128
        %2786 = vxpose.xlu0.b32.cont [2/16] 0.0, 128
        %2787 = vxpose.xlu0.b32.cont [3/16] 0.0, 128
        %2788 = vxpose.xlu0.b32.cont [4/16] 0.0, 128
        %2789 = vxpose.xlu0.b32.cont [5/16] 0.0, 128
        %2790 = vxpose.xlu0.b32.cont [6/16] 0.0, 128
        %2791 = vxpose.xlu0.b32.cont [7/16] 0.0, 128
        %2792 = vxpose.xlu0.b32.cont [8/16] 0.0, 128
        %2793 = vxpose.xlu0.b32.cont [9/16] 0.0, 128
        %2794 = vxpose.xlu0.b32.cont [10/16] 0.0, 128
        %2795 = vxpose.xlu0.b32.cont [11/16] 0.0, 128
        %2796 = vxpose.xlu0.b32.cont [12/16] 0.0, 128
        %2797 = vxpose.xlu0.b32.cont [13/16] 0.0, 128
        %2798 = vxpose.xlu0.b32.cont [14/16] 0.0, 128
        %2799 = vxpose.xlu0.b32.cont [15/16] 0.0, 128
        %2800 = vxpose.xlu0.b32.end [16/16] 0.0, 128
        %v2801 = vpop.trf.xlu0
        %v2802 = vpop.trf.xlu0
        %v2803 = vpop.trf.xlu0
        %v2804 = vpop.trf.xlu0
        %v2805 = vpop.trf.xlu0
        %v2806 = vpop.trf.xlu0
        %v2807 = vpop.trf.xlu0
        %v2808 = vpop.trf.xlu0
        %v2809 = vpop.trf.xlu0
        %v2810 = vpop.trf.xlu0
        %v2811 = vpop.trf.xlu0
        %v2812 = vpop.trf.xlu0
        %v2813 = vpop.trf.xlu0
        %v2814 = vpop.trf.xlu0
        %v2815 = vpop.trf.xlu0
        %v2816 = vpop.trf.xlu0
        %v2818 = vsel %vm2096, %v2801, 0
        %v2821 = vsel %vm1673, %v2784, 0
        %2823 = vmatprep.subr.mxu0 0.0
        %2824 = vmatpush1.msra.mxu0 %v2821
        %2825 = vmatprep.subr.mxu0 0.0
        %2826 = vmatpush1.msra.mxu0 0.0
        %2827 = vmatprep.subr.mxu0 0.0
        %2828 = vmatpush1.msra.mxu0 0.0
        %2829 = vmatprep.subr.mxu0 0.0
        %2830 = vmatpush1.msra.mxu0 0.0
        %2831 = vmatprep.subr.mxu0 0.0
        %2832 = vmatpush1.msra.mxu0 0.0
        %2833 = vmatprep.subr.mxu0 0.0
        %2834 = vmatpush1.msra.mxu0 0.0
        %2835 = vmatprep.subr.mxu0 0.0
        %2836 = vmatpush1.msra.mxu0 0.0
        %2837 = vmatprep.subr.mxu0 0.0
        %2838 = vmatpush1.msra.mxu0 0.0
        %2839 = vmatprep.subr.mxu0 0.0
        %2840 = vmatpush1.msra.mxu0 0.0
        %2841 = vmatprep.subr.mxu0 0.0
        %2842 = vmatpush1.msra.mxu0 0.0
        %2843 = vmatprep.subr.mxu0 0.0
        %2844 = vmatpush1.msra.mxu0 0.0
        %2845 = vmatprep.subr.mxu0 0.0
        %2846 = vmatpush1.msra.mxu0 0.0
        %2847 = vmatprep.subr.mxu0 0.0
        %2848 = vmatpush1.msra.mxu0 0.0
        %2849 = vmatprep.subr.mxu0 0.0
        %2850 = vmatpush1.msra.mxu0 0.0
        %2851 = vmatprep.subr.mxu0 0.0
        %2852 = vmatpush1.msra.mxu0 0.0
        %2853 = vmatprep.subr.mxu0 0.0
        %2854 = vmatpush1.msra.mxu0 0.0
        %2855 = vmatprep.subr.mxu0 0.0
        %2856 = vmatpush1.msra.mxu0 0.0
        %2857 = vmatprep.subr.mxu0 0.0
        %2858 = vmatpush1.msra.mxu0 0.0
        %2859 = vmatprep.subr.mxu0 0.0
        %2860 = vmatpush1.msra.mxu0 0.0
        %2861 = vmatprep.subr.mxu0 0.0
        %2862 = vmatpush1.msra.mxu0 0.0
        %2863 = vmatprep.subr.mxu0 0.0
        %2864 = vmatpush1.msra.mxu0 0.0
        %2865 = vmatprep.subr.mxu0 0.0
        %2866 = vmatpush1.msra.mxu0 0.0
        %2867 = vmatprep.subr.mxu0 0.0
        %2868 = vmatpush1.msra.mxu0 0.0
        %2869 = vmatprep.subr.mxu0 0.0
        %2870 = vmatpush1.msra.mxu0 0.0
        %2871 = vmatprep.subr.mxu0 0.0
        %2872 = vmatpush1.msra.mxu0 0.0
        %2873 = vmatprep.subr.mxu0 0.0
        %2874 = vmatpush1.msra.mxu0 0.0
        %2875 = vmatprep.subr.mxu0 0.0
        %2876 = vmatpush1.msra.mxu0 0.0
        %2877 = vmatprep.subr.mxu0 0.0
        %2878 = vmatpush1.msra.mxu0 0.0
        %2879 = vmatprep.subr.mxu0 0.0
        %2880 = vmatpush1.msra.mxu0 0.0
        %2881 = vmatprep.subr.mxu0 0.0
        %2882 = vmatpush1.msra.mxu0 0.0
        %2883 = vmatprep.subr.mxu0 0.0
        %2884 = vmatpush1.msra.mxu0 0.0
        %2885 = vmatprep.subr.mxu0 0.0
        %2886 = vmatpush1.msra.mxu0 0.0
        %2887 = vmatprep.mubr.f32.mxu0 0.0
        %2888 = vmatmul.mubr.f32.gmra.mrb[0].mxu0 %v2818
        %v2889 = vpop.f32.mrb[0].mxu0
        %v2890 = vadd.f32 0.0, %v2889
        %v2891 = vpop.f32.mrb[0].mxu0
        %2892 = vdwg.mxu0
        %2893 = vst.msk [vmem:[#allocation5 + $0x14] sm:$0xf] %vm871, %v2890
        %v2894 = vadd.f32 %v2768, %v2778
        %v2895 = vsel %vm797, %v2174, %v2318
        %v2896 = vsel %vm1673, %v2895, %v2462
        %v2897 = vsel %vm1675, %v2896, %v2606
        %v2898 = vsel %vm1677, %v2897, %v2750
        %v2899 = vsel %vm1679, %v2898, %v2894
        %v2900 = vld [vmem:[#allocation5] ss:$4 sm:$0x3f]
        %v2901 = vld [vmem:[%s8] sm:$0xf]
        %v2902 = vld [vmem:[%s1685] ss:$4 sm:$0x3f]
        %v2903 = vld [vmem:[%s1687] sm:$0xf]
        %v2905 = vsel %vm503, %v2902, 0
        %v2908 = vsel %vm1677, %v2903, 0
        %2910 = vmatprep.subr.mxu0 0.0
        %2911 = vmatpush1.msra.mxu0 %v2908
        %2912 = vmatprep.subr.mxu0 0.0
        %2913 = vmatpush1.msra.mxu0 0.0
        %2914 = vmatprep.subr.mxu0 0.0
        %2915 = vmatpush1.msra.mxu0 0.0
        %2916 = vmatprep.subr.mxu0 0.0
        %2917 = vmatpush1.msra.mxu0 0.0
        %2918 = vmatprep.subr.mxu0 0.0
        %2919 = vmatpush1.msra.mxu0 0.0
        %2920 = vmatprep.subr.mxu0 0.0
        %2921 = vmatpush1.msra.mxu0 0.0
        %2922 = vmatprep.subr.mxu0 0.0
        %2923 = vmatpush1.msra.mxu0 0.0
        %2924 = vmatprep.subr.mxu0 0.0
        %2925 = vmatpush1.msra.mxu0 0.0
        %2926 = vmatprep.subr.mxu0 0.0
        %2927 = vmatpush1.msra.mxu0 0.0
        %2928 = vmatprep.subr.mxu0 0.0
        %2929 = vmatpush1.msra.mxu0 0.0
        %2930 = vmatprep.subr.mxu0 0.0
        %2931 = vmatpush1.msra.mxu0 0.0
        %2932 = vmatprep.subr.mxu0 0.0
        %2933 = vmatpush1.msra.mxu0 0.0
        %2934 = vmatprep.subr.mxu0 0.0
        %2935 = vmatpush1.msra.mxu0 0.0
        %2936 = vmatprep.subr.mxu0 0.0
        %2937 = vmatpush1.msra.mxu0 0.0
        %2938 = vmatprep.subr.mxu0 0.0
        %2939 = vmatpush1.msra.mxu0 0.0
        %2940 = vmatprep.subr.mxu0 0.0
        %2941 = vmatpush1.msra.mxu0 0.0
        %2942 = vmatprep.subr.mxu0 0.0
        %2943 = vmatpush1.msra.mxu0 0.0
        %2944 = vmatprep.subr.mxu0 0.0
        %2945 = vmatpush1.msra.mxu0 0.0
        %2946 = vmatprep.subr.mxu0 0.0
        %2947 = vmatpush1.msra.mxu0 0.0
        %2948 = vmatprep.subr.mxu0 0.0
        %2949 = vmatpush1.msra.mxu0 0.0
        %2950 = vmatprep.subr.mxu0 0.0
        %2951 = vmatpush1.msra.mxu0 0.0
        %2952 = vmatprep.subr.mxu0 0.0
        %2953 = vmatpush1.msra.mxu0 0.0
        %2954 = vmatprep.subr.mxu0 0.0
        %2955 = vmatpush1.msra.mxu0 0.0
        %2956 = vmatprep.subr.mxu0 0.0
        %2957 = vmatpush1.msra.mxu0 0.0
        %2958 = vmatprep.subr.mxu0 0.0
        %2959 = vmatpush1.msra.mxu0 0.0
        %2960 = vmatprep.subr.mxu0 0.0
        %2961 = vmatpush1.msra.mxu0 0.0
        %2962 = vmatprep.subr.mxu0 0.0
        %2963 = vmatpush1.msra.mxu0 0.0
        %2964 = vmatprep.subr.mxu0 0.0
        %2965 = vmatpush1.msra.mxu0 0.0
        %2966 = vmatprep.subr.mxu0 0.0
        %2967 = vmatpush1.msra.mxu0 0.0
        %2968 = vmatprep.subr.mxu0 0.0
        %2969 = vmatpush1.msra.mxu0 0.0
        %2970 = vmatprep.subr.mxu0 0.0
        %2971 = vmatpush1.msra.mxu0 0.0
        %2972 = vmatprep.subr.mxu0 0.0
        %2973 = vmatpush1.msra.mxu0 0.0
        %2974 = vmatprep.mubr.f32.mxu0 0.0
        %2975 = vmatmul.mubr.f32.gmra.mrb[0].mxu0 %v2905
        %v2976 = vpop.f32.mrb[0].mxu0
        %v2977 = vadd.f32 0.0, %v2976
        %v2978 = vpop.f32.mrb[0].mxu0
        %2979 = vdwg.mxu0
        %v2981 = vsel %vm503, %v2900, 0
        %v2984 = vsel %vm1677, %v2901, 0
        %2986 = vmatprep.subr.mxu0 0.0
        %2987 = vmatpush1.msra.mxu0 %v2984
        %2988 = vmatprep.subr.mxu0 0.0
        %2989 = vmatpush1.msra.mxu0 0.0
        %2990 = vmatprep.subr.mxu0 0.0
        %2991 = vmatpush1.msra.mxu0 0.0
        %2992 = vmatprep.subr.mxu0 0.0
        %2993 = vmatpush1.msra.mxu0 0.0
        %2994 = vmatprep.subr.mxu0 0.0
        %2995 = vmatpush1.msra.mxu0 0.0
        %2996 = vmatprep.subr.mxu0 0.0
        %2997 = vmatpush1.msra.mxu0 0.0
        %2998 = vmatprep.subr.mxu0 0.0
        %2999 = vmatpush1.msra.mxu0 0.0
        %3000 = vmatprep.subr.mxu0 0.0
        %3001 = vmatpush1.msra.mxu0 0.0
        %3002 = vmatprep.subr.mxu0 0.0
        %3003 = vmatpush1.msra.mxu0 0.0
        %3004 = vmatprep.subr.mxu0 0.0
        %3005 = vmatpush1.msra.mxu0 0.0
        %3006 = vmatprep.subr.mxu0 0.0
        %3007 = vmatpush1.msra.mxu0 0.0
        %3008 = vmatprep.subr.mxu0 0.0
        %3009 = vmatpush1.msra.mxu0 0.0
        %3010 = vmatprep.subr.mxu0 0.0
        %3011 = vmatpush1.msra.mxu0 0.0
        %3012 = vmatprep.subr.mxu0 0.0
        %3013 = vmatpush1.msra.mxu0 0.0
        %3014 = vmatprep.subr.mxu0 0.0
        %3015 = vmatpush1.msra.mxu0 0.0
        %3016 = vmatprep.subr.mxu0 0.0
        %3017 = vmatpush1.msra.mxu0 0.0
        %3018 = vmatprep.subr.mxu0 0.0
        %3019 = vmatpush1.msra.mxu0 0.0
        %3020 = vmatprep.subr.mxu0 0.0
        %3021 = vmatpush1.msra.mxu0 0.0
        %3022 = vmatprep.subr.mxu0 0.0
        %3023 = vmatpush1.msra.mxu0 0.0
        %3024 = vmatprep.subr.mxu0 0.0
        %3025 = vmatpush1.msra.mxu0 0.0
        %3026 = vmatprep.subr.mxu0 0.0
        %3027 = vmatpush1.msra.mxu0 0.0
        %3028 = vmatprep.subr.mxu0 0.0
        %3029 = vmatpush1.msra.mxu0 0.0
        %3030 = vmatprep.subr.mxu0 0.0
        %3031 = vmatpush1.msra.mxu0 0.0
        %3032 = vmatprep.subr.mxu0 0.0
        %3033 = vmatpush1.msra.mxu0 0.0
        %3034 = vmatprep.subr.mxu0 0.0
        %3035 = vmatpush1.msra.mxu0 0.0
        %3036 = vmatprep.subr.mxu0 0.0
        %3037 = vmatpush1.msra.mxu0 0.0
        %3038 = vmatprep.subr.mxu0 0.0
        %3039 = vmatpush1.msra.mxu0 0.0
        %3040 = vmatprep.subr.mxu0 0.0
        %3041 = vmatpush1.msra.mxu0 0.0
        %3042 = vmatprep.subr.mxu0 0.0
        %3043 = vmatpush1.msra.mxu0 0.0
        %3044 = vmatprep.subr.mxu0 0.0
        %3045 = vmatpush1.msra.mxu0 0.0
        %3046 = vmatprep.subr.mxu0 0.0
        %3047 = vmatpush1.msra.mxu0 0.0
        %3048 = vmatprep.subr.mxu0 0.0
        %3049 = vmatpush1.msra.mxu0 0.0
        %3050 = vmatprep.mubr.f32.mxu0 0.0
        %3051 = vmatmul.mubr.f32.gmra.mrb[0].mxu0 %v2981
        %v3052 = vpop.f32.mrb[0].mxu0
        %v3053 = vadd.f32 %v2977, %v3052
        %v3054 = vpop.f32.mrb[0].mxu0
        %3055 = vdwg.mxu0
        %v3056 = vld [vmem:[%s1841] ss:$4 sm:$0x3f]
        %v3057 = vld [vmem:[%s1843] sm:$0xf]
        %v3059 = vsel %vm503, %v3056, 0
        %v3062 = vsel %vm1677, %v3057, 0
        %3064 = vmatprep.subr.mxu0 0.0
        %3065 = vmatpush1.msra.mxu0 %v3062
        %3066 = vmatprep.subr.mxu0 0.0
        %3067 = vmatpush1.msra.mxu0 0.0
        %3068 = vmatprep.subr.mxu0 0.0
        %3069 = vmatpush1.msra.mxu0 0.0
        %3070 = vmatprep.subr.mxu0 0.0
        %3071 = vmatpush1.msra.mxu0 0.0
        %3072 = vmatprep.subr.mxu0 0.0
        %3073 = vmatpush1.msra.mxu0 0.0
        %3074 = vmatprep.subr.mxu0 0.0
        %3075 = vmatpush1.msra.mxu0 0.0
        %3076 = vmatprep.subr.mxu0 0.0
        %3077 = vmatpush1.msra.mxu0 0.0
        %3078 = vmatprep.subr.mxu0 0.0
        %3079 = vmatpush1.msra.mxu0 0.0
        %3080 = vmatprep.subr.mxu0 0.0
        %3081 = vmatpush1.msra.mxu0 0.0
        %3082 = vmatprep.subr.mxu0 0.0
        %3083 = vmatpush1.msra.mxu0 0.0
        %3084 = vmatprep.subr.mxu0 0.0
        %3085 = vmatpush1.msra.mxu0 0.0
        %3086 = vmatprep.subr.mxu0 0.0
        %3087 = vmatpush1.msra.mxu0 0.0
        %3088 = vmatprep.subr.mxu0 0.0
        %3089 = vmatpush1.msra.mxu0 0.0
        %3090 = vmatprep.subr.mxu0 0.0
        %3091 = vmatpush1.msra.mxu0 0.0
        %3092 = vmatprep.subr.mxu0 0.0
        %3093 = vmatpush1.msra.mxu0 0.0
        %3094 = vmatprep.subr.mxu0 0.0
        %3095 = vmatpush1.msra.mxu0 0.0
        %3096 = vmatprep.subr.mxu0 0.0
        %3097 = vmatpush1.msra.mxu0 0.0
        %3098 = vmatprep.subr.mxu0 0.0
        %3099 = vmatpush1.msra.mxu0 0.0
        %3100 = vmatprep.subr.mxu0 0.0
        %3101 = vmatpush1.msra.mxu0 0.0
        %3102 = vmatprep.subr.mxu0 0.0
        %3103 = vmatpush1.msra.mxu0 0.0
        %3104 = vmatprep.subr.mxu0 0.0
        %3105 = vmatpush1.msra.mxu0 0.0
        %3106 = vmatprep.subr.mxu0 0.0
        %3107 = vmatpush1.msra.mxu0 0.0
        %3108 = vmatprep.subr.mxu0 0.0
        %3109 = vmatpush1.msra.mxu0 0.0
        %3110 = vmatprep.subr.mxu0 0.0
        %3111 = vmatpush1.msra.mxu0 0.0
        %3112 = vmatprep.subr.mxu0 0.0
        %3113 = vmatpush1.msra.mxu0 0.0
        %3114 = vmatprep.subr.mxu0 0.0
        %3115 = vmatpush1.msra.mxu0 0.0
        %3116 = vmatprep.subr.mxu0 0.0
        %3117 = vmatpush1.msra.mxu0 0.0
        %3118 = vmatprep.subr.mxu0 0.0
        %3119 = vmatpush1.msra.mxu0 0.0
        %3120 = vmatprep.subr.mxu0 0.0
        %3121 = vmatpush1.msra.mxu0 0.0
        %3122 = vmatprep.subr.mxu0 0.0
        %3123 = vmatpush1.msra.mxu0 0.0
        %3124 = vmatprep.subr.mxu0 0.0
        %3125 = vmatpush1.msra.mxu0 0.0
        %3126 = vmatprep.subr.mxu0 0.0
        %3127 = vmatpush1.msra.mxu0 0.0
        %3128 = vmatprep.mubr.f32.mxu0 0.0
        %3129 = vmatmul.mubr.f32.gmra.mrb[0].mxu0 %v3059
        %v3130 = vpop.f32.mrb[0].mxu0
        %v3131 = vadd.f32 0.0, %v3130
        %v3132 = vpop.f32.mrb[0].mxu0
        %3133 = vdwg.mxu0
        %v3134 = vadd.f32 %v3053, %v3131
        %v3135 = vld [vmem:[%s1922] ss:$4 sm:$0x3f]
        %v3136 = vld [vmem:[%s1924] sm:$0xf]
        %v3138 = vsel %vm503, %v3135, 0
        %v3141 = vsel %vm1677, %v3136, 0
        %3143 = vmatprep.subr.mxu0 0.0
        %3144 = vmatpush1.msra.mxu0 %v3141
        %3145 = vmatprep.subr.mxu0 0.0
        %3146 = vmatpush1.msra.mxu0 0.0
        %3147 = vmatprep.subr.mxu0 0.0
        %3148 = vmatpush1.msra.mxu0 0.0
        %3149 = vmatprep.subr.mxu0 0.0
        %3150 = vmatpush1.msra.mxu0 0.0
        %3151 = vmatprep.subr.mxu0 0.0
        %3152 = vmatpush1.msra.mxu0 0.0
        %3153 = vmatprep.subr.mxu0 0.0
        %3154 = vmatpush1.msra.mxu0 0.0
        %3155 = vmatprep.subr.mxu0 0.0
        %3156 = vmatpush1.msra.mxu0 0.0
        %3157 = vmatprep.subr.mxu0 0.0
        %3158 = vmatpush1.msra.mxu0 0.0
        %3159 = vmatprep.subr.mxu0 0.0
        %3160 = vmatpush1.msra.mxu0 0.0
        %3161 = vmatprep.subr.mxu0 0.0
        %3162 = vmatpush1.msra.mxu0 0.0
        %3163 = vmatprep.subr.mxu0 0.0
        %3164 = vmatpush1.msra.mxu0 0.0
        %3165 = vmatprep.subr.mxu0 0.0
        %3166 = vmatpush1.msra.mxu0 0.0
        %3167 = vmatprep.subr.mxu0 0.0
        %3168 = vmatpush1.msra.mxu0 0.0
        %3169 = vmatprep.subr.mxu0 0.0
        %3170 = vmatpush1.msra.mxu0 0.0
        %3171 = vmatprep.subr.mxu0 0.0
        %3172 = vmatpush1.msra.mxu0 0.0
        %3173 = vmatprep.subr.mxu0 0.0
        %3174 = vmatpush1.msra.mxu0 0.0
        %3175 = vmatprep.subr.mxu0 0.0
        %3176 = vmatpush1.msra.mxu0 0.0
        %3177 = vmatprep.subr.mxu0 0.0
        %3178 = vmatpush1.msra.mxu0 0.0
        %3179 = vmatprep.subr.mxu0 0.0
        %3180 = vmatpush1.msra.mxu0 0.0
        %3181 = vmatprep.subr.mxu0 0.0
        %3182 = vmatpush1.msra.mxu0 0.0
        %3183 = vmatprep.subr.mxu0 0.0
        %3184 = vmatpush1.msra.mxu0 0.0
        %3185 = vmatprep.subr.mxu0 0.0
        %3186 = vmatpush1.msra.mxu0 0.0
        %3187 = vmatprep.subr.mxu0 0.0
        %3188 = vmatpush1.msra.mxu0 0.0
        %3189 = vmatprep.subr.mxu0 0.0
        %3190 = vmatpush1.msra.mxu0 0.0
        %3191 = vmatprep.subr.mxu0 0.0
        %3192 = vmatpush1.msra.mxu0 0.0
        %3193 = vmatprep.subr.mxu0 0.0
        %3194 = vmatpush1.msra.mxu0 0.0
        %3195 = vmatprep.subr.mxu0 0.0
        %3196 = vmatpush1.msra.mxu0 0.0
        %3197 = vmatprep.subr.mxu0 0.0
        %3198 = vmatpush1.msra.mxu0 0.0
        %3199 = vmatprep.subr.mxu0 0.0
        %3200 = vmatpush1.msra.mxu0 0.0
        %3201 = vmatprep.subr.mxu0 0.0
        %3202 = vmatpush1.msra.mxu0 0.0
        %3203 = vmatprep.subr.mxu0 0.0
        %3204 = vmatpush1.msra.mxu0 0.0
        %3205 = vmatprep.subr.mxu0 0.0
        %3206 = vmatpush1.msra.mxu0 0.0
        %3207 = vmatprep.mubr.f32.mxu0 0.0
        %3208 = vmatmul.mubr.f32.gmra.mrb[0].mxu0 %v3138
        %v3209 = vpop.f32.mrb[0].mxu0
        %v3210 = vadd.f32 0.0, %v3209
        %v3211 = vpop.f32.mrb[0].mxu0
        %3212 = vdwg.mxu0
        %v3213 = vadd.f32 %v3134, %v3210
        %s3214 = scalar_lea.vmem [#allocation3], 2
        %v3215 = vld [vmem:[%s3214] ss:$9 sm:$0x3f]
        %s3216 = scalar_lea.vmem [#allocation4], 2
        %v3217 = vld [vmem:[%s3216] ss:$9 sm:$0x3f]
        %v3218 = vlog2.pop %v3213
        %v3219 = vmul.f32 %v3218, 0.6931472
        %3221 = vset.pattern.permute.xlu0 0
        %3222 = vperm.xlu0 %3221, %v2899
        %v3223 = vpop.permute.xlu0 %3222
        %v3225 = vadd.f32 %v3223, %v3219
        %v3226 = vadd.f32 %v3225, %v3215
        %3228 = vset.pattern.permute.xlu0 0
        %3229 = vperm.xlu0 %3228, %v3217
        %v3230 = vpop.permute.xlu0 %3229
        %v3232 = vadd.f32 %v3226, %v3230
        %3233 = vst.msk [vmem:[#allocation2 + $0x2] sm:$0x1] %vm726, %v3232
        %3234 = vst.msk [vmem:[#allocation2 + $0xa] sm:$0x2] %vm728, %v3232
        %3235 = vst.msk [vmem:[#allocation2 + $0x12] sm:$0x4] %vm730, %v3232
        %3236 = vst.msk [vmem:[#allocation2 + $0x1a] sm:$0x8] %vm732, %v3232
        %3237 = vst.msk [vmem:[#allocation2 + $0x22] sm:$0x10] %vm734, %v3232
        %3238 = vst.msk [vmem:[#allocation2 + $0x2a] sm:$0x20] %vm736, %v3232
        %v3239 = vld [vmem:[#allocation2] sm:$0x7]
        %v3240 = vld [vmem:[#allocation3] sm:$0x7]
        %v3241 = vadd.f32 %v3239, %v3240
        %s3242 = scalar_lea.vmem [#allocation2], 11
        %v3243 = vld [vmem:[%s3242] ss:$8 sm:$0x7]
        %s3244 = scalar_lea.vmem [#allocation3], 11
        %v3245 = vld [vmem:[%s3244] ss:$8 sm:$0x7]
        %v3246 = vadd.f32 %v3243, %v3245
        %vm3247 = vcmask 26624
        %v3248 = vsel %vm3247, %v3241, -inf
        %3249 = vmax.xlane.f32.xlu0 %v3248
        %v3250 = vpop.xlane.xlu0 %3249
        %v3251 = vsel %vm1675, %v3250, -inf
        %v3252 = vrot.slane %v3251, 4
        %v3253 = vmax.f32 %v3251, %v3252
        %v3254 = vrot.slane %v3253, 2
        %v3255 = vmax.f32 %v3253, %v3254
        %v3256 = vrot.slane %v3255, 1
        %v3257 = vmax.f32 %v3255, %v3256
        %v3258 = vsel %vm3247, %v3246, -inf
        %3259 = vmax.xlane.f32.xlu0 %v3258
        %v3260 = vpop.xlane.xlu0 %3259
        %v3261 = vsel %vm1675, %v3260, -inf
        %v3262 = vrot.slane %v3261, 4
        %v3263 = vmax.f32 %v3261, %v3262
        %v3264 = vrot.slane %v3263, 2
        %v3265 = vmax.f32 %v3263, %v3264
        %v3266 = vrot.slane %v3265, 1
        %v3267 = vmax.f32 %v3265, %v3266
        %v3268 = vsub.f32 %v3241, %v3257
        %v3269 = vmul.f32 %v3268, 1.442695
        %v3270 = vpow.pop %v3269
        %v3271 = vsub.f32 %v3246, %v3267
        %v3272 = vmul.f32 %v3271, 1.442695
        %v3273 = vpow.pop %v3272
        %3274 = vxpose.xlu0.b32.start [1/16] %v3270, 128
        %3275 = vxpose.xlu0.b32.cont [2/16] 0.0, 128
        %3276 = vxpose.xlu0.b32.cont [3/16] 0.0, 128
        %3277 = vxpose.xlu0.b32.cont [4/16] 0.0, 128
        %3278 = vxpose.xlu0.b32.cont [5/16] 0.0, 128
        %3279 = vxpose.xlu0.b32.cont [6/16] 0.0, 128
        %3280 = vxpose.xlu0.b32.cont [7/16] 0.0, 128
        %3281 = vxpose.xlu0.b32.cont [8/16] 0.0, 128
        %3282 = vxpose.xlu0.b32.cont [9/16] 0.0, 128
        %3283 = vxpose.xlu0.b32.cont [10/16] 0.0, 128
        %3284 = vxpose.xlu0.b32.cont [11/16] 0.0, 128
        %3285 = vxpose.xlu0.b32.cont [12/16] 0.0, 128
        %3286 = vxpose.xlu0.b32.cont [13/16] 0.0, 128
        %3287 = vxpose.xlu0.b32.cont [14/16] 0.0, 128
        %3288 = vxpose.xlu0.b32.cont [15/16] 0.0, 128
        %3289 = vxpose.xlu0.b32.end [16/16] 0.0, 128
        %v3290 = vpop.trf.xlu0
        %v3291 = vpop.trf.xlu0
        %v3292 = vpop.trf.xlu0
        %v3293 = vpop.trf.xlu0
        %v3294 = vpop.trf.xlu0
        %v3295 = vpop.trf.xlu0
        %v3296 = vpop.trf.xlu0
        %v3297 = vpop.trf.xlu0
        %v3298 = vpop.trf.xlu0
        %v3299 = vpop.trf.xlu0
        %v3300 = vpop.trf.xlu0
        %v3301 = vpop.trf.xlu0
        %v3302 = vpop.trf.xlu0
        %v3303 = vpop.trf.xlu0
        %v3304 = vpop.trf.xlu0
        %v3305 = vpop.trf.xlu0
        %vm3306 = vcmask 23552
        %v3308 = vsel %vm3306, %v3290, 0
        %v3311 = vsel %vm1675, %v3273, 0
        %3313 = vmatprep.subr.mxu0 0.0
        %3314 = vmatpush1.msra.mxu0 %v3311
        %3315 = vmatprep.subr.mxu0 0.0
        %3316 = vmatpush1.msra.mxu0 0.0
        %3317 = vmatprep.subr.mxu0 0.0
        %3318 = vmatpush1.msra.mxu0 0.0
        %3319 = vmatprep.subr.mxu0 0.0
        %3320 = vmatpush1.msra.mxu0 0.0
        %3321 = vmatprep.subr.mxu0 0.0
        %3322 = vmatpush1.msra.mxu0 0.0
        %3323 = vmatprep.subr.mxu0 0.0
        %3324 = vmatpush1.msra.mxu0 0.0
        %3325 = vmatprep.subr.mxu0 0.0
        %3326 = vmatpush1.msra.mxu0 0.0
        %3327 = vmatprep.subr.mxu0 0.0
        %3328 = vmatpush1.msra.mxu0 0.0
        %3329 = vmatprep.subr.mxu0 0.0
        %3330 = vmatpush1.msra.mxu0 0.0
        %3331 = vmatprep.subr.mxu0 0.0
        %3332 = vmatpush1.msra.mxu0 0.0
        %3333 = vmatprep.subr.mxu0 0.0
        %3334 = vmatpush1.msra.mxu0 0.0
        %3335 = vmatprep.subr.mxu0 0.0
        %3336 = vmatpush1.msra.mxu0 0.0
        %3337 = vmatprep.subr.mxu0 0.0
        %3338 = vmatpush1.msra.mxu0 0.0
        %3339 = vmatprep.subr.mxu0 0.0
        %3340 = vmatpush1.msra.mxu0 0.0
        %3341 = vmatprep.subr.mxu0 0.0
        %3342 = vmatpush1.msra.mxu0 0.0
        %3343 = vmatprep.subr.mxu0 0.0
        %3344 = vmatpush1.msra.mxu0 0.0
        %3345 = vmatprep.subr.mxu0 0.0
        %3346 = vmatpush1.msra.mxu0 0.0
        %3347 = vmatprep.subr.mxu0 0.0
        %3348 = vmatpush1.msra.mxu0 0.0
        %3349 = vmatprep.subr.mxu0 0.0
        %3350 = vmatpush1.msra.mxu0 0.0
        %3351 = vmatprep.subr.mxu0 0.0
        %3352 = vmatpush1.msra.mxu0 0.0
        %3353 = vmatprep.subr.mxu0 0.0
        %3354 = vmatpush1.msra.mxu0 0.0
        %3355 = vmatprep.subr.mxu0 0.0
        %3356 = vmatpush1.msra.mxu0 0.0
        %3357 = vmatprep.subr.mxu0 0.0
        %3358 = vmatpush1.msra.mxu0 0.0
        %3359 = vmatprep.subr.mxu0 0.0
        %3360 = vmatpush1.msra.mxu0 0.0
        %3361 = vmatprep.subr.mxu0 0.0
        %3362 = vmatpush1.msra.mxu0 0.0
        %3363 = vmatprep.subr.mxu0 0.0
        %3364 = vmatpush1.msra.mxu0 0.0
        %3365 = vmatprep.subr.mxu0 0.0
        %3366 = vmatpush1.msra.mxu0 0.0
        %3367 = vmatprep.subr.mxu0 0.0
        %3368 = vmatpush1.msra.mxu0 0.0
        %3369 = vmatprep.subr.mxu0 0.0
        %3370 = vmatpush1.msra.mxu0 0.0
        %3371 = vmatprep.subr.mxu0 0.0
        %3372 = vmatpush1.msra.mxu0 0.0
        %3373 = vmatprep.subr.mxu0 0.0
        %3374 = vmatpush1.msra.mxu0 0.0
        %3375 = vmatprep.subr.mxu0 0.0
        %3376 = vmatpush1.msra.mxu0 0.0
        %3377 = vmatprep.mubr.f32.mxu0 0.0
        %3378 = vmatmul.mubr.f32.gmra.mrb[0].mxu0 %v3308
        %v3379 = vpop.f32.mrb[0].mxu0
        %v3380 = vadd.f32 0.0, %v3379
        %v3381 = vpop.f32.mrb[0].mxu0
        %3382 = vdwg.mxu0
        %3383 = vst.msk [vmem:[#allocation5] sm:$0xf] %vm871, %v3380
        %v3384 = vadd.f32 %v3257, %v3267
        %v3385 = vld [vmem:[#allocation2 + $0x9] sm:$0x7]
        %v3386 = vld [vmem:[#allocation3 + $0x9] sm:$0x7]
        %v3387 = vadd.f32 %v3385, %v3386
        %s3388 = scalar_lea.vmem [#allocation2], 20
        %v3389 = vld [vmem:[%s3388] ss:$8 sm:$0x7]
        %s3390 = scalar_lea.vmem [#allocation3], 20
        %v3391 = vld [vmem:[%s3390] ss:$8 sm:$0x7]
        %v3392 = vadd.f32 %v3389, %v3391
        %v3393 = vsel %vm3247, %v3387, -inf
        %3394 = vmax.xlane.f32.xlu0 %v3393
        %v3395 = vpop.xlane.xlu0 %3394
        %v3396 = vsel %vm1675, %v3395, -inf
        %v3397 = vrot.slane %v3396, 4
        %v3398 = vmax.f32 %v3396, %v3397
        %v3399 = vrot.slane %v3398, 2
        %v3400 = vmax.f32 %v3398, %v3399
        %v3401 = vrot.slane %v3400, 1
        %v3402 = vmax.f32 %v3400, %v3401
        %v3403 = vsel %vm3247, %v3392, -inf
        %3404 = vmax.xlane.f32.xlu0 %v3403
        %v3405 = vpop.xlane.xlu0 %3404
        %v3406 = vsel %vm1675, %v3405, -inf
        %v3407 = vrot.slane %v3406, 4
        %v3408 = vmax.f32 %v3406, %v3407
        %v3409 = vrot.slane %v3408, 2
        %v3410 = vmax.f32 %v3408, %v3409
        %v3411 = vrot.slane %v3410, 1
        %v3412 = vmax.f32 %v3410, %v3411
        %v3413 = vsub.f32 %v3387, %v3402
        %v3414 = vmul.f32 %v3413, 1.442695
        %v3415 = vpow.pop %v3414
        %v3416 = vsub.f32 %v3392, %v3412
        %v3417 = vmul.f32 %v3416, 1.442695
        %v3418 = vpow.pop %v3417
        %3419 = vxpose.xlu0.b32.start [1/16] %v3415, 128
        %3420 = vxpose.xlu0.b32.cont [2/16] 0.0, 128
        %3421 = vxpose.xlu0.b32.cont [3/16] 0.0, 128
        %3422 = vxpose.xlu0.b32.cont [4/16] 0.0, 128
        %3423 = vxpose.xlu0.b32.cont [5/16] 0.0, 128
        %3424 = vxpose.xlu0.b32.cont [6/16] 0.0, 128
        %3425 = vxpose.xlu0.b32.cont [7/16] 0.0, 128
        %3426 = vxpose.xlu0.b32.cont [8/16] 0.0, 128
        %3427 = vxpose.xlu0.b32.cont [9/16] 0.0, 128
        %3428 = vxpose.xlu0.b32.cont [10/16] 0.0, 128
        %3429 = vxpose.xlu0.b32.cont [11/16] 0.0, 128
        %3430 = vxpose.xlu0.b32.cont [12/16] 0.0, 128
        %3431 = vxpose.xlu0.b32.cont [13/16] 0.0, 128
        %3432 = vxpose.xlu0.b32.cont [14/16] 0.0, 128
        %3433 = vxpose.xlu0.b32.cont [15/16] 0.0, 128
        %3434 = vxpose.xlu0.b32.end [16/16] 0.0, 128
        %v3435 = vpop.trf.xlu0
        %v3436 = vpop.trf.xlu0
        %v3437 = vpop.trf.xlu0
        %v3438 = vpop.trf.xlu0
        %v3439 = vpop.trf.xlu0
        %v3440 = vpop.trf.xlu0
        %v3441 = vpop.trf.xlu0
        %v3442 = vpop.trf.xlu0
        %v3443 = vpop.trf.xlu0
        %v3444 = vpop.trf.xlu0
        %v3445 = vpop.trf.xlu0
        %v3446 = vpop.trf.xlu0
        %v3447 = vpop.trf.xlu0
        %v3448 = vpop.trf.xlu0
        %v3449 = vpop.trf.xlu0
        %v3450 = vpop.trf.xlu0
        %v3452 = vsel %vm3306, %v3435, 0
        %v3455 = vsel %vm1675, %v3418, 0
        %3457 = vmatprep.subr.mxu0 0.0
        %3458 = vmatpush1.msra.mxu0 %v3455
        %3459 = vmatprep.subr.mxu0 0.0
        %3460 = vmatpush1.msra.mxu0 0.0
        %3461 = vmatprep.subr.mxu0 0.0
        %3462 = vmatpush1.msra.mxu0 0.0
        %3463 = vmatprep.subr.mxu0 0.0
        %3464 = vmatpush1.msra.mxu0 0.0
        %3465 = vmatprep.subr.mxu0 0.0
        %3466 = vmatpush1.msra.mxu0 0.0
        %3467 = vmatprep.subr.mxu0 0.0
        %3468 = vmatpush1.msra.mxu0 0.0
        %3469 = vmatprep.subr.mxu0 0.0
        %3470 = vmatpush1.msra.mxu0 0.0
        %3471 = vmatprep.subr.mxu0 0.0
        %3472 = vmatpush1.msra.mxu0 0.0
        %3473 = vmatprep.subr.mxu0 0.0
        %3474 = vmatpush1.msra.mxu0 0.0
        %3475 = vmatprep.subr.mxu0 0.0
        %3476 = vmatpush1.msra.mxu0 0.0
        %3477 = vmatprep.subr.mxu0 0.0
        %3478 = vmatpush1.msra.mxu0 0.0
        %3479 = vmatprep.subr.mxu0 0.0
        %3480 = vmatpush1.msra.mxu0 0.0
        %3481 = vmatprep.subr.mxu0 0.0
        %3482 = vmatpush1.msra.mxu0 0.0
        %3483 = vmatprep.subr.mxu0 0.0
        %3484 = vmatpush1.msra.mxu0 0.0
        %3485 = vmatprep.subr.mxu0 0.0
        %3486 = vmatpush1.msra.mxu0 0.0
        %3487 = vmatprep.subr.mxu0 0.0
        %3488 = vmatpush1.msra.mxu0 0.0
        %3489 = vmatprep.subr.mxu0 0.0
        %3490 = vmatpush1.msra.mxu0 0.0
        %3491 = vmatprep.subr.mxu0 0.0
        %3492 = vmatpush1.msra.mxu0 0.0
        %3493 = vmatprep.subr.mxu0 0.0
        %3494 = vmatpush1.msra.mxu0 0.0
        %3495 = vmatprep.subr.mxu0 0.0
        %3496 = vmatpush1.msra.mxu0 0.0
        %3497 = vmatprep.subr.mxu0 0.0
        %3498 = vmatpush1.msra.mxu0 0.0
        %3499 = vmatprep.subr.mxu0 0.0
        %3500 = vmatpush1.msra.mxu0 0.0
        %3501 = vmatprep.subr.mxu0 0.0
        %3502 = vmatpush1.msra.mxu0 0.0
        %3503 = vmatprep.subr.mxu0 0.0
        %3504 = vmatpush1.msra.mxu0 0.0
        %3505 = vmatprep.subr.mxu0 0.0
        %3506 = vmatpush1.msra.mxu0 0.0
        %3507 = vmatprep.subr.mxu0 0.0
        %3508 = vmatpush1.msra.mxu0 0.0
        %3509 = vmatprep.subr.mxu0 0.0
        %3510 = vmatpush1.msra.mxu0 0.0
        %3511 = vmatprep.subr.mxu0 0.0
        %3512 = vmatpush1.msra.mxu0 0.0
        %3513 = vmatprep.subr.mxu0 0.0
        %3514 = vmatpush1.msra.mxu0 0.0
        %3515 = vmatprep.subr.mxu0 0.0
        %3516 = vmatpush1.msra.mxu0 0.0
        %3517 = vmatprep.subr.mxu0 0.0
        %3518 = vmatpush1.msra.mxu0 0.0
        %3519 = vmatprep.subr.mxu0 0.0
        %3520 = vmatpush1.msra.mxu0 0.0
        %3521 = vmatprep.mubr.f32.mxu0 0.0
        %3522 = vmatmul.mubr.f32.gmra.mrb[0].mxu0 %v3452
        %v3523 = vpop.f32.mrb[0].mxu0
        %v3524 = vadd.f32 0.0, %v3523
        %v3525 = vpop.f32.mrb[0].mxu0
        %3526 = vdwg.mxu0
        %3527 = vst.msk [vmem:[#allocation5 + $0x4] sm:$0xf] %vm871, %v3524
        %v3528 = vadd.f32 %v3402, %v3412
        %v3529 = vld [vmem:[#allocation2 + $0x12] sm:$0x7]
        %v3530 = vld [vmem:[#allocation3 + $0x12] sm:$0x7]
        %v3531 = vadd.f32 %v3529, %v3530
        %s3532 = scalar_lea.vmem [#allocation2], 29
        %v3533 = vld [vmem:[%s3532] ss:$8 sm:$0x7]
        %s3534 = scalar_lea.vmem [#allocation3], 29
        %v3535 = vld [vmem:[%s3534] ss:$8 sm:$0x7]
        %v3536 = vadd.f32 %v3533, %v3535
        %v3537 = vsel %vm3247, %v3531, -inf
        %3538 = vmax.xlane.f32.xlu0 %v3537
        %v3539 = vpop.xlane.xlu0 %3538
        %v3540 = vsel %vm1675, %v3539, -inf
        %v3541 = vrot.slane %v3540, 4
        %v3542 = vmax.f32 %v3540, %v3541
        %v3543 = vrot.slane %v3542, 2
        %v3544 = vmax.f32 %v3542, %v3543
        %v3545 = vrot.slane %v3544, 1
        %v3546 = vmax.f32 %v3544, %v3545
        %v3547 = vsel %vm3247, %v3536, -inf
        %3548 = vmax.xlane.f32.xlu0 %v3547
        %v3549 = vpop.xlane.xlu0 %3548
        %v3550 = vsel %vm1675, %v3549, -inf
        %v3551 = vrot.slane %v3550, 4
        %v3552 = vmax.f32 %v3550, %v3551
        %v3553 = vrot.slane %v3552, 2
        %v3554 = vmax.f32 %v3552, %v3553
        %v3555 = vrot.slane %v3554, 1
        %v3556 = vmax.f32 %v3554, %v3555
        %v3557 = vsub.f32 %v3531, %v3546
        %v3558 = vmul.f32 %v3557, 1.442695
        %v3559 = vpow.pop %v3558
        %v3560 = vsub.f32 %v3536, %v3556
        %v3561 = vmul.f32 %v3560, 1.442695
        %v3562 = vpow.pop %v3561
        %3563 = vxpose.xlu0.b32.start [1/16] %v3559, 128
        %3564 = vxpose.xlu0.b32.cont [2/16] 0.0, 128
        %3565 = vxpose.xlu0.b32.cont [3/16] 0.0, 128
        %3566 = vxpose.xlu0.b32.cont [4/16] 0.0, 128
        %3567 = vxpose.xlu0.b32.cont [5/16] 0.0, 128
        %3568 = vxpose.xlu0.b32.cont [6/16] 0.0, 128
        %3569 = vxpose.xlu0.b32.cont [7/16] 0.0, 128
        %3570 = vxpose.xlu0.b32.cont [8/16] 0.0, 128
        %3571 = vxpose.xlu0.b32.cont [9/16] 0.0, 128
        %3572 = vxpose.xlu0.b32.cont [10/16] 0.0, 128
        %3573 = vxpose.xlu0.b32.cont [11/16] 0.0, 128
        %3574 = vxpose.xlu0.b32.cont [12/16] 0.0, 128
        %3575 = vxpose.xlu0.b32.cont [13/16] 0.0, 128
        %3576 = vxpose.xlu0.b32.cont [14/16] 0.0, 128
        %3577 = vxpose.xlu0.b32.cont [15/16] 0.0, 128
        %3578 = vxpose.xlu0.b32.end [16/16] 0.0, 128
        %v3579 = vpop.trf.xlu0
        %v3580 = vpop.trf.xlu0
        %v3581 = vpop.trf.xlu0
        %v3582 = vpop.trf.xlu0
        %v3583 = vpop.trf.xlu0
        %v3584 = vpop.trf.xlu0
        %v3585 = vpop.trf.xlu0
        %v3586 = vpop.trf.xlu0
        %v3587 = vpop.trf.xlu0
        %v3588 = vpop.trf.xlu0
        %v3589 = vpop.trf.xlu0
        %v3590 = vpop.trf.xlu0
        %v3591 = vpop.trf.xlu0
        %v3592 = vpop.trf.xlu0
        %v3593 = vpop.trf.xlu0
        %v3594 = vpop.trf.xlu0
        %v3596 = vsel %vm3306, %v3579, 0
        %v3599 = vsel %vm1675, %v3562, 0
        %3601 = vmatprep.subr.mxu0 0.0
        %3602 = vmatpush1.msra.mxu0 %v3599
        %3603 = vmatprep.subr.mxu0 0.0
        %3604 = vmatpush1.msra.mxu0 0.0
        %3605 = vmatprep.subr.mxu0 0.0
        %3606 = vmatpush1.msra.mxu0 0.0
        %3607 = vmatprep.subr.mxu0 0.0
        %3608 = vmatpush1.msra.mxu0 0.0
        %3609 = vmatprep.subr.mxu0 0.0
        %3610 = vmatpush1.msra.mxu0 0.0
        %3611 = vmatprep.subr.mxu0 0.0
        %3612 = vmatpush1.msra.mxu0 0.0
        %3613 = vmatprep.subr.mxu0 0.0
        %3614 = vmatpush1.msra.mxu0 0.0
        %3615 = vmatprep.subr.mxu0 0.0
        %3616 = vmatpush1.msra.mxu0 0.0
        %3617 = vmatprep.subr.mxu0 0.0
        %3618 = vmatpush1.msra.mxu0 0.0
        %3619 = vmatprep.subr.mxu0 0.0
        %3620 = vmatpush1.msra.mxu0 0.0
        %3621 = vmatprep.subr.mxu0 0.0
        %3622 = vmatpush1.msra.mxu0 0.0
        %3623 = vmatprep.subr.mxu0 0.0
        %3624 = vmatpush1.msra.mxu0 0.0
        %3625 = vmatprep.subr.mxu0 0.0
        %3626 = vmatpush1.msra.mxu0 0.0
        %3627 = vmatprep.subr.mxu0 0.0
        %3628 = vmatpush1.msra.mxu0 0.0
        %3629 = vmatprep.subr.mxu0 0.0
        %3630 = vmatpush1.msra.mxu0 0.0
        %3631 = vmatprep.subr.mxu0 0.0
        %3632 = vmatpush1.msra.mxu0 0.0
        %3633 = vmatprep.subr.mxu0 0.0
        %3634 = vmatpush1.msra.mxu0 0.0
        %3635 = vmatprep.subr.mxu0 0.0
        %3636 = vmatpush1.msra.mxu0 0.0
        %3637 = vmatprep.subr.mxu0 0.0
        %3638 = vmatpush1.msra.mxu0 0.0
        %3639 = vmatprep.subr.mxu0 0.0
        %3640 = vmatpush1.msra.mxu0 0.0
        %3641 = vmatprep.subr.mxu0 0.0
        %3642 = vmatpush1.msra.mxu0 0.0
        %3643 = vmatprep.subr.mxu0 0.0
        %3644 = vmatpush1.msra.mxu0 0.0
        %3645 = vmatprep.subr.mxu0 0.0
        %3646 = vmatpush1.msra.mxu0 0.0
        %3647 = vmatprep.subr.mxu0 0.0
        %3648 = vmatpush1.msra.mxu0 0.0
        %3649 = vmatprep.subr.mxu0 0.0
        %3650 = vmatpush1.msra.mxu0 0.0
        %3651 = vmatprep.subr.mxu0 0.0
        %3652 = vmatpush1.msra.mxu0 0.0
        %3653 = vmatprep.subr.mxu0 0.0
        %3654 = vmatpush1.msra.mxu0 0.0
        %3655 = vmatprep.subr.mxu0 0.0
        %3656 = vmatpush1.msra.mxu0 0.0
        %3657 = vmatprep.subr.mxu0 0.0
        %3658 = vmatpush1.msra.mxu0 0.0
        %3659 = vmatprep.subr.mxu0 0.0
        %3660 = vmatpush1.msra.mxu0 0.0
        %3661 = vmatprep.subr.mxu0 0.0
        %3662 = vmatpush1.msra.mxu0 0.0
        %3663 = vmatprep.subr.mxu0 0.0
        %3664 = vmatpush1.msra.mxu0 0.0
        %3665 = vmatprep.mubr.f32.mxu0 0.0
        %3666 = vmatmul.mubr.f32.gmra.mrb[0].mxu0 %v3596
        %v3667 = vpop.f32.mrb[0].mxu0
        %v3668 = vadd.f32 0.0, %v3667
        %v3669 = vpop.f32.mrb[0].mxu0
        %3670 = vdwg.mxu0
        %3671 = vst.msk [vmem:[#allocation5 + $0x8] sm:$0xf] %vm871, %v3668
        %v3672 = vadd.f32 %v3546, %v3556
        %v3673 = vld [vmem:[#allocation2 + $0x1b] sm:$0x7]
        %v3674 = vld [vmem:[#allocation3 + $0x1b] sm:$0x7]
        %v3675 = vadd.f32 %v3673, %v3674
        %s3676 = scalar_lea.vmem [#allocation2], 38
        %v3677 = vld [vmem:[%s3676] ss:$8 sm:$0x7]
        %s3678 = scalar_lea.vmem [#allocation3], 38
        %v3679 = vld [vmem:[%s3678] ss:$8 sm:$0x7]
        %v3680 = vadd.f32 %v3677, %v3679
        %v3681 = vsel %vm3247, %v3675, -inf
        %3682 = vmax.xlane.f32.xlu0 %v3681
        %v3683 = vpop.xlane.xlu0 %3682
        %v3684 = vsel %vm1675, %v3683, -inf
        %v3685 = vrot.slane %v3684, 4
        %v3686 = vmax.f32 %v3684, %v3685
        %v3687 = vrot.slane %v3686, 2
        %v3688 = vmax.f32 %v3686, %v3687
        %v3689 = vrot.slane %v3688, 1
        %v3690 = vmax.f32 %v3688, %v3689
        %v3691 = vsel %vm3247, %v3680, -inf
        %3692 = vmax.xlane.f32.xlu0 %v3691
        %v3693 = vpop.xlane.xlu0 %3692
        %v3694 = vsel %vm1675, %v3693, -inf
        %v3695 = vrot.slane %v3694, 4
        %v3696 = vmax.f32 %v3694, %v3695
        %v3697 = vrot.slane %v3696, 2
        %v3698 = vmax.f32 %v3696, %v3697
        %v3699 = vrot.slane %v3698, 1
        %v3700 = vmax.f32 %v3698, %v3699
        %v3701 = vsub.f32 %v3675, %v3690
        %v3702 = vmul.f32 %v3701, 1.442695
        %v3703 = vpow.pop %v3702
        %v3704 = vsub.f32 %v3680, %v3700
        %v3705 = vmul.f32 %v3704, 1.442695
        %v3706 = vpow.pop %v3705
        %3707 = vxpose.xlu0.b32.start [1/16] %v3703, 128
        %3708 = vxpose.xlu0.b32.cont [2/16] 0.0, 128
        %3709 = vxpose.xlu0.b32.cont [3/16] 0.0, 128
        %3710 = vxpose.xlu0.b32.cont [4/16] 0.0, 128
        %3711 = vxpose.xlu0.b32.cont [5/16] 0.0, 128
        %3712 = vxpose.xlu0.b32.cont [6/16] 0.0, 128
        %3713 = vxpose.xlu0.b32.cont [7/16] 0.0, 128
        %3714 = vxpose.xlu0.b32.cont [8/16] 0.0, 128
        %3715 = vxpose.xlu0.b32.cont [9/16] 0.0, 128
        %3716 = vxpose.xlu0.b32.cont [10/16] 0.0, 128
        %3717 = vxpose.xlu0.b32.cont [11/16] 0.0, 128
        %3718 = vxpose.xlu0.b32.cont [12/16] 0.0, 128
        %3719 = vxpose.xlu0.b32.cont [13/16] 0.0, 128
        %3720 = vxpose.xlu0.b32.cont [14/16] 0.0, 128
        %3721 = vxpose.xlu0.b32.cont [15/16] 0.0, 128
        %3722 = vxpose.xlu0.b32.end [16/16] 0.0, 128
        %v3723 = vpop.trf.xlu0
        %v3724 = vpop.trf.xlu0
        %v3725 = vpop.trf.xlu0
        %v3726 = vpop.trf.xlu0
        %v3727 = vpop.trf.xlu0
        %v3728 = vpop.trf.xlu0
        %v3729 = vpop.trf.xlu0
        %v3730 = vpop.trf.xlu0
        %v3731 = vpop.trf.xlu0
        %v3732 = vpop.trf.xlu0
        %v3733 = vpop.trf.xlu0
        %v3734 = vpop.trf.xlu0
        %v3735 = vpop.trf.xlu0
        %v3736 = vpop.trf.xlu0
        %v3737 = vpop.trf.xlu0
        %v3738 = vpop.trf.xlu0
        %v3740 = vsel %vm3306, %v3723, 0
        %v3743 = vsel %vm1675, %v3706, 0
        %3745 = vmatprep.subr.mxu0 0.0
        %3746 = vmatpush1.msra.mxu0 %v3743
        %3747 = vmatprep.subr.mxu0 0.0
        %3748 = vmatpush1.msra.mxu0 0.0
        %3749 = vmatprep.subr.mxu0 0.0
        %3750 = vmatpush1.msra.mxu0 0.0
        %3751 = vmatprep.subr.mxu0 0.0
        %3752 = vmatpush1.msra.mxu0 0.0
        %3753 = vmatprep.subr.mxu0 0.0
        %3754 = vmatpush1.msra.mxu0 0.0
        %3755 = vmatprep.subr.mxu0 0.0
        %3756 = vmatpush1.msra.mxu0 0.0
        %3757 = vmatprep.subr.mxu0 0.0
        %3758 = vmatpush1.msra.mxu0 0.0
        %3759 = vmatprep.subr.mxu0 0.0
        %3760 = vmatpush1.msra.mxu0 0.0
        %3761 = vmatprep.subr.mxu0 0.0
        %3762 = vmatpush1.msra.mxu0 0.0
        %3763 = vmatprep.subr.mxu0 0.0
        %3764 = vmatpush1.msra.mxu0 0.0
        %3765 = vmatprep.subr.mxu0 0.0
        %3766 = vmatpush1.msra.mxu0 0.0
        %3767 = vmatprep.subr.mxu0 0.0
        %3768 = vmatpush1.msra.mxu0 0.0
        %3769 = vmatprep.subr.mxu0 0.0
        %3770 = vmatpush1.msra.mxu0 0.0
        %3771 = vmatprep.subr.mxu0 0.0
        %3772 = vmatpush1.msra.mxu0 0.0
        %3773 = vmatprep.subr.mxu0 0.0
        %3774 = vmatpush1.msra.mxu0 0.0
        %3775 = vmatprep.subr.mxu0 0.0
        %3776 = vmatpush1.msra.mxu0 0.0
        %3777 = vmatprep.subr.mxu0 0.0
        %3778 = vmatpush1.msra.mxu0 0.0
        %3779 = vmatprep.subr.mxu0 0.0
        %3780 = vmatpush1.msra.mxu0 0.0
        %3781 = vmatprep.subr.mxu0 0.0
        %3782 = vmatpush1.msra.mxu0 0.0
        %3783 = vmatprep.subr.mxu0 0.0
        %3784 = vmatpush1.msra.mxu0 0.0
        %3785 = vmatprep.subr.mxu0 0.0
        %3786 = vmatpush1.msra.mxu0 0.0
        %3787 = vmatprep.subr.mxu0 0.0
        %3788 = vmatpush1.msra.mxu0 0.0
        %3789 = vmatprep.subr.mxu0 0.0
        %3790 = vmatpush1.msra.mxu0 0.0
        %3791 = vmatprep.subr.mxu0 0.0
        %3792 = vmatpush1.msra.mxu0 0.0
        %3793 = vmatprep.subr.mxu0 0.0
        %3794 = vmatpush1.msra.mxu0 0.0
        %3795 = vmatprep.subr.mxu0 0.0
        %3796 = vmatpush1.msra.mxu0 0.0
        %3797 = vmatprep.subr.mxu0 0.0
        %3798 = vmatpush1.msra.mxu0 0.0
        %3799 = vmatprep.subr.mxu0 0.0
        %3800 = vmatpush1.msra.mxu0 0.0
        %3801 = vmatprep.subr.mxu0 0.0
        %3802 = vmatpush1.msra.mxu0 0.0
        %3803 = vmatprep.subr.mxu0 0.0
        %3804 = vmatpush1.msra.mxu0 0.0
        %3805 = vmatprep.subr.mxu0 0.0
        %3806 = vmatpush1.msra.mxu0 0.0
        %3807 = vmatprep.subr.mxu0 0.0
        %3808 = vmatpush1.msra.mxu0 0.0
        %3809 = vmatprep.mubr.f32.mxu0 0.0
        %3810 = vmatmul.mubr.f32.gmra.mrb[0].mxu0 %v3740
        %v3811 = vpop.f32.mrb[0].mxu0
        %v3812 = vadd.f32 0.0, %v3811
        %v3813 = vpop.f32.mrb[0].mxu0
        %3814 = vdwg.mxu0
        %3815 = vst.msk [vmem:[#allocation5 + $0xc] sm:$0xf] %vm871, %v3812
        %v3816 = vadd.f32 %v3690, %v3700
        %v3817 = vld [vmem:[#allocation2 + $0x24] sm:$0x7]
        %v3818 = vld [vmem:[#allocation3 + $0x24] sm:$0x7]
        %v3819 = vadd.f32 %v3817, %v3818
        %s3820 = scalar_lea.vmem [#allocation2], 47
        %v3821 = vld [vmem:[%s3820] ss:$8 sm:$0x7]
        %s3822 = scalar_lea.vmem [#allocation3], 47
        %v3823 = vld [vmem:[%s3822] ss:$8 sm:$0x7]
        %v3824 = vadd.f32 %v3821, %v3823
        %v3825 = vsel %vm3247, %v3819, -inf
        %3826 = vmax.xlane.f32.xlu0 %v3825
        %v3827 = vpop.xlane.xlu0 %3826
        %v3828 = vsel %vm1675, %v3827, -inf
        %v3829 = vrot.slane %v3828, 4
        %v3830 = vmax.f32 %v3828, %v3829
        %v3831 = vrot.slane %v3830, 2
        %v3832 = vmax.f32 %v3830, %v3831
        %v3833 = vrot.slane %v3832, 1
        %v3834 = vmax.f32 %v3832, %v3833
        %v3835 = vsel %vm3247, %v3824, -inf
        %3836 = vmax.xlane.f32.xlu0 %v3835
        %v3837 = vpop.xlane.xlu0 %3836
        %v3838 = vsel %vm1675, %v3837, -inf
        %v3839 = vrot.slane %v3838, 4
        %v3840 = vmax.f32 %v3838, %v3839
        %v3841 = vrot.slane %v3840, 2
        %v3842 = vmax.f32 %v3840, %v3841
        %v3843 = vrot.slane %v3842, 1
        %v3844 = vmax.f32 %v3842, %v3843
        %v3845 = vsub.f32 %v3819, %v3834
        %v3846 = vmul.f32 %v3845, 1.442695
        %v3847 = vpow.pop %v3846
        %v3848 = vsub.f32 %v3824, %v3844
        %v3849 = vmul.f32 %v3848, 1.442695
        %v3850 = vpow.pop %v3849
        %3851 = vxpose.xlu0.b32.start [1/16] %v3847, 128
        %3852 = vxpose.xlu0.b32.cont [2/16] 0.0, 128
        %3853 = vxpose.xlu0.b32.cont [3/16] 0.0, 128
        %3854 = vxpose.xlu0.b32.cont [4/16] 0.0, 128
        %3855 = vxpose.xlu0.b32.cont [5/16] 0.0, 128
        %3856 = vxpose.xlu0.b32.cont [6/16] 0.0, 128
        %3857 = vxpose.xlu0.b32.cont [7/16] 0.0, 128
        %3858 = vxpose.xlu0.b32.cont [8/16] 0.0, 128
        %3859 = vxpose.xlu0.b32.cont [9/16] 0.0, 128
        %3860 = vxpose.xlu0.b32.cont [10/16] 0.0, 128
        %3861 = vxpose.xlu0.b32.cont [11/16] 0.0, 128
        %3862 = vxpose.xlu0.b32.cont [12/16] 0.0, 128
        %3863 = vxpose.xlu0.b32.cont [13/16] 0.0, 128
        %3864 = vxpose.xlu0.b32.cont [14/16] 0.0, 128
        %3865 = vxpose.xlu0.b32.cont [15/16] 0.0, 128
        %3866 = vxpose.xlu0.b32.end [16/16] 0.0, 128
        %v3867 = vpop.trf.xlu0
        %v3868 = vpop.trf.xlu0
        %v3869 = vpop.trf.xlu0
        %v3870 = vpop.trf.xlu0
        %v3871 = vpop.trf.xlu0
        %v3872 = vpop.trf.xlu0
        %v3873 = vpop.trf.xlu0
        %v3874 = vpop.trf.xlu0
        %v3875 = vpop.trf.xlu0
        %v3876 = vpop.trf.xlu0
        %v3877 = vpop.trf.xlu0
        %v3878 = vpop.trf.xlu0
        %v3879 = vpop.trf.xlu0
        %v3880 = vpop.trf.xlu0
        %v3881 = vpop.trf.xlu0
        %v3882 = vpop.trf.xlu0
        %v3884 = vsel %vm3306, %v3867, 0
        %v3887 = vsel %vm1675, %v3850, 0
        %3889 = vmatprep.subr.mxu0 0.0
        %3890 = vmatpush1.msra.mxu0 %v3887
        %3891 = vmatprep.subr.mxu0 0.0
        %3892 = vmatpush1.msra.mxu0 0.0
        %3893 = vmatprep.subr.mxu0 0.0
        %3894 = vmatpush1.msra.mxu0 0.0
        %3895 = vmatprep.subr.mxu0 0.0
        %3896 = vmatpush1.msra.mxu0 0.0
        %3897 = vmatprep.subr.mxu0 0.0
        %3898 = vmatpush1.msra.mxu0 0.0
        %3899 = vmatprep.subr.mxu0 0.0
        %3900 = vmatpush1.msra.mxu0 0.0
        %3901 = vmatprep.subr.mxu0 0.0
        %3902 = vmatpush1.msra.mxu0 0.0
        %3903 = vmatprep.subr.mxu0 0.0
        %3904 = vmatpush1.msra.mxu0 0.0
        %3905 = vmatprep.subr.mxu0 0.0
        %3906 = vmatpush1.msra.mxu0 0.0
        %3907 = vmatprep.subr.mxu0 0.0
        %3908 = vmatpush1.msra.mxu0 0.0
        %3909 = vmatprep.subr.mxu0 0.0
        %3910 = vmatpush1.msra.mxu0 0.0
        %3911 = vmatprep.subr.mxu0 0.0
        %3912 = vmatpush1.msra.mxu0 0.0
        %3913 = vmatprep.subr.mxu0 0.0
        %3914 = vmatpush1.msra.mxu0 0.0
        %3915 = vmatprep.subr.mxu0 0.0
        %3916 = vmatpush1.msra.mxu0 0.0
        %3917 = vmatprep.subr.mxu0 0.0
        %3918 = vmatpush1.msra.mxu0 0.0
        %3919 = vmatprep.subr.mxu0 0.0
        %3920 = vmatpush1.msra.mxu0 0.0
        %3921 = vmatprep.subr.mxu0 0.0
        %3922 = vmatpush1.msra.mxu0 0.0
        %3923 = vmatprep.subr.mxu0 0.0
        %3924 = vmatpush1.msra.mxu0 0.0
        %3925 = vmatprep.subr.mxu0 0.0
        %3926 = vmatpush1.msra.mxu0 0.0
        %3927 = vmatprep.subr.mxu0 0.0
        %3928 = vmatpush1.msra.mxu0 0.0
        %3929 = vmatprep.subr.mxu0 0.0
        %3930 = vmatpush1.msra.mxu0 0.0
        %3931 = vmatprep.subr.mxu0 0.0
        %3932 = vmatpush1.msra.mxu0 0.0
        %3933 = vmatprep.subr.mxu0 0.0
        %3934 = vmatpush1.msra.mxu0 0.0
        %3935 = vmatprep.subr.mxu0 0.0
        %3936 = vmatpush1.msra.mxu0 0.0
        %3937 = vmatprep.subr.mxu0 0.0
        %3938 = vmatpush1.msra.mxu0 0.0
        %3939 = vmatprep.subr.mxu0 0.0
        %3940 = vmatpush1.msra.mxu0 0.0
        %3941 = vmatprep.subr.mxu0 0.0
        %3942 = vmatpush1.msra.mxu0 0.0
        %3943 = vmatprep.subr.mxu0 0.0
        %3944 = vmatpush1.msra.mxu0 0.0
        %3945 = vmatprep.subr.mxu0 0.0
        %3946 = vmatpush1.msra.mxu0 0.0
        %3947 = vmatprep.subr.mxu0 0.0
        %3948 = vmatpush1.msra.mxu0 0.0
        %3949 = vmatprep.subr.mxu0 0.0
        %3950 = vmatpush1.msra.mxu0 0.0
        %3951 = vmatprep.subr.mxu0 0.0
        %3952 = vmatpush1.msra.mxu0 0.0
        %3953 = vmatprep.mubr.f32.mxu0 0.0
        %3954 = vmatmul.mubr.f32.gmra.mrb[0].mxu0 %v3884
        %v3955 = vpop.f32.mrb[0].mxu0
        %v3956 = vadd.f32 0.0, %v3955
        %v3957 = vpop.f32.mrb[0].mxu0
        %3958 = vdwg.mxu0
        %3959 = vst.msk [vmem:[#allocation5 + $0x10] sm:$0xf] %vm871, %v3956
        %v3960 = vadd.f32 %v3834, %v3844
        %v3961 = vsel %vm797, %v3384, %v3528
        %v3962 = vsel %vm1673, %v3961, %v3672
        %v3963 = vsel %vm1675, %v3962, %v3816
        %v3964 = vsel %vm1677, %v3963, %v3960
        %v3965 = vld [vmem:[#allocation5] ss:$4 sm:$0x1f]
        %v3966 = vld [vmem:[%s8] sm:$0xf]
        %v3967 = vld [vmem:[%s1685] ss:$4 sm:$0x1f]
        %v3968 = vld [vmem:[%s1687] sm:$0xf]
        %v3970 = vsel %vm503, %v3967, 0
        %v3973 = vsel %vm1677, %v3968, 0
        %3975 = vmatprep.subr.mxu0 0.0
        %3976 = vmatpush1.msra.mxu0 %v3973
        %3977 = vmatprep.subr.mxu0 0.0
        %3978 = vmatpush1.msra.mxu0 0.0
        %3979 = vmatprep.subr.mxu0 0.0
        %3980 = vmatpush1.msra.mxu0 0.0
        %3981 = vmatprep.subr.mxu0 0.0
        %3982 = vmatpush1.msra.mxu0 0.0
        %3983 = vmatprep.subr.mxu0 0.0
        %3984 = vmatpush1.msra.mxu0 0.0
        %3985 = vmatprep.subr.mxu0 0.0
        %3986 = vmatpush1.msra.mxu0 0.0
        %3987 = vmatprep.subr.mxu0 0.0
        %3988 = vmatpush1.msra.mxu0 0.0
        %3989 = vmatprep.subr.mxu0 0.0
        %3990 = vmatpush1.msra.mxu0 0.0
        %3991 = vmatprep.subr.mxu0 0.0
        %3992 = vmatpush1.msra.mxu0 0.0
        %3993 = vmatprep.subr.mxu0 0.0
        %3994 = vmatpush1.msra.mxu0 0.0
        %3995 = vmatprep.subr.mxu0 0.0
        %3996 = vmatpush1.msra.mxu0 0.0
        %3997 = vmatprep.subr.mxu0 0.0
        %3998 = vmatpush1.msra.mxu0 0.0
        %3999 = vmatprep.subr.mxu0 0.0
        %4000 = vmatpush1.msra.mxu0 0.0
        %4001 = vmatprep.subr.mxu0 0.0
        %4002 = vmatpush1.msra.mxu0 0.0
        %4003 = vmatprep.subr.mxu0 0.0
        %4004 = vmatpush1.msra.mxu0 0.0
        %4005 = vmatprep.subr.mxu0 0.0
        %4006 = vmatpush1.msra.mxu0 0.0
        %4007 = vmatprep.subr.mxu0 0.0
        %4008 = vmatpush1.msra.mxu0 0.0
        %4009 = vmatprep.subr.mxu0 0.0
        %4010 = vmatpush1.msra.mxu0 0.0
        %4011 = vmatprep.subr.mxu0 0.0
        %4012 = vmatpush1.msra.mxu0 0.0
        %4013 = vmatprep.subr.mxu0 0.0
        %4014 = vmatpush1.msra.mxu0 0.0
        %4015 = vmatprep.subr.mxu0 0.0
        %4016 = vmatpush1.msra.mxu0 0.0
        %4017 = vmatprep.subr.mxu0 0.0
        %4018 = vmatpush1.msra.mxu0 0.0
        %4019 = vmatprep.subr.mxu0 0.0
        %4020 = vmatpush1.msra.mxu0 0.0
        %4021 = vmatprep.subr.mxu0 0.0
        %4022 = vmatpush1.msra.mxu0 0.0
        %4023 = vmatprep.subr.mxu0 0.0
        %4024 = vmatpush1.msra.mxu0 0.0
        %4025 = vmatprep.subr.mxu0 0.0
        %4026 = vmatpush1.msra.mxu0 0.0
        %4027 = vmatprep.subr.mxu0 0.0
        %4028 = vmatpush1.msra.mxu0 0.0
        %4029 = vmatprep.subr.mxu0 0.0
        %4030 = vmatpush1.msra.mxu0 0.0
        %4031 = vmatprep.subr.mxu0 0.0
        %4032 = vmatpush1.msra.mxu0 0.0
        %4033 = vmatprep.subr.mxu0 0.0
        %4034 = vmatpush1.msra.mxu0 0.0
        %4035 = vmatprep.subr.mxu0 0.0
        %4036 = vmatpush1.msra.mxu0 0.0
        %4037 = vmatprep.subr.mxu0 0.0
        %4038 = vmatpush1.msra.mxu0 0.0
        %4039 = vmatprep.mubr.f32.mxu0 0.0
        %4040 = vmatmul.mubr.f32.gmra.mrb[0].mxu0 %v3970
        %v4041 = vpop.f32.mrb[0].mxu0
        %v4042 = vadd.f32 0.0, %v4041
        %v4043 = vpop.f32.mrb[0].mxu0
        %4044 = vdwg.mxu0
        %v4046 = vsel %vm503, %v3965, 0
        %v4049 = vsel %vm1677, %v3966, 0
        %4051 = vmatprep.subr.mxu0 0.0
        %4052 = vmatpush1.msra.mxu0 %v4049
        %4053 = vmatprep.subr.mxu0 0.0
        %4054 = vmatpush1.msra.mxu0 0.0
        %4055 = vmatprep.subr.mxu0 0.0
        %4056 = vmatpush1.msra.mxu0 0.0
        %4057 = vmatprep.subr.mxu0 0.0
        %4058 = vmatpush1.msra.mxu0 0.0
        %4059 = vmatprep.subr.mxu0 0.0
        %4060 = vmatpush1.msra.mxu0 0.0
        %4061 = vmatprep.subr.mxu0 0.0
        %4062 = vmatpush1.msra.mxu0 0.0
        %4063 = vmatprep.subr.mxu0 0.0
        %4064 = vmatpush1.msra.mxu0 0.0
        %4065 = vmatprep.subr.mxu0 0.0
        %4066 = vmatpush1.msra.mxu0 0.0
        %4067 = vmatprep.subr.mxu0 0.0
        %4068 = vmatpush1.msra.mxu0 0.0
        %4069 = vmatprep.subr.mxu0 0.0
        %4070 = vmatpush1.msra.mxu0 0.0
        %4071 = vmatprep.subr.mxu0 0.0
        %4072 = vmatpush1.msra.mxu0 0.0
        %4073 = vmatprep.subr.mxu0 0.0
        %4074 = vmatpush1.msra.mxu0 0.0
        %4075 = vmatprep.subr.mxu0 0.0
        %4076 = vmatpush1.msra.mxu0 0.0
        %4077 = vmatprep.subr.mxu0 0.0
        %4078 = vmatpush1.msra.mxu0 0.0
        %4079 = vmatprep.subr.mxu0 0.0
        %4080 = vmatpush1.msra.mxu0 0.0
        %4081 = vmatprep.subr.mxu0 0.0
        %4082 = vmatpush1.msra.mxu0 0.0
        %4083 = vmatprep.subr.mxu0 0.0
        %4084 = vmatpush1.msra.mxu0 0.0
        %4085 = vmatprep.subr.mxu0 0.0
        %4086 = vmatpush1.msra.mxu0 0.0
        %4087 = vmatprep.subr.mxu0 0.0
        %4088 = vmatpush1.msra.mxu0 0.0
        %4089 = vmatprep.subr.mxu0 0.0
        %4090 = vmatpush1.msra.mxu0 0.0
        %4091 = vmatprep.subr.mxu0 0.0
        %4092 = vmatpush1.msra.mxu0 0.0
        %4093 = vmatprep.subr.mxu0 0.0
        %4094 = vmatpush1.msra.mxu0 0.0
        %4095 = vmatprep.subr.mxu0 0.0
        %4096 = vmatpush1.msra.mxu0 0.0
        %4097 = vmatprep.subr.mxu0 0.0
        %4098 = vmatpush1.msra.mxu0 0.0
        %4099 = vmatprep.subr.mxu0 0.0
        %4100 = vmatpush1.msra.mxu0 0.0
        %4101 = vmatprep.subr.mxu0 0.0
        %4102 = vmatpush1.msra.mxu0 0.0
        %4103 = vmatprep.subr.mxu0 0.0
        %4104 = vmatpush1.msra.mxu0 0.0
        %4105 = vmatprep.subr.mxu0 0.0
        %4106 = vmatpush1.msra.mxu0 0.0
        %4107 = vmatprep.subr.mxu0 0.0
        %4108 = vmatpush1.msra.mxu0 0.0
        %4109 = vmatprep.subr.mxu0 0.0
        %4110 = vmatpush1.msra.mxu0 0.0
        %4111 = vmatprep.subr.mxu0 0.0
        %4112 = vmatpush1.msra.mxu0 0.0
        %4113 = vmatprep.subr.mxu0 0.0
        %4114 = vmatpush1.msra.mxu0 0.0
        %4115 = vmatprep.mubr.f32.mxu0 0.0
        %4116 = vmatmul.mubr.f32.gmra.mrb[0].mxu0 %v4046
        %v4117 = vpop.f32.mrb[0].mxu0
        %v4118 = vadd.f32 %v4042, %v4117
        %v4119 = vpop.f32.mrb[0].mxu0
        %4120 = vdwg.mxu0
        %v4121 = vld [vmem:[%s1841] ss:$4 sm:$0x1f]
        %v4122 = vld [vmem:[%s1843] sm:$0xf]
        %v4124 = vsel %vm503, %v4121, 0
        %v4127 = vsel %vm1677, %v4122, 0
        %4129 = vmatprep.subr.mxu0 0.0
        %4130 = vmatpush1.msra.mxu0 %v4127
        %4131 = vmatprep.subr.mxu0 0.0
        %4132 = vmatpush1.msra.mxu0 0.0
        %4133 = vmatprep.subr.mxu0 0.0
        %4134 = vmatpush1.msra.mxu0 0.0
        %4135 = vmatprep.subr.mxu0 0.0
        %4136 = vmatpush1.msra.mxu0 0.0
        %4137 = vmatprep.subr.mxu0 0.0
        %4138 = vmatpush1.msra.mxu0 0.0
        %4139 = vmatprep.subr.mxu0 0.0
        %4140 = vmatpush1.msra.mxu0 0.0
        %4141 = vmatprep.subr.mxu0 0.0
        %4142 = vmatpush1.msra.mxu0 0.0
        %4143 = vmatprep.subr.mxu0 0.0
        %4144 = vmatpush1.msra.mxu0 0.0
        %4145 = vmatprep.subr.mxu0 0.0
        %4146 = vmatpush1.msra.mxu0 0.0
        %4147 = vmatprep.subr.mxu0 0.0
        %4148 = vmatpush1.msra.mxu0 0.0
        %4149 = vmatprep.subr.mxu0 0.0
        %4150 = vmatpush1.msra.mxu0 0.0
        %4151 = vmatprep.subr.mxu0 0.0
        %4152 = vmatpush1.msra.mxu0 0.0
        %4153 = vmatprep.subr.mxu0 0.0
        %4154 = vmatpush1.msra.mxu0 0.0
        %4155 = vmatprep.subr.mxu0 0.0
        %4156 = vmatpush1.msra.mxu0 0.0
        %4157 = vmatprep.subr.mxu0 0.0
        %4158 = vmatpush1.msra.mxu0 0.0
        %4159 = vmatprep.subr.mxu0 0.0
        %4160 = vmatpush1.msra.mxu0 0.0
        %4161 = vmatprep.subr.mxu0 0.0
        %4162 = vmatpush1.msra.mxu0 0.0
        %4163 = vmatprep.subr.mxu0 0.0
        %4164 = vmatpush1.msra.mxu0 0.0
        %4165 = vmatprep.subr.mxu0 0.0
        %4166 = vmatpush1.msra.mxu0 0.0
        %4167 = vmatprep.subr.mxu0 0.0
        %4168 = vmatpush1.msra.mxu0 0.0
        %4169 = vmatprep.subr.mxu0 0.0
        %4170 = vmatpush1.msra.mxu0 0.0
        %4171 = vmatprep.subr.mxu0 0.0
        %4172 = vmatpush1.msra.mxu0 0.0
        %4173 = vmatprep.subr.mxu0 0.0
        %4174 = vmatpush1.msra.mxu0 0.0
        %4175 = vmatprep.subr.mxu0 0.0
        %4176 = vmatpush1.msra.mxu0 0.0
        %4177 = vmatprep.subr.mxu0 0.0
        %4178 = vmatpush1.msra.mxu0 0.0
        %4179 = vmatprep.subr.mxu0 0.0
        %4180 = vmatpush1.msra.mxu0 0.0
        %4181 = vmatprep.subr.mxu0 0.0
        %4182 = vmatpush1.msra.mxu0 0.0
        %4183 = vmatprep.subr.mxu0 0.0
        %4184 = vmatpush1.msra.mxu0 0.0
        %4185 = vmatprep.subr.mxu0 0.0
        %4186 = vmatpush1.msra.mxu0 0.0
        %4187 = vmatprep.subr.mxu0 0.0
        %4188 = vmatpush1.msra.mxu0 0.0
        %4189 = vmatprep.subr.mxu0 0.0
        %4190 = vmatpush1.msra.mxu0 0.0
        %4191 = vmatprep.subr.mxu0 0.0
        %4192 = vmatpush1.msra.mxu0 0.0
        %4193 = vmatprep.mubr.f32.mxu0 0.0
        %4194 = vmatmul.mubr.f32.gmra.mrb[0].mxu0 %v4124
        %v4195 = vpop.f32.mrb[0].mxu0
        %v4196 = vadd.f32 0.0, %v4195
        %v4197 = vpop.f32.mrb[0].mxu0
        %4198 = vdwg.mxu0
        %v4199 = vadd.f32 %v4118, %v4196
        %v4200 = vld [vmem:[%s1922] ss:$4 sm:$0x1f]
        %v4201 = vld [vmem:[%s1924] sm:$0xf]
        %v4203 = vsel %vm503, %v4200, 0
        %v4206 = vsel %vm1677, %v4201, 0
        %4208 = vmatprep.subr.mxu0 0.0
        %4209 = vmatpush1.msra.mxu0 %v4206
        %4210 = vmatprep.subr.mxu0 0.0
        %4211 = vmatpush1.msra.mxu0 0.0
        %4212 = vmatprep.subr.mxu0 0.0
        %4213 = vmatpush1.msra.mxu0 0.0
        %4214 = vmatprep.subr.mxu0 0.0
        %4215 = vmatpush1.msra.mxu0 0.0
        %4216 = vmatprep.subr.mxu0 0.0
        %4217 = vmatpush1.msra.mxu0 0.0
        %4218 = vmatprep.subr.mxu0 0.0
        %4219 = vmatpush1.msra.mxu0 0.0
        %4220 = vmatprep.subr.mxu0 0.0
        %4221 = vmatpush1.msra.mxu0 0.0
        %4222 = vmatprep.subr.mxu0 0.0
        %4223 = vmatpush1.msra.mxu0 0.0
        %4224 = vmatprep.subr.mxu0 0.0
        %4225 = vmatpush1.msra.mxu0 0.0
        %4226 = vmatprep.subr.mxu0 0.0
        %4227 = vmatpush1.msra.mxu0 0.0
        %4228 = vmatprep.subr.mxu0 0.0
        %4229 = vmatpush1.msra.mxu0 0.0
        %4230 = vmatprep.subr.mxu0 0.0
        %4231 = vmatpush1.msra.mxu0 0.0
        %4232 = vmatprep.subr.mxu0 0.0
        %4233 = vmatpush1.msra.mxu0 0.0
        %4234 = vmatprep.subr.mxu0 0.0
        %4235 = vmatpush1.msra.mxu0 0.0
        %4236 = vmatprep.subr.mxu0 0.0
        %4237 = vmatpush1.msra.mxu0 0.0
        %4238 = vmatprep.subr.mxu0 0.0
        %4239 = vmatpush1.msra.mxu0 0.0
        %4240 = vmatprep.subr.mxu0 0.0
        %4241 = vmatpush1.msra.mxu0 0.0
        %4242 = vmatprep.subr.mxu0 0.0
        %4243 = vmatpush1.msra.mxu0 0.0
        %4244 = vmatprep.subr.mxu0 0.0
        %4245 = vmatpush1.msra.mxu0 0.0
        %4246 = vmatprep.subr.mxu0 0.0
        %4247 = vmatpush1.msra.mxu0 0.0
        %4248 = vmatprep.subr.mxu0 0.0
        %4249 = vmatpush1.msra.mxu0 0.0
        %4250 = vmatprep.subr.mxu0 0.0
        %4251 = vmatpush1.msra.mxu0 0.0
        %4252 = vmatprep.subr.mxu0 0.0
        %4253 = vmatpush1.msra.mxu0 0.0
        %4254 = vmatprep.subr.mxu0 0.0
        %4255 = vmatpush1.msra.mxu0 0.0
        %4256 = vmatprep.subr.mxu0 0.0
        %4257 = vmatpush1.msra.mxu0 0.0
        %4258 = vmatprep.subr.mxu0 0.0
        %4259 = vmatpush1.msra.mxu0 0.0
        %4260 = vmatprep.subr.mxu0 0.0
        %4261 = vmatpush1.msra.mxu0 0.0
        %4262 = vmatprep.subr.mxu0 0.0
        %4263 = vmatpush1.msra.mxu0 0.0
        %4264 = vmatprep.subr.mxu0 0.0
        %4265 = vmatpush1.msra.mxu0 0.0
        %4266 = vmatprep.subr.mxu0 0.0
        %4267 = vmatpush1.msra.mxu0 0.0
        %4268 = vmatprep.subr.mxu0 0.0
        %4269 = vmatpush1.msra.mxu0 0.0
        %4270 = vmatprep.subr.mxu0 0.0
        %4271 = vmatpush1.msra.mxu0 0.0
        %4272 = vmatprep.mubr.f32.mxu0 0.0
        %4273 = vmatmul.mubr.f32.gmra.mrb[0].mxu0 %v4203
        %v4274 = vpop.f32.mrb[0].mxu0
        %v4275 = vadd.f32 0.0, %v4274
        %v4276 = vpop.f32.mrb[0].mxu0
        %4277 = vdwg.mxu0
        %v4278 = vadd.f32 %v4199, %v4275
        %s4279 = scalar_lea.vmem [#allocation3], 3
        %v4280 = vld [vmem:[%s4279] ss:$9 sm:$0x1f]
        %s4281 = scalar_lea.vmem [#allocation4], 3
        %v4282 = vld [vmem:[%s4281] ss:$9 sm:$0x1f]
        %v4283 = vlog2.pop %v4278
        %v4284 = vmul.f32 %v4283, 0.6931472
        %4286 = vset.pattern.permute.xlu0 0
        %4287 = vperm.xlu0 %4286, %v3964
        %v4288 = vpop.permute.xlu0 %4287
        %v4290 = vadd.f32 %v4288, %v4284
        %v4291 = vadd.f32 %v4290, %v4280
        %4293 = vset.pattern.permute.xlu0 0
        %4294 = vperm.xlu0 %4293, %v4282
        %v4295 = vpop.permute.xlu0 %4294
        %v4297 = vadd.f32 %v4291, %v4295
        %4298 = vst.msk [vmem:[#allocation2 + $0x3] sm:$0x1] %vm726, %v4297
        %4299 = vst.msk [vmem:[#allocation2 + $0xb] sm:$0x2] %vm728, %v4297
        %4300 = vst.msk [vmem:[#allocation2 + $0x13] sm:$0x4] %vm730, %v4297
        %4301 = vst.msk [vmem:[#allocation2 + $0x1b] sm:$0x8] %vm732, %v4297
        %4302 = vst.msk [vmem:[#allocation2 + $0x23] sm:$0x10] %vm734, %v4297
        %v4303 = vld [vmem:[#allocation2] sm:$0xf]
        %v4304 = vld [vmem:[#allocation3] sm:$0xf]
        %v4305 = vadd.f32 %v4303, %v4304
        %s4306 = scalar_lea.vmem [#allocation2], 12
        %v4307 = vld [vmem:[%s4306] ss:$8 sm:$0xf]
        %s4308 = scalar_lea.vmem [#allocation3], 12
        %v4309 = vld [vmem:[%s4308] ss:$8 sm:$0xf]
        %v4310 = vadd.f32 %v4307, %v4309
        %v4311 = vsel %vm871, %v4305, -inf
        %4312 = vmax.xlane.f32.xlu0 %v4311
        %v4313 = vpop.xlane.xlu0 %4312
        %v4314 = vsel %vm1677, %v4313, -inf
        %v4315 = vrot.slane %v4314, 4
        %v4316 = vmax.f32 %v4314, %v4315
        %v4317 = vrot.slane %v4316, 2
        %v4318 = vmax.f32 %v4316, %v4317
        %v4319 = vrot.slane %v4318, 1
        %v4320 = vmax.f32 %v4318, %v4319
        %v4321 = vsel %vm871, %v4310, -inf
        %4322 = vmax.xlane.f32.xlu0 %v4321
        %v4323 = vpop.xlane.xlu0 %4322
        %v4324 = vsel %vm1677, %v4323, -inf
        %v4325 = vrot.slane %v4324, 4
        %v4326 = vmax.f32 %v4324, %v4325
        %v4327 = vrot.slane %v4326, 2
        %v4328 = vmax.f32 %v4326, %v4327
        %v4329 = vrot.slane %v4328, 1
        %v4330 = vmax.f32 %v4328, %v4329
        %v4331 = vsub.f32 %v4305, %v4320
        %v4332 = vmul.f32 %v4331, 1.442695
        %v4333 = vpow.pop %v4332
        %v4334 = vsub.f32 %v4310, %v4330
        %v4335 = vmul.f32 %v4334, 1.442695
        %v4336 = vpow.pop %v4335
        %4337 = vxpose.xlu0.b32.start [1/16] %v4333, 128
        %4338 = vxpose.xlu0.b32.cont [2/16] 0.0, 128
        %4339 = vxpose.xlu0.b32.cont [3/16] 0.0, 128
        %4340 = vxpose.xlu0.b32.cont [4/16] 0.0, 128
        %4341 = vxpose.xlu0.b32.cont [5/16] 0.0, 128
        %4342 = vxpose.xlu0.b32.cont [6/16] 0.0, 128
        %4343 = vxpose.xlu0.b32.cont [7/16] 0.0, 128
        %4344 = vxpose.xlu0.b32.cont [8/16] 0.0, 128
        %4345 = vxpose.xlu0.b32.cont [9/16] 0.0, 128
        %4346 = vxpose.xlu0.b32.cont [10/16] 0.0, 128
        %4347 = vxpose.xlu0.b32.cont [11/16] 0.0, 128
        %4348 = vxpose.xlu0.b32.cont [12/16] 0.0, 128
        %4349 = vxpose.xlu0.b32.cont [13/16] 0.0, 128
        %4350 = vxpose.xlu0.b32.cont [14/16] 0.0, 128
        %4351 = vxpose.xlu0.b32.cont [15/16] 0.0, 128
        %4352 = vxpose.xlu0.b32.end [16/16] 0.0, 128
        %v4353 = vpop.trf.xlu0
        %v4354 = vpop.trf.xlu0
        %v4355 = vpop.trf.xlu0
        %v4356 = vpop.trf.xlu0
        %v4357 = vpop.trf.xlu0
        %v4358 = vpop.trf.xlu0
        %v4359 = vpop.trf.xlu0
        %v4360 = vpop.trf.xlu0
        %v4361 = vpop.trf.xlu0
        %v4362 = vpop.trf.xlu0
        %v4363 = vpop.trf.xlu0
        %v4364 = vpop.trf.xlu0
        %v4365 = vpop.trf.xlu0
        %v4366 = vpop.trf.xlu0
        %v4367 = vpop.trf.xlu0
        %v4368 = vpop.trf.xlu0
        %v4370 = vsel %vm503, %v4353, 0
        %v4373 = vsel %vm1677, %v4336, 0
        %4375 = vmatprep.subr.mxu0 0.0
        %4376 = vmatpush1.msra.mxu0 %v4373
        %4377 = vmatprep.subr.mxu0 0.0
        %4378 = vmatpush1.msra.mxu0 0.0
        %4379 = vmatprep.subr.mxu0 0.0
        %4380 = vmatpush1.msra.mxu0 0.0
        %4381 = vmatprep.subr.mxu0 0.0
        %4382 = vmatpush1.msra.mxu0 0.0
        %4383 = vmatprep.subr.mxu0 0.0
        %4384 = vmatpush1.msra.mxu0 0.0
        %4385 = vmatprep.subr.mxu0 0.0
        %4386 = vmatpush1.msra.mxu0 0.0
        %4387 = vmatprep.subr.mxu0 0.0
        %4388 = vmatpush1.msra.mxu0 0.0
        %4389 = vmatprep.subr.mxu0 0.0
        %4390 = vmatpush1.msra.mxu0 0.0
        %4391 = vmatprep.subr.mxu0 0.0
        %4392 = vmatpush1.msra.mxu0 0.0
        %4393 = vmatprep.subr.mxu0 0.0
        %4394 = vmatpush1.msra.mxu0 0.0
        %4395 = vmatprep.subr.mxu0 0.0
        %4396 = vmatpush1.msra.mxu0 0.0
        %4397 = vmatprep.subr.mxu0 0.0
        %4398 = vmatpush1.msra.mxu0 0.0
        %4399 = vmatprep.subr.mxu0 0.0
        %4400 = vmatpush1.msra.mxu0 0.0
        %4401 = vmatprep.subr.mxu0 0.0
        %4402 = vmatpush1.msra.mxu0 0.0
        %4403 = vmatprep.subr.mxu0 0.0
        %4404 = vmatpush1.msra.mxu0 0.0
        %4405 = vmatprep.subr.mxu0 0.0
        %4406 = vmatpush1.msra.mxu0 0.0
        %4407 = vmatprep.subr.mxu0 0.0
        %4408 = vmatpush1.msra.mxu0 0.0
        %4409 = vmatprep.subr.mxu0 0.0
        %4410 = vmatpush1.msra.mxu0 0.0
        %4411 = vmatprep.subr.mxu0 0.0
        %4412 = vmatpush1.msra.mxu0 0.0
        %4413 = vmatprep.subr.mxu0 0.0
        %4414 = vmatpush1.msra.mxu0 0.0
        %4415 = vmatprep.subr.mxu0 0.0
        %4416 = vmatpush1.msra.mxu0 0.0
        %4417 = vmatprep.subr.mxu0 0.0
        %4418 = vmatpush1.msra.mxu0 0.0
        %4419 = vmatprep.subr.mxu0 0.0
        %4420 = vmatpush1.msra.mxu0 0.0
        %4421 = vmatprep.subr.mxu0 0.0
        %4422 = vmatpush1.msra.mxu0 0.0
        %4423 = vmatprep.subr.mxu0 0.0
        %4424 = vmatpush1.msra.mxu0 0.0
        %4425 = vmatprep.subr.mxu0 0.0
        %4426 = vmatpush1.msra.mxu0 0.0
        %4427 = vmatprep.subr.mxu0 0.0
        %4428 = vmatpush1.msra.mxu0 0.0
        %4429 = vmatprep.subr.mxu0 0.0
        %4430 = vmatpush1.msra.mxu0 0.0
        %4431 = vmatprep.subr.mxu0 0.0
        %4432 = vmatpush1.msra.mxu0 0.0
        %4433 = vmatprep.subr.mxu0 0.0
        %4434 = vmatpush1.msra.mxu0 0.0
        %4435 = vmatprep.subr.mxu0 0.0
        %4436 = vmatpush1.msra.mxu0 0.0
        %4437 = vmatprep.subr.mxu0 0.0
        %4438 = vmatpush1.msra.mxu0 0.0
        %4439 = vmatprep.mubr.f32.mxu0 0.0
        %4440 = vmatmul.mubr.f32.gmra.mrb[0].mxu0 %v4370
        %v4441 = vpop.f32.mrb[0].mxu0
        %v4442 = vadd.f32 0.0, %v4441
        %v4443 = vpop.f32.mrb[0].mxu0
        %4444 = vdwg.mxu0
        %4445 = vst.msk [vmem:[#allocation5] sm:$0xf] %vm871, %v4442
        %v4446 = vadd.f32 %v4320, %v4330
        %v4447 = vld [vmem:[#allocation2 + $0x9] sm:$0xf]
        %v4448 = vld [vmem:[#allocation3 + $0x9] sm:$0xf]
        %v4449 = vadd.f32 %v4447, %v4448
        %s4450 = scalar_lea.vmem [#allocation2], 21
        %v4451 = vld [vmem:[%s4450] ss:$8 sm:$0xf]
        %s4452 = scalar_lea.vmem [#allocation3], 21
        %v4453 = vld [vmem:[%s4452] ss:$8 sm:$0xf]
        %v4454 = vadd.f32 %v4451, %v4453
        %v4455 = vsel %vm871, %v4449, -inf
        %4456 = vmax.xlane.f32.xlu0 %v4455
        %v4457 = vpop.xlane.xlu0 %4456
        %v4458 = vsel %vm1677, %v4457, -inf
        %v4459 = vrot.slane %v4458, 4
        %v4460 = vmax.f32 %v4458, %v4459
        %v4461 = vrot.slane %v4460, 2
        %v4462 = vmax.f32 %v4460, %v4461
        %v4463 = vrot.slane %v4462, 1
        %v4464 = vmax.f32 %v4462, %v4463
        %v4465 = vsel %vm871, %v4454, -inf
        %4466 = vmax.xlane.f32.xlu0 %v4465
        %v4467 = vpop.xlane.xlu0 %4466
        %v4468 = vsel %vm1677, %v4467, -inf
        %v4469 = vrot.slane %v4468, 4
        %v4470 = vmax.f32 %v4468, %v4469
        %v4471 = vrot.slane %v4470, 2
        %v4472 = vmax.f32 %v4470, %v4471
        %v4473 = vrot.slane %v4472, 1
        %v4474 = vmax.f32 %v4472, %v4473
        %v4475 = vsub.f32 %v4449, %v4464
        %v4476 = vmul.f32 %v4475, 1.442695
        %v4477 = vpow.pop %v4476
        %v4478 = vsub.f32 %v4454, %v4474
        %v4479 = vmul.f32 %v4478, 1.442695
        %v4480 = vpow.pop %v4479
        %4481 = vxpose.xlu0.b32.start [1/16] %v4477, 128
        %4482 = vxpose.xlu0.b32.cont [2/16] 0.0, 128
        %4483 = vxpose.xlu0.b32.cont [3/16] 0.0, 128
        %4484 = vxpose.xlu0.b32.cont [4/16] 0.0, 128
        %4485 = vxpose.xlu0.b32.cont [5/16] 0.0, 128
        %4486 = vxpose.xlu0.b32.cont [6/16] 0.0, 128
        %4487 = vxpose.xlu0.b32.cont [7/16] 0.0, 128
        %4488 = vxpose.xlu0.b32.cont [8/16] 0.0, 128
        %4489 = vxpose.xlu0.b32.cont [9/16] 0.0, 128
        %4490 = vxpose.xlu0.b32.cont [10/16] 0.0, 128
        %4491 = vxpose.xlu0.b32.cont [11/16] 0.0, 128
        %4492 = vxpose.xlu0.b32.cont [12/16] 0.0, 128
        %4493 = vxpose.xlu0.b32.cont [13/16] 0.0, 128
        %4494 = vxpose.xlu0.b32.cont [14/16] 0.0, 128
        %4495 = vxpose.xlu0.b32.cont [15/16] 0.0, 128
        %4496 = vxpose.xlu0.b32.end [16/16] 0.0, 128
        %v4497 = vpop.trf.xlu0
        %v4498 = vpop.trf.xlu0
        %v4499 = vpop.trf.xlu0
        %v4500 = vpop.trf.xlu0
        %v4501 = vpop.trf.xlu0
        %v4502 = vpop.trf.xlu0
        %v4503 = vpop.trf.xlu0
        %v4504 = vpop.trf.xlu0
        %v4505 = vpop.trf.xlu0
        %v4506 = vpop.trf.xlu0
        %v4507 = vpop.trf.xlu0
        %v4508 = vpop.trf.xlu0
        %v4509 = vpop.trf.xlu0
        %v4510 = vpop.trf.xlu0
        %v4511 = vpop.trf.xlu0
        %v4512 = vpop.trf.xlu0
        %v4514 = vsel %vm503, %v4497, 0
        %v4517 = vsel %vm1677, %v4480, 0
        %4519 = vmatprep.subr.mxu0 0.0
        %4520 = vmatpush1.msra.mxu0 %v4517
        %4521 = vmatprep.subr.mxu0 0.0
        %4522 = vmatpush1.msra.mxu0 0.0
        %4523 = vmatprep.subr.mxu0 0.0
        %4524 = vmatpush1.msra.mxu0 0.0
        %4525 = vmatprep.subr.mxu0 0.0
        %4526 = vmatpush1.msra.mxu0 0.0
        %4527 = vmatprep.subr.mxu0 0.0
        %4528 = vmatpush1.msra.mxu0 0.0
        %4529 = vmatprep.subr.mxu0 0.0
        %4530 = vmatpush1.msra.mxu0 0.0
        %4531 = vmatprep.subr.mxu0 0.0
        %4532 = vmatpush1.msra.mxu0 0.0
        %4533 = vmatprep.subr.mxu0 0.0
        %4534 = vmatpush1.msra.mxu0 0.0
        %4535 = vmatprep.subr.mxu0 0.0
        %4536 = vmatpush1.msra.mxu0 0.0
        %4537 = vmatprep.subr.mxu0 0.0
        %4538 = vmatpush1.msra.mxu0 0.0
        %4539 = vmatprep.subr.mxu0 0.0
        %4540 = vmatpush1.msra.mxu0 0.0
        %4541 = vmatprep.subr.mxu0 0.0
        %4542 = vmatpush1.msra.mxu0 0.0
        %4543 = vmatprep.subr.mxu0 0.0
        %4544 = vmatpush1.msra.mxu0 0.0
        %4545 = vmatprep.subr.mxu0 0.0
        %4546 = vmatpush1.msra.mxu0 0.0
        %4547 = vmatprep.subr.mxu0 0.0
        %4548 = vmatpush1.msra.mxu0 0.0
        %4549 = vmatprep.subr.mxu0 0.0
        %4550 = vmatpush1.msra.mxu0 0.0
        %4551 = vmatprep.subr.mxu0 0.0
        %4552 = vmatpush1.msra.mxu0 0.0
        %4553 = vmatprep.subr.mxu0 0.0
        %4554 = vmatpush1.msra.mxu0 0.0
        %4555 = vmatprep.subr.mxu0 0.0
        %4556 = vmatpush1.msra.mxu0 0.0
        %4557 = vmatprep.subr.mxu0 0.0
        %4558 = vmatpush1.msra.mxu0 0.0
        %4559 = vmatprep.subr.mxu0 0.0
        %4560 = vmatpush1.msra.mxu0 0.0
        %4561 = vmatprep.subr.mxu0 0.0
        %4562 = vmatpush1.msra.mxu0 0.0
        %4563 = vmatprep.subr.mxu0 0.0
        %4564 = vmatpush1.msra.mxu0 0.0
        %4565 = vmatprep.subr.mxu0 0.0
        %4566 = vmatpush1.msra.mxu0 0.0
        %4567 = vmatprep.subr.mxu0 0.0
        %4568 = vmatpush1.msra.mxu0 0.0
        %4569 = vmatprep.subr.mxu0 0.0
        %4570 = vmatpush1.msra.mxu0 0.0
        %4571 = vmatprep.subr.mxu0 0.0
        %4572 = vmatpush1.msra.mxu0 0.0
        %4573 = vmatprep.subr.mxu0 0.0
        %4574 = vmatpush1.msra.mxu0 0.0
        %4575 = vmatprep.subr.mxu0 0.0
        %4576 = vmatpush1.msra.mxu0 0.0
        %4577 = vmatprep.subr.mxu0 0.0
        %4578 = vmatpush1.msra.mxu0 0.0
        %4579 = vmatprep.subr.mxu0 0.0
        %4580 = vmatpush1.msra.mxu0 0.0
        %4581 = vmatprep.subr.mxu0 0.0
        %4582 = vmatpush1.msra.mxu0 0.0
        %4583 = vmatprep.mubr.f32.mxu0 0.0
        %4584 = vmatmul.mubr.f32.gmra.mrb[0].mxu0 %v4514
        %v4585 = vpop.f32.mrb[0].mxu0
        %v4586 = vadd.f32 0.0, %v4585
        %v4587 = vpop.f32.mrb[0].mxu0
        %4588 = vdwg.mxu0
        %4589 = vst.msk [vmem:[#allocation5 + $0x4] sm:$0xf] %vm871, %v4586
        %v4590 = vadd.f32 %v4464, %v4474
        %v4591 = vld [vmem:[#allocation2 + $0x12] sm:$0xf]
        %v4592 = vld [vmem:[#allocation3 + $0x12] sm:$0xf]
        %v4593 = vadd.f32 %v4591, %v4592
        %s4594 = scalar_lea.vmem [#allocation2], 30
        %v4595 = vld [vmem:[%s4594] ss:$8 sm:$0xf]
        %s4596 = scalar_lea.vmem [#allocation3], 30
        %v4597 = vld [vmem:[%s4596] ss:$8 sm:$0xf]
        %v4598 = vadd.f32 %v4595, %v4597
        %v4599 = vsel %vm871, %v4593, -inf
        %4600 = vmax.xlane.f32.xlu0 %v4599
        %v4601 = vpop.xlane.xlu0 %4600
        %v4602 = vsel %vm1677, %v4601, -inf
        %v4603 = vrot.slane %v4602, 4
        %v4604 = vmax.f32 %v4602, %v4603
        %v4605 = vrot.slane %v4604, 2
        %v4606 = vmax.f32 %v4604, %v4605
        %v4607 = vrot.slane %v4606, 1
        %v4608 = vmax.f32 %v4606, %v4607
        %v4609 = vsel %vm871, %v4598, -inf
        %4610 = vmax.xlane.f32.xlu0 %v4609
        %v4611 = vpop.xlane.xlu0 %4610
        %v4612 = vsel %vm1677, %v4611, -inf
        %v4613 = vrot.slane %v4612, 4
        %v4614 = vmax.f32 %v4612, %v4613
        %v4615 = vrot.slane %v4614, 2
        %v4616 = vmax.f32 %v4614, %v4615
        %v4617 = vrot.slane %v4616, 1
        %v4618 = vmax.f32 %v4616, %v4617
        %v4619 = vsub.f32 %v4593, %v4608
        %v4620 = vmul.f32 %v4619, 1.442695
        %v4621 = vpow.pop %v4620
        %v4622 = vsub.f32 %v4598, %v4618
        %v4623 = vmul.f32 %v4622, 1.442695
        %v4624 = vpow.pop %v4623
        %4625 = vxpose.xlu0.b32.start [1/16] %v4621, 128
        %4626 = vxpose.xlu0.b32.cont [2/16] 0.0, 128
        %4627 = vxpose.xlu0.b32.cont [3/16] 0.0, 128
        %4628 = vxpose.xlu0.b32.cont [4/16] 0.0, 128
        %4629 = vxpose.xlu0.b32.cont [5/16] 0.0, 128
        %4630 = vxpose.xlu0.b32.cont [6/16] 0.0, 128
        %4631 = vxpose.xlu0.b32.cont [7/16] 0.0, 128
        %4632 = vxpose.xlu0.b32.cont [8/16] 0.0, 128
        %4633 = vxpose.xlu0.b32.cont [9/16] 0.0, 128
        %4634 = vxpose.xlu0.b32.cont [10/16] 0.0, 128
        %4635 = vxpose.xlu0.b32.cont [11/16] 0.0, 128
        %4636 = vxpose.xlu0.b32.cont [12/16] 0.0, 128
        %4637 = vxpose.xlu0.b32.cont [13/16] 0.0, 128
        %4638 = vxpose.xlu0.b32.cont [14/16] 0.0, 128
        %4639 = vxpose.xlu0.b32.cont [15/16] 0.0, 128
        %4640 = vxpose.xlu0.b32.end [16/16] 0.0, 128
        %v4641 = vpop.trf.xlu0
        %v4642 = vpop.trf.xlu0
        %v4643 = vpop.trf.xlu0
        %v4644 = vpop.trf.xlu0
        %v4645 = vpop.trf.xlu0
        %v4646 = vpop.trf.xlu0
        %v4647 = vpop.trf.xlu0
        %v4648 = vpop.trf.xlu0
        %v4649 = vpop.trf.xlu0
        %v4650 = vpop.trf.xlu0
        %v4651 = vpop.trf.xlu0
        %v4652 = vpop.trf.xlu0
        %v4653 = vpop.trf.xlu0
        %v4654 = vpop.trf.xlu0
        %v4655 = vpop.trf.xlu0
        %v4656 = vpop.trf.xlu0
        %v4658 = vsel %vm503, %v4641, 0
        %v4661 = vsel %vm1677, %v4624, 0
        %4663 = vmatprep.subr.mxu0 0.0
        %4664 = vmatpush1.msra.mxu0 %v4661
        %4665 = vmatprep.subr.mxu0 0.0
        %4666 = vmatpush1.msra.mxu0 0.0
        %4667 = vmatprep.subr.mxu0 0.0
        %4668 = vmatpush1.msra.mxu0 0.0
        %4669 = vmatprep.subr.mxu0 0.0
        %4670 = vmatpush1.msra.mxu0 0.0
        %4671 = vmatprep.subr.mxu0 0.0
        %4672 = vmatpush1.msra.mxu0 0.0
        %4673 = vmatprep.subr.mxu0 0.0
        %4674 = vmatpush1.msra.mxu0 0.0
        %4675 = vmatprep.subr.mxu0 0.0
        %4676 = vmatpush1.msra.mxu0 0.0
        %4677 = vmatprep.subr.mxu0 0.0
        %4678 = vmatpush1.msra.mxu0 0.0
        %4679 = vmatprep.subr.mxu0 0.0
        %4680 = vmatpush1.msra.mxu0 0.0
        %4681 = vmatprep.subr.mxu0 0.0
        %4682 = vmatpush1.msra.mxu0 0.0
        %4683 = vmatprep.subr.mxu0 0.0
        %4684 = vmatpush1.msra.mxu0 0.0
        %4685 = vmatprep.subr.mxu0 0.0
        %4686 = vmatpush1.msra.mxu0 0.0
        %4687 = vmatprep.subr.mxu0 0.0
        %4688 = vmatpush1.msra.mxu0 0.0
        %4689 = vmatprep.subr.mxu0 0.0
        %4690 = vmatpush1.msra.mxu0 0.0
        %4691 = vmatprep.subr.mxu0 0.0
        %4692 = vmatpush1.msra.mxu0 0.0
        %4693 = vmatprep.subr.mxu0 0.0
        %4694 = vmatpush1.msra.mxu0 0.0
        %4695 = vmatprep.subr.mxu0 0.0
        %4696 = vmatpush1.msra.mxu0 0.0
        %4697 = vmatprep.subr.mxu0 0.0
        %4698 = vmatpush1.msra.mxu0 0.0
        %4699 = vmatprep.subr.mxu0 0.0
        %4700 = vmatpush1.msra.mxu0 0.0
        %4701 = vmatprep.subr.mxu0 0.0
        %4702 = vmatpush1.msra.mxu0 0.0
        %4703 = vmatprep.subr.mxu0 0.0
        %4704 = vmatpush1.msra.mxu0 0.0
        %4705 = vmatprep.subr.mxu0 0.0
        %4706 = vmatpush1.msra.mxu0 0.0
        %4707 = vmatprep.subr.mxu0 0.0
        %4708 = vmatpush1.msra.mxu0 0.0
        %4709 = vmatprep.subr.mxu0 0.0
        %4710 = vmatpush1.msra.mxu0 0.0
        %4711 = vmatprep.subr.mxu0 0.0
        %4712 = vmatpush1.msra.mxu0 0.0
        %4713 = vmatprep.subr.mxu0 0.0
        %4714 = vmatpush1.msra.mxu0 0.0
        %4715 = vmatprep.subr.mxu0 0.0
        %4716 = vmatpush1.msra.mxu0 0.0
        %4717 = vmatprep.subr.mxu0 0.0
        %4718 = vmatpush1.msra.mxu0 0.0
        %4719 = vmatprep.subr.mxu0 0.0
        %4720 = vmatpush1.msra.mxu0 0.0
        %4721 = vmatprep.subr.mxu0 0.0
        %4722 = vmatpush1.msra.mxu0 0.0
        %4723 = vmatprep.subr.mxu0 0.0
        %4724 = vmatpush1.msra.mxu0 0.0
        %4725 = vmatprep.subr.mxu0 0.0
        %4726 = vmatpush1.msra.mxu0 0.0
        %4727 = vmatprep.mubr.f32.mxu0 0.0
        %4728 = vmatmul.mubr.f32.gmra.mrb[0].mxu0 %v4658
        %v4729 = vpop.f32.mrb[0].mxu0
        %v4730 = vadd.f32 0.0, %v4729
        %v4731 = vpop.f32.mrb[0].mxu0
        %4732 = vdwg.mxu0
        %4733 = vst.msk [vmem:[#allocation5 + $0x8] sm:$0xf] %vm871, %v4730
        %v4734 = vadd.f32 %v4608, %v4618
        %v4735 = vld [vmem:[#allocation2 + $0x1b] sm:$0xf]
        %v4736 = vld [vmem:[#allocation3 + $0x1b] sm:$0xf]
        %v4737 = vadd.f32 %v4735, %v4736
        %s4738 = scalar_lea.vmem [#allocation2], 39
        %v4739 = vld [vmem:[%s4738] ss:$8 sm:$0xf]
        %s4740 = scalar_lea.vmem [#allocation3], 39
        %v4741 = vld [vmem:[%s4740] ss:$8 sm:$0xf]
        %v4742 = vadd.f32 %v4739, %v4741
        %v4743 = vsel %vm871, %v4737, -inf
        %4744 = vmax.xlane.f32.xlu0 %v4743
        %v4745 = vpop.xlane.xlu0 %4744
        %v4746 = vsel %vm1677, %v4745, -inf
        %v4747 = vrot.slane %v4746, 4
        %v4748 = vmax.f32 %v4746, %v4747
        %v4749 = vrot.slane %v4748, 2
        %v4750 = vmax.f32 %v4748, %v4749
        %v4751 = vrot.slane %v4750, 1
        %v4752 = vmax.f32 %v4750, %v4751
        %v4753 = vsel %vm871, %v4742, -inf
        %4754 = vmax.xlane.f32.xlu0 %v4753
        %v4755 = vpop.xlane.xlu0 %4754
        %v4756 = vsel %vm1677, %v4755, -inf
        %v4757 = vrot.slane %v4756, 4
        %v4758 = vmax.f32 %v4756, %v4757
        %v4759 = vrot.slane %v4758, 2
        %v4760 = vmax.f32 %v4758, %v4759
        %v4761 = vrot.slane %v4760, 1
        %v4762 = vmax.f32 %v4760, %v4761
        %v4763 = vsub.f32 %v4737, %v4752
        %v4764 = vmul.f32 %v4763, 1.442695
        %v4765 = vpow.pop %v4764
        %v4766 = vsub.f32 %v4742, %v4762
        %v4767 = vmul.f32 %v4766, 1.442695
        %v4768 = vpow.pop %v4767
        %4769 = vxpose.xlu0.b32.start [1/16] %v4765, 128
        %4770 = vxpose.xlu0.b32.cont [2/16] 0.0, 128
        %4771 = vxpose.xlu0.b32.cont [3/16] 0.0, 128
        %4772 = vxpose.xlu0.b32.cont [4/16] 0.0, 128
        %4773 = vxpose.xlu0.b32.cont [5/16] 0.0, 128
        %4774 = vxpose.xlu0.b32.cont [6/16] 0.0, 128
        %4775 = vxpose.xlu0.b32.cont [7/16] 0.0, 128
        %4776 = vxpose.xlu0.b32.cont [8/16] 0.0, 128
        %4777 = vxpose.xlu0.b32.cont [9/16] 0.0, 128
        %4778 = vxpose.xlu0.b32.cont [10/16] 0.0, 128
        %4779 = vxpose.xlu0.b32.cont [11/16] 0.0, 128
        %4780 = vxpose.xlu0.b32.cont [12/16] 0.0, 128
        %4781 = vxpose.xlu0.b32.cont [13/16] 0.0, 128
        %4782 = vxpose.xlu0.b32.cont [14/16] 0.0, 128
        %4783 = vxpose.xlu0.b32.cont [15/16] 0.0, 128
        %4784 = vxpose.xlu0.b32.end [16/16] 0.0, 128
        %v4785 = vpop.trf.xlu0
        %v4786 = vpop.trf.xlu0
        %v4787 = vpop.trf.xlu0
        %v4788 = vpop.trf.xlu0
        %v4789 = vpop.trf.xlu0
        %v4790 = vpop.trf.xlu0
        %v4791 = vpop.trf.xlu0
        %v4792 = vpop.trf.xlu0
        %v4793 = vpop.trf.xlu0
        %v4794 = vpop.trf.xlu0
        %v4795 = vpop.trf.xlu0
        %v4796 = vpop.trf.xlu0
        %v4797 = vpop.trf.xlu0
        %v4798 = vpop.trf.xlu0
        %v4799 = vpop.trf.xlu0
        %v4800 = vpop.trf.xlu0
        %v4802 = vsel %vm503, %v4785, 0
        %v4805 = vsel %vm1677, %v4768, 0
        %4807 = vmatprep.subr.mxu0 0.0
        %4808 = vmatpush1.msra.mxu0 %v4805
        %4809 = vmatprep.subr.mxu0 0.0
        %4810 = vmatpush1.msra.mxu0 0.0
        %4811 = vmatprep.subr.mxu0 0.0
        %4812 = vmatpush1.msra.mxu0 0.0
        %4813 = vmatprep.subr.mxu0 0.0
        %4814 = vmatpush1.msra.mxu0 0.0
        %4815 = vmatprep.subr.mxu0 0.0
        %4816 = vmatpush1.msra.mxu0 0.0
        %4817 = vmatprep.subr.mxu0 0.0
        %4818 = vmatpush1.msra.mxu0 0.0
        %4819 = vmatprep.subr.mxu0 0.0
        %4820 = vmatpush1.msra.mxu0 0.0
        %4821 = vmatprep.subr.mxu0 0.0
        %4822 = vmatpush1.msra.mxu0 0.0
        %4823 = vmatprep.subr.mxu0 0.0
        %4824 = vmatpush1.msra.mxu0 0.0
        %4825 = vmatprep.subr.mxu0 0.0
        %4826 = vmatpush1.msra.mxu0 0.0
        %4827 = vmatprep.subr.mxu0 0.0
        %4828 = vmatpush1.msra.mxu0 0.0
        %4829 = vmatprep.subr.mxu0 0.0
        %4830 = vmatpush1.msra.mxu0 0.0
        %4831 = vmatprep.subr.mxu0 0.0
        %4832 = vmatpush1.msra.mxu0 0.0
        %4833 = vmatprep.subr.mxu0 0.0
        %4834 = vmatpush1.msra.mxu0 0.0
        %4835 = vmatprep.subr.mxu0 0.0
        %4836 = vmatpush1.msra.mxu0 0.0
        %4837 = vmatprep.subr.mxu0 0.0
        %4838 = vmatpush1.msra.mxu0 0.0
        %4839 = vmatprep.subr.mxu0 0.0
        %4840 = vmatpush1.msra.mxu0 0.0
        %4841 = vmatprep.subr.mxu0 0.0
        %4842 = vmatpush1.msra.mxu0 0.0
        %4843 = vmatprep.subr.mxu0 0.0
        %4844 = vmatpush1.msra.mxu0 0.0
        %4845 = vmatprep.subr.mxu0 0.0
        %4846 = vmatpush1.msra.mxu0 0.0
        %4847 = vmatprep.subr.mxu0 0.0
        %4848 = vmatpush1.msra.mxu0 0.0
        %4849 = vmatprep.subr.mxu0 0.0
        %4850 = vmatpush1.msra.mxu0 0.0
        %4851 = vmatprep.subr.mxu0 0.0
        %4852 = vmatpush1.msra.mxu0 0.0
        %4853 = vmatprep.subr.mxu0 0.0
        %4854 = vmatpush1.msra.mxu0 0.0
        %4855 = vmatprep.subr.mxu0 0.0
        %4856 = vmatpush1.msra.mxu0 0.0
        %4857 = vmatprep.subr.mxu0 0.0
        %4858 = vmatpush1.msra.mxu0 0.0
        %4859 = vmatprep.subr.mxu0 0.0
        %4860 = vmatpush1.msra.mxu0 0.0
        %4861 = vmatprep.subr.mxu0 0.0
        %4862 = vmatpush1.msra.mxu0 0.0
        %4863 = vmatprep.subr.mxu0 0.0
        %4864 = vmatpush1.msra.mxu0 0.0
        %4865 = vmatprep.subr.mxu0 0.0
        %4866 = vmatpush1.msra.mxu0 0.0
        %4867 = vmatprep.subr.mxu0 0.0
        %4868 = vmatpush1.msra.mxu0 0.0
        %4869 = vmatprep.subr.mxu0 0.0
        %4870 = vmatpush1.msra.mxu0 0.0
        %4871 = vmatprep.mubr.f32.mxu0 0.0
        %4872 = vmatmul.mubr.f32.gmra.mrb[0].mxu0 %v4802
        %v4873 = vpop.f32.mrb[0].mxu0
        %v4874 = vadd.f32 0.0, %v4873
        %v4875 = vpop.f32.mrb[0].mxu0
        %4876 = vdwg.mxu0
        %4877 = vst.msk [vmem:[#allocation5 + $0xc] sm:$0xf] %vm871, %v4874
        %v4878 = vadd.f32 %v4752, %v4762
        %v4879 = vsel %vm797, %v4446, %v4590
        %v4880 = vsel %vm1673, %v4879, %v4734
        %v4881 = vsel %vm1675, %v4880, %v4878
        %v4882 = vld [vmem:[#allocation5] ss:$4 sm:$0xf]
        %v4883 = vld [vmem:[%s8] sm:$0xf]
        %v4884 = vld [vmem:[%s1685] ss:$4 sm:$0xf]
        %v4885 = vld [vmem:[%s1687] sm:$0xf]
        %v4887 = vsel %vm503, %v4884, 0
        %v4890 = vsel %vm1677, %v4885, 0
        %4892 = vmatprep.subr.mxu0 0.0
        %4893 = vmatpush1.msra.mxu0 %v4890
        %4894 = vmatprep.subr.mxu0 0.0
        %4895 = vmatpush1.msra.mxu0 0.0
        %4896 = vmatprep.subr.mxu0 0.0
        %4897 = vmatpush1.msra.mxu0 0.0
        %4898 = vmatprep.subr.mxu0 0.0
        %4899 = vmatpush1.msra.mxu0 0.0
        %4900 = vmatprep.subr.mxu0 0.0
        %4901 = vmatpush1.msra.mxu0 0.0
        %4902 = vmatprep.subr.mxu0 0.0
        %4903 = vmatpush1.msra.mxu0 0.0
        %4904 = vmatprep.subr.mxu0 0.0
        %4905 = vmatpush1.msra.mxu0 0.0
        %4906 = vmatprep.subr.mxu0 0.0
        %4907 = vmatpush1.msra.mxu0 0.0
        %4908 = vmatprep.subr.mxu0 0.0
        %4909 = vmatpush1.msra.mxu0 0.0
        %4910 = vmatprep.subr.mxu0 0.0
        %4911 = vmatpush1.msra.mxu0 0.0
        %4912 = vmatprep.subr.mxu0 0.0
        %4913 = vmatpush1.msra.mxu0 0.0
        %4914 = vmatprep.subr.mxu0 0.0
        %4915 = vmatpush1.msra.mxu0 0.0
        %4916 = vmatprep.subr.mxu0 0.0
        %4917 = vmatpush1.msra.mxu0 0.0
        %4918 = vmatprep.subr.mxu0 0.0
        %4919 = vmatpush1.msra.mxu0 0.0
        %4920 = vmatprep.subr.mxu0 0.0
        %4921 = vmatpush1.msra.mxu0 0.0
        %4922 = vmatprep.subr.mxu0 0.0
        %4923 = vmatpush1.msra.mxu0 0.0
        %4924 = vmatprep.subr.mxu0 0.0
        %4925 = vmatpush1.msra.mxu0 0.0
        %4926 = vmatprep.subr.mxu0 0.0
        %4927 = vmatpush1.msra.mxu0 0.0
        %4928 = vmatprep.subr.mxu0 0.0
        %4929 = vmatpush1.msra.mxu0 0.0
        %4930 = vmatprep.subr.mxu0 0.0
        %4931 = vmatpush1.msra.mxu0 0.0
        %4932 = vmatprep.subr.mxu0 0.0
        %4933 = vmatpush1.msra.mxu0 0.0
        %4934 = vmatprep.subr.mxu0 0.0
        %4935 = vmatpush1.msra.mxu0 0.0
        %4936 = vmatprep.subr.mxu0 0.0
        %4937 = vmatpush1.msra.mxu0 0.0
        %4938 = vmatprep.subr.mxu0 0.0
        %4939 = vmatpush1.msra.mxu0 0.0
        %4940 = vmatprep.subr.mxu0 0.0
        %4941 = vmatpush1.msra.mxu0 0.0
        %4942 = vmatprep.subr.mxu0 0.0
        %4943 = vmatpush1.msra.mxu0 0.0
        %4944 = vmatprep.subr.mxu0 0.0
        %4945 = vmatpush1.msra.mxu0 0.0
        %4946 = vmatprep.subr.mxu0 0.0
        %4947 = vmatpush1.msra.mxu0 0.0
        %4948 = vmatprep.subr.mxu0 0.0
        %4949 = vmatpush1.msra.mxu0 0.0
        %4950 = vmatprep.subr.mxu0 0.0
        %4951 = vmatpush1.msra.mxu0 0.0
        %4952 = vmatprep.subr.mxu0 0.0
        %4953 = vmatpush1.msra.mxu0 0.0
        %4954 = vmatprep.subr.mxu0 0.0
        %4955 = vmatpush1.msra.mxu0 0.0
        %4956 = vmatprep.mubr.f32.mxu0 0.0
        %4957 = vmatmul.mubr.f32.gmra.mrb[0].mxu0 %v4887
        %v4958 = vpop.f32.mrb[0].mxu0
        %v4959 = vadd.f32 0.0, %v4958
        %v4960 = vpop.f32.mrb[0].mxu0
        %4961 = vdwg.mxu0
        %v4963 = vsel %vm503, %v4882, 0
        %v4966 = vsel %vm1677, %v4883, 0
        %4968 = vmatprep.subr.mxu0 0.0
        %4969 = vmatpush1.msra.mxu0 %v4966
        %4970 = vmatprep.subr.mxu0 0.0
        %4971 = vmatpush1.msra.mxu0 0.0
        %4972 = vmatprep.subr.mxu0 0.0
        %4973 = vmatpush1.msra.mxu0 0.0
        %4974 = vmatprep.subr.mxu0 0.0
        %4975 = vmatpush1.msra.mxu0 0.0
        %4976 = vmatprep.subr.mxu0 0.0
        %4977 = vmatpush1.msra.mxu0 0.0
        %4978 = vmatprep.subr.mxu0 0.0
        %4979 = vmatpush1.msra.mxu0 0.0
        %4980 = vmatprep.subr.mxu0 0.0
        %4981 = vmatpush1.msra.mxu0 0.0
        %4982 = vmatprep.subr.mxu0 0.0
        %4983 = vmatpush1.msra.mxu0 0.0
        %4984 = vmatprep.subr.mxu0 0.0
        %4985 = vmatpush1.msra.mxu0 0.0
        %4986 = vmatprep.subr.mxu0 0.0
        %4987 = vmatpush1.msra.mxu0 0.0
        %4988 = vmatprep.subr.mxu0 0.0
        %4989 = vmatpush1.msra.mxu0 0.0
        %4990 = vmatprep.subr.mxu0 0.0
        %4991 = vmatpush1.msra.mxu0 0.0
        %4992 = vmatprep.subr.mxu0 0.0
        %4993 = vmatpush1.msra.mxu0 0.0
        %4994 = vmatprep.subr.mxu0 0.0
        %4995 = vmatpush1.msra.mxu0 0.0
        %4996 = vmatprep.subr.mxu0 0.0
        %4997 = vmatpush1.msra.mxu0 0.0
        %4998 = vmatprep.subr.mxu0 0.0
        %4999 = vmatpush1.msra.mxu0 0.0
        %5000 = vmatprep.subr.mxu0 0.0
        %5001 = vmatpush1.msra.mxu0 0.0
        %5002 = vmatprep.subr.mxu0 0.0
        %5003 = vmatpush1.msra.mxu0 0.0
        %5004 = vmatprep.subr.mxu0 0.0
        %5005 = vmatpush1.msra.mxu0 0.0
        %5006 = vmatprep.subr.mxu0 0.0
        %5007 = vmatpush1.msra.mxu0 0.0
        %5008 = vmatprep.subr.mxu0 0.0
        %5009 = vmatpush1.msra.mxu0 0.0
        %5010 = vmatprep.subr.mxu0 0.0
        %5011 = vmatpush1.msra.mxu0 0.0
        %5012 = vmatprep.subr.mxu0 0.0
        %5013 = vmatpush1.msra.mxu0 0.0
        %5014 = vmatprep.subr.mxu0 0.0
        %5015 = vmatpush1.msra.mxu0 0.0
        %5016 = vmatprep.subr.mxu0 0.0
        %5017 = vmatpush1.msra.mxu0 0.0
        %5018 = vmatprep.subr.mxu0 0.0
        %5019 = vmatpush1.msra.mxu0 0.0
        %5020 = vmatprep.subr.mxu0 0.0
        %5021 = vmatpush1.msra.mxu0 0.0
        %5022 = vmatprep.subr.mxu0 0.0
        %5023 = vmatpush1.msra.mxu0 0.0
        %5024 = vmatprep.subr.mxu0 0.0
        %5025 = vmatpush1.msra.mxu0 0.0
        %5026 = vmatprep.subr.mxu0 0.0
        %5027 = vmatpush1.msra.mxu0 0.0
        %5028 = vmatprep.subr.mxu0 0.0
        %5029 = vmatpush1.msra.mxu0 0.0
        %5030 = vmatprep.subr.mxu0 0.0
        %5031 = vmatpush1.msra.mxu0 0.0
        %5032 = vmatprep.mubr.f32.mxu0 0.0
        %5033 = vmatmul.mubr.f32.gmra.mrb[0].mxu0 %v4963
        %v5034 = vpop.f32.mrb[0].mxu0
        %v5035 = vadd.f32 %v4959, %v5034
        %v5036 = vpop.f32.mrb[0].mxu0
        %5037 = vdwg.mxu0
        %v5038 = vld [vmem:[%s1841] ss:$4 sm:$0xf]
        %v5039 = vld [vmem:[%s1843] sm:$0xf]
        %v5041 = vsel %vm503, %v5038, 0
        %v5044 = vsel %vm1677, %v5039, 0
        %5046 = vmatprep.subr.mxu0 0.0
        %5047 = vmatpush1.msra.mxu0 %v5044
        %5048 = vmatprep.subr.mxu0 0.0
        %5049 = vmatpush1.msra.mxu0 0.0
        %5050 = vmatprep.subr.mxu0 0.0
        %5051 = vmatpush1.msra.mxu0 0.0
        %5052 = vmatprep.subr.mxu0 0.0
        %5053 = vmatpush1.msra.mxu0 0.0
        %5054 = vmatprep.subr.mxu0 0.0
        %5055 = vmatpush1.msra.mxu0 0.0
        %5056 = vmatprep.subr.mxu0 0.0
        %5057 = vmatpush1.msra.mxu0 0.0
        %5058 = vmatprep.subr.mxu0 0.0
        %5059 = vmatpush1.msra.mxu0 0.0
        %5060 = vmatprep.subr.mxu0 0.0
        %5061 = vmatpush1.msra.mxu0 0.0
        %5062 = vmatprep.subr.mxu0 0.0
        %5063 = vmatpush1.msra.mxu0 0.0
        %5064 = vmatprep.subr.mxu0 0.0
        %5065 = vmatpush1.msra.mxu0 0.0
        %5066 = vmatprep.subr.mxu0 0.0
        %5067 = vmatpush1.msra.mxu0 0.0
        %5068 = vmatprep.subr.mxu0 0.0
        %5069 = vmatpush1.msra.mxu0 0.0
        %5070 = vmatprep.subr.mxu0 0.0
        %5071 = vmatpush1.msra.mxu0 0.0
        %5072 = vmatprep.subr.mxu0 0.0
        %5073 = vmatpush1.msra.mxu0 0.0
        %5074 = vmatprep.subr.mxu0 0.0
        %5075 = vmatpush1.msra.mxu0 0.0
        %5076 = vmatprep.subr.mxu0 0.0
        %5077 = vmatpush1.msra.mxu0 0.0
        %5078 = vmatprep.subr.mxu0 0.0
        %5079 = vmatpush1.msra.mxu0 0.0
        %5080 = vmatprep.subr.mxu0 0.0
        %5081 = vmatpush1.msra.mxu0 0.0
        %5082 = vmatprep.subr.mxu0 0.0
        %5083 = vmatpush1.msra.mxu0 0.0
        %5084 = vmatprep.subr.mxu0 0.0
        %5085 = vmatpush1.msra.mxu0 0.0
        %5086 = vmatprep.subr.mxu0 0.0
        %5087 = vmatpush1.msra.mxu0 0.0
        %5088 = vmatprep.subr.mxu0 0.0
        %5089 = vmatpush1.msra.mxu0 0.0
        %5090 = vmatprep.subr.mxu0 0.0
        %5091 = vmatpush1.msra.mxu0 0.0
        %5092 = vmatprep.subr.mxu0 0.0
        %5093 = vmatpush1.msra.mxu0 0.0
        %5094 = vmatprep.subr.mxu0 0.0
        %5095 = vmatpush1.msra.mxu0 0.0
        %5096 = vmatprep.subr.mxu0 0.0
        %5097 = vmatpush1.msra.mxu0 0.0
        %5098 = vmatprep.subr.mxu0 0.0
        %5099 = vmatpush1.msra.mxu0 0.0
        %5100 = vmatprep.subr.mxu0 0.0
        %5101 = vmatpush1.msra.mxu0 0.0
        %5102 = vmatprep.subr.mxu0 0.0
        %5103 = vmatpush1.msra.mxu0 0.0
        %5104 = vmatprep.subr.mxu0 0.0
        %5105 = vmatpush1.msra.mxu0 0.0
        %5106 = vmatprep.subr.mxu0 0.0
        %5107 = vmatpush1.msra.mxu0 0.0
        %5108 = vmatprep.subr.mxu0 0.0
        %5109 = vmatpush1.msra.mxu0 0.0
        %5110 = vmatprep.mubr.f32.mxu0 0.0
        %5111 = vmatmul.mubr.f32.gmra.mrb[0].mxu0 %v5041
        %v5112 = vpop.f32.mrb[0].mxu0
        %v5113 = vadd.f32 0.0, %v5112
        %v5114 = vpop.f32.mrb[0].mxu0
        %5115 = vdwg.mxu0
        %v5116 = vadd.f32 %v5035, %v5113
        %v5117 = vld [vmem:[%s1922] ss:$4 sm:$0xf]
        %v5118 = vld [vmem:[%s1924] sm:$0xf]
        %v5120 = vsel %vm503, %v5117, 0
        %v5123 = vsel %vm1677, %v5118, 0
        %5125 = vmatprep.subr.mxu0 0.0
        %5126 = vmatpush1.msra.mxu0 %v5123
        %5127 = vmatprep.subr.mxu0 0.0
        %5128 = vmatpush1.msra.mxu0 0.0
        %5129 = vmatprep.subr.mxu0 0.0
        %5130 = vmatpush1.msra.mxu0 0.0
        %5131 = vmatprep.subr.mxu0 0.0
        %5132 = vmatpush1.msra.mxu0 0.0
        %5133 = vmatprep.subr.mxu0 0.0
        %5134 = vmatpush1.msra.mxu0 0.0
        %5135 = vmatprep.subr.mxu0 0.0
        %5136 = vmatpush1.msra.mxu0 0.0
        %5137 = vmatprep.subr.mxu0 0.0
        %5138 = vmatpush1.msra.mxu0 0.0
        %5139 = vmatprep.subr.mxu0 0.0
        %5140 = vmatpush1.msra.mxu0 0.0
        %5141 = vmatprep.subr.mxu0 0.0
        %5142 = vmatpush1.msra.mxu0 0.0
        %5143 = vmatprep.subr.mxu0 0.0
        %5144 = vmatpush1.msra.mxu0 0.0
        %5145 = vmatprep.subr.mxu0 0.0
        %5146 = vmatpush1.msra.mxu0 0.0
        %5147 = vmatprep.subr.mxu0 0.0
        %5148 = vmatpush1.msra.mxu0 0.0
        %5149 = vmatprep.subr.mxu0 0.0
        %5150 = vmatpush1.msra.mxu0 0.0
        %5151 = vmatprep.subr.mxu0 0.0
        %5152 = vmatpush1.msra.mxu0 0.0
        %5153 = vmatprep.subr.mxu0 0.0
        %5154 = vmatpush1.msra.mxu0 0.0
        %5155 = vmatprep.subr.mxu0 0.0
        %5156 = vmatpush1.msra.mxu0 0.0
        %5157 = vmatprep.subr.mxu0 0.0
        %5158 = vmatpush1.msra.mxu0 0.0
        %5159 = vmatprep.subr.mxu0 0.0
        %5160 = vmatpush1.msra.mxu0 0.0
        %5161 = vmatprep.subr.mxu0 0.0
        %5162 = vmatpush1.msra.mxu0 0.0
        %5163 = vmatprep.subr.mxu0 0.0
        %5164 = vmatpush1.msra.mxu0 0.0
        %5165 = vmatprep.subr.mxu0 0.0
        %5166 = vmatpush1.msra.mxu0 0.0
        %5167 = vmatprep.subr.mxu0 0.0
        %5168 = vmatpush1.msra.mxu0 0.0
        %5169 = vmatprep.subr.mxu0 0.0
        %5170 = vmatpush1.msra.mxu0 0.0
        %5171 = vmatprep.subr.mxu0 0.0
        %5172 = vmatpush1.msra.mxu0 0.0
        %5173 = vmatprep.subr.mxu0 0.0
        %5174 = vmatpush1.msra.mxu0 0.0
        %5175 = vmatprep.subr.mxu0 0.0
        %5176 = vmatpush1.msra.mxu0 0.0
        %5177 = vmatprep.subr.mxu0 0.0
        %5178 = vmatpush1.msra.mxu0 0.0
        %5179 = vmatprep.subr.mxu0 0.0
        %5180 = vmatpush1.msra.mxu0 0.0
        %5181 = vmatprep.subr.mxu0 0.0
        %5182 = vmatpush1.msra.mxu0 0.0
        %5183 = vmatprep.subr.mxu0 0.0
        %5184 = vmatpush1.msra.mxu0 0.0
        %5185 = vmatprep.subr.mxu0 0.0
        %5186 = vmatpush1.msra.mxu0 0.0
        %5187 = vmatprep.subr.mxu0 0.0
        %5188 = vmatpush1.msra.mxu0 0.0
        %5189 = vmatprep.mubr.f32.mxu0 0.0
        %5190 = vmatmul.mubr.f32.gmra.mrb[0].mxu0 %v5120
        %v5191 = vpop.f32.mrb[0].mxu0
        %v5192 = vadd.f32 0.0, %v5191
        %v5193 = vpop.f32.mrb[0].mxu0
        %5194 = vdwg.mxu0
        %v5195 = vadd.f32 %v5116, %v5192
        %s5196 = scalar_lea.vmem [#allocation3], 4
        %v5197 = vld [vmem:[%s5196] ss:$9 sm:$0xf]
        %s5198 = scalar_lea.vmem [#allocation4], 4
        %v5199 = vld [vmem:[%s5198] ss:$9 sm:$0xf]
        %v5200 = vlog2.pop %v5195
        %v5201 = vmul.f32 %v5200, 0.6931472
        %5203 = vset.pattern.permute.xlu0 0
        %5204 = vperm.xlu0 %5203, %v4881
        %v5205 = vpop.permute.xlu0 %5204
        %v5207 = vadd.f32 %v5205, %v5201
        %v5208 = vadd.f32 %v5207, %v5197
        %5210 = vset.pattern.permute.xlu0 0
        %5211 = vperm.xlu0 %5210, %v5199
        %v5212 = vpop.permute.xlu0 %5211
        %v5214 = vadd.f32 %v5208, %v5212
        %5215 = vst.msk [vmem:[#allocation2 + $0x4] sm:$0x1] %vm726, %v5214
        %5216 = vst.msk [vmem:[#allocation2 + $0xc] sm:$0x2] %vm728, %v5214
        %5217 = vst.msk [vmem:[#allocation2 + $0x14] sm:$0x4] %vm730, %v5214
        %5218 = vst.msk [vmem:[#allocation2 + $0x1c] sm:$0x8] %vm732, %v5214
        %v5219 = vld [vmem:[#allocation2] sm:$0x1f]
        %v5220 = vld [vmem:[#allocation3] sm:$0x1f]
        %v5221 = vadd.f32 %v5219, %v5220
        %s5222 = scalar_lea.vmem [#allocation2], 13
        %v5223 = vld [vmem:[%s5222] ss:$8 sm:$0xf]
        %v5224 = vld [vmem:[%s5222] ss:$8 sm:$0x10]
        %v5225 = vor.u32 %v5223, %v5224
        %s5226 = scalar_lea.vmem [#allocation3], 13
        %v5227 = vld [vmem:[%s5226] ss:$8 sm:$0xf]
        %v5228 = vld [vmem:[%s5226] ss:$8 sm:$0x10]
        %v5229 = vor.u32 %v5227, %v5228
        %v5230 = vadd.f32 %v5225, %v5229
        %vm5231 = vcmask 28672
        %v5232 = vsel %vm5231, %v5221, -inf
        %5233 = vmax.xlane.f32.xlu0 %v5232
        %v5234 = vpop.xlane.xlu0 %5233
        %v5235 = vsel %vm1679, %v5234, -inf
        %v5236 = vrot.slane %v5235, 4
        %v5237 = vmax.f32 %v5235, %v5236
        %v5238 = vrot.slane %v5237, 2
        %v5239 = vmax.f32 %v5237, %v5238
        %v5240 = vrot.slane %v5239, 1
        %v5241 = vmax.f32 %v5239, %v5240
        %v5242 = vsel %vm5231, %v5230, -inf
        %5243 = vmax.xlane.f32.xlu0 %v5242
        %v5244 = vpop.xlane.xlu0 %5243
        %v5245 = vsel %vm1679, %v5244, -inf
        %v5246 = vrot.slane %v5245, 4
        %v5247 = vmax.f32 %v5245, %v5246
        %v5248 = vrot.slane %v5247, 2
        %v5249 = vmax.f32 %v5247, %v5248
        %v5250 = vrot.slane %v5249, 1
        %v5251 = vmax.f32 %v5249, %v5250
        %v5252 = vsub.f32 %v5221, %v5241
        %v5253 = vmul.f32 %v5252, 1.442695
        %v5254 = vpow.pop %v5253
        %v5255 = vsub.f32 %v5230, %v5251
        %v5256 = vmul.f32 %v5255, 1.442695
        %v5257 = vpow.pop %v5256
        %5258 = vxpose.xlu0.b32.start [1/16] %v5254, 128
        %5259 = vxpose.xlu0.b32.cont [2/16] 0.0, 128
        %5260 = vxpose.xlu0.b32.cont [3/16] 0.0, 128
        %5261 = vxpose.xlu0.b32.cont [4/16] 0.0, 128
        %5262 = vxpose.xlu0.b32.cont [5/16] 0.0, 128
        %5263 = vxpose.xlu0.b32.cont [6/16] 0.0, 128
        %5264 = vxpose.xlu0.b32.cont [7/16] 0.0, 128
        %5265 = vxpose.xlu0.b32.cont [8/16] 0.0, 128
        %5266 = vxpose.xlu0.b32.cont [9/16] 0.0, 128
        %5267 = vxpose.xlu0.b32.cont [10/16] 0.0, 128
        %5268 = vxpose.xlu0.b32.cont [11/16] 0.0, 128
        %5269 = vxpose.xlu0.b32.cont [12/16] 0.0, 128
        %5270 = vxpose.xlu0.b32.cont [13/16] 0.0, 128
        %5271 = vxpose.xlu0.b32.cont [14/16] 0.0, 128
        %5272 = vxpose.xlu0.b32.cont [15/16] 0.0, 128
        %5273 = vxpose.xlu0.b32.end [16/16] 0.0, 128
        %v5274 = vpop.trf.xlu0
        %v5275 = vpop.trf.xlu0
        %v5276 = vpop.trf.xlu0
        %v5277 = vpop.trf.xlu0
        %v5278 = vpop.trf.xlu0
        %v5279 = vpop.trf.xlu0
        %v5280 = vpop.trf.xlu0
        %v5281 = vpop.trf.xlu0
        %v5282 = vpop.trf.xlu0
        %v5283 = vpop.trf.xlu0
        %v5284 = vpop.trf.xlu0
        %v5285 = vpop.trf.xlu0
        %v5286 = vpop.trf.xlu0
        %v5287 = vpop.trf.xlu0
        %v5288 = vpop.trf.xlu0
        %v5289 = vpop.trf.xlu0
        %vm5290 = vcmask 39936
        %v5292 = vsel %vm5290, %v5274, 0
        %v5295 = vsel %vm1679, %v5257, 0
        %5297 = vmatprep.subr.mxu0 0.0
        %5298 = vmatpush1.msra.mxu0 %v5295
        %5299 = vmatprep.subr.mxu0 0.0
        %5300 = vmatpush1.msra.mxu0 0.0
        %5301 = vmatprep.subr.mxu0 0.0
        %5302 = vmatpush1.msra.mxu0 0.0
        %5303 = vmatprep.subr.mxu0 0.0
        %5304 = vmatpush1.msra.mxu0 0.0
        %5305 = vmatprep.subr.mxu0 0.0
        %5306 = vmatpush1.msra.mxu0 0.0
        %5307 = vmatprep.subr.mxu0 0.0
        %5308 = vmatpush1.msra.mxu0 0.0
        %5309 = vmatprep.subr.mxu0 0.0
        %5310 = vmatpush1.msra.mxu0 0.0
        %5311 = vmatprep.subr.mxu0 0.0
        %5312 = vmatpush1.msra.mxu0 0.0
        %5313 = vmatprep.subr.mxu0 0.0
        %5314 = vmatpush1.msra.mxu0 0.0
        %5315 = vmatprep.subr.mxu0 0.0
        %5316 = vmatpush1.msra.mxu0 0.0
        %5317 = vmatprep.subr.mxu0 0.0
        %5318 = vmatpush1.msra.mxu0 0.0
        %5319 = vmatprep.subr.mxu0 0.0
        %5320 = vmatpush1.msra.mxu0 0.0
        %5321 = vmatprep.subr.mxu0 0.0
        %5322 = vmatpush1.msra.mxu0 0.0
        %5323 = vmatprep.subr.mxu0 0.0
        %5324 = vmatpush1.msra.mxu0 0.0
        %5325 = vmatprep.subr.mxu0 0.0
        %5326 = vmatpush1.msra.mxu0 0.0
        %5327 = vmatprep.subr.mxu0 0.0
        %5328 = vmatpush1.msra.mxu0 0.0
        %5329 = vmatprep.subr.mxu0 0.0
        %5330 = vmatpush1.msra.mxu0 0.0
        %5331 = vmatprep.subr.mxu0 0.0
        %5332 = vmatpush1.msra.mxu0 0.0
        %5333 = vmatprep.subr.mxu0 0.0
        %5334 = vmatpush1.msra.mxu0 0.0
        %5335 = vmatprep.subr.mxu0 0.0
        %5336 = vmatpush1.msra.mxu0 0.0
        %5337 = vmatprep.subr.mxu0 0.0
        %5338 = vmatpush1.msra.mxu0 0.0
        %5339 = vmatprep.subr.mxu0 0.0
        %5340 = vmatpush1.msra.mxu0 0.0
        %5341 = vmatprep.subr.mxu0 0.0
        %5342 = vmatpush1.msra.mxu0 0.0
        %5343 = vmatprep.subr.mxu0 0.0
        %5344 = vmatpush1.msra.mxu0 0.0
        %5345 = vmatprep.subr.mxu0 0.0
        %5346 = vmatpush1.msra.mxu0 0.0
        %5347 = vmatprep.subr.mxu0 0.0
        %5348 = vmatpush1.msra.mxu0 0.0
        %5349 = vmatprep.subr.mxu0 0.0
        %5350 = vmatpush1.msra.mxu0 0.0
        %5351 = vmatprep.subr.mxu0 0.0
        %5352 = vmatpush1.msra.mxu0 0.0
        %5353 = vmatprep.subr.mxu0 0.0
        %5354 = vmatpush1.msra.mxu0 0.0
        %5355 = vmatprep.subr.mxu0 0.0
        %5356 = vmatpush1.msra.mxu0 0.0
        %5357 = vmatprep.subr.mxu0 0.0
        %5358 = vmatpush1.msra.mxu0 0.0
        %5359 = vmatprep.subr.mxu0 0.0
        %5360 = vmatpush1.msra.mxu0 0.0
        %5361 = vmatprep.mubr.f32.mxu0 0.0
        %5362 = vmatmul.mubr.f32.gmra.mrb[0].mxu0 %v5292
        %v5363 = vpop.f32.mrb[0].mxu0
        %v5364 = vadd.f32 0.0, %v5363
        %v5365 = vpop.f32.mrb[0].mxu0
        %5366 = vdwg.mxu0
        %5367 = vst.msk [vmem:[#allocation5] sm:$0xf] %vm871, %v5364
        %v5368 = vadd.f32 %v5241, %v5251
        %v5369 = vld [vmem:[#allocation2 + $0x9] sm:$0x1f]
        %v5370 = vld [vmem:[#allocation3 + $0x9] sm:$0x1f]
        %v5371 = vadd.f32 %v5369, %v5370
        %s5372 = scalar_lea.vmem [#allocation2], 22
        %v5373 = vld [vmem:[%s5372] ss:$8 sm:$0xf]
        %v5374 = vld [vmem:[%s5372] ss:$8 sm:$0x10]
        %v5375 = vor.u32 %v5373, %v5374
        %s5376 = scalar_lea.vmem [#allocation3], 22
        %v5377 = vld [vmem:[%s5376] ss:$8 sm:$0xf]
        %v5378 = vld [vmem:[%s5376] ss:$8 sm:$0x10]
        %v5379 = vor.u32 %v5377, %v5378
        %v5380 = vadd.f32 %v5375, %v5379
        %v5381 = vsel %vm5231, %v5371, -inf
        %5382 = vmax.xlane.f32.xlu0 %v5381
        %v5383 = vpop.xlane.xlu0 %5382
        %v5384 = vsel %vm1679, %v5383, -inf
        %v5385 = vrot.slane %v5384, 4
        %v5386 = vmax.f32 %v5384, %v5385
        %v5387 = vrot.slane %v5386, 2
        %v5388 = vmax.f32 %v5386, %v5387
        %v5389 = vrot.slane %v5388, 1
        %v5390 = vmax.f32 %v5388, %v5389
        %v5391 = vsel %vm5231, %v5380, -inf
        %5392 = vmax.xlane.f32.xlu0 %v5391
        %v5393 = vpop.xlane.xlu0 %5392
        %v5394 = vsel %vm1679, %v5393, -inf
        %v5395 = vrot.slane %v5394, 4
        %v5396 = vmax.f32 %v5394, %v5395
        %v5397 = vrot.slane %v5396, 2
        %v5398 = vmax.f32 %v5396, %v5397
        %v5399 = vrot.slane %v5398, 1
        %v5400 = vmax.f32 %v5398, %v5399
        %v5401 = vsub.f32 %v5371, %v5390
        %v5402 = vmul.f32 %v5401, 1.442695
        %v5403 = vpow.pop %v5402
        %v5404 = vsub.f32 %v5380, %v5400
        %v5405 = vmul.f32 %v5404, 1.442695
        %v5406 = vpow.pop %v5405
        %5407 = vxpose.xlu0.b32.start [1/16] %v5403, 128
        %5408 = vxpose.xlu0.b32.cont [2/16] 0.0, 128
        %5409 = vxpose.xlu0.b32.cont [3/16] 0.0, 128
        %5410 = vxpose.xlu0.b32.cont [4/16] 0.0, 128
        %5411 = vxpose.xlu0.b32.cont [5/16] 0.0, 128
        %5412 = vxpose.xlu0.b32.cont [6/16] 0.0, 128
        %5413 = vxpose.xlu0.b32.cont [7/16] 0.0, 128
        %5414 = vxpose.xlu0.b32.cont [8/16] 0.0, 128
        %5415 = vxpose.xlu0.b32.cont [9/16] 0.0, 128
        %5416 = vxpose.xlu0.b32.cont [10/16] 0.0, 128
        %5417 = vxpose.xlu0.b32.cont [11/16] 0.0, 128
        %5418 = vxpose.xlu0.b32.cont [12/16] 0.0, 128
        %5419 = vxpose.xlu0.b32.cont [13/16] 0.0, 128
        %5420 = vxpose.xlu0.b32.cont [14/16] 0.0, 128
        %5421 = vxpose.xlu0.b32.cont [15/16] 0.0, 128
        %5422 = vxpose.xlu0.b32.end [16/16] 0.0, 128
        %v5423 = vpop.trf.xlu0
        %v5424 = vpop.trf.xlu0
        %v5425 = vpop.trf.xlu0
        %v5426 = vpop.trf.xlu0
        %v5427 = vpop.trf.xlu0
        %v5428 = vpop.trf.xlu0
        %v5429 = vpop.trf.xlu0
        %v5430 = vpop.trf.xlu0
        %v5431 = vpop.trf.xlu0
        %v5432 = vpop.trf.xlu0
        %v5433 = vpop.trf.xlu0
        %v5434 = vpop.trf.xlu0
        %v5435 = vpop.trf.xlu0
        %v5436 = vpop.trf.xlu0
        %v5437 = vpop.trf.xlu0
        %v5438 = vpop.trf.xlu0
        %v5440 = vsel %vm5290, %v5423, 0
        %v5443 = vsel %vm1679, %v5406, 0
        %5445 = vmatprep.subr.mxu0 0.0
        %5446 = vmatpush1.msra.mxu0 %v5443
        %5447 = vmatprep.subr.mxu0 0.0
        %5448 = vmatpush1.msra.mxu0 0.0
        %5449 = vmatprep.subr.mxu0 0.0
        %5450 = vmatpush1.msra.mxu0 0.0
        %5451 = vmatprep.subr.mxu0 0.0
        %5452 = vmatpush1.msra.mxu0 0.0
        %5453 = vmatprep.subr.mxu0 0.0
        %5454 = vmatpush1.msra.mxu0 0.0
        %5455 = vmatprep.subr.mxu0 0.0
        %5456 = vmatpush1.msra.mxu0 0.0
        %5457 = vmatprep.subr.mxu0 0.0
        %5458 = vmatpush1.msra.mxu0 0.0
        %5459 = vmatprep.subr.mxu0 0.0
        %5460 = vmatpush1.msra.mxu0 0.0
        %5461 = vmatprep.subr.mxu0 0.0
        %5462 = vmatpush1.msra.mxu0 0.0
        %5463 = vmatprep.subr.mxu0 0.0
        %5464 = vmatpush1.msra.mxu0 0.0
        %5465 = vmatprep.subr.mxu0 0.0
        %5466 = vmatpush1.msra.mxu0 0.0
        %5467 = vmatprep.subr.mxu0 0.0
        %5468 = vmatpush1.msra.mxu0 0.0
        %5469 = vmatprep.subr.mxu0 0.0
        %5470 = vmatpush1.msra.mxu0 0.0
        %5471 = vmatprep.subr.mxu0 0.0
        %5472 = vmatpush1.msra.mxu0 0.0
        %5473 = vmatprep.subr.mxu0 0.0
        %5474 = vmatpush1.msra.mxu0 0.0
        %5475 = vmatprep.subr.mxu0 0.0
        %5476 = vmatpush1.msra.mxu0 0.0
        %5477 = vmatprep.subr.mxu0 0.0
        %5478 = vmatpush1.msra.mxu0 0.0
        %5479 = vmatprep.subr.mxu0 0.0
        %5480 = vmatpush1.msra.mxu0 0.0
        %5481 = vmatprep.subr.mxu0 0.0
        %5482 = vmatpush1.msra.mxu0 0.0
        %5483 = vmatprep.subr.mxu0 0.0
        %5484 = vmatpush1.msra.mxu0 0.0
        %5485 = vmatprep.subr.mxu0 0.0
        %5486 = vmatpush1.msra.mxu0 0.0
        %5487 = vmatprep.subr.mxu0 0.0
        %5488 = vmatpush1.msra.mxu0 0.0
        %5489 = vmatprep.subr.mxu0 0.0
        %5490 = vmatpush1.msra.mxu0 0.0
        %5491 = vmatprep.subr.mxu0 0.0
        %5492 = vmatpush1.msra.mxu0 0.0
        %5493 = vmatprep.subr.mxu0 0.0
        %5494 = vmatpush1.msra.mxu0 0.0
        %5495 = vmatprep.subr.mxu0 0.0
        %5496 = vmatpush1.msra.mxu0 0.0
        %5497 = vmatprep.subr.mxu0 0.0
        %5498 = vmatpush1.msra.mxu0 0.0
        %5499 = vmatprep.subr.mxu0 0.0
        %5500 = vmatpush1.msra.mxu0 0.0
        %5501 = vmatprep.subr.mxu0 0.0
        %5502 = vmatpush1.msra.mxu0 0.0
        %5503 = vmatprep.subr.mxu0 0.0
        %5504 = vmatpush1.msra.mxu0 0.0
        %5505 = vmatprep.subr.mxu0 0.0
        %5506 = vmatpush1.msra.mxu0 0.0
        %5507 = vmatprep.subr.mxu0 0.0
        %5508 = vmatpush1.msra.mxu0 0.0
        %5509 = vmatprep.mubr.f32.mxu0 0.0
        %5510 = vmatmul.mubr.f32.gmra.mrb[0].mxu0 %v5440
        %v5511 = vpop.f32.mrb[0].mxu0
        %v5512 = vadd.f32 0.0, %v5511
        %v5513 = vpop.f32.mrb[0].mxu0
        %5514 = vdwg.mxu0
        %5515 = vst.msk [vmem:[#allocation5 + $0x4] sm:$0xf] %vm871, %v5512
        %v5516 = vadd.f32 %v5390, %v5400
        %v5517 = vld [vmem:[#allocation2 + $0x12] sm:$0x1f]
        %v5518 = vld [vmem:[#allocation3 + $0x12] sm:$0x1f]
        %v5519 = vadd.f32 %v5517, %v5518
        %s5520 = scalar_lea.vmem [#allocation2], 31
        %v5521 = vld [vmem:[%s5520] ss:$8 sm:$0xf]
        %v5522 = vld [vmem:[%s5520] ss:$8 sm:$0x10]
        %v5523 = vor.u32 %v5521, %v5522
        %s5524 = scalar_lea.vmem [#allocation3], 31
        %v5525 = vld [vmem:[%s5524] ss:$8 sm:$0xf]
        %v5526 = vld [vmem:[%s5524] ss:$8 sm:$0x10]
        %v5527 = vor.u32 %v5525, %v5526
        %v5528 = vadd.f32 %v5523, %v5527
        %v5529 = vsel %vm5231, %v5519, -inf
        %5530 = vmax.xlane.f32.xlu0 %v5529
        %v5531 = vpop.xlane.xlu0 %5530
        %v5532 = vsel %vm1679, %v5531, -inf
        %v5533 = vrot.slane %v5532, 4
        %v5534 = vmax.f32 %v5532, %v5533
        %v5535 = vrot.slane %v5534, 2
        %v5536 = vmax.f32 %v5534, %v5535
        %v5537 = vrot.slane %v5536, 1
        %v5538 = vmax.f32 %v5536, %v5537
        %v5539 = vsel %vm5231, %v5528, -inf
        %5540 = vmax.xlane.f32.xlu0 %v5539
        %v5541 = vpop.xlane.xlu0 %5540
        %v5542 = vsel %vm1679, %v5541, -inf
        %v5543 = vrot.slane %v5542, 4
        %v5544 = vmax.f32 %v5542, %v5543
        %v5545 = vrot.slane %v5544, 2
        %v5546 = vmax.f32 %v5544, %v5545
        %v5547 = vrot.slane %v5546, 1
        %v5548 = vmax.f32 %v5546, %v5547
        %v5549 = vsub.f32 %v5519, %v5538
        %v5550 = vmul.f32 %v5549, 1.442695
        %v5551 = vpow.pop %v5550
        %v5552 = vsub.f32 %v5528, %v5548
        %v5553 = vmul.f32 %v5552, 1.442695
        %v5554 = vpow.pop %v5553
        %5555 = vxpose.xlu0.b32.start [1/16] %v5551, 128
        %5556 = vxpose.xlu0.b32.cont [2/16] 0.0, 128
        %5557 = vxpose.xlu0.b32.cont [3/16] 0.0, 128
        %5558 = vxpose.xlu0.b32.cont [4/16] 0.0, 128
        %5559 = vxpose.xlu0.b32.cont [5/16] 0.0, 128
        %5560 = vxpose.xlu0.b32.cont [6/16] 0.0, 128
        %5561 = vxpose.xlu0.b32.cont [7/16] 0.0, 128
        %5562 = vxpose.xlu0.b32.cont [8/16] 0.0, 128
        %5563 = vxpose.xlu0.b32.cont [9/16] 0.0, 128
        %5564 = vxpose.xlu0.b32.cont [10/16] 0.0, 128
        %5565 = vxpose.xlu0.b32.cont [11/16] 0.0, 128
        %5566 = vxpose.xlu0.b32.cont [12/16] 0.0, 128
        %5567 = vxpose.xlu0.b32.cont [13/16] 0.0, 128
        %5568 = vxpose.xlu0.b32.cont [14/16] 0.0, 128
        %5569 = vxpose.xlu0.b32.cont [15/16] 0.0, 128
        %5570 = vxpose.xlu0.b32.end [16/16] 0.0, 128
        %v5571 = vpop.trf.xlu0
        %v5572 = vpop.trf.xlu0
        %v5573 = vpop.trf.xlu0
        %v5574 = vpop.trf.xlu0
        %v5575 = vpop.trf.xlu0
        %v5576 = vpop.trf.xlu0
        %v5577 = vpop.trf.xlu0
        %v5578 = vpop.trf.xlu0
        %v5579 = vpop.trf.xlu0
        %v5580 = vpop.trf.xlu0
        %v5581 = vpop.trf.xlu0
        %v5582 = vpop.trf.xlu0
        %v5583 = vpop.trf.xlu0
        %v5584 = vpop.trf.xlu0
        %v5585 = vpop.trf.xlu0
        %v5586 = vpop.trf.xlu0
        %v5588 = vsel %vm5290, %v5571, 0
        %v5591 = vsel %vm1679, %v5554, 0
        %5593 = vmatprep.subr.mxu0 0.0
        %5594 = vmatpush1.msra.mxu0 %v5591
        %5595 = vmatprep.subr.mxu0 0.0
        %5596 = vmatpush1.msra.mxu0 0.0
        %5597 = vmatprep.subr.mxu0 0.0
        %5598 = vmatpush1.msra.mxu0 0.0
        %5599 = vmatprep.subr.mxu0 0.0
        %5600 = vmatpush1.msra.mxu0 0.0
        %5601 = vmatprep.subr.mxu0 0.0
        %5602 = vmatpush1.msra.mxu0 0.0
        %5603 = vmatprep.subr.mxu0 0.0
        %5604 = vmatpush1.msra.mxu0 0.0
        %5605 = vmatprep.subr.mxu0 0.0
        %5606 = vmatpush1.msra.mxu0 0.0
        %5607 = vmatprep.subr.mxu0 0.0
        %5608 = vmatpush1.msra.mxu0 0.0
        %5609 = vmatprep.subr.mxu0 0.0
        %5610 = vmatpush1.msra.mxu0 0.0
        %5611 = vmatprep.subr.mxu0 0.0
        %5612 = vmatpush1.msra.mxu0 0.0
        %5613 = vmatprep.subr.mxu0 0.0
        %5614 = vmatpush1.msra.mxu0 0.0
        %5615 = vmatprep.subr.mxu0 0.0
        %5616 = vmatpush1.msra.mxu0 0.0
        %5617 = vmatprep.subr.mxu0 0.0
        %5618 = vmatpush1.msra.mxu0 0.0
        %5619 = vmatprep.subr.mxu0 0.0
        %5620 = vmatpush1.msra.mxu0 0.0
        %5621 = vmatprep.subr.mxu0 0.0
        %5622 = vmatpush1.msra.mxu0 0.0
        %5623 = vmatprep.subr.mxu0 0.0
        %5624 = vmatpush1.msra.mxu0 0.0
        %5625 = vmatprep.subr.mxu0 0.0
        %5626 = vmatpush1.msra.mxu0 0.0
        %5627 = vmatprep.subr.mxu0 0.0
        %5628 = vmatpush1.msra.mxu0 0.0
        %5629 = vmatprep.subr.mxu0 0.0
        %5630 = vmatpush1.msra.mxu0 0.0
        %5631 = vmatprep.subr.mxu0 0.0
        %5632 = vmatpush1.msra.mxu0 0.0
        %5633 = vmatprep.subr.mxu0 0.0
        %5634 = vmatpush1.msra.mxu0 0.0
        %5635 = vmatprep.subr.mxu0 0.0
        %5636 = vmatpush1.msra.mxu0 0.0
        %5637 = vmatprep.subr.mxu0 0.0
        %5638 = vmatpush1.msra.mxu0 0.0
        %5639 = vmatprep.subr.mxu0 0.0
        %5640 = vmatpush1.msra.mxu0 0.0
        %5641 = vmatprep.subr.mxu0 0.0
        %5642 = vmatpush1.msra.mxu0 0.0
        %5643 = vmatprep.subr.mxu0 0.0
        %5644 = vmatpush1.msra.mxu0 0.0
        %5645 = vmatprep.subr.mxu0 0.0
        %5646 = vmatpush1.msra.mxu0 0.0
        %5647 = vmatprep.subr.mxu0 0.0
        %5648 = vmatpush1.msra.mxu0 0.0
        %5649 = vmatprep.subr.mxu0 0.0
        %5650 = vmatpush1.msra.mxu0 0.0
        %5651 = vmatprep.subr.mxu0 0.0
        %5652 = vmatpush1.msra.mxu0 0.0
        %5653 = vmatprep.subr.mxu0 0.0
        %5654 = vmatpush1.msra.mxu0 0.0
        %5655 = vmatprep.subr.mxu0 0.0
        %5656 = vmatpush1.msra.mxu0 0.0
        %5657 = vmatprep.mubr.f32.mxu0 0.0
        %5658 = vmatmul.mubr.f32.gmra.mrb[0].mxu0 %v5588
        %v5659 = vpop.f32.mrb[0].mxu0
        %v5660 = vadd.f32 0.0, %v5659
        %v5661 = vpop.f32.mrb[0].mxu0
        %5662 = vdwg.mxu0
        %5663 = vst.msk [vmem:[#allocation5 + $0x8] sm:$0xf] %vm871, %v5660
        %v5664 = vadd.f32 %v5538, %v5548
        %v5665 = vsel %vm797, %v5368, %v5516
        %v5666 = vsel %vm1673, %v5665, %v5664
        %v5667 = vld [vmem:[#allocation5] ss:$4 sm:$0x7]
        %v5668 = vld [vmem:[%s8] sm:$0xf]
        %v5669 = vld [vmem:[%s1685] ss:$4 sm:$0x7]
        %v5670 = vld [vmem:[%s1687] sm:$0xf]
        %v5672 = vsel %vm503, %v5669, 0
        %v5675 = vsel %vm1677, %v5670, 0
        %5677 = vmatprep.subr.mxu0 0.0
        %5678 = vmatpush1.msra.mxu0 %v5675
        %5679 = vmatprep.subr.mxu0 0.0
        %5680 = vmatpush1.msra.mxu0 0.0
        %5681 = vmatprep.subr.mxu0 0.0
        %5682 = vmatpush1.msra.mxu0 0.0
        %5683 = vmatprep.subr.mxu0 0.0
        %5684 = vmatpush1.msra.mxu0 0.0
        %5685 = vmatprep.subr.mxu0 0.0
        %5686 = vmatpush1.msra.mxu0 0.0
        %5687 = vmatprep.subr.mxu0 0.0
        %5688 = vmatpush1.msra.mxu0 0.0
        %5689 = vmatprep.subr.mxu0 0.0
        %5690 = vmatpush1.msra.mxu0 0.0
        %5691 = vmatprep.subr.mxu0 0.0
        %5692 = vmatpush1.msra.mxu0 0.0
        %5693 = vmatprep.subr.mxu0 0.0
        %5694 = vmatpush1.msra.mxu0 0.0
        %5695 = vmatprep.subr.mxu0 0.0
        %5696 = vmatpush1.msra.mxu0 0.0
        %5697 = vmatprep.subr.mxu0 0.0
        %5698 = vmatpush1.msra.mxu0 0.0
        %5699 = vmatprep.subr.mxu0 0.0
        %5700 = vmatpush1.msra.mxu0 0.0
        %5701 = vmatprep.subr.mxu0 0.0
        %5702 = vmatpush1.msra.mxu0 0.0
        %5703 = vmatprep.subr.mxu0 0.0
        %5704 = vmatpush1.msra.mxu0 0.0
        %5705 = vmatprep.subr.mxu0 0.0
        %5706 = vmatpush1.msra.mxu0 0.0
        %5707 = vmatprep.subr.mxu0 0.0
        %5708 = vmatpush1.msra.mxu0 0.0
        %5709 = vmatprep.subr.mxu0 0.0
        %5710 = vmatpush1.msra.mxu0 0.0
        %5711 = vmatprep.subr.mxu0 0.0
        %5712 = vmatpush1.msra.mxu0 0.0
        %5713 = vmatprep.subr.mxu0 0.0
        %5714 = vmatpush1.msra.mxu0 0.0
        %5715 = vmatprep.subr.mxu0 0.0
        %5716 = vmatpush1.msra.mxu0 0.0
        %5717 = vmatprep.subr.mxu0 0.0
        %5718 = vmatpush1.msra.mxu0 0.0
        %5719 = vmatprep.subr.mxu0 0.0
        %5720 = vmatpush1.msra.mxu0 0.0
        %5721 = vmatprep.subr.mxu0 0.0
        %5722 = vmatpush1.msra.mxu0 0.0
        %5723 = vmatprep.subr.mxu0 0.0
        %5724 = vmatpush1.msra.mxu0 0.0
        %5725 = vmatprep.subr.mxu0 0.0
        %5726 = vmatpush1.msra.mxu0 0.0
        %5727 = vmatprep.subr.mxu0 0.0
        %5728 = vmatpush1.msra.mxu0 0.0
        %5729 = vmatprep.subr.mxu0 0.0
        %5730 = vmatpush1.msra.mxu0 0.0
        %5731 = vmatprep.subr.mxu0 0.0
        %5732 = vmatpush1.msra.mxu0 0.0
        %5733 = vmatprep.subr.mxu0 0.0
        %5734 = vmatpush1.msra.mxu0 0.0
        %5735 = vmatprep.subr.mxu0 0.0
        %5736 = vmatpush1.msra.mxu0 0.0
        %5737 = vmatprep.subr.mxu0 0.0
        %5738 = vmatpush1.msra.mxu0 0.0
        %5739 = vmatprep.subr.mxu0 0.0
        %5740 = vmatpush1.msra.mxu0 0.0
        %5741 = vmatprep.mubr.f32.mxu0 0.0
        %5742 = vmatmul.mubr.f32.gmra.mrb[0].mxu0 %v5672
        %v5743 = vpop.f32.mrb[0].mxu0
        %v5744 = vadd.f32 0.0, %v5743
        %v5745 = vpop.f32.mrb[0].mxu0
        %5746 = vdwg.mxu0
        %v5748 = vsel %vm503, %v5667, 0
        %v5751 = vsel %vm1677, %v5668, 0
        %5753 = vmatprep.subr.mxu0 0.0
        %5754 = vmatpush1.msra.mxu0 %v5751
        %5755 = vmatprep.subr.mxu0 0.0
        %5756 = vmatpush1.msra.mxu0 0.0
        %5757 = vmatprep.subr.mxu0 0.0
        %5758 = vmatpush1.msra.mxu0 0.0
        %5759 = vmatprep.subr.mxu0 0.0
        %5760 = vmatpush1.msra.mxu0 0.0
        %5761 = vmatprep.subr.mxu0 0.0
        %5762 = vmatpush1.msra.mxu0 0.0
        %5763 = vmatprep.subr.mxu0 0.0
        %5764 = vmatpush1.msra.mxu0 0.0
        %5765 = vmatprep.subr.mxu0 0.0
        %5766 = vmatpush1.msra.mxu0 0.0
        %5767 = vmatprep.subr.mxu0 0.0
        %5768 = vmatpush1.msra.mxu0 0.0
        %5769 = vmatprep.subr.mxu0 0.0
        %5770 = vmatpush1.msra.mxu0 0.0
        %5771 = vmatprep.subr.mxu0 0.0
        %5772 = vmatpush1.msra.mxu0 0.0
        %5773 = vmatprep.subr.mxu0 0.0
        %5774 = vmatpush1.msra.mxu0 0.0
        %5775 = vmatprep.subr.mxu0 0.0
        %5776 = vmatpush1.msra.mxu0 0.0
        %5777 = vmatprep.subr.mxu0 0.0
        %5778 = vmatpush1.msra.mxu0 0.0
        %5779 = vmatprep.subr.mxu0 0.0
        %5780 = vmatpush1.msra.mxu0 0.0
        %5781 = vmatprep.subr.mxu0 0.0
        %5782 = vmatpush1.msra.mxu0 0.0
        %5783 = vmatprep.subr.mxu0 0.0
        %5784 = vmatpush1.msra.mxu0 0.0
        %5785 = vmatprep.subr.mxu0 0.0
        %5786 = vmatpush1.msra.mxu0 0.0
        %5787 = vmatprep.subr.mxu0 0.0
        %5788 = vmatpush1.msra.mxu0 0.0
        %5789 = vmatprep.subr.mxu0 0.0
        %5790 = vmatpush1.msra.mxu0 0.0
        %5791 = vmatprep.subr.mxu0 0.0
        %5792 = vmatpush1.msra.mxu0 0.0
        %5793 = vmatprep.subr.mxu0 0.0
        %5794 = vmatpush1.msra.mxu0 0.0
        %5795 = vmatprep.subr.mxu0 0.0
        %5796 = vmatpush1.msra.mxu0 0.0
        %5797 = vmatprep.subr.mxu0 0.0
        %5798 = vmatpush1.msra.mxu0 0.0
        %5799 = vmatprep.subr.mxu0 0.0
        %5800 = vmatpush1.msra.mxu0 0.0
        %5801 = vmatprep.subr.mxu0 0.0
        %5802 = vmatpush1.msra.mxu0 0.0
        %5803 = vmatprep.subr.mxu0 0.0
        %5804 = vmatpush1.msra.mxu0 0.0
        %5805 = vmatprep.subr.mxu0 0.0
        %5806 = vmatpush1.msra.mxu0 0.0
        %5807 = vmatprep.subr.mxu0 0.0
        %5808 = vmatpush1.msra.mxu0 0.0
        %5809 = vmatprep.subr.mxu0 0.0
        %5810 = vmatpush1.msra.mxu0 0.0
        %5811 = vmatprep.subr.mxu0 0.0
        %5812 = vmatpush1.msra.mxu0 0.0
        %5813 = vmatprep.subr.mxu0 0.0
        %5814 = vmatpush1.msra.mxu0 0.0
        %5815 = vmatprep.subr.mxu0 0.0
        %5816 = vmatpush1.msra.mxu0 0.0
        %5817 = vmatprep.mubr.f32.mxu0 0.0
        %5818 = vmatmul.mubr.f32.gmra.mrb[0].mxu0 %v5748
        %v5819 = vpop.f32.mrb[0].mxu0
        %v5820 = vadd.f32 %v5744, %v5819
        %v5821 = vpop.f32.mrb[0].mxu0
        %5822 = vdwg.mxu0
        %v5823 = vld [vmem:[%s1841] ss:$4 sm:$0x7]
        %v5824 = vld [vmem:[%s1843] sm:$0xf]
        %v5826 = vsel %vm503, %v5823, 0
        %v5829 = vsel %vm1677, %v5824, 0
        %5831 = vmatprep.subr.mxu0 0.0
        %5832 = vmatpush1.msra.mxu0 %v5829
        %5833 = vmatprep.subr.mxu0 0.0
        %5834 = vmatpush1.msra.mxu0 0.0
        %5835 = vmatprep.subr.mxu0 0.0
        %5836 = vmatpush1.msra.mxu0 0.0
        %5837 = vmatprep.subr.mxu0 0.0
        %5838 = vmatpush1.msra.mxu0 0.0
        %5839 = vmatprep.subr.mxu0 0.0
        %5840 = vmatpush1.msra.mxu0 0.0
        %5841 = vmatprep.subr.mxu0 0.0
        %5842 = vmatpush1.msra.mxu0 0.0
        %5843 = vmatprep.subr.mxu0 0.0
        %5844 = vmatpush1.msra.mxu0 0.0
        %5845 = vmatprep.subr.mxu0 0.0
        %5846 = vmatpush1.msra.mxu0 0.0
        %5847 = vmatprep.subr.mxu0 0.0
        %5848 = vmatpush1.msra.mxu0 0.0
        %5849 = vmatprep.subr.mxu0 0.0
        %5850 = vmatpush1.msra.mxu0 0.0
        %5851 = vmatprep.subr.mxu0 0.0
        %5852 = vmatpush1.msra.mxu0 0.0
        %5853 = vmatprep.subr.mxu0 0.0
        %5854 = vmatpush1.msra.mxu0 0.0
        %5855 = vmatprep.subr.mxu0 0.0
        %5856 = vmatpush1.msra.mxu0 0.0
        %5857 = vmatprep.subr.mxu0 0.0
        %5858 = vmatpush1.msra.mxu0 0.0
        %5859 = vmatprep.subr.mxu0 0.0
        %5860 = vmatpush1.msra.mxu0 0.0
        %5861 = vmatprep.subr.mxu0 0.0
        %5862 = vmatpush1.msra.mxu0 0.0
        %5863 = vmatprep.subr.mxu0 0.0
        %5864 = vmatpush1.msra.mxu0 0.0
        %5865 = vmatprep.subr.mxu0 0.0
        %5866 = vmatpush1.msra.mxu0 0.0
        %5867 = vmatprep.subr.mxu0 0.0
        %5868 = vmatpush1.msra.mxu0 0.0
        %5869 = vmatprep.subr.mxu0 0.0
        %5870 = vmatpush1.msra.mxu0 0.0
        %5871 = vmatprep.subr.mxu0 0.0
        %5872 = vmatpush1.msra.mxu0 0.0
        %5873 = vmatprep.subr.mxu0 0.0
        %5874 = vmatpush1.msra.mxu0 0.0
        %5875 = vmatprep.subr.mxu0 0.0
        %5876 = vmatpush1.msra.mxu0 0.0
        %5877 = vmatprep.subr.mxu0 0.0
        %5878 = vmatpush1.msra.mxu0 0.0
        %5879 = vmatprep.subr.mxu0 0.0
        %5880 = vmatpush1.msra.mxu0 0.0
        %5881 = vmatprep.subr.mxu0 0.0
        %5882 = vmatpush1.msra.mxu0 0.0
        %5883 = vmatprep.subr.mxu0 0.0
        %5884 = vmatpush1.msra.mxu0 0.0
        %5885 = vmatprep.subr.mxu0 0.0
        %5886 = vmatpush1.msra.mxu0 0.0
        %5887 = vmatprep.subr.mxu0 0.0
        %5888 = vmatpush1.msra.mxu0 0.0
        %5889 = vmatprep.subr.mxu0 0.0
        %5890 = vmatpush1.msra.mxu0 0.0
        %5891 = vmatprep.subr.mxu0 0.0
        %5892 = vmatpush1.msra.mxu0 0.0
        %5893 = vmatprep.subr.mxu0 0.0
        %5894 = vmatpush1.msra.mxu0 0.0
        %5895 = vmatprep.mubr.f32.mxu0 0.0
        %5896 = vmatmul.mubr.f32.gmra.mrb[0].mxu0 %v5826
        %v5897 = vpop.f32.mrb[0].mxu0
        %v5898 = vadd.f32 0.0, %v5897
        %v5899 = vpop.f32.mrb[0].mxu0
        %5900 = vdwg.mxu0
        %v5901 = vadd.f32 %v5820, %v5898
        %v5902 = vld [vmem:[%s1922] ss:$4 sm:$0x7]
        %v5903 = vld [vmem:[%s1924] sm:$0xf]
        %v5905 = vsel %vm503, %v5902, 0
        %v5908 = vsel %vm1677, %v5903, 0
        %5910 = vmatprep.subr.mxu0 0.0
        %5911 = vmatpush1.msra.mxu0 %v5908
        %5912 = vmatprep.subr.mxu0 0.0
        %5913 = vmatpush1.msra.mxu0 0.0
        %5914 = vmatprep.subr.mxu0 0.0
        %5915 = vmatpush1.msra.mxu0 0.0
        %5916 = vmatprep.subr.mxu0 0.0
        %5917 = vmatpush1.msra.mxu0 0.0
        %5918 = vmatprep.subr.mxu0 0.0
        %5919 = vmatpush1.msra.mxu0 0.0
        %5920 = vmatprep.subr.mxu0 0.0
        %5921 = vmatpush1.msra.mxu0 0.0
        %5922 = vmatprep.subr.mxu0 0.0
        %5923 = vmatpush1.msra.mxu0 0.0
        %5924 = vmatprep.subr.mxu0 0.0
        %5925 = vmatpush1.msra.mxu0 0.0
        %5926 = vmatprep.subr.mxu0 0.0
        %5927 = vmatpush1.msra.mxu0 0.0
        %5928 = vmatprep.subr.mxu0 0.0
        %5929 = vmatpush1.msra.mxu0 0.0
        %5930 = vmatprep.subr.mxu0 0.0
        %5931 = vmatpush1.msra.mxu0 0.0
        %5932 = vmatprep.subr.mxu0 0.0
        %5933 = vmatpush1.msra.mxu0 0.0
        %5934 = vmatprep.subr.mxu0 0.0
        %5935 = vmatpush1.msra.mxu0 0.0
        %5936 = vmatprep.subr.mxu0 0.0
        %5937 = vmatpush1.msra.mxu0 0.0
        %5938 = vmatprep.subr.mxu0 0.0
        %5939 = vmatpush1.msra.mxu0 0.0
        %5940 = vmatprep.subr.mxu0 0.0
        %5941 = vmatpush1.msra.mxu0 0.0
        %5942 = vmatprep.subr.mxu0 0.0
        %5943 = vmatpush1.msra.mxu0 0.0
        %5944 = vmatprep.subr.mxu0 0.0
        %5945 = vmatpush1.msra.mxu0 0.0
        %5946 = vmatprep.subr.mxu0 0.0
        %5947 = vmatpush1.msra.mxu0 0.0
        %5948 = vmatprep.subr.mxu0 0.0
        %5949 = vmatpush1.msra.mxu0 0.0
        %5950 = vmatprep.subr.mxu0 0.0
        %5951 = vmatpush1.msra.mxu0 0.0
        %5952 = vmatprep.subr.mxu0 0.0
        %5953 = vmatpush1.msra.mxu0 0.0
        %5954 = vmatprep.subr.mxu0 0.0
        %5955 = vmatpush1.msra.mxu0 0.0
        %5956 = vmatprep.subr.mxu0 0.0
        %5957 = vmatpush1.msra.mxu0 0.0
        %5958 = vmatprep.subr.mxu0 0.0
        %5959 = vmatpush1.msra.mxu0 0.0
        %5960 = vmatprep.subr.mxu0 0.0
        %5961 = vmatpush1.msra.mxu0 0.0
        %5962 = vmatprep.subr.mxu0 0.0
        %5963 = vmatpush1.msra.mxu0 0.0
        %5964 = vmatprep.subr.mxu0 0.0
        %5965 = vmatpush1.msra.mxu0 0.0
        %5966 = vmatprep.subr.mxu0 0.0
        %5967 = vmatpush1.msra.mxu0 0.0
        %5968 = vmatprep.subr.mxu0 0.0
        %5969 = vmatpush1.msra.mxu0 0.0
        %5970 = vmatprep.subr.mxu0 0.0
        %5971 = vmatpush1.msra.mxu0 0.0
        %5972 = vmatprep.subr.mxu0 0.0
        %5973 = vmatpush1.msra.mxu0 0.0
        %5974 = vmatprep.mubr.f32.mxu0 0.0
        %5975 = vmatmul.mubr.f32.gmra.mrb[0].mxu0 %v5905
        %v5976 = vpop.f32.mrb[0].mxu0
        %v5977 = vadd.f32 0.0, %v5976
        %v5978 = vpop.f32.mrb[0].mxu0
        %5979 = vdwg.mxu0
        %v5980 = vadd.f32 %v5901, %v5977
        %s5981 = scalar_lea.vmem [#allocation3], 5
        %v5982 = vld [vmem:[%s5981] ss:$9 sm:$0x7]
        %s5983 = scalar_lea.vmem [#allocation4], 5
        %v5984 = vld [vmem:[%s5983] ss:$9 sm:$0x7]
        %v5985 = vlog2.pop %v5980
        %v5986 = vmul.f32 %v5985, 0.6931472
        %5988 = vset.pattern.permute.xlu0 0
        %5989 = vperm.xlu0 %5988, %v5666
        %v5990 = vpop.permute.xlu0 %5989
        %v5992 = vadd.f32 %v5990, %v5986
        %v5993 = vadd.f32 %v5992, %v5982
        %5995 = vset.pattern.permute.xlu0 0
        %5996 = vperm.xlu0 %5995, %v5984
        %v5997 = vpop.permute.xlu0 %5996
        %v5999 = vadd.f32 %v5993, %v5997
        %6000 = vst.msk [vmem:[#allocation2 + $0x5] sm:$0x1] %vm726, %v5999
        %6001 = vst.msk [vmem:[#allocation2 + $0xd] sm:$0x2] %vm728, %v5999
        %6002 = vst.msk [vmem:[#allocation2 + $0x15] sm:$0x4] %vm730, %v5999
        %v6003 = vld [vmem:[#allocation2] sm:$0x3f]
        %v6004 = vld [vmem:[#allocation3] sm:$0x3f]
        %v6005 = vadd.f32 %v6003, %v6004
        %s6006 = scalar_lea.vmem [#allocation2], 14
        %v6007 = vld [vmem:[%s6006] ss:$8 sm:$0xf]
        %v6008 = vld [vmem:[%s6006] ss:$8 sm:$0x30]
        %v6009 = vor.u32 %v6007, %v6008
        %s6010 = scalar_lea.vmem [#allocation3], 14
        %v6011 = vld [vmem:[%s6010] ss:$8 sm:$0xf]
        %v6012 = vld [vmem:[%s6010] ss:$8 sm:$0x30]
        %v6013 = vor.u32 %v6011, %v6012
        %v6014 = vadd.f32 %v6009, %v6013
        %vm6015 = vcmask 29696
        %v6016 = vsel %vm6015, %v6005, -inf
        %6017 = vmax.xlane.f32.xlu0 %v6016
        %v6018 = vpop.xlane.xlu0 %6017
        %v6019 = vsel %vm1681, %v6018, -inf
        %v6020 = vrot.slane %v6019, 4
        %v6021 = vmax.f32 %v6019, %v6020
        %v6022 = vrot.slane %v6021, 2
        %v6023 = vmax.f32 %v6021, %v6022
        %v6024 = vrot.slane %v6023, 1
        %v6025 = vmax.f32 %v6023, %v6024
        %v6026 = vsel %vm6015, %v6014, -inf
        %6027 = vmax.xlane.f32.xlu0 %v6026
        %v6028 = vpop.xlane.xlu0 %6027
        %v6029 = vsel %vm1681, %v6028, -inf
        %v6030 = vrot.slane %v6029, 4
        %v6031 = vmax.f32 %v6029, %v6030
        %v6032 = vrot.slane %v6031, 2
        %v6033 = vmax.f32 %v6031, %v6032
        %v6034 = vrot.slane %v6033, 1
        %v6035 = vmax.f32 %v6033, %v6034
        %v6036 = vsub.f32 %v6005, %v6025
        %v6037 = vmul.f32 %v6036, 1.442695
        %v6038 = vpow.pop %v6037
        %v6039 = vsub.f32 %v6014, %v6035
        %v6040 = vmul.f32 %v6039, 1.442695
        %v6041 = vpow.pop %v6040
        %6042 = vxpose.xlu0.b32.start [1/16] %v6038, 128
        %6043 = vxpose.xlu0.b32.cont [2/16] 0.0, 128
        %6044 = vxpose.xlu0.b32.cont [3/16] 0.0, 128
        %6045 = vxpose.xlu0.b32.cont [4/16] 0.0, 128
        %6046 = vxpose.xlu0.b32.cont [5/16] 0.0, 128
        %6047 = vxpose.xlu0.b32.cont [6/16] 0.0, 128
        %6048 = vxpose.xlu0.b32.cont [7/16] 0.0, 128
        %6049 = vxpose.xlu0.b32.cont [8/16] 0.0, 128
        %6050 = vxpose.xlu0.b32.cont [9/16] 0.0, 128
        %6051 = vxpose.xlu0.b32.cont [10/16] 0.0, 128
        %6052 = vxpose.xlu0.b32.cont [11/16] 0.0, 128
        %6053 = vxpose.xlu0.b32.cont [12/16] 0.0, 128
        %6054 = vxpose.xlu0.b32.cont [13/16] 0.0, 128
        %6055 = vxpose.xlu0.b32.cont [14/16] 0.0, 128
        %6056 = vxpose.xlu0.b32.cont [15/16] 0.0, 128
        %6057 = vxpose.xlu0.b32.end [16/16] 0.0, 128
        %v6058 = vpop.trf.xlu0
        %v6059 = vpop.trf.xlu0
        %v6060 = vpop.trf.xlu0
        %v6061 = vpop.trf.xlu0
        %v6062 = vpop.trf.xlu0
        %v6063 = vpop.trf.xlu0
        %v6064 = vpop.trf.xlu0
        %v6065 = vpop.trf.xlu0
        %v6066 = vpop.trf.xlu0
        %v6067 = vpop.trf.xlu0
        %v6068 = vpop.trf.xlu0
        %v6069 = vpop.trf.xlu0
        %v6070 = vpop.trf.xlu0
        %v6071 = vpop.trf.xlu0
        %v6072 = vpop.trf.xlu0
        %v6073 = vpop.trf.xlu0
        %vm6074 = vcmask 48128
        %v6076 = vsel %vm6074, %v6058, 0
        %v6079 = vsel %vm1681, %v6041, 0
        %6081 = vmatprep.subr.mxu0 0.0
        %6082 = vmatpush1.msra.mxu0 %v6079
        %6083 = vmatprep.subr.mxu0 0.0
        %6084 = vmatpush1.msra.mxu0 0.0
        %6085 = vmatprep.subr.mxu0 0.0
        %6086 = vmatpush1.msra.mxu0 0.0
        %6087 = vmatprep.subr.mxu0 0.0
        %6088 = vmatpush1.msra.mxu0 0.0
        %6089 = vmatprep.subr.mxu0 0.0
        %6090 = vmatpush1.msra.mxu0 0.0
        %6091 = vmatprep.subr.mxu0 0.0
        %6092 = vmatpush1.msra.mxu0 0.0
        %6093 = vmatprep.subr.mxu0 0.0
        %6094 = vmatpush1.msra.mxu0 0.0
        %6095 = vmatprep.subr.mxu0 0.0
        %6096 = vmatpush1.msra.mxu0 0.0
        %6097 = vmatprep.subr.mxu0 0.0
        %6098 = vmatpush1.msra.mxu0 0.0
        %6099 = vmatprep.subr.mxu0 0.0
        %6100 = vmatpush1.msra.mxu0 0.0
        %6101 = vmatprep.subr.mxu0 0.0
        %6102 = vmatpush1.msra.mxu0 0.0
        %6103 = vmatprep.subr.mxu0 0.0
        %6104 = vmatpush1.msra.mxu0 0.0
        %6105 = vmatprep.subr.mxu0 0.0
        %6106 = vmatpush1.msra.mxu0 0.0
        %6107 = vmatprep.subr.mxu0 0.0
        %6108 = vmatpush1.msra.mxu0 0.0
        %6109 = vmatprep.subr.mxu0 0.0
        %6110 = vmatpush1.msra.mxu0 0.0
        %6111 = vmatprep.subr.mxu0 0.0
        %6112 = vmatpush1.msra.mxu0 0.0
        %6113 = vmatprep.subr.mxu0 0.0
        %6114 = vmatpush1.msra.mxu0 0.0
        %6115 = vmatprep.subr.mxu0 0.0
        %6116 = vmatpush1.msra.mxu0 0.0
        %6117 = vmatprep.subr.mxu0 0.0
        %6118 = vmatpush1.msra.mxu0 0.0
        %6119 = vmatprep.subr.mxu0 0.0
        %6120 = vmatpush1.msra.mxu0 0.0
        %6121 = vmatprep.subr.mxu0 0.0
        %6122 = vmatpush1.msra.mxu0 0.0
        %6123 = vmatprep.subr.mxu0 0.0
        %6124 = vmatpush1.msra.mxu0 0.0
        %6125 = vmatprep.subr.mxu0 0.0
        %6126 = vmatpush1.msra.mxu0 0.0
        %6127 = vmatprep.subr.mxu0 0.0
        %6128 = vmatpush1.msra.mxu0 0.0
        %6129 = vmatprep.subr.mxu0 0.0
        %6130 = vmatpush1.msra.mxu0 0.0
        %6131 = vmatprep.subr.mxu0 0.0
        %6132 = vmatpush1.msra.mxu0 0.0
        %6133 = vmatprep.subr.mxu0 0.0
        %6134 = vmatpush1.msra.mxu0 0.0
        %6135 = vmatprep.subr.mxu0 0.0
        %6136 = vmatpush1.msra.mxu0 0.0
        %6137 = vmatprep.subr.mxu0 0.0
        %6138 = vmatpush1.msra.mxu0 0.0
        %6139 = vmatprep.subr.mxu0 0.0
        %6140 = vmatpush1.msra.mxu0 0.0
        %6141 = vmatprep.subr.mxu0 0.0
        %6142 = vmatpush1.msra.mxu0 0.0
        %6143 = vmatprep.subr.mxu0 0.0
        %6144 = vmatpush1.msra.mxu0 0.0
        %6145 = vmatprep.mubr.f32.mxu0 0.0
        %6146 = vmatmul.mubr.f32.gmra.mrb[0].mxu0 %v6076
        %v6147 = vpop.f32.mrb[0].mxu0
        %v6148 = vadd.f32 0.0, %v6147
        %v6149 = vpop.f32.mrb[0].mxu0
        %6150 = vdwg.mxu0
        %6151 = vst.msk [vmem:[#allocation5] sm:$0xf] %vm871, %v6148
        %v6152 = vadd.f32 %v6025, %v6035
        %v6153 = vld [vmem:[#allocation2 + $0x9] sm:$0x3f]
        %v6154 = vld [vmem:[#allocation3 + $0x9] sm:$0x3f]
        %v6155 = vadd.f32 %v6153, %v6154
        %s6156 = scalar_lea.vmem [#allocation2], 23
        %v6157 = vld [vmem:[%s6156] ss:$8 sm:$0xf]
        %v6158 = vld [vmem:[%s6156] ss:$8 sm:$0x30]
        %v6159 = vor.u32 %v6157, %v6158
        %s6160 = scalar_lea.vmem [#allocation3], 23
        %v6161 = vld [vmem:[%s6160] ss:$8 sm:$0xf]
        %v6162 = vld [vmem:[%s6160] ss:$8 sm:$0x30]
        %v6163 = vor.u32 %v6161, %v6162
        %v6164 = vadd.f32 %v6159, %v6163
        %v6165 = vsel %vm6015, %v6155, -inf
        %6166 = vmax.xlane.f32.xlu0 %v6165
        %v6167 = vpop.xlane.xlu0 %6166
        %v6168 = vsel %vm1681, %v6167, -inf
        %v6169 = vrot.slane %v6168, 4
        %v6170 = vmax.f32 %v6168, %v6169
        %v6171 = vrot.slane %v6170, 2
        %v6172 = vmax.f32 %v6170, %v6171
        %v6173 = vrot.slane %v6172, 1
        %v6174 = vmax.f32 %v6172, %v6173
        %v6175 = vsel %vm6015, %v6164, -inf
        %6176 = vmax.xlane.f32.xlu0 %v6175
        %v6177 = vpop.xlane.xlu0 %6176
        %v6178 = vsel %vm1681, %v6177, -inf
        %v6179 = vrot.slane %v6178, 4
        %v6180 = vmax.f32 %v6178, %v6179
        %v6181 = vrot.slane %v6180, 2
        %v6182 = vmax.f32 %v6180, %v6181
        %v6183 = vrot.slane %v6182, 1
        %v6184 = vmax.f32 %v6182, %v6183
        %v6185 = vsub.f32 %v6155, %v6174
        %v6186 = vmul.f32 %v6185, 1.442695
        %v6187 = vpow.pop %v6186
        %v6188 = vsub.f32 %v6164, %v6184
        %v6189 = vmul.f32 %v6188, 1.442695
        %v6190 = vpow.pop %v6189
        %6191 = vxpose.xlu0.b32.start [1/16] %v6187, 128
        %6192 = vxpose.xlu0.b32.cont [2/16] 0.0, 128
        %6193 = vxpose.xlu0.b32.cont [3/16] 0.0, 128
        %6194 = vxpose.xlu0.b32.cont [4/16] 0.0, 128
        %6195 = vxpose.xlu0.b32.cont [5/16] 0.0, 128
        %6196 = vxpose.xlu0.b32.cont [6/16] 0.0, 128
        %6197 = vxpose.xlu0.b32.cont [7/16] 0.0, 128
        %6198 = vxpose.xlu0.b32.cont [8/16] 0.0, 128
        %6199 = vxpose.xlu0.b32.cont [9/16] 0.0, 128
        %6200 = vxpose.xlu0.b32.cont [10/16] 0.0, 128
        %6201 = vxpose.xlu0.b32.cont [11/16] 0.0, 128
        %6202 = vxpose.xlu0.b32.cont [12/16] 0.0, 128
        %6203 = vxpose.xlu0.b32.cont [13/16] 0.0, 128
        %6204 = vxpose.xlu0.b32.cont [14/16] 0.0, 128
        %6205 = vxpose.xlu0.b32.cont [15/16] 0.0, 128
        %6206 = vxpose.xlu0.b32.end [16/16] 0.0, 128
        %v6207 = vpop.trf.xlu0
        %v6208 = vpop.trf.xlu0
        %v6209 = vpop.trf.xlu0
        %v6210 = vpop.trf.xlu0
        %v6211 = vpop.trf.xlu0
        %v6212 = vpop.trf.xlu0
        %v6213 = vpop.trf.xlu0
        %v6214 = vpop.trf.xlu0
        %v6215 = vpop.trf.xlu0
        %v6216 = vpop.trf.xlu0
        %v6217 = vpop.trf.xlu0
        %v6218 = vpop.trf.xlu0
        %v6219 = vpop.trf.xlu0
        %v6220 = vpop.trf.xlu0
        %v6221 = vpop.trf.xlu0
        %v6222 = vpop.trf.xlu0
        %v6224 = vsel %vm6074, %v6207, 0
        %v6227 = vsel %vm1681, %v6190, 0
        %6229 = vmatprep.subr.mxu0 0.0
        %6230 = vmatpush1.msra.mxu0 %v6227
        %6231 = vmatprep.subr.mxu0 0.0
        %6232 = vmatpush1.msra.mxu0 0.0
        %6233 = vmatprep.subr.mxu0 0.0
        %6234 = vmatpush1.msra.mxu0 0.0
        %6235 = vmatprep.subr.mxu0 0.0
        %6236 = vmatpush1.msra.mxu0 0.0
        %6237 = vmatprep.subr.mxu0 0.0
        %6238 = vmatpush1.msra.mxu0 0.0
        %6239 = vmatprep.subr.mxu0 0.0
        %6240 = vmatpush1.msra.mxu0 0.0
        %6241 = vmatprep.subr.mxu0 0.0
        %6242 = vmatpush1.msra.mxu0 0.0
        %6243 = vmatprep.subr.mxu0 0.0
        %6244 = vmatpush1.msra.mxu0 0.0
        %6245 = vmatprep.subr.mxu0 0.0
        %6246 = vmatpush1.msra.mxu0 0.0
        %6247 = vmatprep.subr.mxu0 0.0
        %6248 = vmatpush1.msra.mxu0 0.0
        %6249 = vmatprep.subr.mxu0 0.0
        %6250 = vmatpush1.msra.mxu0 0.0
        %6251 = vmatprep.subr.mxu0 0.0
        %6252 = vmatpush1.msra.mxu0 0.0
        %6253 = vmatprep.subr.mxu0 0.0
        %6254 = vmatpush1.msra.mxu0 0.0
        %6255 = vmatprep.subr.mxu0 0.0
        %6256 = vmatpush1.msra.mxu0 0.0
        %6257 = vmatprep.subr.mxu0 0.0
        %6258 = vmatpush1.msra.mxu0 0.0
        %6259 = vmatprep.subr.mxu0 0.0
        %6260 = vmatpush1.msra.mxu0 0.0
        %6261 = vmatprep.subr.mxu0 0.0
        %6262 = vmatpush1.msra.mxu0 0.0
        %6263 = vmatprep.subr.mxu0 0.0
        %6264 = vmatpush1.msra.mxu0 0.0
        %6265 = vmatprep.subr.mxu0 0.0
        %6266 = vmatpush1.msra.mxu0 0.0
        %6267 = vmatprep.subr.mxu0 0.0
        %6268 = vmatpush1.msra.mxu0 0.0
        %6269 = vmatprep.subr.mxu0 0.0
        %6270 = vmatpush1.msra.mxu0 0.0
        %6271 = vmatprep.subr.mxu0 0.0
        %6272 = vmatpush1.msra.mxu0 0.0
        %6273 = vmatprep.subr.mxu0 0.0
        %6274 = vmatpush1.msra.mxu0 0.0
        %6275 = vmatprep.subr.mxu0 0.0
        %6276 = vmatpush1.msra.mxu0 0.0
        %6277 = vmatprep.subr.mxu0 0.0
        %6278 = vmatpush1.msra.mxu0 0.0
        %6279 = vmatprep.subr.mxu0 0.0
        %6280 = vmatpush1.msra.mxu0 0.0
        %6281 = vmatprep.subr.mxu0 0.0
        %6282 = vmatpush1.msra.mxu0 0.0
        %6283 = vmatprep.subr.mxu0 0.0
        %6284 = vmatpush1.msra.mxu0 0.0
        %6285 = vmatprep.subr.mxu0 0.0
        %6286 = vmatpush1.msra.mxu0 0.0
        %6287 = vmatprep.subr.mxu0 0.0
        %6288 = vmatpush1.msra.mxu0 0.0
        %6289 = vmatprep.subr.mxu0 0.0
        %6290 = vmatpush1.msra.mxu0 0.0
        %6291 = vmatprep.subr.mxu0 0.0
        %6292 = vmatpush1.msra.mxu0 0.0
        %6293 = vmatprep.mubr.f32.mxu0 0.0
        %6294 = vmatmul.mubr.f32.gmra.mrb[0].mxu0 %v6224
        %v6295 = vpop.f32.mrb[0].mxu0
        %v6296 = vadd.f32 0.0, %v6295
        %v6297 = vpop.f32.mrb[0].mxu0
        %6298 = vdwg.mxu0
        %6299 = vst.msk [vmem:[#allocation5 + $0x4] sm:$0xf] %vm871, %v6296
        %v6300 = vadd.f32 %v6174, %v6184
        %v6301 = vsel %vm797, %v6152, %v6300
        %v6302 = vld [vmem:[#allocation5] ss:$4 sm:$0x3]
        %v6303 = vld [vmem:[%s8] sm:$0xf]
        %v6304 = vld [vmem:[%s1685] ss:$4 sm:$0x3]
        %v6305 = vld [vmem:[%s1687] sm:$0xf]
        %v6307 = vsel %vm503, %v6304, 0
        %v6310 = vsel %vm1677, %v6305, 0
        %6312 = vmatprep.subr.mxu0 0.0
        %6313 = vmatpush1.msra.mxu0 %v6310
        %6314 = vmatprep.subr.mxu0 0.0
        %6315 = vmatpush1.msra.mxu0 0.0
        %6316 = vmatprep.subr.mxu0 0.0
        %6317 = vmatpush1.msra.mxu0 0.0
        %6318 = vmatprep.subr.mxu0 0.0
        %6319 = vmatpush1.msra.mxu0 0.0
        %6320 = vmatprep.subr.mxu0 0.0
        %6321 = vmatpush1.msra.mxu0 0.0
        %6322 = vmatprep.subr.mxu0 0.0
        %6323 = vmatpush1.msra.mxu0 0.0
        %6324 = vmatprep.subr.mxu0 0.0
        %6325 = vmatpush1.msra.mxu0 0.0
        %6326 = vmatprep.subr.mxu0 0.0
        %6327 = vmatpush1.msra.mxu0 0.0
        %6328 = vmatprep.subr.mxu0 0.0
        %6329 = vmatpush1.msra.mxu0 0.0
        %6330 = vmatprep.subr.mxu0 0.0
        %6331 = vmatpush1.msra.mxu0 0.0
        %6332 = vmatprep.subr.mxu0 0.0
        %6333 = vmatpush1.msra.mxu0 0.0
        %6334 = vmatprep.subr.mxu0 0.0
        %6335 = vmatpush1.msra.mxu0 0.0
        %6336 = vmatprep.subr.mxu0 0.0
        %6337 = vmatpush1.msra.mxu0 0.0
        %6338 = vmatprep.subr.mxu0 0.0
        %6339 = vmatpush1.msra.mxu0 0.0
        %6340 = vmatprep.subr.mxu0 0.0
        %6341 = vmatpush1.msra.mxu0 0.0
        %6342 = vmatprep.subr.mxu0 0.0
        %6343 = vmatpush1.msra.mxu0 0.0
        %6344 = vmatprep.subr.mxu0 0.0
        %6345 = vmatpush1.msra.mxu0 0.0
        %6346 = vmatprep.subr.mxu0 0.0
        %6347 = vmatpush1.msra.mxu0 0.0
        %6348 = vmatprep.subr.mxu0 0.0
        %6349 = vmatpush1.msra.mxu0 0.0
        %6350 = vmatprep.subr.mxu0 0.0
        %6351 = vmatpush1.msra.mxu0 0.0
        %6352 = vmatprep.subr.mxu0 0.0
        %6353 = vmatpush1.msra.mxu0 0.0
        %6354 = vmatprep.subr.mxu0 0.0
        %6355 = vmatpush1.msra.mxu0 0.0
        %6356 = vmatprep.subr.mxu0 0.0
        %6357 = vmatpush1.msra.mxu0 0.0
        %6358 = vmatprep.subr.mxu0 0.0
        %6359 = vmatpush1.msra.mxu0 0.0
        %6360 = vmatprep.subr.mxu0 0.0
        %6361 = vmatpush1.msra.mxu0 0.0
        %6362 = vmatprep.subr.mxu0 0.0
        %6363 = vmatpush1.msra.mxu0 0.0
        %6364 = vmatprep.subr.mxu0 0.0
        %6365 = vmatpush1.msra.mxu0 0.0
        %6366 = vmatprep.subr.mxu0 0.0
        %6367 = vmatpush1.msra.mxu0 0.0
        %6368 = vmatprep.subr.mxu0 0.0
        %6369 = vmatpush1.msra.mxu0 0.0
        %6370 = vmatprep.subr.mxu0 0.0
        %6371 = vmatpush1.msra.mxu0 0.0
        %6372 = vmatprep.subr.mxu0 0.0
        %6373 = vmatpush1.msra.mxu0 0.0
        %6374 = vmatprep.subr.mxu0 0.0
        %6375 = vmatpush1.msra.mxu0 0.0
        %6376 = vmatprep.mubr.f32.mxu0 0.0
        %6377 = vmatmul.mubr.f32.gmra.mrb[0].mxu0 %v6307
        %v6378 = vpop.f32.mrb[0].mxu0
        %v6379 = vadd.f32 0.0, %v6378
        %v6380 = vpop.f32.mrb[0].mxu0
        %6381 = vdwg.mxu0
        %v6383 = vsel %vm503, %v6302, 0
        %v6386 = vsel %vm1677, %v6303, 0
        %6388 = vmatprep.subr.mxu0 0.0
        %6389 = vmatpush1.msra.mxu0 %v6386
        %6390 = vmatprep.subr.mxu0 0.0
        %6391 = vmatpush1.msra.mxu0 0.0
        %6392 = vmatprep.subr.mxu0 0.0
        %6393 = vmatpush1.msra.mxu0 0.0
        %6394 = vmatprep.subr.mxu0 0.0
        %6395 = vmatpush1.msra.mxu0 0.0
        %6396 = vmatprep.subr.mxu0 0.0
        %6397 = vmatpush1.msra.mxu0 0.0
        %6398 = vmatprep.subr.mxu0 0.0
        %6399 = vmatpush1.msra.mxu0 0.0
        %6400 = vmatprep.subr.mxu0 0.0
        %6401 = vmatpush1.msra.mxu0 0.0
        %6402 = vmatprep.subr.mxu0 0.0
        %6403 = vmatpush1.msra.mxu0 0.0
        %6404 = vmatprep.subr.mxu0 0.0
        %6405 = vmatpush1.msra.mxu0 0.0
        %6406 = vmatprep.subr.mxu0 0.0
        %6407 = vmatpush1.msra.mxu0 0.0
        %6408 = vmatprep.subr.mxu0 0.0
        %6409 = vmatpush1.msra.mxu0 0.0
        %6410 = vmatprep.subr.mxu0 0.0
        %6411 = vmatpush1.msra.mxu0 0.0
        %6412 = vmatprep.subr.mxu0 0.0
        %6413 = vmatpush1.msra.mxu0 0.0
        %6414 = vmatprep.subr.mxu0 0.0
        %6415 = vmatpush1.msra.mxu0 0.0
        %6416 = vmatprep.subr.mxu0 0.0
        %6417 = vmatpush1.msra.mxu0 0.0
        %6418 = vmatprep.subr.mxu0 0.0
        %6419 = vmatpush1.msra.mxu0 0.0
        %6420 = vmatprep.subr.mxu0 0.0
        %6421 = vmatpush1.msra.mxu0 0.0
        %6422 = vmatprep.subr.mxu0 0.0
        %6423 = vmatpush1.msra.mxu0 0.0
        %6424 = vmatprep.subr.mxu0 0.0
        %6425 = vmatpush1.msra.mxu0 0.0
        %6426 = vmatprep.subr.mxu0 0.0
        %6427 = vmatpush1.msra.mxu0 0.0
        %6428 = vmatprep.subr.mxu0 0.0
        %6429 = vmatpush1.msra.mxu0 0.0
        %6430 = vmatprep.subr.mxu0 0.0
        %6431 = vmatpush1.msra.mxu0 0.0
        %6432 = vmatprep.subr.mxu0 0.0
        %6433 = vmatpush1.msra.mxu0 0.0
        %6434 = vmatprep.subr.mxu0 0.0
        %6435 = vmatpush1.msra.mxu0 0.0
        %6436 = vmatprep.subr.mxu0 0.0
        %6437 = vmatpush1.msra.mxu0 0.0
        %6438 = vmatprep.subr.mxu0 0.0
        %6439 = vmatpush1.msra.mxu0 0.0
        %6440 = vmatprep.subr.mxu0 0.0
        %6441 = vmatpush1.msra.mxu0 0.0
        %6442 = vmatprep.subr.mxu0 0.0
        %6443 = vmatpush1.msra.mxu0 0.0
        %6444 = vmatprep.subr.mxu0 0.0
        %6445 = vmatpush1.msra.mxu0 0.0
        %6446 = vmatprep.subr.mxu0 0.0
        %6447 = vmatpush1.msra.mxu0 0.0
        %6448 = vmatprep.subr.mxu0 0.0
        %6449 = vmatpush1.msra.mxu0 0.0
        %6450 = vmatprep.subr.mxu0 0.0
        %6451 = vmatpush1.msra.mxu0 0.0
        %6452 = vmatprep.mubr.f32.mxu0 0.0
        %6453 = vmatmul.mubr.f32.gmra.mrb[0].mxu0 %v6383
        %v6454 = vpop.f32.mrb[0].mxu0
        %v6455 = vadd.f32 %v6379, %v6454
        %v6456 = vpop.f32.mrb[0].mxu0
        %6457 = vdwg.mxu0
        %v6458 = vld [vmem:[%s1841] ss:$4 sm:$0x3]
        %v6459 = vld [vmem:[%s1843] sm:$0xf]
        %v6461 = vsel %vm503, %v6458, 0
        %v6464 = vsel %vm1677, %v6459, 0
        %6466 = vmatprep.subr.mxu0 0.0
        %6467 = vmatpush1.msra.mxu0 %v6464
        %6468 = vmatprep.subr.mxu0 0.0
        %6469 = vmatpush1.msra.mxu0 0.0
        %6470 = vmatprep.subr.mxu0 0.0
        %6471 = vmatpush1.msra.mxu0 0.0
        %6472 = vmatprep.subr.mxu0 0.0
        %6473 = vmatpush1.msra.mxu0 0.0
        %6474 = vmatprep.subr.mxu0 0.0
        %6475 = vmatpush1.msra.mxu0 0.0
        %6476 = vmatprep.subr.mxu0 0.0
        %6477 = vmatpush1.msra.mxu0 0.0
        %6478 = vmatprep.subr.mxu0 0.0
        %6479 = vmatpush1.msra.mxu0 0.0
        %6480 = vmatprep.subr.mxu0 0.0
        %6481 = vmatpush1.msra.mxu0 0.0
        %6482 = vmatprep.subr.mxu0 0.0
        %6483 = vmatpush1.msra.mxu0 0.0
        %6484 = vmatprep.subr.mxu0 0.0
        %6485 = vmatpush1.msra.mxu0 0.0
        %6486 = vmatprep.subr.mxu0 0.0
        %6487 = vmatpush1.msra.mxu0 0.0
        %6488 = vmatprep.subr.mxu0 0.0
        %6489 = vmatpush1.msra.mxu0 0.0
        %6490 = vmatprep.subr.mxu0 0.0
        %6491 = vmatpush1.msra.mxu0 0.0
        %6492 = vmatprep.subr.mxu0 0.0
        %6493 = vmatpush1.msra.mxu0 0.0
        %6494 = vmatprep.subr.mxu0 0.0
        %6495 = vmatpush1.msra.mxu0 0.0
        %6496 = vmatprep.subr.mxu0 0.0
        %6497 = vmatpush1.msra.mxu0 0.0
        %6498 = vmatprep.subr.mxu0 0.0
        %6499 = vmatpush1.msra.mxu0 0.0
        %6500 = vmatprep.subr.mxu0 0.0
        %6501 = vmatpush1.msra.mxu0 0.0
        %6502 = vmatprep.subr.mxu0 0.0
        %6503 = vmatpush1.msra.mxu0 0.0
        %6504 = vmatprep.subr.mxu0 0.0
        %6505 = vmatpush1.msra.mxu0 0.0
        %6506 = vmatprep.subr.mxu0 0.0
        %6507 = vmatpush1.msra.mxu0 0.0
        %6508 = vmatprep.subr.mxu0 0.0
        %6509 = vmatpush1.msra.mxu0 0.0
        %6510 = vmatprep.subr.mxu0 0.0
        %6511 = vmatpush1.msra.mxu0 0.0
        %6512 = vmatprep.subr.mxu0 0.0
        %6513 = vmatpush1.msra.mxu0 0.0
        %6514 = vmatprep.subr.mxu0 0.0
        %6515 = vmatpush1.msra.mxu0 0.0
        %6516 = vmatprep.subr.mxu0 0.0
        %6517 = vmatpush1.msra.mxu0 0.0
        %6518 = vmatprep.subr.mxu0 0.0
        %6519 = vmatpush1.msra.mxu0 0.0
        %6520 = vmatprep.subr.mxu0 0.0
        %6521 = vmatpush1.msra.mxu0 0.0
        %6522 = vmatprep.subr.mxu0 0.0
        %6523 = vmatpush1.msra.mxu0 0.0
        %6524 = vmatprep.subr.mxu0 0.0
        %6525 = vmatpush1.msra.mxu0 0.0
        %6526 = vmatprep.subr.mxu0 0.0
        %6527 = vmatpush1.msra.mxu0 0.0
        %6528 = vmatprep.subr.mxu0 0.0
        %6529 = vmatpush1.msra.mxu0 0.0
        %6530 = vmatprep.mubr.f32.mxu0 0.0
        %6531 = vmatmul.mubr.f32.gmra.mrb[0].mxu0 %v6461
        %v6532 = vpop.f32.mrb[0].mxu0
        %v6533 = vadd.f32 0.0, %v6532
        %v6534 = vpop.f32.mrb[0].mxu0
        %6535 = vdwg.mxu0
        %v6536 = vadd.f32 %v6455, %v6533
        %v6537 = vld [vmem:[%s1922] ss:$4 sm:$0x3]
        %v6538 = vld [vmem:[%s1924] sm:$0xf]
        %v6540 = vsel %vm503, %v6537, 0
        %v6543 = vsel %vm1677, %v6538, 0
        %6545 = vmatprep.subr.mxu0 0.0
        %6546 = vmatpush1.msra.mxu0 %v6543
        %6547 = vmatprep.subr.mxu0 0.0
        %6548 = vmatpush1.msra.mxu0 0.0
        %6549 = vmatprep.subr.mxu0 0.0
        %6550 = vmatpush1.msra.mxu0 0.0
        %6551 = vmatprep.subr.mxu0 0.0
        %6552 = vmatpush1.msra.mxu0 0.0
        %6553 = vmatprep.subr.mxu0 0.0
        %6554 = vmatpush1.msra.mxu0 0.0
        %6555 = vmatprep.subr.mxu0 0.0
        %6556 = vmatpush1.msra.mxu0 0.0
        %6557 = vmatprep.subr.mxu0 0.0
        %6558 = vmatpush1.msra.mxu0 0.0
        %6559 = vmatprep.subr.mxu0 0.0
        %6560 = vmatpush1.msra.mxu0 0.0
        %6561 = vmatprep.subr.mxu0 0.0
        %6562 = vmatpush1.msra.mxu0 0.0
        %6563 = vmatprep.subr.mxu0 0.0
        %6564 = vmatpush1.msra.mxu0 0.0
        %6565 = vmatprep.subr.mxu0 0.0
        %6566 = vmatpush1.msra.mxu0 0.0
        %6567 = vmatprep.subr.mxu0 0.0
        %6568 = vmatpush1.msra.mxu0 0.0
        %6569 = vmatprep.subr.mxu0 0.0
        %6570 = vmatpush1.msra.mxu0 0.0
        %6571 = vmatprep.subr.mxu0 0.0
        %6572 = vmatpush1.msra.mxu0 0.0
        %6573 = vmatprep.subr.mxu0 0.0
        %6574 = vmatpush1.msra.mxu0 0.0
        %6575 = vmatprep.subr.mxu0 0.0
        %6576 = vmatpush1.msra.mxu0 0.0
        %6577 = vmatprep.subr.mxu0 0.0
        %6578 = vmatpush1.msra.mxu0 0.0
        %6579 = vmatprep.subr.mxu0 0.0
        %6580 = vmatpush1.msra.mxu0 0.0
        %6581 = vmatprep.subr.mxu0 0.0
        %6582 = vmatpush1.msra.mxu0 0.0
        %6583 = vmatprep.subr.mxu0 0.0
        %6584 = vmatpush1.msra.mxu0 0.0
        %6585 = vmatprep.subr.mxu0 0.0
        %6586 = vmatpush1.msra.mxu0 0.0
        %6587 = vmatprep.subr.mxu0 0.0
        %6588 = vmatpush1.msra.mxu0 0.0
        %6589 = vmatprep.subr.mxu0 0.0
        %6590 = vmatpush1.msra.mxu0 0.0
        %6591 = vmatprep.subr.mxu0 0.0
        %6592 = vmatpush1.msra.mxu0 0.0
        %6593 = vmatprep.subr.mxu0 0.0
        %6594 = vmatpush1.msra.mxu0 0.0
        %6595 = vmatprep.subr.mxu0 0.0
        %6596 = vmatpush1.msra.mxu0 0.0
        %6597 = vmatprep.subr.mxu0 0.0
        %6598 = vmatpush1.msra.mxu0 0.0
        %6599 = vmatprep.subr.mxu0 0.0
        %6600 = vmatpush1.msra.mxu0 0.0
        %6601 = vmatprep.subr.mxu0 0.0
        %6602 = vmatpush1.msra.mxu0 0.0
        %6603 = vmatprep.subr.mxu0 0.0
        %6604 = vmatpush1.msra.mxu0 0.0
        %6605 = vmatprep.subr.mxu0 0.0
        %6606 = vmatpush1.msra.mxu0 0.0
        %6607 = vmatprep.subr.mxu0 0.0
        %6608 = vmatpush1.msra.mxu0 0.0
        %6609 = vmatprep.mubr.f32.mxu0 0.0
        %6610 = vmatmul.mubr.f32.gmra.mrb[0].mxu0 %v6540
        %v6611 = vpop.f32.mrb[0].mxu0
        %v6612 = vadd.f32 0.0, %v6611
        %v6613 = vpop.f32.mrb[0].mxu0
        %6614 = vdwg.mxu0
        %v6615 = vadd.f32 %v6536, %v6612
        %s6616 = scalar_lea.vmem [#allocation3], 6
        %v6617 = vld [vmem:[%s6616] ss:$9 sm:$0x3]
        %s6618 = scalar_lea.vmem [#allocation4], 6
        %v6619 = vld [vmem:[%s6618] ss:$9 sm:$0x3]
        %v6620 = vlog2.pop %v6615
        %v6621 = vmul.f32 %v6620, 0.6931472
        %6623 = vset.pattern.permute.xlu0 0
        %6624 = vperm.xlu0 %6623, %v6301
        %v6625 = vpop.permute.xlu0 %6624
        %v6627 = vadd.f32 %v6625, %v6621
        %v6628 = vadd.f32 %v6627, %v6617
        %6630 = vset.pattern.permute.xlu0 0
        %6631 = vperm.xlu0 %6630, %v6619
        %v6632 = vpop.permute.xlu0 %6631
        %v6634 = vadd.f32 %v6628, %v6632
        %6635 = vst.msk [vmem:[#allocation2 + $0x6] sm:$0x1] %vm726, %v6634
        %6636 = vst.msk [vmem:[#allocation2 + $0xe] sm:$0x2] %vm728, %v6634
        %v6637 = vld [vmem:[#allocation2] sm:$0x7f]
        %v6638 = vld [vmem:[#allocation3] sm:$0x7f]
        %v6639 = vadd.f32 %v6637, %v6638
        %s6640 = scalar_lea.vmem [#allocation2], 15
        %v6641 = vld [vmem:[%s6640] ss:$8 sm:$0xf]
        %v6642 = vld [vmem:[%s6640] ss:$8 sm:$0x70]
        %v6643 = vor.u32 %v6641, %v6642
        %s6644 = scalar_lea.vmem [#allocation3], 15
        %v6645 = vld [vmem:[%s6644] ss:$8 sm:$0xf]
        %v6646 = vld [vmem:[%s6644] ss:$8 sm:$0x70]
        %v6647 = vor.u32 %v6645, %v6646
        %v6648 = vadd.f32 %v6643, %v6647
        %vm6649 = vcmask 30720
        %v6650 = vsel %vm6649, %v6639, -inf
        %6651 = vmax.xlane.f32.xlu0 %v6650
        %v6652 = vpop.xlane.xlu0 %6651
        %vm6653 = vcmask 1046528
        %v6654 = vsel %vm6653, %v6652, -inf
        %v6655 = vrot.slane %v6654, 4
        %v6656 = vmax.f32 %v6654, %v6655
        %v6657 = vrot.slane %v6656, 2
        %v6658 = vmax.f32 %v6656, %v6657
        %v6659 = vrot.slane %v6658, 1
        %v6660 = vmax.f32 %v6658, %v6659
        %v6661 = vsel %vm6649, %v6648, -inf
        %6662 = vmax.xlane.f32.xlu0 %v6661
        %v6663 = vpop.xlane.xlu0 %6662
        %v6664 = vsel %vm6653, %v6663, -inf
        %v6665 = vrot.slane %v6664, 4
        %v6666 = vmax.f32 %v6664, %v6665
        %v6667 = vrot.slane %v6666, 2
        %v6668 = vmax.f32 %v6666, %v6667
        %v6669 = vrot.slane %v6668, 1
        %v6670 = vmax.f32 %v6668, %v6669
        %v6671 = vsub.f32 %v6639, %v6660
        %v6672 = vmul.f32 %v6671, 1.442695
        %v6673 = vpow.pop %v6672
        %v6674 = vsub.f32 %v6648, %v6670
        %v6675 = vmul.f32 %v6674, 1.442695
        %v6676 = vpow.pop %v6675
        %6677 = vxpose.xlu0.b32.start [1/16] %v6673, 128
        %6678 = vxpose.xlu0.b32.cont [2/16] 0.0, 128
        %6679 = vxpose.xlu0.b32.cont [3/16] 0.0, 128
        %6680 = vxpose.xlu0.b32.cont [4/16] 0.0, 128
        %6681 = vxpose.xlu0.b32.cont [5/16] 0.0, 128
        %6682 = vxpose.xlu0.b32.cont [6/16] 0.0, 128
        %6683 = vxpose.xlu0.b32.cont [7/16] 0.0, 128
        %6684 = vxpose.xlu0.b32.cont [8/16] 0.0, 128
        %6685 = vxpose.xlu0.b32.cont [9/16] 0.0, 128
        %6686 = vxpose.xlu0.b32.cont [10/16] 0.0, 128
        %6687 = vxpose.xlu0.b32.cont [11/16] 0.0, 128
        %6688 = vxpose.xlu0.b32.cont [12/16] 0.0, 128
        %6689 = vxpose.xlu0.b32.cont [13/16] 0.0, 128
        %6690 = vxpose.xlu0.b32.cont [14/16] 0.0, 128
        %6691 = vxpose.xlu0.b32.cont [15/16] 0.0, 128
        %6692 = vxpose.xlu0.b32.end [16/16] 0.0, 128
        %v6693 = vpop.trf.xlu0
        %v6694 = vpop.trf.xlu0
        %v6695 = vpop.trf.xlu0
        %v6696 = vpop.trf.xlu0
        %v6697 = vpop.trf.xlu0
        %v6698 = vpop.trf.xlu0
        %v6699 = vpop.trf.xlu0
        %v6700 = vpop.trf.xlu0
        %v6701 = vpop.trf.xlu0
        %v6702 = vpop.trf.xlu0
        %v6703 = vpop.trf.xlu0
        %v6704 = vpop.trf.xlu0
        %v6705 = vpop.trf.xlu0
        %v6706 = vpop.trf.xlu0
        %v6707 = vpop.trf.xlu0
        %v6708 = vpop.trf.xlu0
        %vm6709 = vcmask 56320
        %v6711 = vsel %vm6709, %v6693, 0
        %v6714 = vsel %vm6653, %v6676, 0
        %6716 = vmatprep.subr.mxu0 0.0
        %6717 = vmatpush1.msra.mxu0 %v6714
        %6718 = vmatprep.subr.mxu0 0.0
        %6719 = vmatpush1.msra.mxu0 0.0
        %6720 = vmatprep.subr.mxu0 0.0
        %6721 = vmatpush1.msra.mxu0 0.0
        %6722 = vmatprep.subr.mxu0 0.0
        %6723 = vmatpush1.msra.mxu0 0.0
        %6724 = vmatprep.subr.mxu0 0.0
        %6725 = vmatpush1.msra.mxu0 0.0
        %6726 = vmatprep.subr.mxu0 0.0
        %6727 = vmatpush1.msra.mxu0 0.0
        %6728 = vmatprep.subr.mxu0 0.0
        %6729 = vmatpush1.msra.mxu0 0.0
        %6730 = vmatprep.subr.mxu0 0.0
        %6731 = vmatpush1.msra.mxu0 0.0
        %6732 = vmatprep.subr.mxu0 0.0
        %6733 = vmatpush1.msra.mxu0 0.0
        %6734 = vmatprep.subr.mxu0 0.0
        %6735 = vmatpush1.msra.mxu0 0.0
        %6736 = vmatprep.subr.mxu0 0.0
        %6737 = vmatpush1.msra.mxu0 0.0
        %6738 = vmatprep.subr.mxu0 0.0
        %6739 = vmatpush1.msra.mxu0 0.0
        %6740 = vmatprep.subr.mxu0 0.0
        %6741 = vmatpush1.msra.mxu0 0.0
        %6742 = vmatprep.subr.mxu0 0.0
        %6743 = vmatpush1.msra.mxu0 0.0
        %6744 = vmatprep.subr.mxu0 0.0
        %6745 = vmatpush1.msra.mxu0 0.0
        %6746 = vmatprep.subr.mxu0 0.0
        %6747 = vmatpush1.msra.mxu0 0.0
        %6748 = vmatprep.subr.mxu0 0.0
        %6749 = vmatpush1.msra.mxu0 0.0
        %6750 = vmatprep.subr.mxu0 0.0
        %6751 = vmatpush1.msra.mxu0 0.0
        %6752 = vmatprep.subr.mxu0 0.0
        %6753 = vmatpush1.msra.mxu0 0.0
        %6754 = vmatprep.subr.mxu0 0.0
        %6755 = vmatpush1.msra.mxu0 0.0
        %6756 = vmatprep.subr.mxu0 0.0
        %6757 = vmatpush1.msra.mxu0 0.0
        %6758 = vmatprep.subr.mxu0 0.0
        %6759 = vmatpush1.msra.mxu0 0.0
        %6760 = vmatprep.subr.mxu0 0.0
        %6761 = vmatpush1.msra.mxu0 0.0
        %6762 = vmatprep.subr.mxu0 0.0
        %6763 = vmatpush1.msra.mxu0 0.0
        %6764 = vmatprep.subr.mxu0 0.0
        %6765 = vmatpush1.msra.mxu0 0.0
        %6766 = vmatprep.subr.mxu0 0.0
        %6767 = vmatpush1.msra.mxu0 0.0
        %6768 = vmatprep.subr.mxu0 0.0
        %6769 = vmatpush1.msra.mxu0 0.0
        %6770 = vmatprep.subr.mxu0 0.0
        %6771 = vmatpush1.msra.mxu0 0.0
        %6772 = vmatprep.subr.mxu0 0.0
        %6773 = vmatpush1.msra.mxu0 0.0
        %6774 = vmatprep.subr.mxu0 0.0
        %6775 = vmatpush1.msra.mxu0 0.0
        %6776 = vmatprep.subr.mxu0 0.0
        %6777 = vmatpush1.msra.mxu0 0.0
        %6778 = vmatprep.subr.mxu0 0.0
        %6779 = vmatpush1.msra.mxu0 0.0
        %6780 = vmatprep.mubr.f32.mxu0 0.0
        %6781 = vmatmul.mubr.f32.gmra.mrb[0].mxu0 %v6711
        %v6782 = vpop.f32.mrb[0].mxu0
        %v6783 = vadd.f32 0.0, %v6782
        %v6784 = vpop.f32.mrb[0].mxu0
        %6785 = vdwg.mxu0
        %6786 = vst.msk [vmem:[#allocation5] sm:$0xf] %vm871, %v6783
        %v6787 = vadd.f32 %v6660, %v6670
        %v6788 = vld [vmem:[#allocation5] ss:$4 sm:$0x1]
        %v6789 = vld [vmem:[%s8] sm:$0xf]
        %v6790 = vld [vmem:[%s1685] ss:$4 sm:$0x1]
        %v6791 = vld [vmem:[%s1687] sm:$0xf]
        %v6793 = vsel %vm503, %v6790, 0
        %v6796 = vsel %vm1677, %v6791, 0
        %6798 = vmatprep.subr.mxu0 0.0
        %6799 = vmatpush1.msra.mxu0 %v6796
        %6800 = vmatprep.subr.mxu0 0.0
        %6801 = vmatpush1.msra.mxu0 0.0
        %6802 = vmatprep.subr.mxu0 0.0
        %6803 = vmatpush1.msra.mxu0 0.0
        %6804 = vmatprep.subr.mxu0 0.0
        %6805 = vmatpush1.msra.mxu0 0.0
        %6806 = vmatprep.subr.mxu0 0.0
        %6807 = vmatpush1.msra.mxu0 0.0
        %6808 = vmatprep.subr.mxu0 0.0
        %6809 = vmatpush1.msra.mxu0 0.0
        %6810 = vmatprep.subr.mxu0 0.0
        %6811 = vmatpush1.msra.mxu0 0.0
        %6812 = vmatprep.subr.mxu0 0.0
        %6813 = vmatpush1.msra.mxu0 0.0
        %6814 = vmatprep.subr.mxu0 0.0
        %6815 = vmatpush1.msra.mxu0 0.0
        %6816 = vmatprep.subr.mxu0 0.0
        %6817 = vmatpush1.msra.mxu0 0.0
        %6818 = vmatprep.subr.mxu0 0.0
        %6819 = vmatpush1.msra.mxu0 0.0
        %6820 = vmatprep.subr.mxu0 0.0
        %6821 = vmatpush1.msra.mxu0 0.0
        %6822 = vmatprep.subr.mxu0 0.0
        %6823 = vmatpush1.msra.mxu0 0.0
        %6824 = vmatprep.subr.mxu0 0.0
        %6825 = vmatpush1.msra.mxu0 0.0
        %6826 = vmatprep.subr.mxu0 0.0
        %6827 = vmatpush1.msra.mxu0 0.0
        %6828 = vmatprep.subr.mxu0 0.0
        %6829 = vmatpush1.msra.mxu0 0.0
        %6830 = vmatprep.subr.mxu0 0.0
        %6831 = vmatpush1.msra.mxu0 0.0
        %6832 = vmatprep.subr.mxu0 0.0
        %6833 = vmatpush1.msra.mxu0 0.0
        %6834 = vmatprep.subr.mxu0 0.0
        %6835 = vmatpush1.msra.mxu0 0.0
        %6836 = vmatprep.subr.mxu0 0.0
        %6837 = vmatpush1.msra.mxu0 0.0
        %6838 = vmatprep.subr.mxu0 0.0
        %6839 = vmatpush1.msra.mxu0 0.0
        %6840 = vmatprep.subr.mxu0 0.0
        %6841 = vmatpush1.msra.mxu0 0.0
        %6842 = vmatprep.subr.mxu0 0.0
        %6843 = vmatpush1.msra.mxu0 0.0
        %6844 = vmatprep.subr.mxu0 0.0
        %6845 = vmatpush1.msra.mxu0 0.0
        %6846 = vmatprep.subr.mxu0 0.0
        %6847 = vmatpush1.msra.mxu0 0.0
        %6848 = vmatprep.subr.mxu0 0.0
        %6849 = vmatpush1.msra.mxu0 0.0
        %6850 = vmatprep.subr.mxu0 0.0
        %6851 = vmatpush1.msra.mxu0 0.0
        %6852 = vmatprep.subr.mxu0 0.0
        %6853 = vmatpush1.msra.mxu0 0.0
        %6854 = vmatprep.subr.mxu0 0.0
        %6855 = vmatpush1.msra.mxu0 0.0
        %6856 = vmatprep.subr.mxu0 0.0
        %6857 = vmatpush1.msra.mxu0 0.0
        %6858 = vmatprep.subr.mxu0 0.0
        %6859 = vmatpush1.msra.mxu0 0.0
        %6860 = vmatprep.subr.mxu0 0.0
        %6861 = vmatpush1.msra.mxu0 0.0
        %6862 = vmatprep.mubr.f32.mxu0 0.0
        %6863 = vmatmul.mubr.f32.gmra.mrb[0].mxu0 %v6793
        %v6864 = vpop.f32.mrb[0].mxu0
        %v6865 = vadd.f32 0.0, %v6864
        %v6866 = vpop.f32.mrb[0].mxu0
        %6867 = vdwg.mxu0
        %v6869 = vsel %vm503, %v6788, 0
        %v6872 = vsel %vm1677, %v6789, 0
        %6874 = vmatprep.subr.mxu0 0.0
        %6875 = vmatpush1.msra.mxu0 %v6872
        %6876 = vmatprep.subr.mxu0 0.0
        %6877 = vmatpush1.msra.mxu0 0.0
        %6878 = vmatprep.subr.mxu0 0.0
        %6879 = vmatpush1.msra.mxu0 0.0
        %6880 = vmatprep.subr.mxu0 0.0
        %6881 = vmatpush1.msra.mxu0 0.0
        %6882 = vmatprep.subr.mxu0 0.0
        %6883 = vmatpush1.msra.mxu0 0.0
        %6884 = vmatprep.subr.mxu0 0.0
        %6885 = vmatpush1.msra.mxu0 0.0
        %6886 = vmatprep.subr.mxu0 0.0
        %6887 = vmatpush1.msra.mxu0 0.0
        %6888 = vmatprep.subr.mxu0 0.0
        %6889 = vmatpush1.msra.mxu0 0.0
        %6890 = vmatprep.subr.mxu0 0.0
        %6891 = vmatpush1.msra.mxu0 0.0
        %6892 = vmatprep.subr.mxu0 0.0
        %6893 = vmatpush1.msra.mxu0 0.0
        %6894 = vmatprep.subr.mxu0 0.0
        %6895 = vmatpush1.msra.mxu0 0.0
        %6896 = vmatprep.subr.mxu0 0.0
        %6897 = vmatpush1.msra.mxu0 0.0
        %6898 = vmatprep.subr.mxu0 0.0
        %6899 = vmatpush1.msra.mxu0 0.0
        %6900 = vmatprep.subr.mxu0 0.0
        %6901 = vmatpush1.msra.mxu0 0.0
        %6902 = vmatprep.subr.mxu0 0.0
        %6903 = vmatpush1.msra.mxu0 0.0
        %6904 = vmatprep.subr.mxu0 0.0
        %6905 = vmatpush1.msra.mxu0 0.0
        %6906 = vmatprep.subr.mxu0 0.0
        %6907 = vmatpush1.msra.mxu0 0.0
        %6908 = vmatprep.subr.mxu0 0.0
        %6909 = vmatpush1.msra.mxu0 0.0
        %6910 = vmatprep.subr.mxu0 0.0
        %6911 = vmatpush1.msra.mxu0 0.0
        %6912 = vmatprep.subr.mxu0 0.0
        %6913 = vmatpush1.msra.mxu0 0.0
        %6914 = vmatprep.subr.mxu0 0.0
        %6915 = vmatpush1.msra.mxu0 0.0
        %6916 = vmatprep.subr.mxu0 0.0
        %6917 = vmatpush1.msra.mxu0 0.0
        %6918 = vmatprep.subr.mxu0 0.0
        %6919 = vmatpush1.msra.mxu0 0.0
        %6920 = vmatprep.subr.mxu0 0.0
        %6921 = vmatpush1.msra.mxu0 0.0
        %6922 = vmatprep.subr.mxu0 0.0
        %6923 = vmatpush1.msra.mxu0 0.0
        %6924 = vmatprep.subr.mxu0 0.0
        %6925 = vmatpush1.msra.mxu0 0.0
        %6926 = vmatprep.subr.mxu0 0.0
        %6927 = vmatpush1.msra.mxu0 0.0
        %6928 = vmatprep.subr.mxu0 0.0
        %6929 = vmatpush1.msra.mxu0 0.0
        %6930 = vmatprep.subr.mxu0 0.0
        %6931 = vmatpush1.msra.mxu0 0.0
        %6932 = vmatprep.subr.mxu0 0.0
        %6933 = vmatpush1.msra.mxu0 0.0
        %6934 = vmatprep.subr.mxu0 0.0
        %6935 = vmatpush1.msra.mxu0 0.0
        %6936 = vmatprep.subr.mxu0 0.0
        %6937 = vmatpush1.msra.mxu0 0.0
        %6938 = vmatprep.mubr.f32.mxu0 0.0
        %6939 = vmatmul.mubr.f32.gmra.mrb[0].mxu0 %v6869
        %v6940 = vpop.f32.mrb[0].mxu0
        %v6941 = vadd.f32 %v6865, %v6940
        %v6942 = vpop.f32.mrb[0].mxu0
        %6943 = vdwg.mxu0
        %v6944 = vld [vmem:[%s1841] ss:$4 sm:$0x1]
        %v6945 = vld [vmem:[%s1843] sm:$0xf]
        %v6947 = vsel %vm503, %v6944, 0
        %v6950 = vsel %vm1677, %v6945, 0
        %6952 = vmatprep.subr.mxu0 0.0
        %6953 = vmatpush1.msra.mxu0 %v6950
        %6954 = vmatprep.subr.mxu0 0.0
        %6955 = vmatpush1.msra.mxu0 0.0
        %6956 = vmatprep.subr.mxu0 0.0
        %6957 = vmatpush1.msra.mxu0 0.0
        %6958 = vmatprep.subr.mxu0 0.0
        %6959 = vmatpush1.msra.mxu0 0.0
        %6960 = vmatprep.subr.mxu0 0.0
        %6961 = vmatpush1.msra.mxu0 0.0
        %6962 = vmatprep.subr.mxu0 0.0
        %6963 = vmatpush1.msra.mxu0 0.0
        %6964 = vmatprep.subr.mxu0 0.0
        %6965 = vmatpush1.msra.mxu0 0.0
        %6966 = vmatprep.subr.mxu0 0.0
        %6967 = vmatpush1.msra.mxu0 0.0
        %6968 = vmatprep.subr.mxu0 0.0
        %6969 = vmatpush1.msra.mxu0 0.0
        %6970 = vmatprep.subr.mxu0 0.0
        %6971 = vmatpush1.msra.mxu0 0.0
        %6972 = vmatprep.subr.mxu0 0.0
        %6973 = vmatpush1.msra.mxu0 0.0
        %6974 = vmatprep.subr.mxu0 0.0
        %6975 = vmatpush1.msra.mxu0 0.0
        %6976 = vmatprep.subr.mxu0 0.0
        %6977 = vmatpush1.msra.mxu0 0.0
        %6978 = vmatprep.subr.mxu0 0.0
        %6979 = vmatpush1.msra.mxu0 0.0
        %6980 = vmatprep.subr.mxu0 0.0
        %6981 = vmatpush1.msra.mxu0 0.0
        %6982 = vmatprep.subr.mxu0 0.0
        %6983 = vmatpush1.msra.mxu0 0.0
        %6984 = vmatprep.subr.mxu0 0.0
        %6985 = vmatpush1.msra.mxu0 0.0
        %6986 = vmatprep.subr.mxu0 0.0
        %6987 = vmatpush1.msra.mxu0 0.0
        %6988 = vmatprep.subr.mxu0 0.0
        %6989 = vmatpush1.msra.mxu0 0.0
        %6990 = vmatprep.subr.mxu0 0.0
        %6991 = vmatpush1.msra.mxu0 0.0
        %6992 = vmatprep.subr.mxu0 0.0
        %6993 = vmatpush1.msra.mxu0 0.0
        %6994 = vmatprep.subr.mxu0 0.0
        %6995 = vmatpush1.msra.mxu0 0.0
        %6996 = vmatprep.subr.mxu0 0.0
        %6997 = vmatpush1.msra.mxu0 0.0
        %6998 = vmatprep.subr.mxu0 0.0
        %6999 = vmatpush1.msra.mxu0 0.0
        %7000 = vmatprep.subr.mxu0 0.0
        %7001 = vmatpush1.msra.mxu0 0.0
        %7002 = vmatprep.subr.mxu0 0.0
        %7003 = vmatpush1.msra.mxu0 0.0
        %7004 = vmatprep.subr.mxu0 0.0
        %7005 = vmatpush1.msra.mxu0 0.0
        %7006 = vmatprep.subr.mxu0 0.0
        %7007 = vmatpush1.msra.mxu0 0.0
        %7008 = vmatprep.subr.mxu0 0.0
        %7009 = vmatpush1.msra.mxu0 0.0
        %7010 = vmatprep.subr.mxu0 0.0
        %7011 = vmatpush1.msra.mxu0 0.0
        %7012 = vmatprep.subr.mxu0 0.0
        %7013 = vmatpush1.msra.mxu0 0.0
        %7014 = vmatprep.subr.mxu0 0.0
        %7015 = vmatpush1.msra.mxu0 0.0
        %7016 = vmatprep.mubr.f32.mxu0 0.0
        %7017 = vmatmul.mubr.f32.gmra.mrb[0].mxu0 %v6947
        %v7018 = vpop.f32.mrb[0].mxu0
        %v7019 = vadd.f32 0.0, %v7018
        %v7020 = vpop.f32.mrb[0].mxu0
        %7021 = vdwg.mxu0
        %v7022 = vadd.f32 %v6941, %v7019
        %v7023 = vld [vmem:[%s1922] ss:$4 sm:$0x1]
        %v7024 = vld [vmem:[%s1924] sm:$0xf]
        %v7026 = vsel %vm503, %v7023, 0
        %v7029 = vsel %vm1677, %v7024, 0
        %7031 = vmatprep.subr.mxu0 0.0
        %7032 = vmatpush1.msra.mxu0 %v7029
        %7033 = vmatprep.subr.mxu0 0.0
        %7034 = vmatpush1.msra.mxu0 0.0
        %7035 = vmatprep.subr.mxu0 0.0
        %7036 = vmatpush1.msra.mxu0 0.0
        %7037 = vmatprep.subr.mxu0 0.0
        %7038 = vmatpush1.msra.mxu0 0.0
        %7039 = vmatprep.subr.mxu0 0.0
        %7040 = vmatpush1.msra.mxu0 0.0
        %7041 = vmatprep.subr.mxu0 0.0
        %7042 = vmatpush1.msra.mxu0 0.0
        %7043 = vmatprep.subr.mxu0 0.0
        %7044 = vmatpush1.msra.mxu0 0.0
        %7045 = vmatprep.subr.mxu0 0.0
        %7046 = vmatpush1.msra.mxu0 0.0
        %7047 = vmatprep.subr.mxu0 0.0
        %7048 = vmatpush1.msra.mxu0 0.0
        %7049 = vmatprep.subr.mxu0 0.0
        %7050 = vmatpush1.msra.mxu0 0.0
        %7051 = vmatprep.subr.mxu0 0.0
        %7052 = vmatpush1.msra.mxu0 0.0
        %7053 = vmatprep.subr.mxu0 0.0
        %7054 = vmatpush1.msra.mxu0 0.0
        %7055 = vmatprep.subr.mxu0 0.0
        %7056 = vmatpush1.msra.mxu0 0.0
        %7057 = vmatprep.subr.mxu0 0.0
        %7058 = vmatpush1.msra.mxu0 0.0
        %7059 = vmatprep.subr.mxu0 0.0
        %7060 = vmatpush1.msra.mxu0 0.0
        %7061 = vmatprep.subr.mxu0 0.0
        %7062 = vmatpush1.msra.mxu0 0.0
        %7063 = vmatprep.subr.mxu0 0.0
        %7064 = vmatpush1.msra.mxu0 0.0
        %7065 = vmatprep.subr.mxu0 0.0
        %7066 = vmatpush1.msra.mxu0 0.0
        %7067 = vmatprep.subr.mxu0 0.0
        %7068 = vmatpush1.msra.mxu0 0.0
        %7069 = vmatprep.subr.mxu0 0.0
        %7070 = vmatpush1.msra.mxu0 0.0
        %7071 = vmatprep.subr.mxu0 0.0
        %7072 = vmatpush1.msra.mxu0 0.0
        %7073 = vmatprep.subr.mxu0 0.0
        %7074 = vmatpush1.msra.mxu0 0.0
        %7075 = vmatprep.subr.mxu0 0.0
        %7076 = vmatpush1.msra.mxu0 0.0
        %7077 = vmatprep.subr.mxu0 0.0
        %7078 = vmatpush1.msra.mxu0 0.0
        %7079 = vmatprep.subr.mxu0 0.0
        %7080 = vmatpush1.msra.mxu0 0.0
        %7081 = vmatprep.subr.mxu0 0.0
        %7082 = vmatpush1.msra.mxu0 0.0
        %7083 = vmatprep.subr.mxu0 0.0
        %7084 = vmatpush1.msra.mxu0 0.0
        %7085 = vmatprep.subr.mxu0 0.0
        %7086 = vmatpush1.msra.mxu0 0.0
        %7087 = vmatprep.subr.mxu0 0.0
        %7088 = vmatpush1.msra.mxu0 0.0
        %7089 = vmatprep.subr.mxu0 0.0
        %7090 = vmatpush1.msra.mxu0 0.0
        %7091 = vmatprep.subr.mxu0 0.0
        %7092 = vmatpush1.msra.mxu0 0.0
        %7093 = vmatprep.subr.mxu0 0.0
        %7094 = vmatpush1.msra.mxu0 0.0
        %7095 = vmatprep.mubr.f32.mxu0 0.0
        %7096 = vmatmul.mubr.f32.gmra.mrb[0].mxu0 %v7026
        %v7097 = vpop.f32.mrb[0].mxu0
        %v7098 = vadd.f32 0.0, %v7097
        %v7099 = vpop.f32.mrb[0].mxu0
        %7100 = vdwg.mxu0
        %v7101 = vadd.f32 %v7022, %v7098
        %s7102 = scalar_lea.vmem [#allocation3], 7
        %v7103 = vld [vmem:[%s7102] ss:$9 sm:$0x1]
        %s7104 = scalar_lea.vmem [#allocation4], 7
        %v7105 = vld [vmem:[%s7104] ss:$9 sm:$0x1]
        %v7106 = vlog2.pop %v7101
        %v7107 = vmul.f32 %v7106, 0.6931472
        %v7108 = vadd.f32 %v6787, %v7107
        %v7109 = vadd.f32 %v7108, %v7103
        %7111 = vset.pattern.permute.xlu0 0
        %7112 = vperm.xlu0 %7111, %v7105
        %v7113 = vpop.permute.xlu0 %7112
        %v7115 = vadd.f32 %v7109, %v7113
        %7116 = vst.msk [vmem:[#allocation2 + $0x7] sm:$0x1] %vm726, %v7115
        %s7117 = sld [smem:[#allocation7 + %s30]]
        %s7118 = ssub.s32 %s7117, 1
        %s7119 = scalar_lea.vmem [#allocation2], %s7118
        %v7120 = vld [vmem:[%s7119] sm:$0x1]
        %v7121 = vld [vmem:[%s9] sm:$0x1]
        %v7122 = vadd.f32 %v7120, %v7121
        %7123 = vst.msk [vmem:[%s344] sm:$0x1] %vm726, %v7122
        %s7124 = sand.u32 %s237, 1
        %s7125 = scalar_lea.sflag [#allocation9], %s7124
        %s7126 = sand.u32 %s237, 1
        %s7127 = scalar_lea.vmem [#allocation8], %s7126
        // Predicated region
        $region57: #{tpu_custom_call.1} parent=55 // pred_check
          %p7128 = pneg %p247
        $region58: #{tpu_custom_call.1} parent=55 // pred_check_branch
          %7130 = sbr.rel (%p7128) target = $region60
        $region59: #{tpu_custom_call.1} parent=55 // pred_region
          %s7132 = ssub.s32 16, 16
          %7133 = vsyncadd %s7125, %s7132
          %s7134 = smul.addr %s30, 16
          %s7135 = scalar_lea.hbm %s10, %s7134
          %s7137 = sshll.u32 %s7127, 4
          %s7138 = int_to_ptr.vmem [resolvable:$true] %s7137
          %7140 = dma.vmem_to_hbm [thread:$0]  %s7138, 16, %s7135, %s7125
        $region60: #{tpu_custom_call.1} parent=55 // pred_fallthru
          _
      $region56: #{tpu_custom_call.1} parent=5 // pred_fallthru
        _
      %p7141 = scmp.le.s32.totalorder 2, %s25
      // Predicated region
      $region61: #{tpu_custom_call.1} parent=5 // pred_check
        %p7142 = pneg %p7141
      $region62: #{tpu_custom_call.1} parent=5 // pred_check_branch
        %7144 = sbr.rel (%p7142) target = $region64
      $region63: #{tpu_custom_call.1} parent=5 // pred_region
        %s7145 = ssub.s32 %s25, 2
        // Predicated region
        $region65: #{tpu_custom_call.1} parent=63 // pred_check
          %p7146 = pneg %p253
        $region66: #{tpu_custom_call.1} parent=63 // pred_check_branch
          %7148 = sbr.rel (%p7146) target = $region68
        $region67: #{tpu_custom_call.1} parent=63 // pred_region
          %s7149 = sand.u32 %s238, 1
          %s7150 = scalar_lea.sflag [#allocation9], %s7149
          %s7151 = sand.u32 %s238, 1
          %s7152 = scalar_lea.vmem [#allocation8], %s7151
          %7153 = dma.done %s7150, 16
        $region68: #{tpu_custom_call.1} parent=63 // pred_fallthru
          _
      $region64: #{tpu_custom_call.1} parent=5 // pred_fallthru
        _
    $region6: #{tpu_custom_call.1} parent=1 // loop_footer
      %s29 = sadd.s32 1, %s25
    $region7: #{tpu_custom_call.1} parent=1 // loop_footer_branch
      %24 = sbr.rel target = $region3
    $region8: #{tpu_custom_call.1} parent=1 // loop_exit
      _
    %7154 = vsyncpa [#allocation9], 1
    %s7155 = scalar_lea.sflag [#allocation9], 1
    %7156 = vsyncpa %s7155, 1

</llo_original>
